<compile_context>
chip_gen: v7x
topology: tpu7x:2x2x1
jax: 0.10.0
libtpu: 0.0.40
codegen_flags: <defaults>
</compile_context>

<pallas_src>
import functools
import math

import jax
import jax.numpy as jnp
from jax.experimental import pallas as pl
from jax.experimental.pallas import tpu as pltpu

LANE = 128


def _round_up(x, m):
    return ((x + m - 1) // m) * m


# ----------------------------------------------------------------------------
# Pallas kernel: full transformer-encoder stack + final norm + output linear.
# ----------------------------------------------------------------------------
def transformer_encoder_kernel(
    bias_ref,   # (TB, L, L)        causal + key-padding attention bias (f32)
    src_ref,    # (TB, L, dm)       concat(event_emb, temporal_enc) (f32)
    ipw_ref,    # (NL, dm, 3*H*hdp) fused in-proj, head-lane-padded, Q scaled
    ipb_ref,    # (NL, 1, 3*H*hdp)
    opw_ref,    # (NL, H*hdp, dm)   attn out-proj, rows head-lane-padded
    opb_ref,    # (NL, 1, dm)
    ln1w_ref,   # (NL, 1, dm)
    ln1b_ref,   # (NL, 1, dm)
    l1w_ref,    # (NL, dm, ff)
    l1b_ref,    # (NL, 1, ff)
    l2w_ref,    # (NL, ff, dm)
    l2b_ref,    # (NL, 1, dm)
    ln2w_ref,   # (NL, 1, dm)
    ln2b_ref,   # (NL, 1, dm)
    fnw_ref,    # (1, dm)           final encoder LayerNorm weight
    fnb_ref,    # (1, dm)
    ow_ref,     # (dm, Dp)          output_layer weight, zero-padded to Dp lanes
    ob_ref,     # (1, Dp)
    out_ref,    # (TB, L, Dp)
    *,
    num_heads,
    num_layers,
    head_dim_padded,
):
    TB, L, dm = src_ref.shape
    H = num_heads
    hdp = head_dim_padded
    M = TB * L
    Dp = out_ref.shape[-1]
    f32 = jnp.float32
    mm_dtype = ipw_ref.dtype  # matmul operand dtype (bf16 fast path or f32)

    # Combined causal + key-padding bias (precomputed in the wrapper),
    # replicated head-major ONCE per grid step and reused by every layer so
    # the whole attention batch (H*TB sequences) shares one softmax per layer.
    # NOTE: a fully-masked query row (leading/all-padding sequence) yields a
    # uniform distribution over masked keys instead of PyTorch's NaN; this is
    # harmless for trailing padding.
    bias_all = jnp.concatenate([bias_ref[...]] * H, axis=0)     # (H*TB, L, L)

    # Fold batch into the matmul row dimension.
    x = src_ref[...].reshape(M, dm)                             # f32

    def layer_norm(v, w, b):
        mu = jnp.mean(v, axis=-1, keepdims=True)
        c = v - mu
        var = jnp.mean(c * c, axis=-1, keepdims=True)
        return c * jax.lax.rsqrt(var + f32(1e-5)) * w + b

    def mm(a, w):
        # bf16 (or f32) MXU operands, f32 accumulation.
        return jnp.dot(a.astype(mm_dtype), w, preferred_element_type=f32)

    # TODO(synk): for num_layers >> 4, convert this static unroll to
    # lax.fori_loop with dynamic first-axis ref indexing (ipw_ref[l], ...) to
    # bound vreg live ranges; at 3 layers the unroll is cheaper.
    for l in range(num_layers):
        # ---- multi-head self-attention (post-norm layer, eval mode) ----
        qkv = mm(x, ipw_ref[l]) + ipb_ref[l]                    # (M, 3*H*hdp) f32
        # single cast per layer (was 3*H tiny per-slice casts before)
        qkv = qkv.astype(mm_dtype).reshape(TB, L, 3 * H * hdp)

        # Head split: every per-head block starts on a 128-lane boundary
        # (hd zero-padded to hdp at prepare time) so the slices are
        # whole-vreg moves; heads are stacked into the LEADING batch dim so
        # the score / softmax / PV path is ONE batched op per layer.
        def gather_heads(group):                                # 0=Q,1=K,2=V
            base = group * H * hdp
            return jnp.concatenate(
                [qkv[:, :, base + h * hdp: base + (h + 1) * hdp]
                 for h in range(H)], axis=0)                    # (H*TB, L, hdp)

        q = gather_heads(0)     # scale already folded into the Q weights
        k = gather_heads(1)
        v = gather_heads(2)

        s = jnp.einsum("bqd,bkd->bqk", q, k,
                       preferred_element_type=f32) + bias_all   # (H*TB, L, L)
        mx = jnp.max(s, axis=-1, keepdims=True)
        p = jnp.exp(s - mx)
        denom = jnp.sum(p, axis=-1, keepdims=True)              # (H*TB, L, 1)
        o = jnp.einsum("bqk,bkd->bqd", p.astype(mm_dtype), v,
                       preferred_element_type=f32)              # (H*TB, L, hdp)
        # normalize AFTER PV: per-row scalar on the head output; the approx
        # reciprocal runs on the EUP slot.
        o = o * pl.reciprocal(denom, approx=True)

        # merge heads (lane-aligned 128-wide blocks) -> ONE output projection
        attn = jnp.concatenate([o[h * TB:(h + 1) * TB] for h in range(H)],
                               axis=-1).reshape(M, H * hdp)
        attn = mm(attn, opw_ref[l]) + opb_ref[l]
        x = layer_norm(x + attn, ln1w_ref[l], ln1b_ref[l])

        # ---- feed-forward ----
        hmid = jnp.maximum(mm(x, l1w_ref[l]) + l1b_ref[l], f32(0.0))   # ReLU
        ffo = mm(hmid, l2w_ref[l]) + l2b_ref[l]
        x = layer_norm(x + ffo, ln2w_ref[l], ln2b_ref[l])

    # final encoder norm + output Linear(2D -> Dp) (lane-dense, Dp % 128 == 0)
    x = layer_norm(x, fnw_ref[...], fnb_ref[...])
    out = mm(x, ow_ref[...]) + ob_ref[...]                      # (M, Dp)
    out_ref[...] = out.reshape(TB, L, Dp).astype(out_ref.dtype)


# ----------------------------------------------------------------------------
# One-time weight preparation for the kernel.
# ----------------------------------------------------------------------------
def prepare_kernel_params(params, *, num_heads, matmul_dtype=jnp.bfloat16,
                          lane=LANE):
    """One-time weight transform (do this once, not per call):
      * re-pack the fused in-proj so each head's Q/K/V block starts on a
        128-lane boundary (head dim zero-padded up to hdp) -> in-kernel head
        slices are whole-vreg moves and the attention runs head-batched,
      * re-pack the attention out-proj rows to the same head-padded layout,
      * fold 1/sqrt(head_dim) into the Q columns of the in-proj weight/bias,
      * zero-pad the final output Linear to a lane-dense (multiple-of-128)
        feature dim so kernel stores are unmasked,
      * cast the big matmul weights to `matmul_dtype` (bf16 -> native MXU
        rate, half the weight DMA bytes); biases / LayerNorm params stay f32.
    # TODO(synk): on v7x only, the large projection weights could be cast to
    #             fp8 (native MXU) to halve weight DMA at production d_model.
    """
    NL, dm, three_dm = params["ipw"].shape
    assert three_dm == 3 * dm and dm % num_heads == 0
    H = num_heads
    hd = dm // H
    hdp = _round_up(hd, lane)
    scale = 1.0 / math.sqrt(hd)

    ipw = params["ipw"].astype(jnp.float32)     # (NL, dm, 3dm) cols = [Q|K|V]
    ipb = params["ipb"].astype(jnp.float32)     # (NL, 1, 3dm)
    ipw_p = jnp.zeros((NL, dm, 3 * H * hdp), jnp.float32)
    ipb_p = jnp.zeros((NL, 1, 3 * H * hdp), jnp.float32)
    for g in range(3):                          # 0=Q (scaled), 1=K, 2=V
        gs = scale if g == 0 else 1.0
        for h in range(H):
            sc = g * dm + h * hd
            dc = (g * H + h) * hdp
            ipw_p = ipw_p.at[:, :, dc:dc + hd].set(ipw[:, :, sc:sc + hd] * gs)
            ipb_p = ipb_p.at[:, :, dc:dc + hd].set(ipb[:, :, sc:sc + hd] * gs)

    opw = params["opw"].astype(jnp.float32)     # (NL, dm, dm) rows head-major
    opw_p = jnp.zeros((NL, H * hdp, dm), jnp.float32)
    for h in range(H):
        opw_p = opw_p.at[:, h * hdp:h * hdp + hd, :].set(
            opw[:, h * hd:(h + 1) * hd, :])

    D = params["ow"].shape[-1]
    Dp = _round_up(D, lane)
    ow = jnp.zeros((dm, Dp), jnp.float32).at[:, :D].set(params["ow"])
    ob = jnp.zeros((1, Dp), jnp.float32).at[:, :D].set(params["ob"])

    wd = matmul_dtype
    return dict(
        emb=params["emb"], pos_vec=params["pos_vec"],
        ipw=ipw_p.astype(wd), ipb=ipb_p,
        opw=opw_p.astype(wd), opb=params["opb"],
        ln1w=params["ln1w"], ln1b=params["ln1b"],
        l1w=params["l1w"].astype(wd), l1b=params["l1b"],
        l2w=params["l2w"].astype(wd), l2b=params["l2b"],
        ln2w=params["ln2w"], ln2b=params["ln2b"],
        fnw=params["fnw"], fnb=params["fnb"],
        ow=ow.astype(wd), ob=ob,
    )


# ----------------------------------------------------------------------------
# Wrapper (glue in plain JAX: temporal encoding, embedding gather, concat).
# ----------------------------------------------------------------------------
def _tpu_kind():
    try:
        return (jax.devices()[0].device_kind or "").lower()
    except Exception:
        return ""


def history_encoder_forward(hist_x, hist_e, hist_ts, non_pad_mask, kparams,
                            *, num_heads, num_layers, batch_block=None,
                            single_buffer_weights=True):
    pos = kparams["pos_vec"]                    # (1, D)
    D = pos.shape[-1]
    dm = 2 * D
    Dp = kparams["ow"].shape[-1]                # lane-padded output width
    hdp = kparams["ipw"].shape[-1] // (3 * num_heads)   # padded head dim
    B, L = hist_x.shape
    assert L % 8 == 0, "L must be a multiple of 8 (sublane-safe reshapes)"

    # --- glue in plain JAX: temporal encoding, embedding gather, concat ---
    keep = (1.0 - non_pad_mask.astype(jnp.float32))[..., None]       # (B, L, 1)
    idx = jnp.arange(D)

    # TODO(synk): sin/cos have no reliable Mosaic lowering; the temporal
    #             encoding stays in plain JAX (glue), not in-kernel.
    def temporal_enc(dt):
        r = dt[..., None] / pos[None]                                # (B, L, D)
        return jnp.where(idx % 2 == 0, jnp.sin(r), jnp.cos(r)) * keep

    dt_enc = temporal_enc(hist_x) + temporal_enc(hist_ts)
    emb = kparams["emb"][hist_e]                                     # (B, L, D)
    src = jnp.concatenate([emb, dt_enc], axis=-1).astype(jnp.float32)  # (B,L,dm)

    # Combined attention bias precomputed in the wrapper: causal (src_mask) +
    # key-padding (src_key_padding_mask, True == padding).  -1e30 instead of
    # -inf: exp underflows to exactly 0 either way, and the bias never gets
    # cast to bf16.
    li = jnp.arange(L)
    causal = jnp.where(li[None, :] <= li[:, None], 0.0, -1e30)
    key_bias = jnp.where(non_pad_mask[:, None, :], -1e30, 0.0)
    bias = (causal[None] + key_bias).astype(jnp.float32)             # (B, L, L)

    # --- generation-aware tiling / VMEM budget ---
    kind = _tpu_kind()
    is_v7 = "7" in kind      # v7x: 2 TensorCores/chip, 64 MiB VMEM per TC
    vmem_limit = (48 if is_v7 else 64) * 1024 * 1024

    if batch_block is None:
        # v5e/v6e (single TC): just maximize TB (M = TB*L rows per step);
        # extra grid steps only add per-step overhead.  v7x: keep >=2
        # "parallel" grid steps so both TensorCores get work.
        rows_target = 512
        tb = max(1, min(B, rows_target // max(L, 1)))
        while B % tb:
            tb -= 1
        if is_v7 and B >= 2 and B // tb < 2:
            tb = max(1, B // 2)
            while B % tb:
                tb -= 1
        batch_block = tb
    TB = batch_block
    assert B % TB == 0, (B, TB)
    grid = (B // TB,)

    # Lane-padded output emitted in bf16 on the bf16 matmul path (halves the
    # writeback bytes that are mostly padding); the wrapper slices to D and
    # casts back to f32.
    out_dtype = (jnp.float32 if kparams["ow"].dtype == jnp.float32
                 else jnp.bfloat16)

    weight_names = ("ipw", "ipb", "opw", "opb", "ln1w", "ln1b",
                    "l1w", "l1b", "l2w", "l2b", "ln2w", "ln2b",
                    "fnw", "fnb", "ow", "ob")
    weights = [kparams[n] for n in weight_names]

    def const_spec(a, single_buffer):
        nd = a.ndim
        idx_map = lambda b, _n=nd: (0,) * _n
        if single_buffer:
            # constant block index -> single-buffer halves its VMEM footprint
            return pl.BlockSpec(a.shape, idx_map, pipeline_mode=pl.Buffered(1))
        return pl.BlockSpec(a.shape, idx_map)

    def build(single_buffer):
        in_specs = ([pl.BlockSpec((TB, L, L), lambda b: (b, 0, 0)),    # bias
                     pl.BlockSpec((TB, L, dm), lambda b: (b, 0, 0))]   # src
                    + [const_spec(w, single_buffer) for w in weights])
        out_specs = pl.BlockSpec((TB, L, Dp), lambda b: (b, 0, 0))
        kernel = functools.partial(transformer_encoder_kernel,
                                   num_heads=num_heads,
                                   num_layers=num_layers,
                                   head_dim_padded=hdp)
        # TODO(synk): at production sizes on v7x, make the layer index a
        # trailing "arbitrary" grid axis and index the per-layer weight
        # BlockSpecs by it (stream weights, carry x in VMEM scratch) instead
        # of keeping the whole stack resident.
        return pl.pallas_call(
            kernel,
            out_shape=jax.ShapeDtypeStruct((B, L, Dp), out_dtype),
            grid_spec=pltpu.PrefetchScalarGridSpec(
                num_scalar_prefetch=0,
                grid=grid,
                in_specs=in_specs,
                out_specs=out_specs,
            ),
            compiler_params=pltpu.CompilerParams(
                dimension_semantics=("parallel",),
                vmem_limit_bytes=vmem_limit,
            ),
        )

    use_sb = bool(single_buffer_weights) and hasattr(pl, "Buffered")
    fallback_errors = tuple(
        e for e in (getattr(pltpu, "LoweringException", None),
                    TypeError, ValueError, NotImplementedError)
        if e is not None)
    if use_sb:
        try:
            out = build(True)(bias, src, *weights)
        except fallback_errors:
            # Narrow lowering-compat retry (no bare `except Exception`): a
            # genuine kernel error re-raises identically from the unbuffered
            # build below.
            out = build(False)(bias, src, *weights)
    else:
        out = build(False)(bias, src, *weights)

    return out[..., :D].astype(jnp.float32)   # drop the lane padding


# ----------------------------------------------------------------------------
# Deterministic parameter initialization (synthetic; shapes from __init__).
# ----------------------------------------------------------------------------
def init_params(key, D, ff, num_layers, num_classes):
    dm = 2 * D

    def dense(k, fan_in, shape):
        return jax.random.normal(k, shape, jnp.float32) / jnp.sqrt(
            jnp.float32(fan_in))

    keys = jax.random.split(key, 2 + num_layers)

    emb = jax.random.normal(keys[0], (num_classes + 1, D), jnp.float32) * 0.1
    emb = emb.at[num_classes].set(0.0)  # nn.Embedding padding_idx row is zero
    pos_vec = jnp.array(
        [math.pow(10000.0, 2.0 * (i // 2) / D) for i in range(D)],
        jnp.float32).reshape(1, D)

    ipw, ipb, opw, opb = [], [], [], []
    l1w, l1b, l2w, l2b = [], [], [], []
    ln1w, ln1b, ln2w, ln2b = [], [], [], []
    for l in range(num_layers):
        sk = jax.random.split(keys[2 + l], 8)
        ipw.append(dense(sk[0], dm, (dm, 3 * dm)))
        ipb.append(dense(sk[1], dm, (1, 3 * dm)) * 0.1)
        opw.append(dense(sk[2], dm, (dm, dm)))
        opb.append(dense(sk[3], dm, (1, dm)) * 0.1)
        l1w.append(dense(sk[4], dm, (dm, ff)))
        l1b.append(dense(sk[5], dm, (1, ff)) * 0.1)
        l2w.append(dense(sk[6], ff, (ff, dm)))
        l2b.append(dense(sk[7], ff, (1, dm)) * 0.1)
        ln1w.append(jnp.ones((1, dm), jnp.float32))
        ln1b.append(jnp.zeros((1, dm), jnp.float32))
        ln2w.append(jnp.ones((1, dm), jnp.float32))
        ln2b.append(jnp.zeros((1, dm), jnp.float32))

    ko = jax.random.split(keys[1], 2)
    return dict(
        emb=emb,
        pos_vec=pos_vec,
        ipw=jnp.stack(ipw), ipb=jnp.stack(ipb),
        opw=jnp.stack(opw), opb=jnp.stack(opb),
        ln1w=jnp.stack(ln1w), ln1b=jnp.stack(ln1b),
        l1w=jnp.stack(l1w), l1b=jnp.stack(l1b),
        l2w=jnp.stack(l2w), l2b=jnp.stack(l2b),
        ln2w=jnp.stack(ln2w), ln2b=jnp.stack(ln2b),
        fnw=jnp.ones((1, dm), jnp.float32),
        fnb=jnp.zeros((1, dm), jnp.float32),
        ow=dense(ko[0], dm, (dm, D)),
        ob=dense(ko[1], dm, (1, D)) * 0.1,
    )


# ----------------------------------------------------------------------------
# Pure-JAX reference (mirrors the PyTorch forward, eval mode) for validation.
# ----------------------------------------------------------------------------
def reference_forward(hist_x, hist_e, hist_ts, non_pad_mask, params,
                      num_heads, num_layers):
    pos = params["pos_vec"]
    D = pos.shape[-1]
    dm = 2 * D
    B, L = hist_x.shape
    hd = dm // num_heads

    keep = (1.0 - non_pad_mask.astype(jnp.float32))[..., None]
    idx = jnp.arange(D)

    def tenc(dt):
        r = dt[..., None] / pos[None]
        return jnp.where(idx % 2 == 0, jnp.sin(r), jnp.cos(r)) * keep

    dt_enc = tenc(hist_x) + tenc(hist_ts)
    emb = params["emb"][hist_e]
    x = jnp.concatenate([emb, dt_enc], axis=-1)

    row = jnp.arange(L)[:, None]
    col = jnp.arange(L)[None, :]
    causal = jnp.where(col <= row, 0.0, -1e30)
    bias = causal[None] + jnp.where(non_pad_mask[:, None, :], -1e30, 0.0)

    def ln(v, w, b):
        mu = v.mean(-1, keepdims=True)
        c = v - mu
        var = (c * c).mean(-1, keepdims=True)
        return c * jax.lax.rsqrt(var + 1e-5) * w + b

    scale = 1.0 / math.sqrt(hd)
    for l in range(num_layers):
        qkv = x @ params["ipw"][l] + params["ipb"][l]
        q = qkv[..., :dm].reshape(B, L, num_heads, hd) * scale
        k = qkv[..., dm:2 * dm].reshape(B, L, num_heads, hd)
        v = qkv[..., 2 * dm:].reshape(B, L, num_heads, hd)
        s = jnp.einsum("blhd,bmhd->bhlm", q, k) + bias[:, None]
        p = jax.nn.softmax(s, axis=-1)
        a = jnp.einsum("bhlm,bmhd->blhd", p, v).reshape(B, L, dm)
        a = a @ params["opw"][l] + params["opb"][l]
        x = ln(x + a, params["ln1w"][l], params["ln1b"][l])
        f = jnp.maximum(x @ params["l1w"][l] + params["l1b"][l], 0.0)
        f = f @ params["l2w"][l] + params["l2b"][l]
        x = ln(x + f, params["ln2w"][l], params["ln2b"][l])
    x = ln(x, params["fnw"], params["fnb"])
    return x @ params["ow"] + params["ob"]


# ----------------------------------------------------------------------------
if __name__ == "__main__":
    # Small, head-compatible hyperparameters (L multiple of 8 keeps the
    # in-kernel (TB, L, .) <-> (TB*L, .) reshapes layout-free).
    B, L = 4, 16
    transformer_dim = 32          # D ; d_model = 2*D = 64
    num_heads = 4
    dim_feedforward = 64
    num_layers = 3
    num_classes = 10

    key = jax.random.PRNGKey(0)
    kx, kt, ke, kp = jax.random.split(key, 4)

    hist_x = jax.random.uniform(kx, (B, L), jnp.float32, 0.0, 3.0)
    hist_ts = jnp.cumsum(
        jax.random.uniform(kt, (B, L), jnp.float32, 0.1, 2.0), axis=-1)
    hist_e = jax.random.randint(ke, (B, L), 0, num_classes)
    # trailing padding positions (padding token id == num_classes)
    hist_e = hist_e.at[0, L - 3:].set(num_classes)
    hist_e = hist_e.at[1, L - 1:].set(num_classes)
    hist_e = hist_e.at[3, L - 5:].set(num_classes)
    hist_e = hist_e.astype(jnp.int32)
    # get_non_pad_mask semantics: True where the token is the padding class.
    non_pad_mask = (hist_e == num_classes)

    params = init_params(kp, transformer_dim, dim_feedforward,
                         num_layers, num_classes)
    ref = reference_forward(hist_x, hist_e, hist_ts, non_pad_mask, params,
                            num_heads, num_layers)

    # ---- bf16 MXU fast path (default) ----
    kp_bf16 = prepare_kernel_params(params, num_heads=num_heads,
                                    matmul_dtype=jnp.bfloat16)
    out = history_encoder_forward(hist_x, hist_e, hist_ts, non_pad_mask,
                                  kp_bf16, num_heads=num_heads,
                                  num_layers=num_layers)
    out = jax.block_until_ready(out)
    assert out.shape == (B, L, transformer_dim), out.shape

    # ---- f32 path: strict semantic check against the reference ----
    kp_f32 = prepare_kernel_params(params, num_heads=num_heads,
                                   matmul_dtype=jnp.float32)
    out_f32 = jax.block_until_ready(
        history_encoder_forward(hist_x, hist_e, hist_ts, non_pad_mask,
                                kp_f32, num_heads=num_heads,
                                num_layers=num_layers))

    # Tolerances: the f32 path differs from the reference only by the
    # approximate (EUP) softmax reciprocal and MXU accumulation order; the
    # bf16 path additionally rounds matmul operands and the padded output to
    # bf16 (f32 accumulate).
    err32 = float(jnp.max(jnp.abs(out_f32 - ref)))
    if not bool(jnp.allclose(out_f32, ref, atol=3e-2, rtol=3e-2)):
        raise AssertionError(f"f32 path mismatch, max abs err={err32}")
    errbf = float(jnp.max(jnp.abs(out - ref)))
    if not bool(jnp.allclose(out, ref, atol=2e-1, rtol=2e-1)):
        raise AssertionError(f"bf16 path mismatch, max abs err={errbf}")

    print("KERNEL_OK")
</pallas_src>

<mosaic_0001>
module attributes {stable_mosaic.version = 11 : i64} {
  func.func @transformer_encoder_kernel(%arg0: i32, %arg1: memref<4x16x16xf32, #tpu.memory_space<vmem>>, %arg2: memref<4x16x64xf32, #tpu.memory_space<vmem>>, %arg3: memref<3x64x1536xbf16, #tpu.memory_space<vmem>>, %arg4: memref<3x1x1536xf32, #tpu.memory_space<vmem>>, %arg5: memref<3x512x64xbf16, #tpu.memory_space<vmem>>, %arg6: memref<3x1x64xf32, #tpu.memory_space<vmem>>, %arg7: memref<3x1x64xf32, #tpu.memory_space<vmem>>, %arg8: memref<3x1x64xf32, #tpu.memory_space<vmem>>, %arg9: memref<3x64x64xbf16, #tpu.memory_space<vmem>>, %arg10: memref<3x1x64xf32, #tpu.memory_space<vmem>>, %arg11: memref<3x64x64xbf16, #tpu.memory_space<vmem>>, %arg12: memref<3x1x64xf32, #tpu.memory_space<vmem>>, %arg13: memref<3x1x64xf32, #tpu.memory_space<vmem>>, %arg14: memref<3x1x64xf32, #tpu.memory_space<vmem>>, %arg15: memref<1x64xf32, #tpu.memory_space<vmem>>, %arg16: memref<1x64xf32, #tpu.memory_space<vmem>>, %arg17: memref<64x128xbf16, #tpu.memory_space<vmem>>, %arg18: memref<1x128xf32, #tpu.memory_space<vmem>>, %arg19: memref<4x16x128xbf16, #tpu.memory_space<vmem>>) attributes {dimension_semantics = [#tpu.dimension_semantics<parallel>], iteration_bounds = array<i64: 1>, scalar_prefetch = 0 : i64, scratch_operands = 0 : i64, tpu.core_type = #tpu.core_type<tc>, window_params = [{transform_indices = @transform_0, window_bounds = array<i64: 4, 16, 16>}, {transform_indices = @transform_1, window_bounds = array<i64: 4, 16, 64>}, {pipeline_mode = #tpu.pipeline_mode<synchronous>, transform_indices = @transform_2, window_bounds = array<i64: 3, 64, 1536>}, {pipeline_mode = #tpu.pipeline_mode<synchronous>, transform_indices = @transform_3, window_bounds = array<i64: 3, 1, 1536>}, {pipeline_mode = #tpu.pipeline_mode<synchronous>, transform_indices = @transform_4, window_bounds = array<i64: 3, 512, 64>}, {pipeline_mode = #tpu.pipeline_mode<synchronous>, transform_indices = @transform_5, window_bounds = array<i64: 3, 1, 64>}, {pipeline_mode = #tpu.pipeline_mode<synchronous>, transform_indices = @transform_6, window_bounds = array<i64: 3, 1, 64>}, {pipeline_mode = #tpu.pipeline_mode<synchronous>, transform_indices = @transform_7, window_bounds = array<i64: 3, 1, 64>}, {pipeline_mode = #tpu.pipeline_mode<synchronous>, transform_indices = @transform_8, window_bounds = array<i64: 3, 64, 64>}, {pipeline_mode = #tpu.pipeline_mode<synchronous>, transform_indices = @transform_9, window_bounds = array<i64: 3, 1, 64>}, {pipeline_mode = #tpu.pipeline_mode<synchronous>, transform_indices = @transform_10, window_bounds = array<i64: 3, 64, 64>}, {pipeline_mode = #tpu.pipeline_mode<synchronous>, transform_indices = @transform_11, window_bounds = array<i64: 3, 1, 64>}, {pipeline_mode = #tpu.pipeline_mode<synchronous>, transform_indices = @transform_12, window_bounds = array<i64: 3, 1, 64>}, {pipeline_mode = #tpu.pipeline_mode<synchronous>, transform_indices = @transform_13, window_bounds = array<i64: 3, 1, 64>}, {pipeline_mode = #tpu.pipeline_mode<synchronous>, transform_indices = @transform_14, window_bounds = array<i64: 1, 64>}, {pipeline_mode = #tpu.pipeline_mode<synchronous>, transform_indices = @transform_15, window_bounds = array<i64: 1, 64>}, {pipeline_mode = #tpu.pipeline_mode<synchronous>, transform_indices = @transform_16, window_bounds = array<i64: 64, 128>}, {pipeline_mode = #tpu.pipeline_mode<synchronous>, transform_indices = @transform_17, window_bounds = array<i64: 1, 128>}, {transform_indices = @transform_18, window_bounds = array<i64: 4, 16, 128>}]} {
    %c0 = arith.constant 0 : index
    %c0_0 = arith.constant 0 : index
    %c0_1 = arith.constant 0 : index
    %0 = vector.load %arg1[%c0, %c0_0, %c0_1] : memref<4x16x16xf32, #tpu.memory_space<vmem>>, vector<4x16x16xf32>
    %1 = tpu.concatenate %0, %0, %0, %0 in 0 : vector<4x16x16xf32>, vector<4x16x16xf32>, vector<4x16x16xf32>, vector<4x16x16xf32> -> vector<16x16x16xf32>
    %c0_2 = arith.constant 0 : index
    %c0_3 = arith.constant 0 : index
    %c0_4 = arith.constant 0 : index
    %2 = vector.load %arg2[%c0_2, %c0_3, %c0_4] : memref<4x16x64xf32, #tpu.memory_space<vmem>>, vector<4x16x64xf32>
    %3 = vector.shape_cast %2 : vector<4x16x64xf32> to vector<64x64xf32>
    %c0_5 = arith.constant 0 : index
    %c0_6 = arith.constant 0 : index
    %c0_7 = arith.constant 0 : index
    %4 = vector.load %arg3[%c0_5, %c0_6, %c0_7] : memref<3x64x1536xbf16, #tpu.memory_space<vmem>>, vector<1x64x1536xbf16>
    %5 = vector.shape_cast %4 : vector<1x64x1536xbf16> to vector<64x1536xbf16>
    %6 = arith.truncf %3 : vector<64x64xf32> to vector<64x64xbf16>
    %cst = arith.constant dense<0.000000e+00> : vector<64x1536xf32>
    %7 = tpu.matmul %6, %5, %cst {dimension_numbers = #tpu.dot_dimension_numbers<[1], [0], [0], [1], [0, 0, 1, 1], [], []>} : vector<64x64xbf16>, vector<64x1536xbf16>, vector<64x1536xf32> -> vector<64x1536xf32>
    %c0_8 = arith.constant 0 : index
    %c0_9 = arith.constant 0 : index
    %c0_10 = arith.constant 0 : index
    %8 = vector.load %arg4[%c0_8, %c0_9, %c0_10] : memref<3x1x1536xf32, #tpu.memory_space<vmem>>, vector<1x1x1536xf32>
    %9 = vector.shape_cast %8 : vector<1x1x1536xf32> to vector<1x1536xf32>
    %10 = vector.broadcast %9 : vector<1x1536xf32> to vector<64x1536xf32>
    %11 = arith.addf %7, %10 : vector<64x1536xf32>
    %12 = arith.truncf %11 : vector<64x1536xf32> to vector<64x1536xbf16>
    %13 = vector.shape_cast %12 : vector<64x1536xbf16> to vector<4x16x1536xbf16>
    %14 = vector.extract_strided_slice %13 {offsets = [0, 0, 0], sizes = [4, 16, 128], strides = [1, 1, 1]} : vector<4x16x1536xbf16> to vector<4x16x128xbf16>
    %15 = vector.extract_strided_slice %13 {offsets = [0, 0, 128], sizes = [4, 16, 128], strides = [1, 1, 1]} : vector<4x16x1536xbf16> to vector<4x16x128xbf16>
    %16 = vector.extract_strided_slice %13 {offsets = [0, 0, 256], sizes = [4, 16, 128], strides = [1, 1, 1]} : vector<4x16x1536xbf16> to vector<4x16x128xbf16>
    %17 = vector.extract_strided_slice %13 {offsets = [0, 0, 384], sizes = [4, 16, 128], strides = [1, 1, 1]} : vector<4x16x1536xbf16> to vector<4x16x128xbf16>
    %18 = tpu.concatenate %14, %15, %16, %17 in 0 : vector<4x16x128xbf16>, vector<4x16x128xbf16>, vector<4x16x128xbf16>, vector<4x16x128xbf16> -> vector<16x16x128xbf16>
    %19 = vector.extract_strided_slice %13 {offsets = [0, 0, 512], sizes = [4, 16, 128], strides = [1, 1, 1]} : vector<4x16x1536xbf16> to vector<4x16x128xbf16>
    %20 = vector.extract_strided_slice %13 {offsets = [0, 0, 640], sizes = [4, 16, 128], strides = [1, 1, 1]} : vector<4x16x1536xbf16> to vector<4x16x128xbf16>
    %21 = vector.extract_strided_slice %13 {offsets = [0, 0, 768], sizes = [4, 16, 128], strides = [1, 1, 1]} : vector<4x16x1536xbf16> to vector<4x16x128xbf16>
    %22 = vector.extract_strided_slice %13 {offsets = [0, 0, 896], sizes = [4, 16, 128], strides = [1, 1, 1]} : vector<4x16x1536xbf16> to vector<4x16x128xbf16>
    %23 = tpu.concatenate %19, %20, %21, %22 in 0 : vector<4x16x128xbf16>, vector<4x16x128xbf16>, vector<4x16x128xbf16>, vector<4x16x128xbf16> -> vector<16x16x128xbf16>
    %24 = vector.extract_strided_slice %13 {offsets = [0, 0, 1024], sizes = [4, 16, 128], strides = [1, 1, 1]} : vector<4x16x1536xbf16> to vector<4x16x128xbf16>
    %25 = vector.extract_strided_slice %13 {offsets = [0, 0, 1152], sizes = [4, 16, 128], strides = [1, 1, 1]} : vector<4x16x1536xbf16> to vector<4x16x128xbf16>
    %26 = vector.extract_strided_slice %13 {offsets = [0, 0, 1280], sizes = [4, 16, 128], strides = [1, 1, 1]} : vector<4x16x1536xbf16> to vector<4x16x128xbf16>
    %27 = vector.extract_strided_slice %13 {offsets = [0, 0, 1408], sizes = [4, 16, 128], strides = [1, 1, 1]} : vector<4x16x1536xbf16> to vector<4x16x128xbf16>
    %28 = tpu.concatenate %24, %25, %26, %27 in 0 : vector<4x16x128xbf16>, vector<4x16x128xbf16>, vector<4x16x128xbf16>, vector<4x16x128xbf16> -> vector<16x16x128xbf16>
    "tpu.trace_start"() <{level = 10 : i32, message = "bqd,bkd->bqk"}> : () -> ()
    %cst_11 = arith.constant dense<0.000000e+00> : vector<16x16x16xf32>
    %29 = tpu.matmul %18, %23, %cst_11 {dimension_numbers = #tpu.dot_dimension_numbers<[2], [2], [1], [1], [0, 0, 0, 1, 1, 1], [0], [0]>} : vector<16x16x128xbf16>, vector<16x16x128xbf16>, vector<16x16x16xf32> -> vector<16x16x16xf32>
    "tpu.trace_stop"() : () -> ()
    %30 = arith.addf %29, %1 : vector<16x16x16xf32>
    %cst_12 = arith.constant dense<0xFF800000> : vector<16x16xf32>
    %31 = vector.multi_reduction <maximumf>, %30, %cst_12 [2] : vector<16x16x16xf32> to vector<16x16xf32>
    %32 = vector.shape_cast %31 : vector<16x16xf32> to vector<16x16x1xf32>
    %33 = vector.broadcast %32 : vector<16x16x1xf32> to vector<16x16x16xf32>
    %34 = arith.subf %30, %33 : vector<16x16x16xf32>
    %35 = math.exp %34 : vector<16x16x16xf32>
    %cst_13 = arith.constant dense<0.000000e+00> : vector<16x16xf32>
    %36 = vector.multi_reduction <add>, %35, %cst_13 [2] : vector<16x16x16xf32> to vector<16x16xf32>
    %37 = vector.shape_cast %36 : vector<16x16xf32> to vector<16x16x1xf32>
    %38 = arith.truncf %35 : vector<16x16x16xf32> to vector<16x16x16xbf16>
    "tpu.trace_start"() <{level = 10 : i32, message = "bqk,bkd->bqd"}> : () -> ()
    %cst_14 = arith.constant dense<0.000000e+00> : vector<16x16x128xf32>
    %39 = tpu.matmul %38, %28, %cst_14 {dimension_numbers = #tpu.dot_dimension_numbers<[2], [1], [1], [2], [0, 0, 0, 1, 1, 2], [0], [0]>} : vector<16x16x16xbf16>, vector<16x16x128xbf16>, vector<16x16x128xf32> -> vector<16x16x128xf32>
    "tpu.trace_stop"() : () -> ()
    %40 = tpu.reciprocal %37 {approx = true} : vector<16x16x1xf32> -> vector<16x16x1xf32>
    %41 = vector.broadcast %40 : vector<16x16x1xf32> to vector<16x16x128xf32>
    %42 = arith.mulf %39, %41 : vector<16x16x128xf32>
    %43 = vector.extract_strided_slice %42 {offsets = [0, 0, 0], sizes = [4, 16, 128], strides = [1, 1, 1]} : vector<16x16x128xf32> to vector<4x16x128xf32>
    %44 = vector.extract_strided_slice %42 {offsets = [4, 0, 0], sizes = [4, 16, 128], strides = [1, 1, 1]} : vector<16x16x128xf32> to vector<4x16x128xf32>
    %45 = vector.extract_strided_slice %42 {offsets = [8, 0, 0], sizes = [4, 16, 128], strides = [1, 1, 1]} : vector<16x16x128xf32> to vector<4x16x128xf32>
    %46 = vector.extract_strided_slice %42 {offsets = [12, 0, 0], sizes = [4, 16, 128], strides = [1, 1, 1]} : vector<16x16x128xf32> to vector<4x16x128xf32>
    %47 = tpu.concatenate %43, %44, %45, %46 in 2 : vector<4x16x128xf32>, vector<4x16x128xf32>, vector<4x16x128xf32>, vector<4x16x128xf32> -> vector<4x16x512xf32>
    %48 = vector.shape_cast %47 : vector<4x16x512xf32> to vector<64x512xf32>
    %c0_15 = arith.constant 0 : index
    %c0_16 = arith.constant 0 : index
    %c0_17 = arith.constant 0 : index
    %49 = vector.load %arg5[%c0_15, %c0_16, %c0_17] : memref<3x512x64xbf16, #tpu.memory_space<vmem>>, vector<1x512x64xbf16>
    %50 = vector.shape_cast %49 : vector<1x512x64xbf16> to vector<512x64xbf16>
    %51 = arith.truncf %48 : vector<64x512xf32> to vector<64x512xbf16>
    %cst_18 = arith.constant dense<0.000000e+00> : vector<64x64xf32>
    %52 = tpu.matmul %51, %50, %cst_18 {dimension_numbers = #tpu.dot_dimension_numbers<[1], [0], [0], [1], [0, 0, 1, 1], [], []>} : vector<64x512xbf16>, vector<512x64xbf16>, vector<64x64xf32> -> vector<64x64xf32>
    %c0_19 = arith.constant 0 : index
    %c0_20 = arith.constant 0 : index
    %c0_21 = arith.constant 0 : index
    %53 = vector.load %arg6[%c0_19, %c0_20, %c0_21] : memref<3x1x64xf32, #tpu.memory_space<vmem>>, vector<1x1x64xf32>
    %54 = vector.shape_cast %53 : vector<1x1x64xf32> to vector<1x64xf32>
    %55 = vector.broadcast %54 : vector<1x64xf32> to vector<64x64xf32>
    %56 = arith.addf %52, %55 : vector<64x64xf32>
    %57 = arith.addf %3, %56 : vector<64x64xf32>
    %c0_22 = arith.constant 0 : index
    %c0_23 = arith.constant 0 : index
    %c0_24 = arith.constant 0 : index
    %58 = vector.load %arg7[%c0_22, %c0_23, %c0_24] : memref<3x1x64xf32, #tpu.memory_space<vmem>>, vector<1x1x64xf32>
    %59 = vector.shape_cast %58 : vector<1x1x64xf32> to vector<1x64xf32>
    %c0_25 = arith.constant 0 : index
    %c0_26 = arith.constant 0 : index
    %c0_27 = arith.constant 0 : index
    %60 = vector.load %arg8[%c0_25, %c0_26, %c0_27] : memref<3x1x64xf32, #tpu.memory_space<vmem>>, vector<1x1x64xf32>
    %61 = vector.shape_cast %60 : vector<1x1x64xf32> to vector<1x64xf32>
    %cst_28 = arith.constant dense<0.000000e+00> : vector<64xf32>
    %62 = vector.multi_reduction <add>, %57, %cst_28 [1] : vector<64x64xf32> to vector<64xf32>
    %63 = vector.shape_cast %62 : vector<64xf32> to vector<64x1xf32>
    %cst_29 = arith.constant 6.400000e+01 : f32
    %64 = vector.broadcast %cst_29 : f32 to vector<64x1xf32>
    %65 = arith.divf %63, %64 : vector<64x1xf32>
    %66 = vector.broadcast %65 : vector<64x1xf32> to vector<64x64xf32>
    %67 = arith.subf %57, %66 : vector<64x64xf32>
    %68 = arith.mulf %67, %67 : vector<64x64xf32>
    %cst_30 = arith.constant dense<0.000000e+00> : vector<64xf32>
    %69 = vector.multi_reduction <add>, %68, %cst_30 [1] : vector<64x64xf32> to vector<64xf32>
    %70 = vector.shape_cast %69 : vector<64xf32> to vector<64x1xf32>
    %cst_31 = arith.constant 6.400000e+01 : f32
    %71 = vector.broadcast %cst_31 : f32 to vector<64x1xf32>
    %72 = arith.divf %70, %71 : vector<64x1xf32>
    %cst_32 = arith.constant 9.99999974E-6 : f32
    %73 = vector.broadcast %cst_32 : f32 to vector<64x1xf32>
    %74 = arith.addf %72, %73 : vector<64x1xf32>
    %75 = math.rsqrt %74 : vector<64x1xf32>
    %76 = vector.broadcast %75 : vector<64x1xf32> to vector<64x64xf32>
    %77 = arith.mulf %67, %76 : vector<64x64xf32>
    %78 = vector.broadcast %59 : vector<1x64xf32> to vector<64x64xf32>
    %79 = arith.mulf %77, %78 : vector<64x64xf32>
    %80 = vector.broadcast %61 : vector<1x64xf32> to vector<64x64xf32>
    %81 = arith.addf %79, %80 : vector<64x64xf32>
    %c0_33 = arith.constant 0 : index
    %c0_34 = arith.constant 0 : index
    %c0_35 = arith.constant 0 : index
    %82 = vector.load %arg9[%c0_33, %c0_34, %c0_35] : memref<3x64x64xbf16, #tpu.memory_space<vmem>>, vector<1x64x64xbf16>
    %83 = vector.shape_cast %82 : vector<1x64x64xbf16> to vector<64x64xbf16>
    %84 = arith.truncf %81 : vector<64x64xf32> to vector<64x64xbf16>
    %cst_36 = arith.constant dense<0.000000e+00> : vector<64x64xf32>
    %85 = tpu.matmul %84, %83, %cst_36 {dimension_numbers = #tpu.dot_dimension_numbers<[1], [0], [0], [1], [0, 0, 1, 1], [], []>} : vector<64x64xbf16>, vector<64x64xbf16>, vector<64x64xf32> -> vector<64x64xf32>
    %c0_37 = arith.constant 0 : index
    %c0_38 = arith.constant 0 : index
    %c0_39 = arith.constant 0 : index
    %86 = vector.load %arg10[%c0_37, %c0_38, %c0_39] : memref<3x1x64xf32, #tpu.memory_space<vmem>>, vector<1x1x64xf32>
    %87 = vector.shape_cast %86 : vector<1x1x64xf32> to vector<1x64xf32>
    %88 = vector.broadcast %87 : vector<1x64xf32> to vector<64x64xf32>
    %89 = arith.addf %85, %88 : vector<64x64xf32>
    %cst_40 = arith.constant 0.000000e+00 : f32
    %90 = vector.broadcast %cst_40 : f32 to vector<64x64xf32>
    %91 = arith.maximumf %89, %90 : vector<64x64xf32>
    %c0_41 = arith.constant 0 : index
    %c0_42 = arith.constant 0 : index
    %c0_43 = arith.constant 0 : index
    %92 = vector.load %arg11[%c0_41, %c0_42, %c0_43] : memref<3x64x64xbf16, #tpu.memory_space<vmem>>, vector<1x64x64xbf16>
    %93 = vector.shape_cast %92 : vector<1x64x64xbf16> to vector<64x64xbf16>
    %94 = arith.truncf %91 : vector<64x64xf32> to vector<64x64xbf16>
    %cst_44 = arith.constant dense<0.000000e+00> : vector<64x64xf32>
    %95 = tpu.matmul %94, %93, %cst_44 {dimension_numbers = #tpu.dot_dimension_numbers<[1], [0], [0], [1], [0, 0, 1, 1], [], []>} : vector<64x64xbf16>, vector<64x64xbf16>, vector<64x64xf32> -> vector<64x64xf32>
    %c0_45 = arith.constant 0 : index
    %c0_46 = arith.constant 0 : index
    %c0_47 = arith.constant 0 : index
    %96 = vector.load %arg12[%c0_45, %c0_46, %c0_47] : memref<3x1x64xf32, #tpu.memory_space<vmem>>, vector<1x1x64xf32>
    %97 = vector.shape_cast %96 : vector<1x1x64xf32> to vector<1x64xf32>
    %98 = vector.broadcast %97 : vector<1x64xf32> to vector<64x64xf32>
    %99 = arith.addf %95, %98 : vector<64x64xf32>
    %100 = arith.addf %81, %99 : vector<64x64xf32>
    %c0_48 = arith.constant 0 : index
    %c0_49 = arith.constant 0 : index
    %c0_50 = arith.constant 0 : index
    %101 = vector.load %arg13[%c0_48, %c0_49, %c0_50] : memref<3x1x64xf32, #tpu.memory_space<vmem>>, vector<1x1x64xf32>
    %102 = vector.shape_cast %101 : vector<1x1x64xf32> to vector<1x64xf32>
    %c0_51 = arith.constant 0 : index
    %c0_52 = arith.constant 0 : index
    %c0_53 = arith.constant 0 : index
    %103 = vector.load %arg14[%c0_51, %c0_52, %c0_53] : memref<3x1x64xf32, #tpu.memory_space<vmem>>, vector<1x1x64xf32>
    %104 = vector.shape_cast %103 : vector<1x1x64xf32> to vector<1x64xf32>
    %cst_54 = arith.constant dense<0.000000e+00> : vector<64xf32>
    %105 = vector.multi_reduction <add>, %100, %cst_54 [1] : vector<64x64xf32> to vector<64xf32>
    %106 = vector.shape_cast %105 : vector<64xf32> to vector<64x1xf32>
    %cst_55 = arith.constant 6.400000e+01 : f32
    %107 = vector.broadcast %cst_55 : f32 to vector<64x1xf32>
    %108 = arith.divf %106, %107 : vector<64x1xf32>
    %109 = vector.broadcast %108 : vector<64x1xf32> to vector<64x64xf32>
    %110 = arith.subf %100, %109 : vector<64x64xf32>
    %111 = arith.mulf %110, %110 : vector<64x64xf32>
    %cst_56 = arith.constant dense<0.000000e+00> : vector<64xf32>
    %112 = vector.multi_reduction <add>, %111, %cst_56 [1] : vector<64x64xf32> to vector<64xf32>
    %113 = vector.shape_cast %112 : vector<64xf32> to vector<64x1xf32>
    %cst_57 = arith.constant 6.400000e+01 : f32
    %114 = vector.broadcast %cst_57 : f32 to vector<64x1xf32>
    %115 = arith.divf %113, %114 : vector<64x1xf32>
    %cst_58 = arith.constant 9.99999974E-6 : f32
    %116 = vector.broadcast %cst_58 : f32 to vector<64x1xf32>
    %117 = arith.addf %115, %116 : vector<64x1xf32>
    %118 = math.rsqrt %117 : vector<64x1xf32>
    %119 = vector.broadcast %118 : vector<64x1xf32> to vector<64x64xf32>
    %120 = arith.mulf %110, %119 : vector<64x64xf32>
    %121 = vector.broadcast %102 : vector<1x64xf32> to vector<64x64xf32>
    %122 = arith.mulf %120, %121 : vector<64x64xf32>
    %123 = vector.broadcast %104 : vector<1x64xf32> to vector<64x64xf32>
    %124 = arith.addf %122, %123 : vector<64x64xf32>
    %c1 = arith.constant 1 : index
    %c0_59 = arith.constant 0 : index
    %c0_60 = arith.constant 0 : index
    %125 = vector.load %arg3[%c1, %c0_59, %c0_60] : memref<3x64x1536xbf16, #tpu.memory_space<vmem>>, vector<1x64x1536xbf16>
    %126 = vector.shape_cast %125 : vector<1x64x1536xbf16> to vector<64x1536xbf16>
    %127 = arith.truncf %124 : vector<64x64xf32> to vector<64x64xbf16>
    %cst_61 = arith.constant dense<0.000000e+00> : vector<64x1536xf32>
    %128 = tpu.matmul %127, %126, %cst_61 {dimension_numbers = #tpu.dot_dimension_numbers<[1], [0], [0], [1], [0, 0, 1, 1], [], []>} : vector<64x64xbf16>, vector<64x1536xbf16>, vector<64x1536xf32> -> vector<64x1536xf32>
    %c1_62 = arith.constant 1 : index
    %c0_63 = arith.constant 0 : index
    %c0_64 = arith.constant 0 : index
    %129 = vector.load %arg4[%c1_62, %c0_63, %c0_64] : memref<3x1x1536xf32, #tpu.memory_space<vmem>>, vector<1x1x1536xf32>
    %130 = vector.shape_cast %129 : vector<1x1x1536xf32> to vector<1x1536xf32>
    %131 = vector.broadcast %130 : vector<1x1536xf32> to vector<64x1536xf32>
    %132 = arith.addf %128, %131 : vector<64x1536xf32>
    %133 = arith.truncf %132 : vector<64x1536xf32> to vector<64x1536xbf16>
    %134 = vector.shape_cast %133 : vector<64x1536xbf16> to vector<4x16x1536xbf16>
    %135 = vector.extract_strided_slice %134 {offsets = [0, 0, 0], sizes = [4, 16, 128], strides = [1, 1, 1]} : vector<4x16x1536xbf16> to vector<4x16x128xbf16>
    %136 = vector.extract_strided_slice %134 {offsets = [0, 0, 128], sizes = [4, 16, 128], strides = [1, 1, 1]} : vector<4x16x1536xbf16> to vector<4x16x128xbf16>
    %137 = vector.extract_strided_slice %134 {offsets = [0, 0, 256], sizes = [4, 16, 128], strides = [1, 1, 1]} : vector<4x16x1536xbf16> to vector<4x16x128xbf16>
    %138 = vector.extract_strided_slice %134 {offsets = [0, 0, 384], sizes = [4, 16, 128], strides = [1, 1, 1]} : vector<4x16x1536xbf16> to vector<4x16x128xbf16>
    %139 = tpu.concatenate %135, %136, %137, %138 in 0 : vector<4x16x128xbf16>, vector<4x16x128xbf16>, vector<4x16x128xbf16>, vector<4x16x128xbf16> -> vector<16x16x128xbf16>
    %140 = vector.extract_strided_slice %134 {offsets = [0, 0, 512], sizes = [4, 16, 128], strides = [1, 1, 1]} : vector<4x16x1536xbf16> to vector<4x16x128xbf16>
    %141 = vector.extract_strided_slice %134 {offsets = [0, 0, 640], sizes = [4, 16, 128], strides = [1, 1, 1]} : vector<4x16x1536xbf16> to vector<4x16x128xbf16>
    %142 = vector.extract_strided_slice %134 {offsets = [0, 0, 768], sizes = [4, 16, 128], strides = [1, 1, 1]} : vector<4x16x1536xbf16> to vector<4x16x128xbf16>
    %143 = vector.extract_strided_slice %134 {offsets = [0, 0, 896], sizes = [4, 16, 128], strides = [1, 1, 1]} : vector<4x16x1536xbf16> to vector<4x16x128xbf16>
    %144 = tpu.concatenate %140, %141, %142, %143 in 0 : vector<4x16x128xbf16>, vector<4x16x128xbf16>, vector<4x16x128xbf16>, vector<4x16x128xbf16> -> vector<16x16x128xbf16>
    %145 = vector.extract_strided_slice %134 {offsets = [0, 0, 1024], sizes = [4, 16, 128], strides = [1, 1, 1]} : vector<4x16x1536xbf16> to vector<4x16x128xbf16>
    %146 = vector.extract_strided_slice %134 {offsets = [0, 0, 1152], sizes = [4, 16, 128], strides = [1, 1, 1]} : vector<4x16x1536xbf16> to vector<4x16x128xbf16>
    %147 = vector.extract_strided_slice %134 {offsets = [0, 0, 1280], sizes = [4, 16, 128], strides = [1, 1, 1]} : vector<4x16x1536xbf16> to vector<4x16x128xbf16>
    %148 = vector.extract_strided_slice %134 {offsets = [0, 0, 1408], sizes = [4, 16, 128], strides = [1, 1, 1]} : vector<4x16x1536xbf16> to vector<4x16x128xbf16>
    %149 = tpu.concatenate %145, %146, %147, %148 in 0 : vector<4x16x128xbf16>, vector<4x16x128xbf16>, vector<4x16x128xbf16>, vector<4x16x128xbf16> -> vector<16x16x128xbf16>
    "tpu.trace_start"() <{level = 10 : i32, message = "bqd,bkd->bqk"}> : () -> ()
    %cst_65 = arith.constant dense<0.000000e+00> : vector<16x16x16xf32>
    %150 = tpu.matmul %139, %144, %cst_65 {dimension_numbers = #tpu.dot_dimension_numbers<[2], [2], [1], [1], [0, 0, 0, 1, 1, 1], [0], [0]>} : vector<16x16x128xbf16>, vector<16x16x128xbf16>, vector<16x16x16xf32> -> vector<16x16x16xf32>
    "tpu.trace_stop"() : () -> ()
    %151 = arith.addf %150, %1 : vector<16x16x16xf32>
    %cst_66 = arith.constant dense<0xFF800000> : vector<16x16xf32>
    %152 = vector.multi_reduction <maximumf>, %151, %cst_66 [2] : vector<16x16x16xf32> to vector<16x16xf32>
    %153 = vector.shape_cast %152 : vector<16x16xf32> to vector<16x16x1xf32>
    %154 = vector.broadcast %153 : vector<16x16x1xf32> to vector<16x16x16xf32>
    %155 = arith.subf %151, %154 : vector<16x16x16xf32>
    %156 = math.exp %155 : vector<16x16x16xf32>
    %cst_67 = arith.constant dense<0.000000e+00> : vector<16x16xf32>
    %157 = vector.multi_reduction <add>, %156, %cst_67 [2] : vector<16x16x16xf32> to vector<16x16xf32>
    %158 = vector.shape_cast %157 : vector<16x16xf32> to vector<16x16x1xf32>
    %159 = arith.truncf %156 : vector<16x16x16xf32> to vector<16x16x16xbf16>
    "tpu.trace_start"() <{level = 10 : i32, message = "bqk,bkd->bqd"}> : () -> ()
    %cst_68 = arith.constant dense<0.000000e+00> : vector<16x16x128xf32>
    %160 = tpu.matmul %159, %149, %cst_68 {dimension_numbers = #tpu.dot_dimension_numbers<[2], [1], [1], [2], [0, 0, 0, 1, 1, 2], [0], [0]>} : vector<16x16x16xbf16>, vector<16x16x128xbf16>, vector<16x16x128xf32> -> vector<16x16x128xf32>
    "tpu.trace_stop"() : () -> ()
    %161 = tpu.reciprocal %158 {approx = true} : vector<16x16x1xf32> -> vector<16x16x1xf32>
    %162 = vector.broadcast %161 : vector<16x16x1xf32> to vector<16x16x128xf32>
    %163 = arith.mulf %160, %162 : vector<16x16x128xf32>
    %164 = vector.extract_strided_slice %163 {offsets = [0, 0, 0], sizes = [4, 16, 128], strides = [1, 1, 1]} : vector<16x16x128xf32> to vector<4x16x128xf32>
    %165 = vector.extract_strided_slice %163 {offsets = [4, 0, 0], sizes = [4, 16, 128], strides = [1, 1, 1]} : vector<16x16x128xf32> to vector<4x16x128xf32>
    %166 = vector.extract_strided_slice %163 {offsets = [8, 0, 0], sizes = [4, 16, 128], strides = [1, 1, 1]} : vector<16x16x128xf32> to vector<4x16x128xf32>
    %167 = vector.extract_strided_slice %163 {offsets = [12, 0, 0], sizes = [4, 16, 128], strides = [1, 1, 1]} : vector<16x16x128xf32> to vector<4x16x128xf32>
    %168 = tpu.concatenate %164, %165, %166, %167 in 2 : vector<4x16x128xf32>, vector<4x16x128xf32>, vector<4x16x128xf32>, vector<4x16x128xf32> -> vector<4x16x512xf32>
    %169 = vector.shape_cast %168 : vector<4x16x512xf32> to vector<64x512xf32>
    %c1_69 = arith.constant 1 : index
    %c0_70 = arith.constant 0 : index
    %c0_71 = arith.constant 0 : index
    %170 = vector.load %arg5[%c1_69, %c0_70, %c0_71] : memref<3x512x64xbf16, #tpu.memory_space<vmem>>, vector<1x512x64xbf16>
    %171 = vector.shape_cast %170 : vector<1x512x64xbf16> to vector<512x64xbf16>
    %172 = arith.truncf %169 : vector<64x512xf32> to vector<64x512xbf16>
    %cst_72 = arith.constant dense<0.000000e+00> : vector<64x64xf32>
    %173 = tpu.matmul %172, %171, %cst_72 {dimension_numbers = #tpu.dot_dimension_numbers<[1], [0], [0], [1], [0, 0, 1, 1], [], []>} : vector<64x512xbf16>, vector<512x64xbf16>, vector<64x64xf32> -> vector<64x64xf32>
    %c1_73 = arith.constant 1 : index
    %c0_74 = arith.constant 0 : index
    %c0_75 = arith.constant 0 : index
    %174 = vector.load %arg6[%c1_73, %c0_74, %c0_75] : memref<3x1x64xf32, #tpu.memory_space<vmem>>, vector<1x1x64xf32>
    %175 = vector.shape_cast %174 : vector<1x1x64xf32> to vector<1x64xf32>
    %176 = vector.broadcast %175 : vector<1x64xf32> to vector<64x64xf32>
    %177 = arith.addf %173, %176 : vector<64x64xf32>
    %178 = arith.addf %124, %177 : vector<64x64xf32>
    %c1_76 = arith.constant 1 : index
    %c0_77 = arith.constant 0 : index
    %c0_78 = arith.constant 0 : index
    %179 = vector.load %arg7[%c1_76, %c0_77, %c0_78] : memref<3x1x64xf32, #tpu.memory_space<vmem>>, vector<1x1x64xf32>
    %180 = vector.shape_cast %179 : vector<1x1x64xf32> to vector<1x64xf32>
    %c1_79 = arith.constant 1 : index
    %c0_80 = arith.constant 0 : index
    %c0_81 = arith.constant 0 : index
    %181 = vector.load %arg8[%c1_79, %c0_80, %c0_81] : memref<3x1x64xf32, #tpu.memory_space<vmem>>, vector<1x1x64xf32>
    %182 = vector.shape_cast %181 : vector<1x1x64xf32> to vector<1x64xf32>
    %cst_82 = arith.constant dense<0.000000e+00> : vector<64xf32>
    %183 = vector.multi_reduction <add>, %178, %cst_82 [1] : vector<64x64xf32> to vector<64xf32>
    %184 = vector.shape_cast %183 : vector<64xf32> to vector<64x1xf32>
    %cst_83 = arith.constant 6.400000e+01 : f32
    %185 = vector.broadcast %cst_83 : f32 to vector<64x1xf32>
    %186 = arith.divf %184, %185 : vector<64x1xf32>
    %187 = vector.broadcast %186 : vector<64x1xf32> to vector<64x64xf32>
    %188 = arith.subf %178, %187 : vector<64x64xf32>
    %189 = arith.mulf %188, %188 : vector<64x64xf32>
    %cst_84 = arith.constant dense<0.000000e+00> : vector<64xf32>
    %190 = vector.multi_reduction <add>, %189, %cst_84 [1] : vector<64x64xf32> to vector<64xf32>
    %191 = vector.shape_cast %190 : vector<64xf32> to vector<64x1xf32>
    %cst_85 = arith.constant 6.400000e+01 : f32
    %192 = vector.broadcast %cst_85 : f32 to vector<64x1xf32>
    %193 = arith.divf %191, %192 : vector<64x1xf32>
    %cst_86 = arith.constant 9.99999974E-6 : f32
    %194 = vector.broadcast %cst_86 : f32 to vector<64x1xf32>
    %195 = arith.addf %193, %194 : vector<64x1xf32>
    %196 = math.rsqrt %195 : vector<64x1xf32>
    %197 = vector.broadcast %196 : vector<64x1xf32> to vector<64x64xf32>
    %198 = arith.mulf %188, %197 : vector<64x64xf32>
    %199 = vector.broadcast %180 : vector<1x64xf32> to vector<64x64xf32>
    %200 = arith.mulf %198, %199 : vector<64x64xf32>
    %201 = vector.broadcast %182 : vector<1x64xf32> to vector<64x64xf32>
    %202 = arith.addf %200, %201 : vector<64x64xf32>
    %c1_87 = arith.constant 1 : index
    %c0_88 = arith.constant 0 : index
    %c0_89 = arith.constant 0 : index
    %203 = vector.load %arg9[%c1_87, %c0_88, %c0_89] : memref<3x64x64xbf16, #tpu.memory_space<vmem>>, vector<1x64x64xbf16>
    %204 = vector.shape_cast %203 : vector<1x64x64xbf16> to vector<64x64xbf16>
    %205 = arith.truncf %202 : vector<64x64xf32> to vector<64x64xbf16>
    %cst_90 = arith.constant dense<0.000000e+00> : vector<64x64xf32>
    %206 = tpu.matmul %205, %204, %cst_90 {dimension_numbers = #tpu.dot_dimension_numbers<[1], [0], [0], [1], [0, 0, 1, 1], [], []>} : vector<64x64xbf16>, vector<64x64xbf16>, vector<64x64xf32> -> vector<64x64xf32>
    %c1_91 = arith.constant 1 : index
    %c0_92 = arith.constant 0 : index
    %c0_93 = arith.constant 0 : index
    %207 = vector.load %arg10[%c1_91, %c0_92, %c0_93] : memref<3x1x64xf32, #tpu.memory_space<vmem>>, vector<1x1x64xf32>
    %208 = vector.shape_cast %207 : vector<1x1x64xf32> to vector<1x64xf32>
    %209 = vector.broadcast %208 : vector<1x64xf32> to vector<64x64xf32>
    %210 = arith.addf %206, %209 : vector<64x64xf32>
    %cst_94 = arith.constant 0.000000e+00 : f32
    %211 = vector.broadcast %cst_94 : f32 to vector<64x64xf32>
    %212 = arith.maximumf %210, %211 : vector<64x64xf32>
    %c1_95 = arith.constant 1 : index
    %c0_96 = arith.constant 0 : index
    %c0_97 = arith.constant 0 : index
    %213 = vector.load %arg11[%c1_95, %c0_96, %c0_97] : memref<3x64x64xbf16, #tpu.memory_space<vmem>>, vector<1x64x64xbf16>
    %214 = vector.shape_cast %213 : vector<1x64x64xbf16> to vector<64x64xbf16>
    %215 = arith.truncf %212 : vector<64x64xf32> to vector<64x64xbf16>
    %cst_98 = arith.constant dense<0.000000e+00> : vector<64x64xf32>
    %216 = tpu.matmul %215, %214, %cst_98 {dimension_numbers = #tpu.dot_dimension_numbers<[1], [0], [0], [1], [0, 0, 1, 1], [], []>} : vector<64x64xbf16>, vector<64x64xbf16>, vector<64x64xf32> -> vector<64x64xf32>
    %c1_99 = arith.constant 1 : index
    %c0_100 = arith.constant 0 : index
    %c0_101 = arith.constant 0 : index
    %217 = vector.load %arg12[%c1_99, %c0_100, %c0_101] : memref<3x1x64xf32, #tpu.memory_space<vmem>>, vector<1x1x64xf32>
    %218 = vector.shape_cast %217 : vector<1x1x64xf32> to vector<1x64xf32>
    %219 = vector.broadcast %218 : vector<1x64xf32> to vector<64x64xf32>
    %220 = arith.addf %216, %219 : vector<64x64xf32>
    %221 = arith.addf %202, %220 : vector<64x64xf32>
    %c1_102 = arith.constant 1 : index
    %c0_103 = arith.constant 0 : index
    %c0_104 = arith.constant 0 : index
    %222 = vector.load %arg13[%c1_102, %c0_103, %c0_104] : memref<3x1x64xf32, #tpu.memory_space<vmem>>, vector<1x1x64xf32>
    %223 = vector.shape_cast %222 : vector<1x1x64xf32> to vector<1x64xf32>
    %c1_105 = arith.constant 1 : index
    %c0_106 = arith.constant 0 : index
    %c0_107 = arith.constant 0 : index
    %224 = vector.load %arg14[%c1_105, %c0_106, %c0_107] : memref<3x1x64xf32, #tpu.memory_space<vmem>>, vector<1x1x64xf32>
    %225 = vector.shape_cast %224 : vector<1x1x64xf32> to vector<1x64xf32>
    %cst_108 = arith.constant dense<0.000000e+00> : vector<64xf32>
    %226 = vector.multi_reduction <add>, %221, %cst_108 [1] : vector<64x64xf32> to vector<64xf32>
    %227 = vector.shape_cast %226 : vector<64xf32> to vector<64x1xf32>
    %cst_109 = arith.constant 6.400000e+01 : f32
    %228 = vector.broadcast %cst_109 : f32 to vector<64x1xf32>
    %229 = arith.divf %227, %228 : vector<64x1xf32>
    %230 = vector.broadcast %229 : vector<64x1xf32> to vector<64x64xf32>
    %231 = arith.subf %221, %230 : vector<64x64xf32>
    %232 = arith.mulf %231, %231 : vector<64x64xf32>
    %cst_110 = arith.constant dense<0.000000e+00> : vector<64xf32>
    %233 = vector.multi_reduction <add>, %232, %cst_110 [1] : vector<64x64xf32> to vector<64xf32>
    %234 = vector.shape_cast %233 : vector<64xf32> to vector<64x1xf32>
    %cst_111 = arith.constant 6.400000e+01 : f32
    %235 = vector.broadcast %cst_111 : f32 to vector<64x1xf32>
    %236 = arith.divf %234, %235 : vector<64x1xf32>
    %cst_112 = arith.constant 9.99999974E-6 : f32
    %237 = vector.broadcast %cst_112 : f32 to vector<64x1xf32>
    %238 = arith.addf %236, %237 : vector<64x1xf32>
    %239 = math.rsqrt %238 : vector<64x1xf32>
    %240 = vector.broadcast %239 : vector<64x1xf32> to vector<64x64xf32>
    %241 = arith.mulf %231, %240 : vector<64x64xf32>
    %242 = vector.broadcast %223 : vector<1x64xf32> to vector<64x64xf32>
    %243 = arith.mulf %241, %242 : vector<64x64xf32>
    %244 = vector.broadcast %225 : vector<1x64xf32> to vector<64x64xf32>
    %245 = arith.addf %243, %244 : vector<64x64xf32>
    %c2 = arith.constant 2 : index
    %c0_113 = arith.constant 0 : index
    %c0_114 = arith.constant 0 : index
    %246 = vector.load %arg3[%c2, %c0_113, %c0_114] : memref<3x64x1536xbf16, #tpu.memory_space<vmem>>, vector<1x64x1536xbf16>
    %247 = vector.shape_cast %246 : vector<1x64x1536xbf16> to vector<64x1536xbf16>
    %248 = arith.truncf %245 : vector<64x64xf32> to vector<64x64xbf16>
    %cst_115 = arith.constant dense<0.000000e+00> : vector<64x1536xf32>
    %249 = tpu.matmul %248, %247, %cst_115 {dimension_numbers = #tpu.dot_dimension_numbers<[1], [0], [0], [1], [0, 0, 1, 1], [], []>} : vector<64x64xbf16>, vector<64x1536xbf16>, vector<64x1536xf32> -> vector<64x1536xf32>
    %c2_116 = arith.constant 2 : index
    %c0_117 = arith.constant 0 : index
    %c0_118 = arith.constant 0 : index
    %250 = vector.load %arg4[%c2_116, %c0_117, %c0_118] : memref<3x1x1536xf32, #tpu.memory_space<vmem>>, vector<1x1x1536xf32>
    %251 = vector.shape_cast %250 : vector<1x1x1536xf32> to vector<1x1536xf32>
    %252 = vector.broadcast %251 : vector<1x1536xf32> to vector<64x1536xf32>
    %253 = arith.addf %249, %252 : vector<64x1536xf32>
    %254 = arith.truncf %253 : vector<64x1536xf32> to vector<64x1536xbf16>
    %255 = vector.shape_cast %254 : vector<64x1536xbf16> to vector<4x16x1536xbf16>
    %256 = vector.extract_strided_slice %255 {offsets = [0, 0, 0], sizes = [4, 16, 128], strides = [1, 1, 1]} : vector<4x16x1536xbf16> to vector<4x16x128xbf16>
    %257 = vector.extract_strided_slice %255 {offsets = [0, 0, 128], sizes = [4, 16, 128], strides = [1, 1, 1]} : vector<4x16x1536xbf16> to vector<4x16x128xbf16>
    %258 = vector.extract_strided_slice %255 {offsets = [0, 0, 256], sizes = [4, 16, 128], strides = [1, 1, 1]} : vector<4x16x1536xbf16> to vector<4x16x128xbf16>
    %259 = vector.extract_strided_slice %255 {offsets = [0, 0, 384], sizes = [4, 16, 128], strides = [1, 1, 1]} : vector<4x16x1536xbf16> to vector<4x16x128xbf16>
    %260 = tpu.concatenate %256, %257, %258, %259 in 0 : vector<4x16x128xbf16>, vector<4x16x128xbf16>, vector<4x16x128xbf16>, vector<4x16x128xbf16> -> vector<16x16x128xbf16>
    %261 = vector.extract_strided_slice %255 {offsets = [0, 0, 512], sizes = [4, 16, 128], strides = [1, 1, 1]} : vector<4x16x1536xbf16> to vector<4x16x128xbf16>
    %262 = vector.extract_strided_slice %255 {offsets = [0, 0, 640], sizes = [4, 16, 128], strides = [1, 1, 1]} : vector<4x16x1536xbf16> to vector<4x16x128xbf16>
    %263 = vector.extract_strided_slice %255 {offsets = [0, 0, 768], sizes = [4, 16, 128], strides = [1, 1, 1]} : vector<4x16x1536xbf16> to vector<4x16x128xbf16>
    %264 = vector.extract_strided_slice %255 {offsets = [0, 0, 896], sizes = [4, 16, 128], strides = [1, 1, 1]} : vector<4x16x1536xbf16> to vector<4x16x128xbf16>
    %265 = tpu.concatenate %261, %262, %263, %264 in 0 : vector<4x16x128xbf16>, vector<4x16x128xbf16>, vector<4x16x128xbf16>, vector<4x16x128xbf16> -> vector<16x16x128xbf16>
    %266 = vector.extract_strided_slice %255 {offsets = [0, 0, 1024], sizes = [4, 16, 128], strides = [1, 1, 1]} : vector<4x16x1536xbf16> to vector<4x16x128xbf16>
    %267 = vector.extract_strided_slice %255 {offsets = [0, 0, 1152], sizes = [4, 16, 128], strides = [1, 1, 1]} : vector<4x16x1536xbf16> to vector<4x16x128xbf16>
    %268 = vector.extract_strided_slice %255 {offsets = [0, 0, 1280], sizes = [4, 16, 128], strides = [1, 1, 1]} : vector<4x16x1536xbf16> to vector<4x16x128xbf16>
    %269 = vector.extract_strided_slice %255 {offsets = [0, 0, 1408], sizes = [4, 16, 128], strides = [1, 1, 1]} : vector<4x16x1536xbf16> to vector<4x16x128xbf16>
    %270 = tpu.concatenate %266, %267, %268, %269 in 0 : vector<4x16x128xbf16>, vector<4x16x128xbf16>, vector<4x16x128xbf16>, vector<4x16x128xbf16> -> vector<16x16x128xbf16>
    "tpu.trace_start"() <{level = 10 : i32, message = "bqd,bkd->bqk"}> : () -> ()
    %cst_119 = arith.constant dense<0.000000e+00> : vector<16x16x16xf32>
    %271 = tpu.matmul %260, %265, %cst_119 {dimension_numbers = #tpu.dot_dimension_numbers<[2], [2], [1], [1], [0, 0, 0, 1, 1, 1], [0], [0]>} : vector<16x16x128xbf16>, vector<16x16x128xbf16>, vector<16x16x16xf32> -> vector<16x16x16xf32>
    "tpu.trace_stop"() : () -> ()
    %272 = arith.addf %271, %1 : vector<16x16x16xf32>
    %cst_120 = arith.constant dense<0xFF800000> : vector<16x16xf32>
    %273 = vector.multi_reduction <maximumf>, %272, %cst_120 [2] : vector<16x16x16xf32> to vector<16x16xf32>
    %274 = vector.shape_cast %273 : vector<16x16xf32> to vector<16x16x1xf32>
    %275 = vector.broadcast %274 : vector<16x16x1xf32> to vector<16x16x16xf32>
    %276 = arith.subf %272, %275 : vector<16x16x16xf32>
    %277 = math.exp %276 : vector<16x16x16xf32>
    %cst_121 = arith.constant dense<0.000000e+00> : vector<16x16xf32>
    %278 = vector.multi_reduction <add>, %277, %cst_121 [2] : vector<16x16x16xf32> to vector<16x16xf32>
    %279 = vector.shape_cast %278 : vector<16x16xf32> to vector<16x16x1xf32>
    %280 = arith.truncf %277 : vector<16x16x16xf32> to vector<16x16x16xbf16>
    "tpu.trace_start"() <{level = 10 : i32, message = "bqk,bkd->bqd"}> : () -> ()
    %cst_122 = arith.constant dense<0.000000e+00> : vector<16x16x128xf32>
    %281 = tpu.matmul %280, %270, %cst_122 {dimension_numbers = #tpu.dot_dimension_numbers<[2], [1], [1], [2], [0, 0, 0, 1, 1, 2], [0], [0]>} : vector<16x16x16xbf16>, vector<16x16x128xbf16>, vector<16x16x128xf32> -> vector<16x16x128xf32>
    "tpu.trace_stop"() : () -> ()
    %282 = tpu.reciprocal %279 {approx = true} : vector<16x16x1xf32> -> vector<16x16x1xf32>
    %283 = vector.broadcast %282 : vector<16x16x1xf32> to vector<16x16x128xf32>
    %284 = arith.mulf %281, %283 : vector<16x16x128xf32>
    %285 = vector.extract_strided_slice %284 {offsets = [0, 0, 0], sizes = [4, 16, 128], strides = [1, 1, 1]} : vector<16x16x128xf32> to vector<4x16x128xf32>
    %286 = vector.extract_strided_slice %284 {offsets = [4, 0, 0], sizes = [4, 16, 128], strides = [1, 1, 1]} : vector<16x16x128xf32> to vector<4x16x128xf32>
    %287 = vector.extract_strided_slice %284 {offsets = [8, 0, 0], sizes = [4, 16, 128], strides = [1, 1, 1]} : vector<16x16x128xf32> to vector<4x16x128xf32>
    %288 = vector.extract_strided_slice %284 {offsets = [12, 0, 0], sizes = [4, 16, 128], strides = [1, 1, 1]} : vector<16x16x128xf32> to vector<4x16x128xf32>
    %289 = tpu.concatenate %285, %286, %287, %288 in 2 : vector<4x16x128xf32>, vector<4x16x128xf32>, vector<4x16x128xf32>, vector<4x16x128xf32> -> vector<4x16x512xf32>
    %290 = vector.shape_cast %289 : vector<4x16x512xf32> to vector<64x512xf32>
    %c2_123 = arith.constant 2 : index
    %c0_124 = arith.constant 0 : index
    %c0_125 = arith.constant 0 : index
    %291 = vector.load %arg5[%c2_123, %c0_124, %c0_125] : memref<3x512x64xbf16, #tpu.memory_space<vmem>>, vector<1x512x64xbf16>
    %292 = vector.shape_cast %291 : vector<1x512x64xbf16> to vector<512x64xbf16>
    %293 = arith.truncf %290 : vector<64x512xf32> to vector<64x512xbf16>
    %cst_126 = arith.constant dense<0.000000e+00> : vector<64x64xf32>
    %294 = tpu.matmul %293, %292, %cst_126 {dimension_numbers = #tpu.dot_dimension_numbers<[1], [0], [0], [1], [0, 0, 1, 1], [], []>} : vector<64x512xbf16>, vector<512x64xbf16>, vector<64x64xf32> -> vector<64x64xf32>
    %c2_127 = arith.constant 2 : index
    %c0_128 = arith.constant 0 : index
    %c0_129 = arith.constant 0 : index
    %295 = vector.load %arg6[%c2_127, %c0_128, %c0_129] : memref<3x1x64xf32, #tpu.memory_space<vmem>>, vector<1x1x64xf32>
    %296 = vector.shape_cast %295 : vector<1x1x64xf32> to vector<1x64xf32>
    %297 = vector.broadcast %296 : vector<1x64xf32> to vector<64x64xf32>
    %298 = arith.addf %294, %297 : vector<64x64xf32>
    %299 = arith.addf %245, %298 : vector<64x64xf32>
    %c2_130 = arith.constant 2 : index
    %c0_131 = arith.constant 0 : index
    %c0_132 = arith.constant 0 : index
    %300 = vector.load %arg7[%c2_130, %c0_131, %c0_132] : memref<3x1x64xf32, #tpu.memory_space<vmem>>, vector<1x1x64xf32>
    %301 = vector.shape_cast %300 : vector<1x1x64xf32> to vector<1x64xf32>
    %c2_133 = arith.constant 2 : index
    %c0_134 = arith.constant 0 : index
    %c0_135 = arith.constant 0 : index
    %302 = vector.load %arg8[%c2_133, %c0_134, %c0_135] : memref<3x1x64xf32, #tpu.memory_space<vmem>>, vector<1x1x64xf32>
    %303 = vector.shape_cast %302 : vector<1x1x64xf32> to vector<1x64xf32>
    %cst_136 = arith.constant dense<0.000000e+00> : vector<64xf32>
    %304 = vector.multi_reduction <add>, %299, %cst_136 [1] : vector<64x64xf32> to vector<64xf32>
    %305 = vector.shape_cast %304 : vector<64xf32> to vector<64x1xf32>
    %cst_137 = arith.constant 6.400000e+01 : f32
    %306 = vector.broadcast %cst_137 : f32 to vector<64x1xf32>
    %307 = arith.divf %305, %306 : vector<64x1xf32>
    %308 = vector.broadcast %307 : vector<64x1xf32> to vector<64x64xf32>
    %309 = arith.subf %299, %308 : vector<64x64xf32>
    %310 = arith.mulf %309, %309 : vector<64x64xf32>
    %cst_138 = arith.constant dense<0.000000e+00> : vector<64xf32>
    %311 = vector.multi_reduction <add>, %310, %cst_138 [1] : vector<64x64xf32> to vector<64xf32>
    %312 = vector.shape_cast %311 : vector<64xf32> to vector<64x1xf32>
    %cst_139 = arith.constant 6.400000e+01 : f32
    %313 = vector.broadcast %cst_139 : f32 to vector<64x1xf32>
    %314 = arith.divf %312, %313 : vector<64x1xf32>
    %cst_140 = arith.constant 9.99999974E-6 : f32
    %315 = vector.broadcast %cst_140 : f32 to vector<64x1xf32>
    %316 = arith.addf %314, %315 : vector<64x1xf32>
    %317 = math.rsqrt %316 : vector<64x1xf32>
    %318 = vector.broadcast %317 : vector<64x1xf32> to vector<64x64xf32>
    %319 = arith.mulf %309, %318 : vector<64x64xf32>
    %320 = vector.broadcast %301 : vector<1x64xf32> to vector<64x64xf32>
    %321 = arith.mulf %319, %320 : vector<64x64xf32>
    %322 = vector.broadcast %303 : vector<1x64xf32> to vector<64x64xf32>
    %323 = arith.addf %321, %322 : vector<64x64xf32>
    %c2_141 = arith.constant 2 : index
    %c0_142 = arith.constant 0 : index
    %c0_143 = arith.constant 0 : index
    %324 = vector.load %arg9[%c2_141, %c0_142, %c0_143] : memref<3x64x64xbf16, #tpu.memory_space<vmem>>, vector<1x64x64xbf16>
    %325 = vector.shape_cast %324 : vector<1x64x64xbf16> to vector<64x64xbf16>
    %326 = arith.truncf %323 : vector<64x64xf32> to vector<64x64xbf16>
    %cst_144 = arith.constant dense<0.000000e+00> : vector<64x64xf32>
    %327 = tpu.matmul %326, %325, %cst_144 {dimension_numbers = #tpu.dot_dimension_numbers<[1], [0], [0], [1], [0, 0, 1, 1], [], []>} : vector<64x64xbf16>, vector<64x64xbf16>, vector<64x64xf32> -> vector<64x64xf32>
    %c2_145 = arith.constant 2 : index
    %c0_146 = arith.constant 0 : index
    %c0_147 = arith.constant 0 : index
    %328 = vector.load %arg10[%c2_145, %c0_146, %c0_147] : memref<3x1x64xf32, #tpu.memory_space<vmem>>, vector<1x1x64xf32>
    %329 = vector.shape_cast %328 : vector<1x1x64xf32> to vector<1x64xf32>
    %330 = vector.broadcast %329 : vector<1x64xf32> to vector<64x64xf32>
    %331 = arith.addf %327, %330 : vector<64x64xf32>
    %cst_148 = arith.constant 0.000000e+00 : f32
    %332 = vector.broadcast %cst_148 : f32 to vector<64x64xf32>
    %333 = arith.maximumf %331, %332 : vector<64x64xf32>
    %c2_149 = arith.constant 2 : index
    %c0_150 = arith.constant 0 : index
    %c0_151 = arith.constant 0 : index
    %334 = vector.load %arg11[%c2_149, %c0_150, %c0_151] : memref<3x64x64xbf16, #tpu.memory_space<vmem>>, vector<1x64x64xbf16>
    %335 = vector.shape_cast %334 : vector<1x64x64xbf16> to vector<64x64xbf16>
    %336 = arith.truncf %333 : vector<64x64xf32> to vector<64x64xbf16>
    %cst_152 = arith.constant dense<0.000000e+00> : vector<64x64xf32>
    %337 = tpu.matmul %336, %335, %cst_152 {dimension_numbers = #tpu.dot_dimension_numbers<[1], [0], [0], [1], [0, 0, 1, 1], [], []>} : vector<64x64xbf16>, vector<64x64xbf16>, vector<64x64xf32> -> vector<64x64xf32>
    %c2_153 = arith.constant 2 : index
    %c0_154 = arith.constant 0 : index
    %c0_155 = arith.constant 0 : index
    %338 = vector.load %arg12[%c2_153, %c0_154, %c0_155] : memref<3x1x64xf32, #tpu.memory_space<vmem>>, vector<1x1x64xf32>
    %339 = vector.shape_cast %338 : vector<1x1x64xf32> to vector<1x64xf32>
    %340 = vector.broadcast %339 : vector<1x64xf32> to vector<64x64xf32>
    %341 = arith.addf %337, %340 : vector<64x64xf32>
    %342 = arith.addf %323, %341 : vector<64x64xf32>
    %c2_156 = arith.constant 2 : index
    %c0_157 = arith.constant 0 : index
    %c0_158 = arith.constant 0 : index
    %343 = vector.load %arg13[%c2_156, %c0_157, %c0_158] : memref<3x1x64xf32, #tpu.memory_space<vmem>>, vector<1x1x64xf32>
    %344 = vector.shape_cast %343 : vector<1x1x64xf32> to vector<1x64xf32>
    %c2_159 = arith.constant 2 : index
    %c0_160 = arith.constant 0 : index
    %c0_161 = arith.constant 0 : index
    %345 = vector.load %arg14[%c2_159, %c0_160, %c0_161] : memref<3x1x64xf32, #tpu.memory_space<vmem>>, vector<1x1x64xf32>
    %346 = vector.shape_cast %345 : vector<1x1x64xf32> to vector<1x64xf32>
    %cst_162 = arith.constant dense<0.000000e+00> : vector<64xf32>
    %347 = vector.multi_reduction <add>, %342, %cst_162 [1] : vector<64x64xf32> to vector<64xf32>
    %348 = vector.shape_cast %347 : vector<64xf32> to vector<64x1xf32>
    %cst_163 = arith.constant 6.400000e+01 : f32
    %349 = vector.broadcast %cst_163 : f32 to vector<64x1xf32>
    %350 = arith.divf %348, %349 : vector<64x1xf32>
    %351 = vector.broadcast %350 : vector<64x1xf32> to vector<64x64xf32>
    %352 = arith.subf %342, %351 : vector<64x64xf32>
    %353 = arith.mulf %352, %352 : vector<64x64xf32>
    %cst_164 = arith.constant dense<0.000000e+00> : vector<64xf32>
    %354 = vector.multi_reduction <add>, %353, %cst_164 [1] : vector<64x64xf32> to vector<64xf32>
    %355 = vector.shape_cast %354 : vector<64xf32> to vector<64x1xf32>
    %cst_165 = arith.constant 6.400000e+01 : f32
    %356 = vector.broadcast %cst_165 : f32 to vector<64x1xf32>
    %357 = arith.divf %355, %356 : vector<64x1xf32>
    %cst_166 = arith.constant 9.99999974E-6 : f32
    %358 = vector.broadcast %cst_166 : f32 to vector<64x1xf32>
    %359 = arith.addf %357, %358 : vector<64x1xf32>
    %360 = math.rsqrt %359 : vector<64x1xf32>
    %361 = vector.broadcast %360 : vector<64x1xf32> to vector<64x64xf32>
    %362 = arith.mulf %352, %361 : vector<64x64xf32>
    %363 = vector.broadcast %344 : vector<1x64xf32> to vector<64x64xf32>
    %364 = arith.mulf %362, %363 : vector<64x64xf32>
    %365 = vector.broadcast %346 : vector<1x64xf32> to vector<64x64xf32>
    %366 = arith.addf %364, %365 : vector<64x64xf32>
    %c0_167 = arith.constant 0 : index
    %c0_168 = arith.constant 0 : index
    %367 = vector.load %arg15[%c0_167, %c0_168] : memref<1x64xf32, #tpu.memory_space<vmem>>, vector<1x64xf32>
    %c0_169 = arith.constant 0 : index
    %c0_170 = arith.constant 0 : index
    %368 = vector.load %arg16[%c0_169, %c0_170] : memref<1x64xf32, #tpu.memory_space<vmem>>, vector<1x64xf32>
    %cst_171 = arith.constant dense<0.000000e+00> : vector<64xf32>
    %369 = vector.multi_reduction <add>, %366, %cst_171 [1] : vector<64x64xf32> to vector<64xf32>
    %370 = vector.shape_cast %369 : vector<64xf32> to vector<64x1xf32>
    %cst_172 = arith.constant 6.400000e+01 : f32
    %371 = vector.broadcast %cst_172 : f32 to vector<64x1xf32>
    %372 = arith.divf %370, %371 : vector<64x1xf32>
    %373 = vector.broadcast %372 : vector<64x1xf32> to vector<64x64xf32>
    %374 = arith.subf %366, %373 : vector<64x64xf32>
    %375 = arith.mulf %374, %374 : vector<64x64xf32>
    %cst_173 = arith.constant dense<0.000000e+00> : vector<64xf32>
    %376 = vector.multi_reduction <add>, %375, %cst_173 [1] : vector<64x64xf32> to vector<64xf32>
    %377 = vector.shape_cast %376 : vector<64xf32> to vector<64x1xf32>
    %cst_174 = arith.constant 6.400000e+01 : f32
    %378 = vector.broadcast %cst_174 : f32 to vector<64x1xf32>
    %379 = arith.divf %377, %378 : vector<64x1xf32>
    %cst_175 = arith.constant 9.99999974E-6 : f32
    %380 = vector.broadcast %cst_175 : f32 to vector<64x1xf32>
    %381 = arith.addf %379, %380 : vector<64x1xf32>
    %382 = math.rsqrt %381 : vector<64x1xf32>
    %383 = vector.broadcast %382 : vector<64x1xf32> to vector<64x64xf32>
    %384 = arith.mulf %374, %383 : vector<64x64xf32>
    %385 = vector.broadcast %367 : vector<1x64xf32> to vector<64x64xf32>
    %386 = arith.mulf %384, %385 : vector<64x64xf32>
    %387 = vector.broadcast %368 : vector<1x64xf32> to vector<64x64xf32>
    %388 = arith.addf %386, %387 : vector<64x64xf32>
    %c0_176 = arith.constant 0 : index
    %c0_177 = arith.constant 0 : index
    %389 = vector.load %arg17[%c0_176, %c0_177] : memref<64x128xbf16, #tpu.memory_space<vmem>>, vector<64x128xbf16>
    %390 = arith.truncf %388 : vector<64x64xf32> to vector<64x64xbf16>
    %cst_178 = arith.constant dense<0.000000e+00> : vector<64x128xf32>
    %391 = tpu.matmul %390, %389, %cst_178 {dimension_numbers = #tpu.dot_dimension_numbers<[1], [0], [0], [1], [0, 0, 1, 1], [], []>} : vector<64x64xbf16>, vector<64x128xbf16>, vector<64x128xf32> -> vector<64x128xf32>
    %c0_179 = arith.constant 0 : index
    %c0_180 = arith.constant 0 : index
    %392 = vector.load %arg18[%c0_179, %c0_180] : memref<1x128xf32, #tpu.memory_space<vmem>>, vector<1x128xf32>
    %393 = vector.broadcast %392 : vector<1x128xf32> to vector<64x128xf32>
    %394 = arith.addf %391, %393 : vector<64x128xf32>
    %395 = vector.shape_cast %394 : vector<64x128xf32> to vector<4x16x128xf32>
    %396 = arith.truncf %395 : vector<4x16x128xf32> to vector<4x16x128xbf16>
    %c0_181 = arith.constant 0 : index
    %c0_182 = arith.constant 0 : index
    %c0_183 = arith.constant 0 : index
    %397 = vector.load %arg19[%c0_181, %c0_182, %c0_183] : memref<4x16x128xbf16, #tpu.memory_space<vmem>>, vector<4x16x128xbf16>
    tpu.vector_store %arg19[%c0_181, %c0_182, %c0_183], %396 {strides = array<i32>} : memref<4x16x128xbf16, #tpu.memory_space<vmem>>, vector<4x16x128xbf16>,
    return
  }
  func.func @transform_0(%arg0: i32) -> (i32, i32, i32) {
    %c0_i32 = arith.constant 0 : i32
    %c0_i32_0 = arith.constant 0 : i32
    %c0_i32_1 = arith.constant 0 : i32
    return %arg0, %c0_i32, %c0_i32_0 : i32, i32, i32
  }
  func.func @transform_1(%arg0: i32) -> (i32, i32, i32) {
    %c0_i32 = arith.constant 0 : i32
    %c0_i32_0 = arith.constant 0 : i32
    %c0_i32_1 = arith.constant 0 : i32
    return %arg0, %c0_i32, %c0_i32_0 : i32, i32, i32
  }
  func.func @transform_2(%arg0: i32) -> (i32, i32, i32) {
    %c0_i32 = arith.constant 0 : i32
    %c0_i32_0 = arith.constant 0 : i32
    %c0_i32_1 = arith.constant 0 : i32
    %c0_i32_2 = arith.constant 0 : i32
    return %c0_i32, %c0_i32_0, %c0_i32_1 : i32, i32, i32
  }
  func.func @transform_3(%arg0: i32) -> (i32, i32, i32) {
    %c0_i32 = arith.constant 0 : i32
    %c0_i32_0 = arith.constant 0 : i32
    %c0_i32_1 = arith.constant 0 : i32
    %c0_i32_2 = arith.constant 0 : i32
    return %c0_i32, %c0_i32_0, %c0_i32_1 : i32, i32, i32
  }
  func.func @transform_4(%arg0: i32) -> (i32, i32, i32) {
    %c0_i32 = arith.constant 0 : i32
    %c0_i32_0 = arith.constant 0 : i32
    %c0_i32_1 = arith.constant 0 : i32
    %c0_i32_2 = arith.constant 0 : i32
    return %c0_i32, %c0_i32_0, %c0_i32_1 : i32, i32, i32
  }
  func.func @transform_5(%arg0: i32) -> (i32, i32, i32) {
    %c0_i32 = arith.constant 0 : i32
    %c0_i32_0 = arith.constant 0 : i32
    %c0_i32_1 = arith.constant 0 : i32
    %c0_i32_2 = arith.constant 0 : i32
    return %c0_i32, %c0_i32_0, %c0_i32_1 : i32, i32, i32
  }
  func.func @transform_6(%arg0: i32) -> (i32, i32, i32) {
    %c0_i32 = arith.constant 0 : i32
    %c0_i32_0 = arith.constant 0 : i32
    %c0_i32_1 = arith.constant 0 : i32
    %c0_i32_2 = arith.constant 0 : i32
    return %c0_i32, %c0_i32_0, %c0_i32_1 : i32, i32, i32
  }
  func.func @transform_7(%arg0: i32) -> (i32, i32, i32) {
    %c0_i32 = arith.constant 0 : i32
    %c0_i32_0 = arith.constant 0 : i32
    %c0_i32_1 = arith.constant 0 : i32
    %c0_i32_2 = arith.constant 0 : i32
    return %c0_i32, %c0_i32_0, %c0_i32_1 : i32, i32, i32
  }
  func.func @transform_8(%arg0: i32) -> (i32, i32, i32) {
    %c0_i32 = arith.constant 0 : i32
    %c0_i32_0 = arith.constant 0 : i32
    %c0_i32_1 = arith.constant 0 : i32
    %c0_i32_2 = arith.constant 0 : i32
    return %c0_i32, %c0_i32_0, %c0_i32_1 : i32, i32, i32
  }
  func.func @transform_9(%arg0: i32) -> (i32, i32, i32) {
    %c0_i32 = arith.constant 0 : i32
    %c0_i32_0 = arith.constant 0 : i32
    %c0_i32_1 = arith.constant 0 : i32
    %c0_i32_2 = arith.constant 0 : i32
    return %c0_i32, %c0_i32_0, %c0_i32_1 : i32, i32, i32
  }
  func.func @transform_10(%arg0: i32) -> (i32, i32, i32) {
    %c0_i32 = arith.constant 0 : i32
    %c0_i32_0 = arith.constant 0 : i32
    %c0_i32_1 = arith.constant 0 : i32
    %c0_i32_2 = arith.constant 0 : i32
    return %c0_i32, %c0_i32_0, %c0_i32_1 : i32, i32, i32
  }
  func.func @transform_11(%arg0: i32) -> (i32, i32, i32) {
    %c0_i32 = arith.constant 0 : i32
    %c0_i32_0 = arith.constant 0 : i32
    %c0_i32_1 = arith.constant 0 : i32
    %c0_i32_2 = arith.constant 0 : i32
    return %c0_i32, %c0_i32_0, %c0_i32_1 : i32, i32, i32
  }
  func.func @transform_12(%arg0: i32) -> (i32, i32, i32) {
    %c0_i32 = arith.constant 0 : i32
    %c0_i32_0 = arith.constant 0 : i32
    %c0_i32_1 = arith.constant 0 : i32
    %c0_i32_2 = arith.constant 0 : i32
    return %c0_i32, %c0_i32_0, %c0_i32_1 : i32, i32, i32
  }
  func.func @transform_13(%arg0: i32) -> (i32, i32, i32) {
    %c0_i32 = arith.constant 0 : i32
    %c0_i32_0 = arith.constant 0 : i32
    %c0_i32_1 = arith.constant 0 : i32
    %c0_i32_2 = arith.constant 0 : i32
    return %c0_i32, %c0_i32_0, %c0_i32_1 : i32, i32, i32
  }
  func.func @transform_14(%arg0: i32) -> (i32, i32) {
    %c0_i32 = arith.constant 0 : i32
    %c0_i32_0 = arith.constant 0 : i32
    %c0_i32_1 = arith.constant 0 : i32
    return %c0_i32, %c0_i32_0 : i32, i32
  }
  func.func @transform_15(%arg0: i32) -> (i32, i32) {
    %c0_i32 = arith.constant 0 : i32
    %c0_i32_0 = arith.constant 0 : i32
    %c0_i32_1 = arith.constant 0 : i32
    return %c0_i32, %c0_i32_0 : i32, i32
  }
  func.func @transform_16(%arg0: i32) -> (i32, i32) {
    %c0_i32 = arith.constant 0 : i32
    %c0_i32_0 = arith.constant 0 : i32
    %c0_i32_1 = arith.constant 0 : i32
    return %c0_i32, %c0_i32_0 : i32, i32
  }
  func.func @transform_17(%arg0: i32) -> (i32, i32) {
    %c0_i32 = arith.constant 0 : i32
    %c0_i32_0 = arith.constant 0 : i32
    %c0_i32_1 = arith.constant 0 : i32
    return %c0_i32, %c0_i32_0 : i32, i32
  }
  func.func @transform_18(%arg0: i32) -> (i32, i32, i32) {
    %c0_i32 = arith.constant 0 : i32
    %c0_i32_0 = arith.constant 0 : i32
    %c0_i32_1 = arith.constant 0 : i32
    return %arg0, %c0_i32, %c0_i32_0 : i32, i32, i32
  }
}

</mosaic_0001>

<llo_original>
// kernel: tpu_custom_call.1
$region0: #{tpu_custom_call.1}
  #allocation0 [shape = 'u32[]', space=smem, size = 0x4, offset = 0x4, fixed_abs, tag = 'smem constant byte address 0x4 - core index']
  #allocation1 [shape = 'u32[144,128]{1,0:T(1,128)}', space=vmem, size = 0x12000, scoped, tag = 'internal scratch']
  %s0 = inlined_call_operand.hbm [shape: f32[4,16,16], index: 0, kind: input, shape index: {}]
  %s1 = inlined_call_operand.hbm [shape: f32[4,16,64], index: 1, kind: input, shape index: {}]
  %s2 = inlined_call_operand.hbm [shape: bf16[3,64,1536], index: 2, kind: input, shape index: {}]
  %s3 = inlined_call_operand.hbm [shape: f32[3,1,1536], index: 3, kind: input, shape index: {}]
  %s4 = inlined_call_operand.hbm [shape: bf16[3,512,64], index: 4, kind: input, shape index: {}]
  %s5 = inlined_call_operand.hbm [shape: f32[3,1,64], index: 5, kind: input, shape index: {}]
  %s6 = inlined_call_operand.hbm [shape: f32[3,1,64], index: 6, kind: input, shape index: {}]
  %s7 = inlined_call_operand.hbm [shape: f32[3,1,64], index: 7, kind: input, shape index: {}]
  %s8 = inlined_call_operand.hbm [shape: bf16[3,64,64], index: 8, kind: input, shape index: {}]
  %s9 = inlined_call_operand.hbm [shape: f32[3,1,64], index: 9, kind: input, shape index: {}]
  %s10 = inlined_call_operand.hbm [shape: bf16[3,64,64], index: 10, kind: input, shape index: {}]
  %s11 = inlined_call_operand.hbm [shape: f32[3,1,64], index: 11, kind: input, shape index: {}]
  %s12 = inlined_call_operand.hbm [shape: f32[3,1,64], index: 12, kind: input, shape index: {}]
  %s13 = inlined_call_operand.hbm [shape: f32[3,1,64], index: 13, kind: input, shape index: {}]
  %s14 = inlined_call_operand.hbm [shape: f32[1,64], index: 14, kind: input, shape index: {}]
  %s15 = inlined_call_operand.hbm [shape: f32[1,64], index: 15, kind: input, shape index: {}]
  %s16 = inlined_call_operand.hbm [shape: bf16[64,128], index: 16, kind: input, shape index: {}]
  %s17 = inlined_call_operand.hbm [shape: f32[1,128], index: 17, kind: input, shape index: {}]
  %s18 = inlined_call_operand.hbm [shape: bf16[4,16,128], index: 18, kind: output, shape index: {}]
  %s19 = sld [smem:[#allocation0]]
  $region154: #{tpu_custom_call.1} parent=0
    _
  %s21 = ssub.s32 1, %s19
  %s22 = scalar_select 0, %s21, %s19
  $region1: #{tpu_custom_call.1} parent=0
    #allocation2 [shape = 'u8[32768]{0}', space=vmem, size = 0x8000, scoped, tag = 'input window, operand 0, single buffered']
    #allocation3 [shape = 's32[1]{0}', space=sflag, size = 0x4, scoped, tag = 'scoped memory for tpu_custom_call.1']
    #allocation4 [shape = 's32[1]{0}', space=sflag, size = 0x4, scoped, tag = 'scoped memory for tpu_custom_call.1']
    #allocation5 [shape = 'u8[32768]{0}', space=vmem, size = 0x8000, scoped, tag = 'input window, operand 1, single buffered']
    #allocation6 [shape = 's32[1]{0}', space=sflag, size = 0x4, scoped, tag = 'scoped memory for tpu_custom_call.1']
    #allocation7 [shape = 'u8[589824]{0}', space=vmem, size = 0x90000, scoped, tag = 'input window, operand 2, single buffered']
    #allocation8 [shape = 'u8[18432]{0}', space=vmem, size = 0x4800, scoped, tag = 'input window, operand 3, single buffered']
    #allocation9 [shape = 's32[1]{0}', space=sflag, size = 0x4, scoped, tag = 'scoped memory for tpu_custom_call.1']
    #allocation10 [shape = 'u8[393216]{0}', space=vmem, size = 0x60000, scoped, tag = 'input window, operand 4, single buffered']
    #allocation11 [shape = 'u8[1536]{0}', space=vmem, size = 0x800, scoped, tag = 'input window, operand 5, single buffered']
    #allocation12 [shape = 's32[1]{0}', space=sflag, size = 0x4, scoped, tag = 'scoped memory for tpu_custom_call.1']
    #allocation13 [shape = 'u8[1536]{0}', space=vmem, size = 0x800, scoped, tag = 'input window, operand 6, single buffered']
    #allocation14 [shape = 'u8[1536]{0}', space=vmem, size = 0x800, scoped, tag = 'input window, operand 7, single buffered']
    #allocation15 [shape = 's32[1]{0}', space=sflag, size = 0x4, scoped, tag = 'scoped memory for tpu_custom_call.1']
    #allocation16 [shape = 'u8[49152]{0}', space=vmem, size = 0xc000, scoped, tag = 'input window, operand 8, single buffered']
    #allocation17 [shape = 'u8[1536]{0}', space=vmem, size = 0x800, scoped, tag = 'input window, operand 9, single buffered']
    #allocation18 [shape = 's32[1]{0}', space=sflag, size = 0x4, scoped, tag = 'scoped memory for tpu_custom_call.1']
    #allocation19 [shape = 'u8[49152]{0}', space=vmem, size = 0xc000, scoped, tag = 'input window, operand 10, single buffered']
    #allocation20 [shape = 'u8[1536]{0}', space=vmem, size = 0x800, scoped, tag = 'input window, operand 11, single buffered']
    #allocation21 [shape = 's32[1]{0}', space=sflag, size = 0x4, scoped, tag = 'scoped memory for tpu_custom_call.1']
    #allocation22 [shape = 'u8[1536]{0}', space=vmem, size = 0x800, scoped, tag = 'input window, operand 12, single buffered']
    #allocation23 [shape = 'u8[1536]{0}', space=vmem, size = 0x800, scoped, tag = 'input window, operand 13, single buffered']
    #allocation24 [shape = 's32[1]{0}', space=sflag, size = 0x4, scoped, tag = 'scoped memory for tpu_custom_call.1']
    #allocation25 [shape = 'u8[512]{0}', space=vmem, size = 0x400, scoped, tag = 'input window, operand 14, single buffered']
    #allocation26 [shape = 'u8[512]{0}', space=vmem, size = 0x400, scoped, tag = 'input window, operand 15, single buffered']
    #allocation27 [shape = 's32[1]{0}', space=sflag, size = 0x4, scoped, tag = 'scoped memory for tpu_custom_call.1']
    #allocation28 [shape = 'u8[16384]{0}', space=vmem, size = 0x4000, scoped, tag = 'input window, operand 16, single buffered']
    #allocation29 [shape = 'u8[512]{0}', space=vmem, size = 0x400, scoped, tag = 'input window, operand 17, single buffered']
    #allocation30 [shape = 's32[1]{0}', space=sflag, size = 0x4, scoped, tag = 'scoped memory for tpu_custom_call.1']
    #allocation31 [shape = 'u8[16384]{0}', space=vmem, size = 0x4000, scoped, tag = 'output window, operand 0, single buffered']
    %23 = vsyncpa [#allocation3], 0
    %24 = vsyncpa [#allocation6], 0
    %25 = vsyncpa [#allocation9], 0
    %26 = vsyncpa [#allocation12], 0
    %27 = vsyncpa [#allocation15], 0
    %28 = vsyncpa [#allocation18], 0
    %29 = vsyncpa [#allocation21], 0
    %30 = vsyncpa [#allocation24], 0
    %31 = vsyncpa [#allocation27], 0
    %32 = vsyncpa [#allocation30], 0
    %33 = vsyncpa [#allocation4], 0
    // Predicated region
    $region2: #{tpu_custom_call.1} parent=1 // pred_check
      _
    $region3: #{tpu_custom_call.1} parent=1 // pred_check_branch
      %35 = sbr.rel (0) target = $region5
    $region4: #{tpu_custom_call.1} parent=1 // pred_region
      %s37 = ssub.s32 1024, 1024
      %38 = vsyncadd [#allocation3], %s37
      %s39 = sshll.u32 [#allocation2], 4
      %s40 = int_to_ptr.vmem [resolvable:$true] %s39
      %45 = dma.hbm_to_vmem [thread:$0]  %s0, 1024, %s40, [#allocation3], 128, 128, 8
    $region5: #{tpu_custom_call.1} parent=1 // pred_fallthru
      _
    // Predicated region
    $region6: #{tpu_custom_call.1} parent=1 // pred_check
      _
    $region7: #{tpu_custom_call.1} parent=1 // pred_check_branch
      %47 = sbr.rel (0) target = $region9
    $region8: #{tpu_custom_call.1} parent=1 // pred_region
      %s49 = ssub.s32 1024, 1024
      %50 = vsyncadd [#allocation6], %s49
      %s51 = sshll.u32 [#allocation5], 4
      %s52 = int_to_ptr.vmem [resolvable:$true] %s51
      %57 = dma.hbm_to_vmem [thread:$0]  %s1, 1024, %s52, [#allocation6], 128, 128, 8
    $region9: #{tpu_custom_call.1} parent=1 // pred_fallthru
      _
    // Predicated region
    $region10: #{tpu_custom_call.1} parent=1 // pred_check
      _
    $region11: #{tpu_custom_call.1} parent=1 // pred_check_branch
      %59 = sbr.rel (0) target = $region13
    $region12: #{tpu_custom_call.1} parent=1 // pred_region
      %s61 = ssub.s32 18432, 18432
      %62 = vsyncadd [#allocation6], %s61
      %s63 = sshll.u32 [#allocation7], 4
      %s64 = int_to_ptr.vmem [resolvable:$true] %s63
      %69 = dma.hbm_to_vmem [thread:$0]  %s2, 18432, %s64, [#allocation6], 768, 768, 48
    $region13: #{tpu_custom_call.1} parent=1 // pred_fallthru
      _
    // Predicated region
    $region14: #{tpu_custom_call.1} parent=1 // pred_check
      _
    $region15: #{tpu_custom_call.1} parent=1 // pred_check_branch
      %71 = sbr.rel (0) target = $region17
    $region16: #{tpu_custom_call.1} parent=1 // pred_region
      %s73 = ssub.s32 576, 576
      %74 = vsyncadd [#allocation9], %s73
      %s75 = sshll.u32 [#allocation8], 4
      %s76 = int_to_ptr.vmem [resolvable:$true] %s75
      %81 = dma.hbm_to_vmem [thread:$0]  %s3, 576, %s76, [#allocation9], 192, 192, 12
    $region17: #{tpu_custom_call.1} parent=1 // pred_fallthru
      _
    // Predicated region
    $region18: #{tpu_custom_call.1} parent=1 // pred_check
      _
    $region19: #{tpu_custom_call.1} parent=1 // pred_check_branch
      %83 = sbr.rel (0) target = $region21
    $region20: #{tpu_custom_call.1} parent=1 // pred_region
      %s85 = ssub.s32 12288, 12288
      %86 = vsyncadd [#allocation9], %s85
      %s87 = sshll.u32 [#allocation10], 4
      %s88 = int_to_ptr.vmem [resolvable:$true] %s87
      %93 = dma.hbm_to_vmem [thread:$0]  %s4, 12288, %s88, [#allocation9], 64, 64, 4
    $region21: #{tpu_custom_call.1} parent=1 // pred_fallthru
      _
    // Predicated region
    $region22: #{tpu_custom_call.1} parent=1 // pred_check
      _
    $region23: #{tpu_custom_call.1} parent=1 // pred_check_branch
      %95 = sbr.rel (0) target = $region25
    $region24: #{tpu_custom_call.1} parent=1 // pred_region
      %s97 = ssub.s32 48, 48
      %98 = vsyncadd [#allocation12], %s97
      %s99 = sshll.u32 [#allocation11], 4
      %s100 = int_to_ptr.vmem [resolvable:$true] %s99
      %105 = dma.hbm_to_vmem [thread:$0]  %s5, 48, %s100, [#allocation12], 16, 16, 1
    $region25: #{tpu_custom_call.1} parent=1 // pred_fallthru
      _
    // Predicated region
    $region26: #{tpu_custom_call.1} parent=1 // pred_check
      _
    $region27: #{tpu_custom_call.1} parent=1 // pred_check_branch
      %107 = sbr.rel (0) target = $region29
    $region28: #{tpu_custom_call.1} parent=1 // pred_region
      %s109 = ssub.s32 48, 48
      %110 = vsyncadd [#allocation12], %s109
      %s111 = sshll.u32 [#allocation13], 4
      %s112 = int_to_ptr.vmem [resolvable:$true] %s111
      %117 = dma.hbm_to_vmem [thread:$0]  %s6, 48, %s112, [#allocation12], 16, 16, 1
    $region29: #{tpu_custom_call.1} parent=1 // pred_fallthru
      _
    // Predicated region
    $region30: #{tpu_custom_call.1} parent=1 // pred_check
      _
    $region31: #{tpu_custom_call.1} parent=1 // pred_check_branch
      %119 = sbr.rel (0) target = $region33
    $region32: #{tpu_custom_call.1} parent=1 // pred_region
      %s121 = ssub.s32 48, 48
      %122 = vsyncadd [#allocation15], %s121
      %s123 = sshll.u32 [#allocation14], 4
      %s124 = int_to_ptr.vmem [resolvable:$true] %s123
      %129 = dma.hbm_to_vmem [thread:$0]  %s7, 48, %s124, [#allocation15], 16, 16, 1
    $region33: #{tpu_custom_call.1} parent=1 // pred_fallthru
      _
    // Predicated region
    $region34: #{tpu_custom_call.1} parent=1 // pred_check
      _
    $region35: #{tpu_custom_call.1} parent=1 // pred_check_branch
      %131 = sbr.rel (0) target = $region37
    $region36: #{tpu_custom_call.1} parent=1 // pred_region
      %s133 = ssub.s32 1536, 1536
      %134 = vsyncadd [#allocation15], %s133
      %s135 = sshll.u32 [#allocation16], 4
      %s136 = int_to_ptr.vmem [resolvable:$true] %s135
      %141 = dma.hbm_to_vmem [thread:$0]  %s8, 1536, %s136, [#allocation15], 64, 64, 4
    $region37: #{tpu_custom_call.1} parent=1 // pred_fallthru
      _
    // Predicated region
    $region38: #{tpu_custom_call.1} parent=1 // pred_check
      _
    $region39: #{tpu_custom_call.1} parent=1 // pred_check_branch
      %143 = sbr.rel (0) target = $region41
    $region40: #{tpu_custom_call.1} parent=1 // pred_region
      %s145 = ssub.s32 48, 48
      %146 = vsyncadd [#allocation18], %s145
      %s147 = sshll.u32 [#allocation17], 4
      %s148 = int_to_ptr.vmem [resolvable:$true] %s147
      %153 = dma.hbm_to_vmem [thread:$0]  %s9, 48, %s148, [#allocation18], 16, 16, 1
    $region41: #{tpu_custom_call.1} parent=1 // pred_fallthru
      _
    // Predicated region
    $region42: #{tpu_custom_call.1} parent=1 // pred_check
      _
    $region43: #{tpu_custom_call.1} parent=1 // pred_check_branch
      %155 = sbr.rel (0) target = $region45
    $region44: #{tpu_custom_call.1} parent=1 // pred_region
      %s157 = ssub.s32 1536, 1536
      %158 = vsyncadd [#allocation18], %s157
      %s159 = sshll.u32 [#allocation19], 4
      %s160 = int_to_ptr.vmem [resolvable:$true] %s159
      %165 = dma.hbm_to_vmem [thread:$0]  %s10, 1536, %s160, [#allocation18], 64, 64, 4
    $region45: #{tpu_custom_call.1} parent=1 // pred_fallthru
      _
    // Predicated region
    $region46: #{tpu_custom_call.1} parent=1 // pred_check
      _
    $region47: #{tpu_custom_call.1} parent=1 // pred_check_branch
      %167 = sbr.rel (0) target = $region49
    $region48: #{tpu_custom_call.1} parent=1 // pred_region
      %s169 = ssub.s32 48, 48
      %170 = vsyncadd [#allocation21], %s169
      %s171 = sshll.u32 [#allocation20], 4
      %s172 = int_to_ptr.vmem [resolvable:$true] %s171
      %177 = dma.hbm_to_vmem [thread:$0]  %s11, 48, %s172, [#allocation21], 16, 16, 1
    $region49: #{tpu_custom_call.1} parent=1 // pred_fallthru
      _
    // Predicated region
    $region50: #{tpu_custom_call.1} parent=1 // pred_check
      _
    $region51: #{tpu_custom_call.1} parent=1 // pred_check_branch
      %179 = sbr.rel (0) target = $region53
    $region52: #{tpu_custom_call.1} parent=1 // pred_region
      %s181 = ssub.s32 48, 48
      %182 = vsyncadd [#allocation21], %s181
      %s183 = sshll.u32 [#allocation22], 4
      %s184 = int_to_ptr.vmem [resolvable:$true] %s183
      %189 = dma.hbm_to_vmem [thread:$0]  %s12, 48, %s184, [#allocation21], 16, 16, 1
    $region53: #{tpu_custom_call.1} parent=1 // pred_fallthru
      _
    // Predicated region
    $region54: #{tpu_custom_call.1} parent=1 // pred_check
      _
    $region55: #{tpu_custom_call.1} parent=1 // pred_check_branch
      %191 = sbr.rel (0) target = $region57
    $region56: #{tpu_custom_call.1} parent=1 // pred_region
      %s193 = ssub.s32 48, 48
      %194 = vsyncadd [#allocation24], %s193
      %s195 = sshll.u32 [#allocation23], 4
      %s196 = int_to_ptr.vmem [resolvable:$true] %s195
      %201 = dma.hbm_to_vmem [thread:$0]  %s13, 48, %s196, [#allocation24], 16, 16, 1
    $region57: #{tpu_custom_call.1} parent=1 // pred_fallthru
      _
    // Predicated region
    $region58: #{tpu_custom_call.1} parent=1 // pred_check
      _
    $region59: #{tpu_custom_call.1} parent=1 // pred_check_branch
      %203 = sbr.rel (0) target = $region61
    $region60: #{tpu_custom_call.1} parent=1 // pred_region
      %s205 = ssub.s32 16, 16
      %206 = vsyncadd [#allocation24], %s205
      %s208 = sshll.u32 [#allocation25], 4
      %s209 = int_to_ptr.vmem [resolvable:$true] %s208
      %211 = dma.hbm_to_vmem [thread:$0]  %s14, 16, %s209, [#allocation24]
    $region61: #{tpu_custom_call.1} parent=1 // pred_fallthru
      _
    // Predicated region
    $region62: #{tpu_custom_call.1} parent=1 // pred_check
      _
    $region63: #{tpu_custom_call.1} parent=1 // pred_check_branch
      %213 = sbr.rel (0) target = $region65
    $region64: #{tpu_custom_call.1} parent=1 // pred_region
      %s215 = ssub.s32 16, 16
      %216 = vsyncadd [#allocation27], %s215
      %s218 = sshll.u32 [#allocation26], 4
      %s219 = int_to_ptr.vmem [resolvable:$true] %s218
      %221 = dma.hbm_to_vmem [thread:$0]  %s15, 16, %s219, [#allocation27]
    $region65: #{tpu_custom_call.1} parent=1 // pred_fallthru
      _
    // Predicated region
    $region66: #{tpu_custom_call.1} parent=1 // pred_check
      _
    $region67: #{tpu_custom_call.1} parent=1 // pred_check_branch
      %223 = sbr.rel (0) target = $region69
    $region68: #{tpu_custom_call.1} parent=1 // pred_region
      %s225 = ssub.s32 512, 512
      %226 = vsyncadd [#allocation27], %s225
      %s227 = sshll.u32 [#allocation28], 4
      %s228 = int_to_ptr.vmem [resolvable:$true] %s227
      %233 = dma.hbm_to_vmem [thread:$0]  %s16, 512, %s228, [#allocation27], 64, 64, 4
    $region69: #{tpu_custom_call.1} parent=1 // pred_fallthru
      _
    // Predicated region
    $region70: #{tpu_custom_call.1} parent=1 // pred_check
      _
    $region71: #{tpu_custom_call.1} parent=1 // pred_check_branch
      %235 = sbr.rel (0) target = $region73
    $region72: #{tpu_custom_call.1} parent=1 // pred_region
      %s237 = ssub.s32 16, 16
      %238 = vsyncadd [#allocation30], %s237
      %s240 = sshll.u32 [#allocation29], 4
      %s241 = int_to_ptr.vmem [resolvable:$true] %s240
      %243 = dma.hbm_to_vmem [thread:$0]  %s17, 16, %s241, [#allocation30]
    $region73: #{tpu_custom_call.1} parent=1 // pred_fallthru
      _
    // Predicated region
    $region74: #{tpu_custom_call.1} parent=1 // pred_check
      _
    $region75: #{tpu_custom_call.1} parent=1 // pred_check_branch
      %245 = sbr.rel (0) target = $region77
    $region76: #{tpu_custom_call.1} parent=1 // pred_region
      %246 = dma.done [#allocation3], 1024
    $region77: #{tpu_custom_call.1} parent=1 // pred_fallthru
      _
    // Predicated region
    $region78: #{tpu_custom_call.1} parent=1 // pred_check
      _
    $region79: #{tpu_custom_call.1} parent=1 // pred_check_branch
      %248 = sbr.rel (0) target = $region81
    $region80: #{tpu_custom_call.1} parent=1 // pred_region
      %249 = dma.done [#allocation6], 1024
    $region81: #{tpu_custom_call.1} parent=1 // pred_fallthru
      _
    // Predicated region
    $region82: #{tpu_custom_call.1} parent=1 // pred_check
      _
    $region83: #{tpu_custom_call.1} parent=1 // pred_check_branch
      %251 = sbr.rel (0) target = $region85
    $region84: #{tpu_custom_call.1} parent=1 // pred_region
      %252 = dma.done [#allocation6], 18432
    $region85: #{tpu_custom_call.1} parent=1 // pred_fallthru
      _
    // Predicated region
    $region86: #{tpu_custom_call.1} parent=1 // pred_check
      _
    $region87: #{tpu_custom_call.1} parent=1 // pred_check_branch
      %254 = sbr.rel (0) target = $region89
    $region88: #{tpu_custom_call.1} parent=1 // pred_region
      %255 = dma.done [#allocation9], 576
    $region89: #{tpu_custom_call.1} parent=1 // pred_fallthru
      _
    // Predicated region
    $region90: #{tpu_custom_call.1} parent=1 // pred_check
      _
    $region91: #{tpu_custom_call.1} parent=1 // pred_check_branch
      %257 = sbr.rel (0) target = $region93
    $region92: #{tpu_custom_call.1} parent=1 // pred_region
      %258 = dma.done [#allocation9], 12288
    $region93: #{tpu_custom_call.1} parent=1 // pred_fallthru
      _
    // Predicated region
    $region94: #{tpu_custom_call.1} parent=1 // pred_check
      _
    $region95: #{tpu_custom_call.1} parent=1 // pred_check_branch
      %260 = sbr.rel (0) target = $region97
    $region96: #{tpu_custom_call.1} parent=1 // pred_region
      %261 = dma.done [#allocation12], 48
    $region97: #{tpu_custom_call.1} parent=1 // pred_fallthru
      _
    // Predicated region
    $region98: #{tpu_custom_call.1} parent=1 // pred_check
      _
    $region99: #{tpu_custom_call.1} parent=1 // pred_check_branch
      %263 = sbr.rel (0) target = $region101
    $region100: #{tpu_custom_call.1} parent=1 // pred_region
      %264 = dma.done [#allocation12], 48
    $region101: #{tpu_custom_call.1} parent=1 // pred_fallthru
      _
    // Predicated region
    $region102: #{tpu_custom_call.1} parent=1 // pred_check
      _
    $region103: #{tpu_custom_call.1} parent=1 // pred_check_branch
      %266 = sbr.rel (0) target = $region105
    $region104: #{tpu_custom_call.1} parent=1 // pred_region
      %267 = dma.done [#allocation15], 48
    $region105: #{tpu_custom_call.1} parent=1 // pred_fallthru
      _
    // Predicated region
    $region106: #{tpu_custom_call.1} parent=1 // pred_check
      _
    $region107: #{tpu_custom_call.1} parent=1 // pred_check_branch
      %269 = sbr.rel (0) target = $region109
    $region108: #{tpu_custom_call.1} parent=1 // pred_region
      %270 = dma.done [#allocation15], 1536
    $region109: #{tpu_custom_call.1} parent=1 // pred_fallthru
      _
    // Predicated region
    $region110: #{tpu_custom_call.1} parent=1 // pred_check
      _
    $region111: #{tpu_custom_call.1} parent=1 // pred_check_branch
      %272 = sbr.rel (0) target = $region113
    $region112: #{tpu_custom_call.1} parent=1 // pred_region
      %273 = dma.done [#allocation18], 48
    $region113: #{tpu_custom_call.1} parent=1 // pred_fallthru
      _
    // Predicated region
    $region114: #{tpu_custom_call.1} parent=1 // pred_check
      _
    $region115: #{tpu_custom_call.1} parent=1 // pred_check_branch
      %275 = sbr.rel (0) target = $region117
    $region116: #{tpu_custom_call.1} parent=1 // pred_region
      %276 = dma.done [#allocation18], 1536
    $region117: #{tpu_custom_call.1} parent=1 // pred_fallthru
      _
    // Predicated region
    $region118: #{tpu_custom_call.1} parent=1 // pred_check
      _
    $region119: #{tpu_custom_call.1} parent=1 // pred_check_branch
      %278 = sbr.rel (0) target = $region121
    $region120: #{tpu_custom_call.1} parent=1 // pred_region
      %279 = dma.done [#allocation21], 48
    $region121: #{tpu_custom_call.1} parent=1 // pred_fallthru
      _
    // Predicated region
    $region122: #{tpu_custom_call.1} parent=1 // pred_check
      _
    $region123: #{tpu_custom_call.1} parent=1 // pred_check_branch
      %281 = sbr.rel (0) target = $region125
    $region124: #{tpu_custom_call.1} parent=1 // pred_region
      %282 = dma.done [#allocation21], 48
    $region125: #{tpu_custom_call.1} parent=1 // pred_fallthru
      _
    // Predicated region
    $region126: #{tpu_custom_call.1} parent=1 // pred_check
      _
    $region127: #{tpu_custom_call.1} parent=1 // pred_check_branch
      %284 = sbr.rel (0) target = $region129
    $region128: #{tpu_custom_call.1} parent=1 // pred_region
      %285 = dma.done [#allocation24], 48
    $region129: #{tpu_custom_call.1} parent=1 // pred_fallthru
      _
    // Predicated region
    $region130: #{tpu_custom_call.1} parent=1 // pred_check
      _
    $region131: #{tpu_custom_call.1} parent=1 // pred_check_branch
      %287 = sbr.rel (0) target = $region133
    $region132: #{tpu_custom_call.1} parent=1 // pred_region
      %288 = dma.done [#allocation24], 16
    $region133: #{tpu_custom_call.1} parent=1 // pred_fallthru
      _
    // Predicated region
    $region134: #{tpu_custom_call.1} parent=1 // pred_check
      _
    $region135: #{tpu_custom_call.1} parent=1 // pred_check_branch
      %290 = sbr.rel (0) target = $region137
    $region136: #{tpu_custom_call.1} parent=1 // pred_region
      %291 = dma.done [#allocation27], 16
    $region137: #{tpu_custom_call.1} parent=1 // pred_fallthru
      _
    // Predicated region
    $region138: #{tpu_custom_call.1} parent=1 // pred_check
      _
    $region139: #{tpu_custom_call.1} parent=1 // pred_check_branch
      %293 = sbr.rel (0) target = $region141
    $region140: #{tpu_custom_call.1} parent=1 // pred_region
      %294 = dma.done [#allocation27], 512
    $region141: #{tpu_custom_call.1} parent=1 // pred_fallthru
      _
    // Predicated region
    $region142: #{tpu_custom_call.1} parent=1 // pred_check
      _
    $region143: #{tpu_custom_call.1} parent=1 // pred_check_branch
      %296 = sbr.rel (0) target = $region145
    $region144: #{tpu_custom_call.1} parent=1 // pred_region
      %297 = dma.done [#allocation30], 16
    $region145: #{tpu_custom_call.1} parent=1 // pred_fallthru
      _
    %v299 = vld [vmem:[#allocation2] sm:$0xff]
    %v300 = vld [vmem:[#allocation2 + $0x8] sm:$0xff]
    %v301 = vld [vmem:[#allocation2 + $0x10] sm:$0xff]
    %v302 = vld [vmem:[#allocation2 + $0x18] sm:$0xff]
    %v303 = vld [vmem:[#allocation2 + $0x20] sm:$0xff]
    %v304 = vld [vmem:[#allocation2 + $0x28] sm:$0xff]
    %v305 = vld [vmem:[#allocation2 + $0x30] sm:$0xff]
    %v306 = vld [vmem:[#allocation2 + $0x38] sm:$0xff]
    %v307 = vld [vmem:[#allocation5] sm:$0xff]
    %v308 = vld [vmem:[#allocation5 + $0x8] sm:$0xff]
    %v309 = vld [vmem:[#allocation5 + $0x10] sm:$0xff]
    %v310 = vld [vmem:[#allocation5 + $0x18] sm:$0xff]
    %v311 = vld [vmem:[#allocation5 + $0x20] sm:$0xff]
    %v312 = vld [vmem:[#allocation5 + $0x28] sm:$0xff]
    %v313 = vld [vmem:[#allocation5 + $0x30] sm:$0xff]
    %v314 = vld [vmem:[#allocation5 + $0x38] sm:$0xff]
    %v315 = vld [vmem:[#allocation7] sm:$0xff]
    %v316 = vld [vmem:[#allocation7 + $0x8] sm:$0xff]
    %v317 = vld [vmem:[#allocation7 + $0x10] sm:$0xff]
    %v318 = vld [vmem:[#allocation7 + $0x18] sm:$0xff]
    %v319 = vld [vmem:[#allocation7 + $0x20] sm:$0xff]
    %v320 = vld [vmem:[#allocation7 + $0x28] sm:$0xff]
    %v321 = vld [vmem:[#allocation7 + $0x30] sm:$0xff]
    %v322 = vld [vmem:[#allocation7 + $0x38] sm:$0xff]
    %v323 = vld [vmem:[#allocation7 + $0x40] sm:$0xff]
    %v324 = vld [vmem:[#allocation7 + $0x48] sm:$0xff]
    %v325 = vld [vmem:[#allocation7 + $0x50] sm:$0xff]
    %v326 = vld [vmem:[#allocation7 + $0x58] sm:$0xff]
    %v327 = vld [vmem:[#allocation7 + $0x60] sm:$0xff]
    %v328 = vld [vmem:[#allocation7 + $0x68] sm:$0xff]
    %v329 = vld [vmem:[#allocation7 + $0x70] sm:$0xff]
    %v330 = vld [vmem:[#allocation7 + $0x78] sm:$0xff]
    %v331 = vld [vmem:[#allocation7 + $0x80] sm:$0xff]
    %v332 = vld [vmem:[#allocation7 + $0x88] sm:$0xff]
    %v333 = vld [vmem:[#allocation7 + $0x90] sm:$0xff]
    %v334 = vld [vmem:[#allocation7 + $0x98] sm:$0xff]
    %v335 = vld [vmem:[#allocation7 + $0xa0] sm:$0xff]
    %v336 = vld [vmem:[#allocation7 + $0xa8] sm:$0xff]
    %v337 = vld [vmem:[#allocation7 + $0xb0] sm:$0xff]
    %v338 = vld [vmem:[#allocation7 + $0xb8] sm:$0xff]
    %v339 = vld [vmem:[#allocation7 + $0xc0] sm:$0xff]
    %v340 = vld [vmem:[#allocation7 + $0xc8] sm:$0xff]
    %v341 = vld [vmem:[#allocation7 + $0xd0] sm:$0xff]
    %v342 = vld [vmem:[#allocation7 + $0xd8] sm:$0xff]
    %v343 = vld [vmem:[#allocation7 + $0xe0] sm:$0xff]
    %v344 = vld [vmem:[#allocation7 + $0xe8] sm:$0xff]
    %v345 = vld [vmem:[#allocation7 + $0xf0] sm:$0xff]
    %v346 = vld [vmem:[#allocation7 + $0xf8] sm:$0xff]
    %v347 = vld [vmem:[#allocation7 + $0x100] sm:$0xff]
    %v348 = vld [vmem:[#allocation7 + $0x108] sm:$0xff]
    %v349 = vld [vmem:[#allocation7 + $0x110] sm:$0xff]
    %v350 = vld [vmem:[#allocation7 + $0x118] sm:$0xff]
    %v351 = vld [vmem:[#allocation7 + $0x120] sm:$0xff]
    %v352 = vld [vmem:[#allocation7 + $0x128] sm:$0xff]
    %v353 = vld [vmem:[#allocation7 + $0x130] sm:$0xff]
    %v354 = vld [vmem:[#allocation7 + $0x138] sm:$0xff]
    %v355 = vld [vmem:[#allocation7 + $0x140] sm:$0xff]
    %v356 = vld [vmem:[#allocation7 + $0x148] sm:$0xff]
    %v357 = vld [vmem:[#allocation7 + $0x150] sm:$0xff]
    %v358 = vld [vmem:[#allocation7 + $0x158] sm:$0xff]
    %v359 = vld [vmem:[#allocation7 + $0x160] sm:$0xff]
    %v360 = vld [vmem:[#allocation7 + $0x168] sm:$0xff]
    %v361 = vld [vmem:[#allocation7 + $0x170] sm:$0xff]
    %v362 = vld [vmem:[#allocation7 + $0x178] sm:$0xff]
    %v363 = vpack.c.bf16 %v308, %v307
    %v364 = vpack.c.bf16 %v310, %v309
    %v365 = vpack.c.bf16 %v312, %v311
    %v366 = vpack.c.bf16 %v314, %v313
    %v367 = vld [vmem:[#allocation8] sm:$0xff]
    %v368 = vld [vmem:[#allocation8 + $0x8] sm:$0xf]
    %v371 = vlaneseq
    %v372 = vshrl.u32 %v371, 7
    %v373 = vsub.s32 0, %v372
    %v374 = vrot.slane %v367, %v373
    %v375 = vlaneseq
    %v376 = vshrl.u32 %v375, 7
    %v377 = vsub.s32 1, %v376
    %v378 = vrot.slane %v367, %v377
    %v379 = vlaneseq
    %v380 = vshrl.u32 %v379, 7
    %v381 = vsub.s32 2, %v380
    %v382 = vrot.slane %v367, %v381
    %v383 = vlaneseq
    %v384 = vshrl.u32 %v383, 7
    %v385 = vsub.s32 3, %v384
    %v386 = vrot.slane %v367, %v385
    %v387 = vlaneseq
    %v388 = vshrl.u32 %v387, 7
    %v389 = vsub.s32 4, %v388
    %v390 = vrot.slane %v367, %v389
    %v391 = vlaneseq
    %v392 = vshrl.u32 %v391, 7
    %v393 = vsub.s32 5, %v392
    %v394 = vrot.slane %v367, %v393
    %v395 = vlaneseq
    %v396 = vshrl.u32 %v395, 7
    %v397 = vsub.s32 6, %v396
    %v398 = vrot.slane %v367, %v397
    %v399 = vlaneseq
    %v400 = vshrl.u32 %v399, 7
    %v401 = vsub.s32 7, %v400
    %v402 = vrot.slane %v367, %v401
    %v403 = vlaneseq
    %v404 = vshrl.u32 %v403, 7
    %v405 = vsub.s32 0, %v404
    %v406 = vrot.slane %v368, %v405
    %v407 = vlaneseq
    %v408 = vshrl.u32 %v407, 7
    %v409 = vsub.s32 1, %v408
    %v410 = vrot.slane %v368, %v409
    %v411 = vlaneseq
    %v412 = vshrl.u32 %v411, 7
    %v413 = vsub.s32 2, %v412
    %v414 = vrot.slane %v368, %v413
    %v415 = vlaneseq
    %v416 = vshrl.u32 %v415, 7
    %v417 = vsub.s32 3, %v416
    %v418 = vrot.slane %v368, %v417
    %v479 = vunpack.c.l.b16 %v315
    %v480 = vunpack.c.h.b16 %v315
    %v481 = vunpack.c.l.b16 %v316
    %v482 = vunpack.c.h.b16 %v316
    %v483 = vunpack.c.l.b16 %v317
    %v484 = vunpack.c.h.b16 %v317
    %v485 = vunpack.c.l.b16 %v318
    %v486 = vunpack.c.h.b16 %v318
    %v487 = vunpack.c.l.b16 %v319
    %v488 = vunpack.c.h.b16 %v319
    %v489 = vunpack.c.l.b16 %v320
    %v490 = vunpack.c.h.b16 %v320
    %v491 = vunpack.c.l.b16 %v321
    %v492 = vunpack.c.h.b16 %v321
    %v493 = vunpack.c.l.b16 %v322
    %v494 = vunpack.c.h.b16 %v322
    %v495 = vunpack.c.l.b16 %v323
    %v496 = vunpack.c.h.b16 %v323
    %v497 = vunpack.c.l.b16 %v324
    %v498 = vunpack.c.h.b16 %v324
    %v499 = vunpack.c.l.b16 %v325
    %v500 = vunpack.c.h.b16 %v325
    %v501 = vunpack.c.l.b16 %v326
    %v502 = vunpack.c.h.b16 %v326
    %v503 = vunpack.c.l.b16 %v327
    %v504 = vunpack.c.h.b16 %v327
    %v505 = vunpack.c.l.b16 %v328
    %v506 = vunpack.c.h.b16 %v328
    %v507 = vunpack.c.l.b16 %v329
    %v508 = vunpack.c.h.b16 %v329
    %v509 = vunpack.c.l.b16 %v330
    %v510 = vunpack.c.h.b16 %v330
    %v511 = vunpack.c.l.b16 %v331
    %v512 = vunpack.c.h.b16 %v331
    %v513 = vunpack.c.l.b16 %v332
    %v514 = vunpack.c.h.b16 %v332
    %v515 = vunpack.c.l.b16 %v333
    %v516 = vunpack.c.h.b16 %v333
    %v517 = vunpack.c.l.b16 %v334
    %v518 = vunpack.c.h.b16 %v334
    %v519 = vunpack.c.l.b16 %v335
    %v520 = vunpack.c.h.b16 %v335
    %v521 = vunpack.c.l.b16 %v336
    %v522 = vunpack.c.h.b16 %v336
    %v523 = vunpack.c.l.b16 %v337
    %v524 = vunpack.c.h.b16 %v337
    %v525 = vunpack.c.l.b16 %v338
    %v526 = vunpack.c.h.b16 %v338
    %v527 = vunpack.c.l.b16 %v339
    %v528 = vunpack.c.h.b16 %v339
    %v529 = vunpack.c.l.b16 %v340
    %v530 = vunpack.c.h.b16 %v340
    %v531 = vunpack.c.l.b16 %v341
    %v532 = vunpack.c.h.b16 %v341
    %v533 = vunpack.c.l.b16 %v342
    %v534 = vunpack.c.h.b16 %v342
    %v535 = vunpack.c.l.b16 %v343
    %v536 = vunpack.c.h.b16 %v343
    %v537 = vunpack.c.l.b16 %v344
    %v538 = vunpack.c.h.b16 %v344
    %v539 = vunpack.c.l.b16 %v345
    %v540 = vunpack.c.h.b16 %v345
    %v541 = vunpack.c.l.b16 %v346
    %v542 = vunpack.c.h.b16 %v346
    %v543 = vunpack.c.l.b16 %v347
    %v544 = vunpack.c.h.b16 %v347
    %v545 = vunpack.c.l.b16 %v348
    %v546 = vunpack.c.h.b16 %v348
    %v547 = vunpack.c.l.b16 %v349
    %v548 = vunpack.c.h.b16 %v349
    %v549 = vunpack.c.l.b16 %v350
    %v550 = vunpack.c.h.b16 %v350
    %v551 = vunpack.c.l.b16 %v351
    %v552 = vunpack.c.h.b16 %v351
    %v553 = vunpack.c.l.b16 %v352
    %v554 = vunpack.c.h.b16 %v352
    %v555 = vunpack.c.l.b16 %v353
    %v556 = vunpack.c.h.b16 %v353
    %v557 = vunpack.c.l.b16 %v354
    %v558 = vunpack.c.h.b16 %v354
    %v559 = vunpack.c.l.b16 %v355
    %v560 = vunpack.c.h.b16 %v355
    %v561 = vunpack.c.l.b16 %v356
    %v562 = vunpack.c.h.b16 %v356
    %v563 = vunpack.c.l.b16 %v357
    %v564 = vunpack.c.h.b16 %v357
    %v565 = vunpack.c.l.b16 %v358
    %v566 = vunpack.c.h.b16 %v358
    %v567 = vunpack.c.l.b16 %v359
    %v568 = vunpack.c.h.b16 %v359
    %v569 = vunpack.c.l.b16 %v360
    %v570 = vunpack.c.h.b16 %v360
    %v571 = vunpack.c.l.b16 %v361
    %v572 = vunpack.c.h.b16 %v361
    %v573 = vunpack.c.l.b16 %v362
    %v574 = vunpack.c.h.b16 %v362
    %v575 = vpack.c.b16 %v491, %v479
    %v576 = vpack.c.b16 %v492, %v480
    %v577 = vpack.c.b16 %v493, %v481
    %v578 = vpack.c.b16 %v494, %v482
    %v579 = vpack.c.b16 %v495, %v483
    %v580 = vpack.c.b16 %v496, %v484
    %v581 = vpack.c.b16 %v497, %v485
    %v582 = vpack.c.b16 %v498, %v486
    %v583 = vpack.c.b16 %v499, %v487
    %v584 = vpack.c.b16 %v500, %v488
    %v585 = vpack.c.b16 %v501, %v489
    %v586 = vpack.c.b16 %v502, %v490
    %v587 = vpack.c.b16 %v515, %v503
    %v588 = vpack.c.b16 %v516, %v504
    %v589 = vpack.c.b16 %v517, %v505
    %v590 = vpack.c.b16 %v518, %v506
    %v591 = vpack.c.b16 %v519, %v507
    %v592 = vpack.c.b16 %v520, %v508
    %v593 = vpack.c.b16 %v521, %v509
    %v594 = vpack.c.b16 %v522, %v510
    %v595 = vpack.c.b16 %v523, %v511
    %v596 = vpack.c.b16 %v524, %v512
    %v597 = vpack.c.b16 %v525, %v513
    %v598 = vpack.c.b16 %v526, %v514
    %v599 = vpack.c.b16 %v539, %v527
    %v600 = vpack.c.b16 %v540, %v528
    %v601 = vpack.c.b16 %v541, %v529
    %v602 = vpack.c.b16 %v542, %v530
    %v603 = vpack.c.b16 %v543, %v531
    %v604 = vpack.c.b16 %v544, %v532
    %v605 = vpack.c.b16 %v545, %v533
    %v606 = vpack.c.b16 %v546, %v534
    %v607 = vpack.c.b16 %v547, %v535
    %v608 = vpack.c.b16 %v548, %v536
    %v609 = vpack.c.b16 %v549, %v537
    %v610 = vpack.c.b16 %v550, %v538
    %v611 = vpack.c.b16 %v563, %v551
    %v612 = vpack.c.b16 %v564, %v552
    %v613 = vpack.c.b16 %v565, %v553
    %v614 = vpack.c.b16 %v566, %v554
    %v615 = vpack.c.b16 %v567, %v555
    %v616 = vpack.c.b16 %v568, %v556
    %v617 = vpack.c.b16 %v569, %v557
    %v618 = vpack.c.b16 %v570, %v558
    %v619 = vpack.c.b16 %v571, %v559
    %v620 = vpack.c.b16 %v572, %v560
    %v621 = vpack.c.b16 %v573, %v561
    %v622 = vpack.c.b16 %v574, %v562
    %vm671 = vcmask 523264
    %v673 = vsel %vm671, %v363, 0
    %v676 = vsel %vm671, %v364, 0
    %v679 = vsel %vm671, %v365, 0
    %v682 = vsel %vm671, %v366, 0
    %684 = vmatprep.subr.bf16.mxu0 %v576
    %685 = vmatpush1.bf16.msra.mxu0 %v575
    %686 = vmatprep.subr.bf16.mxu0 %v588
    %687 = vmatpush1.bf16.msra.mxu0 %v587
    %688 = vmatprep.subr.bf16.mxu0 %v600
    %689 = vmatpush1.bf16.msra.mxu0 %v599
    %690 = vmatprep.subr.bf16.mxu0 %v612
    %691 = vmatpush1.bf16.msra.mxu0 %v611
    %692 = vmatprep.subr.bf16.mxu0 0
    %693 = vmatpush1.bf16.msra.mxu0 0
    %694 = vmatprep.subr.bf16.mxu0 0
    %695 = vmatpush1.bf16.msra.mxu0 0
    %696 = vmatprep.subr.bf16.mxu0 0
    %697 = vmatpush1.bf16.msra.mxu0 0
    %698 = vmatprep.subr.bf16.mxu0 0
    %699 = vmatpush1.bf16.msra.mxu0 0
    %700 = vmatprep.subr.bf16.mxu0 0
    %701 = vmatpush1.bf16.msra.mxu0 0
    %702 = vmatprep.subr.bf16.mxu0 0
    %703 = vmatpush1.bf16.msra.mxu0 0
    %704 = vmatprep.subr.bf16.mxu0 0
    %705 = vmatpush1.bf16.msra.mxu0 0
    %706 = vmatprep.subr.bf16.mxu0 0
    %707 = vmatpush1.bf16.msra.mxu0 0
    %708 = vmatprep.subr.bf16.mxu0 0
    %709 = vmatpush1.bf16.msra.mxu0 0
    %710 = vmatprep.subr.bf16.mxu0 0
    %711 = vmatpush1.bf16.msra.mxu0 0
    %712 = vmatprep.subr.bf16.mxu0 0
    %713 = vmatpush1.bf16.msra.mxu0 0
    %714 = vmatprep.subr.bf16.mxu0 0
    %715 = vmatpush1.bf16.msra.mxu0 0
    %716 = vmatprep.mubr.bf16.mxu0 0
    %717 = vmatmul.mubr.bf16.gmra.mrb[0].mxu0 %v673
    %v718 = vpop.f32.mrb[0].mxu0
    %v719 = vadd.f32 %v374, %v718
    %v720 = vpop.f32.mrb[0].mxu0
    %v721 = vadd.f32 %v378, %v720
    %v722 = vpop.f32.mrb[0].mxu0
    %v723 = vadd.f32 %v374, %v722
    %v724 = vpop.f32.mrb[0].mxu0
    %v725 = vadd.f32 %v378, %v724
    %726 = vmatprep.mubr.bf16.mxu0 0
    %727 = vmatmul.mubr.bf16.gmra.mrb[0].mxu0 %v676
    %v728 = vpop.f32.mrb[0].mxu0
    %v729 = vadd.f32 %v374, %v728
    %v730 = vpop.f32.mrb[0].mxu0
    %v731 = vadd.f32 %v378, %v730
    %v732 = vpop.f32.mrb[0].mxu0
    %v733 = vadd.f32 %v374, %v732
    %v734 = vpop.f32.mrb[0].mxu0
    %v735 = vadd.f32 %v378, %v734
    %736 = vmatprep.mubr.bf16.mxu0 0
    %737 = vmatmul.mubr.bf16.gmra.mrb[0].mxu0 %v679
    %v738 = vpop.f32.mrb[0].mxu0
    %v739 = vadd.f32 %v374, %v738
    %v740 = vpop.f32.mrb[0].mxu0
    %v741 = vadd.f32 %v378, %v740
    %v742 = vpop.f32.mrb[0].mxu0
    %v743 = vadd.f32 %v374, %v742
    %v744 = vpop.f32.mrb[0].mxu0
    %v745 = vadd.f32 %v378, %v744
    %746 = vmatprep.mubr.bf16.mxu0 0
    %747 = vmatmul.mubr.bf16.gmra.mrb[0].mxu0 %v682
    %v748 = vpop.f32.mrb[0].mxu0
    %v749 = vadd.f32 %v374, %v748
    %v750 = vpop.f32.mrb[0].mxu0
    %v751 = vadd.f32 %v378, %v750
    %v752 = vpop.f32.mrb[0].mxu0
    %v753 = vadd.f32 %v374, %v752
    %v754 = vpop.f32.mrb[0].mxu0
    %v755 = vadd.f32 %v378, %v754
    %756 = vdwg.mxu0
    %757 = vmatprep.subr.bf16.mxu0 %v578
    %758 = vmatpush1.bf16.msra.mxu0 %v577
    %759 = vmatprep.subr.bf16.mxu0 %v590
    %760 = vmatpush1.bf16.msra.mxu0 %v589
    %761 = vmatprep.subr.bf16.mxu0 %v602
    %762 = vmatpush1.bf16.msra.mxu0 %v601
    %763 = vmatprep.subr.bf16.mxu0 %v614
    %764 = vmatpush1.bf16.msra.mxu0 %v613
    %765 = vmatprep.subr.bf16.mxu0 0
    %766 = vmatpush1.bf16.msra.mxu0 0
    %767 = vmatprep.subr.bf16.mxu0 0
    %768 = vmatpush1.bf16.msra.mxu0 0
    %769 = vmatprep.subr.bf16.mxu0 0
    %770 = vmatpush1.bf16.msra.mxu0 0
    %771 = vmatprep.subr.bf16.mxu0 0
    %772 = vmatpush1.bf16.msra.mxu0 0
    %773 = vmatprep.subr.bf16.mxu0 0
    %774 = vmatpush1.bf16.msra.mxu0 0
    %775 = vmatprep.subr.bf16.mxu0 0
    %776 = vmatpush1.bf16.msra.mxu0 0
    %777 = vmatprep.subr.bf16.mxu0 0
    %778 = vmatpush1.bf16.msra.mxu0 0
    %779 = vmatprep.subr.bf16.mxu0 0
    %780 = vmatpush1.bf16.msra.mxu0 0
    %781 = vmatprep.subr.bf16.mxu0 0
    %782 = vmatpush1.bf16.msra.mxu0 0
    %783 = vmatprep.subr.bf16.mxu0 0
    %784 = vmatpush1.bf16.msra.mxu0 0
    %785 = vmatprep.subr.bf16.mxu0 0
    %786 = vmatpush1.bf16.msra.mxu0 0
    %787 = vmatprep.subr.bf16.mxu0 0
    %788 = vmatpush1.bf16.msra.mxu0 0
    %789 = vmatprep.mubr.bf16.mxu0 0
    %790 = vmatmul.mubr.bf16.gmra.mrb[0].mxu0 %v673
    %v791 = vpop.f32.mrb[0].mxu0
    %v792 = vadd.f32 %v382, %v791
    %v793 = vpop.f32.mrb[0].mxu0
    %v794 = vadd.f32 %v386, %v793
    %v795 = vpop.f32.mrb[0].mxu0
    %v796 = vadd.f32 %v382, %v795
    %v797 = vpop.f32.mrb[0].mxu0
    %v798 = vadd.f32 %v386, %v797
    %799 = vmatprep.mubr.bf16.mxu0 0
    %800 = vmatmul.mubr.bf16.gmra.mrb[0].mxu0 %v676
    %v801 = vpop.f32.mrb[0].mxu0
    %v802 = vadd.f32 %v382, %v801
    %v803 = vpop.f32.mrb[0].mxu0
    %v804 = vadd.f32 %v386, %v803
    %v805 = vpop.f32.mrb[0].mxu0
    %v806 = vadd.f32 %v382, %v805
    %v807 = vpop.f32.mrb[0].mxu0
    %v808 = vadd.f32 %v386, %v807
    %809 = vmatprep.mubr.bf16.mxu0 0
    %810 = vmatmul.mubr.bf16.gmra.mrb[0].mxu0 %v679
    %v811 = vpop.f32.mrb[0].mxu0
    %v812 = vadd.f32 %v382, %v811
    %v813 = vpop.f32.mrb[0].mxu0
    %v814 = vadd.f32 %v386, %v813
    %v815 = vpop.f32.mrb[0].mxu0
    %v816 = vadd.f32 %v382, %v815
    %v817 = vpop.f32.mrb[0].mxu0
    %v818 = vadd.f32 %v386, %v817
    %819 = vmatprep.mubr.bf16.mxu0 0
    %820 = vmatmul.mubr.bf16.gmra.mrb[0].mxu0 %v682
    %v821 = vpop.f32.mrb[0].mxu0
    %v822 = vadd.f32 %v382, %v821
    %v823 = vpop.f32.mrb[0].mxu0
    %v824 = vadd.f32 %v386, %v823
    %v825 = vpop.f32.mrb[0].mxu0
    %v826 = vadd.f32 %v382, %v825
    %v827 = vpop.f32.mrb[0].mxu0
    %v828 = vadd.f32 %v386, %v827
    %829 = vdwg.mxu0
    %830 = vmatprep.subr.bf16.mxu0 %v580
    %831 = vmatpush1.bf16.msra.mxu0 %v579
    %832 = vmatprep.subr.bf16.mxu0 %v592
    %833 = vmatpush1.bf16.msra.mxu0 %v591
    %834 = vmatprep.subr.bf16.mxu0 %v604
    %835 = vmatpush1.bf16.msra.mxu0 %v603
    %836 = vmatprep.subr.bf16.mxu0 %v616
    %837 = vmatpush1.bf16.msra.mxu0 %v615
    %838 = vmatprep.subr.bf16.mxu0 0
    %839 = vmatpush1.bf16.msra.mxu0 0
    %840 = vmatprep.subr.bf16.mxu0 0
    %841 = vmatpush1.bf16.msra.mxu0 0
    %842 = vmatprep.subr.bf16.mxu0 0
    %843 = vmatpush1.bf16.msra.mxu0 0
    %844 = vmatprep.subr.bf16.mxu0 0
    %845 = vmatpush1.bf16.msra.mxu0 0
    %846 = vmatprep.subr.bf16.mxu0 0
    %847 = vmatpush1.bf16.msra.mxu0 0
    %848 = vmatprep.subr.bf16.mxu0 0
    %849 = vmatpush1.bf16.msra.mxu0 0
    %850 = vmatprep.subr.bf16.mxu0 0
    %851 = vmatpush1.bf16.msra.mxu0 0
    %852 = vmatprep.subr.bf16.mxu0 0
    %853 = vmatpush1.bf16.msra.mxu0 0
    %854 = vmatprep.subr.bf16.mxu0 0
    %855 = vmatpush1.bf16.msra.mxu0 0
    %856 = vmatprep.subr.bf16.mxu0 0
    %857 = vmatpush1.bf16.msra.mxu0 0
    %858 = vmatprep.subr.bf16.mxu0 0
    %859 = vmatpush1.bf16.msra.mxu0 0
    %860 = vmatprep.subr.bf16.mxu0 0
    %861 = vmatpush1.bf16.msra.mxu0 0
    %862 = vmatprep.mubr.bf16.mxu0 0
    %863 = vmatmul.mubr.bf16.gmra.mrb[0].mxu0 %v673
    %v864 = vpop.f32.mrb[0].mxu0
    %v865 = vadd.f32 %v390, %v864
    %v866 = vpop.f32.mrb[0].mxu0
    %v867 = vadd.f32 %v394, %v866
    %v868 = vpop.f32.mrb[0].mxu0
    %v869 = vadd.f32 %v390, %v868
    %v870 = vpop.f32.mrb[0].mxu0
    %v871 = vadd.f32 %v394, %v870
    %872 = vmatprep.mubr.bf16.mxu0 0
    %873 = vmatmul.mubr.bf16.gmra.mrb[0].mxu0 %v676
    %v874 = vpop.f32.mrb[0].mxu0
    %v875 = vadd.f32 %v390, %v874
    %v876 = vpop.f32.mrb[0].mxu0
    %v877 = vadd.f32 %v394, %v876
    %v878 = vpop.f32.mrb[0].mxu0
    %v879 = vadd.f32 %v390, %v878
    %v880 = vpop.f32.mrb[0].mxu0
    %v881 = vadd.f32 %v394, %v880
    %882 = vmatprep.mubr.bf16.mxu0 0
    %883 = vmatmul.mubr.bf16.gmra.mrb[0].mxu0 %v679
    %v884 = vpop.f32.mrb[0].mxu0
    %v885 = vadd.f32 %v390, %v884
    %v886 = vpop.f32.mrb[0].mxu0
    %v887 = vadd.f32 %v394, %v886
    %v888 = vpop.f32.mrb[0].mxu0
    %v889 = vadd.f32 %v390, %v888
    %v890 = vpop.f32.mrb[0].mxu0
    %v891 = vadd.f32 %v394, %v890
    %892 = vmatprep.mubr.bf16.mxu0 0
    %893 = vmatmul.mubr.bf16.gmra.mrb[0].mxu0 %v682
    %v894 = vpop.f32.mrb[0].mxu0
    %v895 = vadd.f32 %v390, %v894
    %v896 = vpop.f32.mrb[0].mxu0
    %v897 = vadd.f32 %v394, %v896
    %v898 = vpop.f32.mrb[0].mxu0
    %v899 = vadd.f32 %v390, %v898
    %v900 = vpop.f32.mrb[0].mxu0
    %v901 = vadd.f32 %v394, %v900
    %902 = vdwg.mxu0
    %903 = vmatprep.subr.bf16.mxu0 %v582
    %904 = vmatpush1.bf16.msra.mxu0 %v581
    %905 = vmatprep.subr.bf16.mxu0 %v594
    %906 = vmatpush1.bf16.msra.mxu0 %v593
    %907 = vmatprep.subr.bf16.mxu0 %v606
    %908 = vmatpush1.bf16.msra.mxu0 %v605
    %909 = vmatprep.subr.bf16.mxu0 %v618
    %910 = vmatpush1.bf16.msra.mxu0 %v617
    %911 = vmatprep.subr.bf16.mxu0 0
    %912 = vmatpush1.bf16.msra.mxu0 0
    %913 = vmatprep.subr.bf16.mxu0 0
    %914 = vmatpush1.bf16.msra.mxu0 0
    %915 = vmatprep.subr.bf16.mxu0 0
    %916 = vmatpush1.bf16.msra.mxu0 0
    %917 = vmatprep.subr.bf16.mxu0 0
    %918 = vmatpush1.bf16.msra.mxu0 0
    %919 = vmatprep.subr.bf16.mxu0 0
    %920 = vmatpush1.bf16.msra.mxu0 0
    %921 = vmatprep.subr.bf16.mxu0 0
    %922 = vmatpush1.bf16.msra.mxu0 0
    %923 = vmatprep.subr.bf16.mxu0 0
    %924 = vmatpush1.bf16.msra.mxu0 0
    %925 = vmatprep.subr.bf16.mxu0 0
    %926 = vmatpush1.bf16.msra.mxu0 0
    %927 = vmatprep.subr.bf16.mxu0 0
    %928 = vmatpush1.bf16.msra.mxu0 0
    %929 = vmatprep.subr.bf16.mxu0 0
    %930 = vmatpush1.bf16.msra.mxu0 0
    %931 = vmatprep.subr.bf16.mxu0 0
    %932 = vmatpush1.bf16.msra.mxu0 0
    %933 = vmatprep.subr.bf16.mxu0 0
    %934 = vmatpush1.bf16.msra.mxu0 0
    %935 = vmatprep.mubr.bf16.mxu0 0
    %936 = vmatmul.mubr.bf16.gmra.mrb[0].mxu0 %v673
    %v937 = vpop.f32.mrb[0].mxu0
    %v938 = vadd.f32 %v398, %v937
    %v939 = vpop.f32.mrb[0].mxu0
    %v940 = vadd.f32 %v402, %v939
    %v941 = vpop.f32.mrb[0].mxu0
    %v942 = vadd.f32 %v398, %v941
    %v943 = vpop.f32.mrb[0].mxu0
    %v944 = vadd.f32 %v402, %v943
    %945 = vmatprep.mubr.bf16.mxu0 0
    %946 = vmatmul.mubr.bf16.gmra.mrb[0].mxu0 %v676
    %v947 = vpop.f32.mrb[0].mxu0
    %v948 = vadd.f32 %v398, %v947
    %v949 = vpop.f32.mrb[0].mxu0
    %v950 = vadd.f32 %v402, %v949
    %v951 = vpop.f32.mrb[0].mxu0
    %v952 = vadd.f32 %v398, %v951
    %v953 = vpop.f32.mrb[0].mxu0
    %v954 = vadd.f32 %v402, %v953
    %955 = vmatprep.mubr.bf16.mxu0 0
    %956 = vmatmul.mubr.bf16.gmra.mrb[0].mxu0 %v679
    %v957 = vpop.f32.mrb[0].mxu0
    %v958 = vadd.f32 %v398, %v957
    %v959 = vpop.f32.mrb[0].mxu0
    %v960 = vadd.f32 %v402, %v959
    %v961 = vpop.f32.mrb[0].mxu0
    %v962 = vadd.f32 %v398, %v961
    %v963 = vpop.f32.mrb[0].mxu0
    %v964 = vadd.f32 %v402, %v963
    %965 = vmatprep.mubr.bf16.mxu0 0
    %966 = vmatmul.mubr.bf16.gmra.mrb[0].mxu0 %v682
    %v967 = vpop.f32.mrb[0].mxu0
    %v968 = vadd.f32 %v398, %v967
    %v969 = vpop.f32.mrb[0].mxu0
    %v970 = vadd.f32 %v402, %v969
    %v971 = vpop.f32.mrb[0].mxu0
    %v972 = vadd.f32 %v398, %v971
    %v973 = vpop.f32.mrb[0].mxu0
    %v974 = vadd.f32 %v402, %v973
    %975 = vdwg.mxu0
    %976 = vmatprep.subr.bf16.mxu0 %v584
    %977 = vmatpush1.bf16.msra.mxu0 %v583
    %978 = vmatprep.subr.bf16.mxu0 %v596
    %979 = vmatpush1.bf16.msra.mxu0 %v595
    %980 = vmatprep.subr.bf16.mxu0 %v608
    %981 = vmatpush1.bf16.msra.mxu0 %v607
    %982 = vmatprep.subr.bf16.mxu0 %v620
    %983 = vmatpush1.bf16.msra.mxu0 %v619
    %984 = vmatprep.subr.bf16.mxu0 0
    %985 = vmatpush1.bf16.msra.mxu0 0
    %986 = vmatprep.subr.bf16.mxu0 0
    %987 = vmatpush1.bf16.msra.mxu0 0
    %988 = vmatprep.subr.bf16.mxu0 0
    %989 = vmatpush1.bf16.msra.mxu0 0
    %990 = vmatprep.subr.bf16.mxu0 0
    %991 = vmatpush1.bf16.msra.mxu0 0
    %992 = vmatprep.subr.bf16.mxu0 0
    %993 = vmatpush1.bf16.msra.mxu0 0
    %994 = vmatprep.subr.bf16.mxu0 0
    %995 = vmatpush1.bf16.msra.mxu0 0
    %996 = vmatprep.subr.bf16.mxu0 0
    %997 = vmatpush1.bf16.msra.mxu0 0
    %998 = vmatprep.subr.bf16.mxu0 0
    %999 = vmatpush1.bf16.msra.mxu0 0
    %1000 = vmatprep.subr.bf16.mxu0 0
    %1001 = vmatpush1.bf16.msra.mxu0 0
    %1002 = vmatprep.subr.bf16.mxu0 0
    %1003 = vmatpush1.bf16.msra.mxu0 0
    %1004 = vmatprep.subr.bf16.mxu0 0
    %1005 = vmatpush1.bf16.msra.mxu0 0
    %1006 = vmatprep.subr.bf16.mxu0 0
    %1007 = vmatpush1.bf16.msra.mxu0 0
    %1008 = vmatprep.mubr.bf16.mxu0 0
    %1009 = vmatmul.mubr.bf16.gmra.mrb[0].mxu0 %v673
    %v1010 = vpop.f32.mrb[0].mxu0
    %v1011 = vadd.f32 %v406, %v1010
    %v1012 = vpop.f32.mrb[0].mxu0
    %v1013 = vadd.f32 %v410, %v1012
    %v1014 = vpop.f32.mrb[0].mxu0
    %v1015 = vadd.f32 %v406, %v1014
    %v1016 = vpop.f32.mrb[0].mxu0
    %v1017 = vadd.f32 %v410, %v1016
    %1018 = vmatprep.mubr.bf16.mxu0 0
    %1019 = vmatmul.mubr.bf16.gmra.mrb[0].mxu0 %v676
    %v1020 = vpop.f32.mrb[0].mxu0
    %v1021 = vadd.f32 %v406, %v1020
    %v1022 = vpop.f32.mrb[0].mxu0
    %v1023 = vadd.f32 %v410, %v1022
    %v1024 = vpop.f32.mrb[0].mxu0
    %v1025 = vadd.f32 %v406, %v1024
    %v1026 = vpop.f32.mrb[0].mxu0
    %v1027 = vadd.f32 %v410, %v1026
    %1028 = vmatprep.mubr.bf16.mxu0 0
    %1029 = vmatmul.mubr.bf16.gmra.mrb[0].mxu0 %v679
    %v1030 = vpop.f32.mrb[0].mxu0
    %v1031 = vadd.f32 %v406, %v1030
    %v1032 = vpop.f32.mrb[0].mxu0
    %v1033 = vadd.f32 %v410, %v1032
    %v1034 = vpop.f32.mrb[0].mxu0
    %v1035 = vadd.f32 %v406, %v1034
    %v1036 = vpop.f32.mrb[0].mxu0
    %v1037 = vadd.f32 %v410, %v1036
    %1038 = vmatprep.mubr.bf16.mxu0 0
    %1039 = vmatmul.mubr.bf16.gmra.mrb[0].mxu0 %v682
    %v1040 = vpop.f32.mrb[0].mxu0
    %v1041 = vadd.f32 %v406, %v1040
    %v1042 = vpop.f32.mrb[0].mxu0
    %v1043 = vadd.f32 %v410, %v1042
    %v1044 = vpop.f32.mrb[0].mxu0
    %v1045 = vadd.f32 %v406, %v1044
    %v1046 = vpop.f32.mrb[0].mxu0
    %v1047 = vadd.f32 %v410, %v1046
    %1048 = vdwg.mxu0
    %1049 = vmatprep.subr.bf16.mxu0 %v586
    %1050 = vmatpush1.bf16.msra.mxu0 %v585
    %1051 = vmatprep.subr.bf16.mxu0 %v598
    %1052 = vmatpush1.bf16.msra.mxu0 %v597
    %1053 = vmatprep.subr.bf16.mxu0 %v610
    %1054 = vmatpush1.bf16.msra.mxu0 %v609
    %1055 = vmatprep.subr.bf16.mxu0 %v622
    %1056 = vmatpush1.bf16.msra.mxu0 %v621
    %1057 = vmatprep.subr.bf16.mxu0 0
    %1058 = vmatpush1.bf16.msra.mxu0 0
    %1059 = vmatprep.subr.bf16.mxu0 0
    %1060 = vmatpush1.bf16.msra.mxu0 0
    %1061 = vmatprep.subr.bf16.mxu0 0
    %1062 = vmatpush1.bf16.msra.mxu0 0
    %1063 = vmatprep.subr.bf16.mxu0 0
    %1064 = vmatpush1.bf16.msra.mxu0 0
    %1065 = vmatprep.subr.bf16.mxu0 0
    %1066 = vmatpush1.bf16.msra.mxu0 0
    %1067 = vmatprep.subr.bf16.mxu0 0
    %1068 = vmatpush1.bf16.msra.mxu0 0
    %1069 = vmatprep.subr.bf16.mxu0 0
    %1070 = vmatpush1.bf16.msra.mxu0 0
    %1071 = vmatprep.subr.bf16.mxu0 0
    %1072 = vmatpush1.bf16.msra.mxu0 0
    %1073 = vmatprep.subr.bf16.mxu0 0
    %1074 = vmatpush1.bf16.msra.mxu0 0
    %1075 = vmatprep.subr.bf16.mxu0 0
    %1076 = vmatpush1.bf16.msra.mxu0 0
    %1077 = vmatprep.subr.bf16.mxu0 0
    %1078 = vmatpush1.bf16.msra.mxu0 0
    %1079 = vmatprep.subr.bf16.mxu0 0
    %1080 = vmatpush1.bf16.msra.mxu0 0
    %1081 = vmatprep.mubr.bf16.mxu0 0
    %1082 = vmatmul.mubr.bf16.gmra.mrb[0].mxu0 %v673
    %v1083 = vpop.f32.mrb[0].mxu0
    %v1084 = vadd.f32 %v414, %v1083
    %v1085 = vpop.f32.mrb[0].mxu0
    %v1086 = vadd.f32 %v418, %v1085
    %v1087 = vpop.f32.mrb[0].mxu0
    %v1088 = vadd.f32 %v414, %v1087
    %v1089 = vpop.f32.mrb[0].mxu0
    %v1090 = vadd.f32 %v418, %v1089
    %1091 = vmatprep.mubr.bf16.mxu0 0
    %1092 = vmatmul.mubr.bf16.gmra.mrb[0].mxu0 %v676
    %v1093 = vpop.f32.mrb[0].mxu0
    %v1094 = vadd.f32 %v414, %v1093
    %v1095 = vpop.f32.mrb[0].mxu0
    %v1096 = vadd.f32 %v418, %v1095
    %v1097 = vpop.f32.mrb[0].mxu0
    %v1098 = vadd.f32 %v414, %v1097
    %v1099 = vpop.f32.mrb[0].mxu0
    %v1100 = vadd.f32 %v418, %v1099
    %1101 = vmatprep.mubr.bf16.mxu0 0
    %1102 = vmatmul.mubr.bf16.gmra.mrb[0].mxu0 %v679
    %v1103 = vpop.f32.mrb[0].mxu0
    %v1104 = vadd.f32 %v414, %v1103
    %v1105 = vpop.f32.mrb[0].mxu0
    %v1106 = vadd.f32 %v418, %v1105
    %v1107 = vpop.f32.mrb[0].mxu0
    %v1108 = vadd.f32 %v414, %v1107
    %v1109 = vpop.f32.mrb[0].mxu0
    %v1110 = vadd.f32 %v418, %v1109
    %1111 = vmatprep.mubr.bf16.mxu0 0
    %1112 = vmatmul.mubr.bf16.gmra.mrb[0].mxu0 %v682
    %v1113 = vpop.f32.mrb[0].mxu0
    %v1114 = vadd.f32 %v414, %v1113
    %v1115 = vpop.f32.mrb[0].mxu0
    %v1116 = vadd.f32 %v418, %v1115
    %v1117 = vpop.f32.mrb[0].mxu0
    %v1118 = vadd.f32 %v414, %v1117
    %v1119 = vpop.f32.mrb[0].mxu0
    %v1120 = vadd.f32 %v418, %v1119
    %1121 = vdwg.mxu0
    %v1122 = vpack.c.bf16 %v723, %v719
    %v1123 = vpack.c.bf16 %v725, %v721
    %v1124 = vpack.c.bf16 %v796, %v792
    %v1125 = vpack.c.bf16 %v798, %v794
    %v1126 = vpack.c.bf16 %v869, %v865
    %v1127 = vpack.c.bf16 %v871, %v867
    %v1128 = vpack.c.bf16 %v942, %v938
    %v1129 = vpack.c.bf16 %v944, %v940
    %v1130 = vpack.c.bf16 %v1015, %v1011
    %v1131 = vpack.c.bf16 %v1017, %v1013
    %v1132 = vpack.c.bf16 %v1088, %v1084
    %v1133 = vpack.c.bf16 %v1090, %v1086
    %v1134 = vpack.c.bf16 %v733, %v729
    %v1135 = vpack.c.bf16 %v735, %v731
    %v1136 = vpack.c.bf16 %v806, %v802
    %v1137 = vpack.c.bf16 %v808, %v804
    %v1138 = vpack.c.bf16 %v879, %v875
    %v1139 = vpack.c.bf16 %v881, %v877
    %v1140 = vpack.c.bf16 %v952, %v948
    %v1141 = vpack.c.bf16 %v954, %v950
    %v1142 = vpack.c.bf16 %v1025, %v1021
    %v1143 = vpack.c.bf16 %v1027, %v1023
    %v1144 = vpack.c.bf16 %v1098, %v1094
    %v1145 = vpack.c.bf16 %v1100, %v1096
    %v1146 = vpack.c.bf16 %v743, %v739
    %v1147 = vpack.c.bf16 %v745, %v741
    %v1148 = vpack.c.bf16 %v816, %v812
    %v1149 = vpack.c.bf16 %v818, %v814
    %v1150 = vpack.c.bf16 %v889, %v885
    %v1151 = vpack.c.bf16 %v891, %v887
    %v1152 = vpack.c.bf16 %v962, %v958
    %v1153 = vpack.c.bf16 %v964, %v960
    %v1154 = vpack.c.bf16 %v1035, %v1031
    %v1155 = vpack.c.bf16 %v1037, %v1033
    %v1156 = vpack.c.bf16 %v1108, %v1104
    %v1157 = vpack.c.bf16 %v1110, %v1106
    %v1158 = vpack.c.bf16 %v753, %v749
    %v1159 = vpack.c.bf16 %v755, %v751
    %v1160 = vpack.c.bf16 %v826, %v822
    %v1161 = vpack.c.bf16 %v828, %v824
    %v1162 = vpack.c.bf16 %v899, %v895
    %v1163 = vpack.c.bf16 %v901, %v897
    %v1164 = vpack.c.bf16 %v972, %v968
    %v1165 = vpack.c.bf16 %v974, %v970
    %v1166 = vpack.c.bf16 %v1045, %v1041
    %v1167 = vpack.c.bf16 %v1047, %v1043
    %v1168 = vpack.c.bf16 %v1118, %v1114
    %v1169 = vpack.c.bf16 %v1120, %v1116
    %1170 = vmatprep.subr.bf16.mxu0 0
    %1171 = vmatpush1.bf16.xpose.msra.mxu0 %v1126
    %1172 = vmatprep.subr.bf16.mxu0 0
    %1173 = vmatpush1.bf16.xpose.msra.mxu0 0
    %1174 = vmatprep.subr.bf16.mxu0 0
    %1175 = vmatpush1.bf16.xpose.msra.mxu0 0
    %1176 = vmatprep.subr.bf16.mxu0 0
    %1177 = vmatpush1.bf16.xpose.msra.mxu0 0
    %1178 = vmatprep.subr.bf16.mxu0 0
    %1179 = vmatpush1.bf16.xpose.msra.mxu0 0
    %1180 = vmatprep.subr.bf16.mxu0 0
    %1181 = vmatpush1.bf16.xpose.msra.mxu0 0
    %1182 = vmatprep.subr.bf16.mxu0 0
    %1183 = vmatpush1.bf16.xpose.msra.mxu0 0
    %1184 = vmatprep.subr.bf16.mxu0 0
    %1185 = vmatpush1.bf16.xpose.msra.mxu0 0
    %1186 = vmatprep.subr.bf16.mxu0 0
    %1187 = vmatpush1.bf16.xpose.msra.mxu0 0
    %1188 = vmatprep.subr.bf16.mxu0 0
    %1189 = vmatpush1.bf16.xpose.msra.mxu0 0
    %1190 = vmatprep.subr.bf16.mxu0 0
    %1191 = vmatpush1.bf16.xpose.msra.mxu0 0
    %1192 = vmatprep.subr.bf16.mxu0 0
    %1193 = vmatpush1.bf16.xpose.msra.mxu0 0
    %1194 = vmatprep.subr.bf16.mxu0 0
    %1195 = vmatpush1.bf16.xpose.msra.mxu0 0
    %1196 = vmatprep.subr.bf16.mxu0 0
    %1197 = vmatpush1.bf16.xpose.msra.mxu0 0
    %1198 = vmatprep.subr.bf16.mxu0 0
    %1199 = vmatpush1.bf16.xpose.msra.mxu0 0
    %1200 = vmatprep.subr.bf16.mxu0 0
    %1201 = vmatpush1.bf16.xpose.msra.mxu0 0
    %1202 = vmatprep.mubr.bf16.mxu0 0
    %1203 = vmatmul.mubr.bf16.gmra.mrb[0].mxu0 %v1122
    %v1204 = vpop.f32.mrb[0].mxu0
    %v1205 = vadd.f32 %v299, %v1204
    %v1206 = vpop.f32.mrb[0].mxu0
    %v1207 = vpop.f32.mrb[0].mxu0
    %v1208 = vadd.f32 %v300, %v1207
    %v1209 = vpop.f32.mrb[0].mxu0
    %1210 = vdwg.mxu0
    %1211 = vmatprep.subr.bf16.mxu0 0
    %1212 = vmatpush1.bf16.xpose.msra.mxu0 %v1138
    %1213 = vmatprep.subr.bf16.mxu0 0
    %1214 = vmatpush1.bf16.xpose.msra.mxu0 0
    %1215 = vmatprep.subr.bf16.mxu0 0
    %1216 = vmatpush1.bf16.xpose.msra.mxu0 0
    %1217 = vmatprep.subr.bf16.mxu0 0
    %1218 = vmatpush1.bf16.xpose.msra.mxu0 0
    %1219 = vmatprep.subr.bf16.mxu0 0
    %1220 = vmatpush1.bf16.xpose.msra.mxu0 0
    %1221 = vmatprep.subr.bf16.mxu0 0
    %1222 = vmatpush1.bf16.xpose.msra.mxu0 0
    %1223 = vmatprep.subr.bf16.mxu0 0
    %1224 = vmatpush1.bf16.xpose.msra.mxu0 0
    %1225 = vmatprep.subr.bf16.mxu0 0
    %1226 = vmatpush1.bf16.xpose.msra.mxu0 0
    %1227 = vmatprep.subr.bf16.mxu0 0
    %1228 = vmatpush1.bf16.xpose.msra.mxu0 0
    %1229 = vmatprep.subr.bf16.mxu0 0
    %1230 = vmatpush1.bf16.xpose.msra.mxu0 0
    %1231 = vmatprep.subr.bf16.mxu0 0
    %1232 = vmatpush1.bf16.xpose.msra.mxu0 0
    %1233 = vmatprep.subr.bf16.mxu0 0
    %1234 = vmatpush1.bf16.xpose.msra.mxu0 0
    %1235 = vmatprep.subr.bf16.mxu0 0
    %1236 = vmatpush1.bf16.xpose.msra.mxu0 0
    %1237 = vmatprep.subr.bf16.mxu0 0
    %1238 = vmatpush1.bf16.xpose.msra.mxu0 0
    %1239 = vmatprep.subr.bf16.mxu0 0
    %1240 = vmatpush1.bf16.xpose.msra.mxu0 0
    %1241 = vmatprep.subr.bf16.mxu0 0
    %1242 = vmatpush1.bf16.xpose.msra.mxu0 0
    %1243 = vmatprep.mubr.bf16.mxu0 0
    %1244 = vmatmul.mubr.bf16.gmra.mrb[0].mxu0 %v1134
    %v1245 = vpop.f32.mrb[0].mxu0
    %v1246 = vadd.f32 %v301, %v1245
    %v1247 = vpop.f32.mrb[0].mxu0
    %v1248 = vpop.f32.mrb[0].mxu0
    %v1249 = vadd.f32 %v302, %v1248
    %v1250 = vpop.f32.mrb[0].mxu0
    %1251 = vdwg.mxu0
    %1252 = vmatprep.subr.bf16.mxu0 0
    %1253 = vmatpush1.bf16.xpose.msra.mxu0 %v1150
    %1254 = vmatprep.subr.bf16.mxu0 0
    %1255 = vmatpush1.bf16.xpose.msra.mxu0 0
    %1256 = vmatprep.subr.bf16.mxu0 0
    %1257 = vmatpush1.bf16.xpose.msra.mxu0 0
    %1258 = vmatprep.subr.bf16.mxu0 0
    %1259 = vmatpush1.bf16.xpose.msra.mxu0 0
    %1260 = vmatprep.subr.bf16.mxu0 0
    %1261 = vmatpush1.bf16.xpose.msra.mxu0 0
    %1262 = vmatprep.subr.bf16.mxu0 0
    %1263 = vmatpush1.bf16.xpose.msra.mxu0 0
    %1264 = vmatprep.subr.bf16.mxu0 0
    %1265 = vmatpush1.bf16.xpose.msra.mxu0 0
    %1266 = vmatprep.subr.bf16.mxu0 0
    %1267 = vmatpush1.bf16.xpose.msra.mxu0 0
    %1268 = vmatprep.subr.bf16.mxu0 0
    %1269 = vmatpush1.bf16.xpose.msra.mxu0 0
    %1270 = vmatprep.subr.bf16.mxu0 0
    %1271 = vmatpush1.bf16.xpose.msra.mxu0 0
    %1272 = vmatprep.subr.bf16.mxu0 0
    %1273 = vmatpush1.bf16.xpose.msra.mxu0 0
    %1274 = vmatprep.subr.bf16.mxu0 0
    %1275 = vmatpush1.bf16.xpose.msra.mxu0 0
    %1276 = vmatprep.subr.bf16.mxu0 0
    %1277 = vmatpush1.bf16.xpose.msra.mxu0 0
    %1278 = vmatprep.subr.bf16.mxu0 0
    %1279 = vmatpush1.bf16.xpose.msra.mxu0 0
    %1280 = vmatprep.subr.bf16.mxu0 0
    %1281 = vmatpush1.bf16.xpose.msra.mxu0 0
    %1282 = vmatprep.subr.bf16.mxu0 0
    %1283 = vmatpush1.bf16.xpose.msra.mxu0 0
    %1284 = vmatprep.mubr.bf16.mxu0 0
    %1285 = vmatmul.mubr.bf16.gmra.mrb[0].mxu0 %v1146
    %v1286 = vpop.f32.mrb[0].mxu0
    %v1287 = vadd.f32 %v303, %v1286
    %v1288 = vpop.f32.mrb[0].mxu0
    %v1289 = vpop.f32.mrb[0].mxu0
    %v1290 = vadd.f32 %v304, %v1289
    %v1291 = vpop.f32.mrb[0].mxu0
    %1292 = vdwg.mxu0
    %1293 = vmatprep.subr.bf16.mxu0 0
    %1294 = vmatpush1.bf16.xpose.msra.mxu0 %v1162
    %1295 = vmatprep.subr.bf16.mxu0 0
    %1296 = vmatpush1.bf16.xpose.msra.mxu0 0
    %1297 = vmatprep.subr.bf16.mxu0 0
    %1298 = vmatpush1.bf16.xpose.msra.mxu0 0
    %1299 = vmatprep.subr.bf16.mxu0 0
    %1300 = vmatpush1.bf16.xpose.msra.mxu0 0
    %1301 = vmatprep.subr.bf16.mxu0 0
    %1302 = vmatpush1.bf16.xpose.msra.mxu0 0
    %1303 = vmatprep.subr.bf16.mxu0 0
    %1304 = vmatpush1.bf16.xpose.msra.mxu0 0
    %1305 = vmatprep.subr.bf16.mxu0 0
    %1306 = vmatpush1.bf16.xpose.msra.mxu0 0
    %1307 = vmatprep.subr.bf16.mxu0 0
    %1308 = vmatpush1.bf16.xpose.msra.mxu0 0
    %1309 = vmatprep.subr.bf16.mxu0 0
    %1310 = vmatpush1.bf16.xpose.msra.mxu0 0
    %1311 = vmatprep.subr.bf16.mxu0 0
    %1312 = vmatpush1.bf16.xpose.msra.mxu0 0
    %1313 = vmatprep.subr.bf16.mxu0 0
    %1314 = vmatpush1.bf16.xpose.msra.mxu0 0
    %1315 = vmatprep.subr.bf16.mxu0 0
    %1316 = vmatpush1.bf16.xpose.msra.mxu0 0
    %1317 = vmatprep.subr.bf16.mxu0 0
    %1318 = vmatpush1.bf16.xpose.msra.mxu0 0
    %1319 = vmatprep.subr.bf16.mxu0 0
    %1320 = vmatpush1.bf16.xpose.msra.mxu0 0
    %1321 = vmatprep.subr.bf16.mxu0 0
    %1322 = vmatpush1.bf16.xpose.msra.mxu0 0
    %1323 = vmatprep.subr.bf16.mxu0 0
    %1324 = vmatpush1.bf16.xpose.msra.mxu0 0
    %1325 = vmatprep.mubr.bf16.mxu0 0
    %1326 = vmatmul.mubr.bf16.gmra.mrb[0].mxu0 %v1158
    %v1327 = vpop.f32.mrb[0].mxu0
    %v1328 = vadd.f32 %v305, %v1327
    %v1329 = vpop.f32.mrb[0].mxu0
    %v1330 = vpop.f32.mrb[0].mxu0
    %v1331 = vadd.f32 %v306, %v1330
    %v1332 = vpop.f32.mrb[0].mxu0
    %1333 = vdwg.mxu0
    %1334 = vmatprep.subr.bf16.mxu0 0
    %1335 = vmatpush1.bf16.xpose.msra.mxu0 %v1127
    %1336 = vmatprep.subr.bf16.mxu0 0
    %1337 = vmatpush1.bf16.xpose.msra.mxu0 0
    %1338 = vmatprep.subr.bf16.mxu0 0
    %1339 = vmatpush1.bf16.xpose.msra.mxu0 0
    %1340 = vmatprep.subr.bf16.mxu0 0
    %1341 = vmatpush1.bf16.xpose.msra.mxu0 0
    %1342 = vmatprep.subr.bf16.mxu0 0
    %1343 = vmatpush1.bf16.xpose.msra.mxu0 0
    %1344 = vmatprep.subr.bf16.mxu0 0
    %1345 = vmatpush1.bf16.xpose.msra.mxu0 0
    %1346 = vmatprep.subr.bf16.mxu0 0
    %1347 = vmatpush1.bf16.xpose.msra.mxu0 0
    %1348 = vmatprep.subr.bf16.mxu0 0
    %1349 = vmatpush1.bf16.xpose.msra.mxu0 0
    %1350 = vmatprep.subr.bf16.mxu0 0
    %1351 = vmatpush1.bf16.xpose.msra.mxu0 0
    %1352 = vmatprep.subr.bf16.mxu0 0
    %1353 = vmatpush1.bf16.xpose.msra.mxu0 0
    %1354 = vmatprep.subr.bf16.mxu0 0
    %1355 = vmatpush1.bf16.xpose.msra.mxu0 0
    %1356 = vmatprep.subr.bf16.mxu0 0
    %1357 = vmatpush1.bf16.xpose.msra.mxu0 0
    %1358 = vmatprep.subr.bf16.mxu0 0
    %1359 = vmatpush1.bf16.xpose.msra.mxu0 0
    %1360 = vmatprep.subr.bf16.mxu0 0
    %1361 = vmatpush1.bf16.xpose.msra.mxu0 0
    %1362 = vmatprep.subr.bf16.mxu0 0
    %1363 = vmatpush1.bf16.xpose.msra.mxu0 0
    %1364 = vmatprep.subr.bf16.mxu0 0
    %1365 = vmatpush1.bf16.xpose.msra.mxu0 0
    %1366 = vmatprep.mubr.bf16.mxu0 0
    %1367 = vmatmul.mubr.bf16.gmra.mrb[0].mxu0 %v1123
    %v1368 = vpop.f32.mrb[0].mxu0
    %v1369 = vadd.f32 %v299, %v1368
    %v1370 = vpop.f32.mrb[0].mxu0
    %v1371 = vpop.f32.mrb[0].mxu0
    %v1372 = vadd.f32 %v300, %v1371
    %v1373 = vpop.f32.mrb[0].mxu0
    %1374 = vdwg.mxu0
    %1375 = vmatprep.subr.bf16.mxu0 0
    %1376 = vmatpush1.bf16.xpose.msra.mxu0 %v1139
    %1377 = vmatprep.subr.bf16.mxu0 0
    %1378 = vmatpush1.bf16.xpose.msra.mxu0 0
    %1379 = vmatprep.subr.bf16.mxu0 0
    %1380 = vmatpush1.bf16.xpose.msra.mxu0 0
    %1381 = vmatprep.subr.bf16.mxu0 0
    %1382 = vmatpush1.bf16.xpose.msra.mxu0 0
    %1383 = vmatprep.subr.bf16.mxu0 0
    %1384 = vmatpush1.bf16.xpose.msra.mxu0 0
    %1385 = vmatprep.subr.bf16.mxu0 0
    %1386 = vmatpush1.bf16.xpose.msra.mxu0 0
    %1387 = vmatprep.subr.bf16.mxu0 0
    %1388 = vmatpush1.bf16.xpose.msra.mxu0 0
    %1389 = vmatprep.subr.bf16.mxu0 0
    %1390 = vmatpush1.bf16.xpose.msra.mxu0 0
    %1391 = vmatprep.subr.bf16.mxu0 0
    %1392 = vmatpush1.bf16.xpose.msra.mxu0 0
    %1393 = vmatprep.subr.bf16.mxu0 0
    %1394 = vmatpush1.bf16.xpose.msra.mxu0 0
    %1395 = vmatprep.subr.bf16.mxu0 0
    %1396 = vmatpush1.bf16.xpose.msra.mxu0 0
    %1397 = vmatprep.subr.bf16.mxu0 0
    %1398 = vmatpush1.bf16.xpose.msra.mxu0 0
    %1399 = vmatprep.subr.bf16.mxu0 0
    %1400 = vmatpush1.bf16.xpose.msra.mxu0 0
    %1401 = vmatprep.subr.bf16.mxu0 0
    %1402 = vmatpush1.bf16.xpose.msra.mxu0 0
    %1403 = vmatprep.subr.bf16.mxu0 0
    %1404 = vmatpush1.bf16.xpose.msra.mxu0 0
    %1405 = vmatprep.subr.bf16.mxu0 0
    %1406 = vmatpush1.bf16.xpose.msra.mxu0 0
    %1407 = vmatprep.mubr.bf16.mxu0 0
    %1408 = vmatmul.mubr.bf16.gmra.mrb[0].mxu0 %v1135
    %v1409 = vpop.f32.mrb[0].mxu0
    %v1410 = vadd.f32 %v301, %v1409
    %v1411 = vpop.f32.mrb[0].mxu0
    %v1412 = vpop.f32.mrb[0].mxu0
    %v1413 = vadd.f32 %v302, %v1412
    %v1414 = vpop.f32.mrb[0].mxu0
    %1415 = vdwg.mxu0
    %1416 = vmatprep.subr.bf16.mxu0 0
    %1417 = vmatpush1.bf16.xpose.msra.mxu0 %v1151
    %1418 = vmatprep.subr.bf16.mxu0 0
    %1419 = vmatpush1.bf16.xpose.msra.mxu0 0
    %1420 = vmatprep.subr.bf16.mxu0 0
    %1421 = vmatpush1.bf16.xpose.msra.mxu0 0
    %1422 = vmatprep.subr.bf16.mxu0 0
    %1423 = vmatpush1.bf16.xpose.msra.mxu0 0
    %1424 = vmatprep.subr.bf16.mxu0 0
    %1425 = vmatpush1.bf16.xpose.msra.mxu0 0
    %1426 = vmatprep.subr.bf16.mxu0 0
    %1427 = vmatpush1.bf16.xpose.msra.mxu0 0
    %1428 = vmatprep.subr.bf16.mxu0 0
    %1429 = vmatpush1.bf16.xpose.msra.mxu0 0
    %1430 = vmatprep.subr.bf16.mxu0 0
    %1431 = vmatpush1.bf16.xpose.msra.mxu0 0
    %1432 = vmatprep.subr.bf16.mxu0 0
    %1433 = vmatpush1.bf16.xpose.msra.mxu0 0
    %1434 = vmatprep.subr.bf16.mxu0 0
    %1435 = vmatpush1.bf16.xpose.msra.mxu0 0
    %1436 = vmatprep.subr.bf16.mxu0 0
    %1437 = vmatpush1.bf16.xpose.msra.mxu0 0
    %1438 = vmatprep.subr.bf16.mxu0 0
    %1439 = vmatpush1.bf16.xpose.msra.mxu0 0
    %1440 = vmatprep.subr.bf16.mxu0 0
    %1441 = vmatpush1.bf16.xpose.msra.mxu0 0
    %1442 = vmatprep.subr.bf16.mxu0 0
    %1443 = vmatpush1.bf16.xpose.msra.mxu0 0
    %1444 = vmatprep.subr.bf16.mxu0 0
    %1445 = vmatpush1.bf16.xpose.msra.mxu0 0
    %1446 = vmatprep.subr.bf16.mxu0 0
    %1447 = vmatpush1.bf16.xpose.msra.mxu0 0
    %1448 = vmatprep.mubr.bf16.mxu0 0
    %1449 = vmatmul.mubr.bf16.gmra.mrb[0].mxu0 %v1147
    %v1450 = vpop.f32.mrb[0].mxu0
    %v1451 = vadd.f32 %v303, %v1450
    %v1452 = vpop.f32.mrb[0].mxu0
    %v1453 = vpop.f32.mrb[0].mxu0
    %v1454 = vadd.f32 %v304, %v1453
    %v1455 = vpop.f32.mrb[0].mxu0
    %1456 = vdwg.mxu0
    %1457 = vmatprep.subr.bf16.mxu0 0
    %1458 = vmatpush1.bf16.xpose.msra.mxu0 %v1163
    %1459 = vmatprep.subr.bf16.mxu0 0
    %1460 = vmatpush1.bf16.xpose.msra.mxu0 0
    %1461 = vmatprep.subr.bf16.mxu0 0
    %1462 = vmatpush1.bf16.xpose.msra.mxu0 0
    %1463 = vmatprep.subr.bf16.mxu0 0
    %1464 = vmatpush1.bf16.xpose.msra.mxu0 0
    %1465 = vmatprep.subr.bf16.mxu0 0
    %1466 = vmatpush1.bf16.xpose.msra.mxu0 0
    %1467 = vmatprep.subr.bf16.mxu0 0
    %1468 = vmatpush1.bf16.xpose.msra.mxu0 0
    %1469 = vmatprep.subr.bf16.mxu0 0
    %1470 = vmatpush1.bf16.xpose.msra.mxu0 0
    %1471 = vmatprep.subr.bf16.mxu0 0
    %1472 = vmatpush1.bf16.xpose.msra.mxu0 0
    %1473 = vmatprep.subr.bf16.mxu0 0
    %1474 = vmatpush1.bf16.xpose.msra.mxu0 0
    %1475 = vmatprep.subr.bf16.mxu0 0
    %1476 = vmatpush1.bf16.xpose.msra.mxu0 0
    %1477 = vmatprep.subr.bf16.mxu0 0
    %1478 = vmatpush1.bf16.xpose.msra.mxu0 0
    %1479 = vmatprep.subr.bf16.mxu0 0
    %1480 = vmatpush1.bf16.xpose.msra.mxu0 0
    %1481 = vmatprep.subr.bf16.mxu0 0
    %1482 = vmatpush1.bf16.xpose.msra.mxu0 0
    %1483 = vmatprep.subr.bf16.mxu0 0
    %1484 = vmatpush1.bf16.xpose.msra.mxu0 0
    %1485 = vmatprep.subr.bf16.mxu0 0
    %1486 = vmatpush1.bf16.xpose.msra.mxu0 0
    %1487 = vmatprep.subr.bf16.mxu0 0
    %1488 = vmatpush1.bf16.xpose.msra.mxu0 0
    %1489 = vmatprep.mubr.bf16.mxu0 0
    %1490 = vmatmul.mubr.bf16.gmra.mrb[0].mxu0 %v1159
    %v1491 = vpop.f32.mrb[0].mxu0
    %v1492 = vadd.f32 %v305, %v1491
    %v1493 = vpop.f32.mrb[0].mxu0
    %v1494 = vpop.f32.mrb[0].mxu0
    %v1495 = vadd.f32 %v306, %v1494
    %v1496 = vpop.f32.mrb[0].mxu0
    %1497 = vdwg.mxu0
    %1498 = vmatprep.subr.bf16.mxu0 0
    %1499 = vmatpush1.bf16.xpose.msra.mxu0 %v1128
    %1500 = vmatprep.subr.bf16.mxu0 0
    %1501 = vmatpush1.bf16.xpose.msra.mxu0 0
    %1502 = vmatprep.subr.bf16.mxu0 0
    %1503 = vmatpush1.bf16.xpose.msra.mxu0 0
    %1504 = vmatprep.subr.bf16.mxu0 0
    %1505 = vmatpush1.bf16.xpose.msra.mxu0 0
    %1506 = vmatprep.subr.bf16.mxu0 0
    %1507 = vmatpush1.bf16.xpose.msra.mxu0 0
    %1508 = vmatprep.subr.bf16.mxu0 0
    %1509 = vmatpush1.bf16.xpose.msra.mxu0 0
    %1510 = vmatprep.subr.bf16.mxu0 0
    %1511 = vmatpush1.bf16.xpose.msra.mxu0 0
    %1512 = vmatprep.subr.bf16.mxu0 0
    %1513 = vmatpush1.bf16.xpose.msra.mxu0 0
    %1514 = vmatprep.subr.bf16.mxu0 0
    %1515 = vmatpush1.bf16.xpose.msra.mxu0 0
    %1516 = vmatprep.subr.bf16.mxu0 0
    %1517 = vmatpush1.bf16.xpose.msra.mxu0 0
    %1518 = vmatprep.subr.bf16.mxu0 0
    %1519 = vmatpush1.bf16.xpose.msra.mxu0 0
    %1520 = vmatprep.subr.bf16.mxu0 0
    %1521 = vmatpush1.bf16.xpose.msra.mxu0 0
    %1522 = vmatprep.subr.bf16.mxu0 0
    %1523 = vmatpush1.bf16.xpose.msra.mxu0 0
    %1524 = vmatprep.subr.bf16.mxu0 0
    %1525 = vmatpush1.bf16.xpose.msra.mxu0 0
    %1526 = vmatprep.subr.bf16.mxu0 0
    %1527 = vmatpush1.bf16.xpose.msra.mxu0 0
    %1528 = vmatprep.subr.bf16.mxu0 0
    %1529 = vmatpush1.bf16.xpose.msra.mxu0 0
    %1530 = vmatprep.mubr.bf16.mxu0 0
    %1531 = vmatmul.mubr.bf16.gmra.mrb[0].mxu0 %v1124
    %v1532 = vpop.f32.mrb[0].mxu0
    %v1533 = vadd.f32 %v299, %v1532
    %v1534 = vpop.f32.mrb[0].mxu0
    %v1535 = vpop.f32.mrb[0].mxu0
    %v1536 = vadd.f32 %v300, %v1535
    %v1537 = vpop.f32.mrb[0].mxu0
    %1538 = vdwg.mxu0
    %1539 = vmatprep.subr.bf16.mxu0 0
    %1540 = vmatpush1.bf16.xpose.msra.mxu0 %v1140
    %1541 = vmatprep.subr.bf16.mxu0 0
    %1542 = vmatpush1.bf16.xpose.msra.mxu0 0
    %1543 = vmatprep.subr.bf16.mxu0 0
    %1544 = vmatpush1.bf16.xpose.msra.mxu0 0
    %1545 = vmatprep.subr.bf16.mxu0 0
    %1546 = vmatpush1.bf16.xpose.msra.mxu0 0
    %1547 = vmatprep.subr.bf16.mxu0 0
    %1548 = vmatpush1.bf16.xpose.msra.mxu0 0
    %1549 = vmatprep.subr.bf16.mxu0 0
    %1550 = vmatpush1.bf16.xpose.msra.mxu0 0
    %1551 = vmatprep.subr.bf16.mxu0 0
    %1552 = vmatpush1.bf16.xpose.msra.mxu0 0
    %1553 = vmatprep.subr.bf16.mxu0 0
    %1554 = vmatpush1.bf16.xpose.msra.mxu0 0
    %1555 = vmatprep.subr.bf16.mxu0 0
    %1556 = vmatpush1.bf16.xpose.msra.mxu0 0
    %1557 = vmatprep.subr.bf16.mxu0 0
    %1558 = vmatpush1.bf16.xpose.msra.mxu0 0
    %1559 = vmatprep.subr.bf16.mxu0 0
    %1560 = vmatpush1.bf16.xpose.msra.mxu0 0
    %1561 = vmatprep.subr.bf16.mxu0 0
    %1562 = vmatpush1.bf16.xpose.msra.mxu0 0
    %1563 = vmatprep.subr.bf16.mxu0 0
    %1564 = vmatpush1.bf16.xpose.msra.mxu0 0
    %1565 = vmatprep.subr.bf16.mxu0 0
    %1566 = vmatpush1.bf16.xpose.msra.mxu0 0
    %1567 = vmatprep.subr.bf16.mxu0 0
    %1568 = vmatpush1.bf16.xpose.msra.mxu0 0
    %1569 = vmatprep.subr.bf16.mxu0 0
    %1570 = vmatpush1.bf16.xpose.msra.mxu0 0
    %1571 = vmatprep.mubr.bf16.mxu0 0
    %1572 = vmatmul.mubr.bf16.gmra.mrb[0].mxu0 %v1136
    %v1573 = vpop.f32.mrb[0].mxu0
    %v1574 = vadd.f32 %v301, %v1573
    %v1575 = vpop.f32.mrb[0].mxu0
    %v1576 = vpop.f32.mrb[0].mxu0
    %v1577 = vadd.f32 %v302, %v1576
    %v1578 = vpop.f32.mrb[0].mxu0
    %1579 = vdwg.mxu0
    %1580 = vmatprep.subr.bf16.mxu0 0
    %1581 = vmatpush1.bf16.xpose.msra.mxu0 %v1152
    %1582 = vmatprep.subr.bf16.mxu0 0
    %1583 = vmatpush1.bf16.xpose.msra.mxu0 0
    %1584 = vmatprep.subr.bf16.mxu0 0
    %1585 = vmatpush1.bf16.xpose.msra.mxu0 0
    %1586 = vmatprep.subr.bf16.mxu0 0
    %1587 = vmatpush1.bf16.xpose.msra.mxu0 0
    %1588 = vmatprep.subr.bf16.mxu0 0
    %1589 = vmatpush1.bf16.xpose.msra.mxu0 0
    %1590 = vmatprep.subr.bf16.mxu0 0
    %1591 = vmatpush1.bf16.xpose.msra.mxu0 0
    %1592 = vmatprep.subr.bf16.mxu0 0
    %1593 = vmatpush1.bf16.xpose.msra.mxu0 0
    %1594 = vmatprep.subr.bf16.mxu0 0
    %1595 = vmatpush1.bf16.xpose.msra.mxu0 0
    %1596 = vmatprep.subr.bf16.mxu0 0
    %1597 = vmatpush1.bf16.xpose.msra.mxu0 0
    %1598 = vmatprep.subr.bf16.mxu0 0
    %1599 = vmatpush1.bf16.xpose.msra.mxu0 0
    %1600 = vmatprep.subr.bf16.mxu0 0
    %1601 = vmatpush1.bf16.xpose.msra.mxu0 0
    %1602 = vmatprep.subr.bf16.mxu0 0
    %1603 = vmatpush1.bf16.xpose.msra.mxu0 0
    %1604 = vmatprep.subr.bf16.mxu0 0
    %1605 = vmatpush1.bf16.xpose.msra.mxu0 0
    %1606 = vmatprep.subr.bf16.mxu0 0
    %1607 = vmatpush1.bf16.xpose.msra.mxu0 0
    %1608 = vmatprep.subr.bf16.mxu0 0
    %1609 = vmatpush1.bf16.xpose.msra.mxu0 0
    %1610 = vmatprep.subr.bf16.mxu0 0
    %1611 = vmatpush1.bf16.xpose.msra.mxu0 0
    %1612 = vmatprep.mubr.bf16.mxu0 0
    %1613 = vmatmul.mubr.bf16.gmra.mrb[0].mxu0 %v1148
    %v1614 = vpop.f32.mrb[0].mxu0
    %v1615 = vadd.f32 %v303, %v1614
    %v1616 = vpop.f32.mrb[0].mxu0
    %v1617 = vpop.f32.mrb[0].mxu0
    %v1618 = vadd.f32 %v304, %v1617
    %v1619 = vpop.f32.mrb[0].mxu0
    %1620 = vdwg.mxu0
    %1621 = vmatprep.subr.bf16.mxu0 0
    %1622 = vmatpush1.bf16.xpose.msra.mxu0 %v1164
    %1623 = vmatprep.subr.bf16.mxu0 0
    %1624 = vmatpush1.bf16.xpose.msra.mxu0 0
    %1625 = vmatprep.subr.bf16.mxu0 0
    %1626 = vmatpush1.bf16.xpose.msra.mxu0 0
    %1627 = vmatprep.subr.bf16.mxu0 0
    %1628 = vmatpush1.bf16.xpose.msra.mxu0 0
    %1629 = vmatprep.subr.bf16.mxu0 0
    %1630 = vmatpush1.bf16.xpose.msra.mxu0 0
    %1631 = vmatprep.subr.bf16.mxu0 0
    %1632 = vmatpush1.bf16.xpose.msra.mxu0 0
    %1633 = vmatprep.subr.bf16.mxu0 0
    %1634 = vmatpush1.bf16.xpose.msra.mxu0 0
    %1635 = vmatprep.subr.bf16.mxu0 0
    %1636 = vmatpush1.bf16.xpose.msra.mxu0 0
    %1637 = vmatprep.subr.bf16.mxu0 0
    %1638 = vmatpush1.bf16.xpose.msra.mxu0 0
    %1639 = vmatprep.subr.bf16.mxu0 0
    %1640 = vmatpush1.bf16.xpose.msra.mxu0 0
    %1641 = vmatprep.subr.bf16.mxu0 0
    %1642 = vmatpush1.bf16.xpose.msra.mxu0 0
    %1643 = vmatprep.subr.bf16.mxu0 0
    %1644 = vmatpush1.bf16.xpose.msra.mxu0 0
    %1645 = vmatprep.subr.bf16.mxu0 0
    %1646 = vmatpush1.bf16.xpose.msra.mxu0 0
    %1647 = vmatprep.subr.bf16.mxu0 0
    %1648 = vmatpush1.bf16.xpose.msra.mxu0 0
    %1649 = vmatprep.subr.bf16.mxu0 0
    %1650 = vmatpush1.bf16.xpose.msra.mxu0 0
    %1651 = vmatprep.subr.bf16.mxu0 0
    %1652 = vmatpush1.bf16.xpose.msra.mxu0 0
    %1653 = vmatprep.mubr.bf16.mxu0 0
    %1654 = vmatmul.mubr.bf16.gmra.mrb[0].mxu0 %v1160
    %v1655 = vpop.f32.mrb[0].mxu0
    %v1656 = vadd.f32 %v305, %v1655
    %v1657 = vpop.f32.mrb[0].mxu0
    %v1658 = vpop.f32.mrb[0].mxu0
    %v1659 = vadd.f32 %v306, %v1658
    %v1660 = vpop.f32.mrb[0].mxu0
    %1661 = vdwg.mxu0
    %1662 = vmatprep.subr.bf16.mxu0 0
    %1663 = vmatpush1.bf16.xpose.msra.mxu0 %v1129
    %1664 = vmatprep.subr.bf16.mxu0 0
    %1665 = vmatpush1.bf16.xpose.msra.mxu0 0
    %1666 = vmatprep.subr.bf16.mxu0 0
    %1667 = vmatpush1.bf16.xpose.msra.mxu0 0
    %1668 = vmatprep.subr.bf16.mxu0 0
    %1669 = vmatpush1.bf16.xpose.msra.mxu0 0
    %1670 = vmatprep.subr.bf16.mxu0 0
    %1671 = vmatpush1.bf16.xpose.msra.mxu0 0
    %1672 = vmatprep.subr.bf16.mxu0 0
    %1673 = vmatpush1.bf16.xpose.msra.mxu0 0
    %1674 = vmatprep.subr.bf16.mxu0 0
    %1675 = vmatpush1.bf16.xpose.msra.mxu0 0
    %1676 = vmatprep.subr.bf16.mxu0 0
    %1677 = vmatpush1.bf16.xpose.msra.mxu0 0
    %1678 = vmatprep.subr.bf16.mxu0 0
    %1679 = vmatpush1.bf16.xpose.msra.mxu0 0
    %1680 = vmatprep.subr.bf16.mxu0 0
    %1681 = vmatpush1.bf16.xpose.msra.mxu0 0
    %1682 = vmatprep.subr.bf16.mxu0 0
    %1683 = vmatpush1.bf16.xpose.msra.mxu0 0
    %1684 = vmatprep.subr.bf16.mxu0 0
    %1685 = vmatpush1.bf16.xpose.msra.mxu0 0
    %1686 = vmatprep.subr.bf16.mxu0 0
    %1687 = vmatpush1.bf16.xpose.msra.mxu0 0
    %1688 = vmatprep.subr.bf16.mxu0 0
    %1689 = vmatpush1.bf16.xpose.msra.mxu0 0
    %1690 = vmatprep.subr.bf16.mxu0 0
    %1691 = vmatpush1.bf16.xpose.msra.mxu0 0
    %1692 = vmatprep.subr.bf16.mxu0 0
    %1693 = vmatpush1.bf16.xpose.msra.mxu0 0
    %1694 = vmatprep.mubr.bf16.mxu0 0
    %1695 = vmatmul.mubr.bf16.gmra.mrb[0].mxu0 %v1125
    %v1696 = vpop.f32.mrb[0].mxu0
    %v1697 = vadd.f32 %v299, %v1696
    %v1698 = vpop.f32.mrb[0].mxu0
    %v1699 = vpop.f32.mrb[0].mxu0
    %v1700 = vadd.f32 %v300, %v1699
    %v1701 = vpop.f32.mrb[0].mxu0
    %1702 = vdwg.mxu0
    %1703 = vmatprep.subr.bf16.mxu0 0
    %1704 = vmatpush1.bf16.xpose.msra.mxu0 %v1141
    %1705 = vmatprep.subr.bf16.mxu0 0
    %1706 = vmatpush1.bf16.xpose.msra.mxu0 0
    %1707 = vmatprep.subr.bf16.mxu0 0
    %1708 = vmatpush1.bf16.xpose.msra.mxu0 0
    %1709 = vmatprep.subr.bf16.mxu0 0
    %1710 = vmatpush1.bf16.xpose.msra.mxu0 0
    %1711 = vmatprep.subr.bf16.mxu0 0
    %1712 = vmatpush1.bf16.xpose.msra.mxu0 0
    %1713 = vmatprep.subr.bf16.mxu0 0
    %1714 = vmatpush1.bf16.xpose.msra.mxu0 0
    %1715 = vmatprep.subr.bf16.mxu0 0
    %1716 = vmatpush1.bf16.xpose.msra.mxu0 0
    %1717 = vmatprep.subr.bf16.mxu0 0
    %1718 = vmatpush1.bf16.xpose.msra.mxu0 0
    %1719 = vmatprep.subr.bf16.mxu0 0
    %1720 = vmatpush1.bf16.xpose.msra.mxu0 0
    %1721 = vmatprep.subr.bf16.mxu0 0
    %1722 = vmatpush1.bf16.xpose.msra.mxu0 0
    %1723 = vmatprep.subr.bf16.mxu0 0
    %1724 = vmatpush1.bf16.xpose.msra.mxu0 0
    %1725 = vmatprep.subr.bf16.mxu0 0
    %1726 = vmatpush1.bf16.xpose.msra.mxu0 0
    %1727 = vmatprep.subr.bf16.mxu0 0
    %1728 = vmatpush1.bf16.xpose.msra.mxu0 0
    %1729 = vmatprep.subr.bf16.mxu0 0
    %1730 = vmatpush1.bf16.xpose.msra.mxu0 0
    %1731 = vmatprep.subr.bf16.mxu0 0
    %1732 = vmatpush1.bf16.xpose.msra.mxu0 0
    %1733 = vmatprep.subr.bf16.mxu0 0
    %1734 = vmatpush1.bf16.xpose.msra.mxu0 0
    %1735 = vmatprep.mubr.bf16.mxu0 0
    %1736 = vmatmul.mubr.bf16.gmra.mrb[0].mxu0 %v1137
    %v1737 = vpop.f32.mrb[0].mxu0
    %v1738 = vadd.f32 %v301, %v1737
    %v1739 = vpop.f32.mrb[0].mxu0
    %v1740 = vpop.f32.mrb[0].mxu0
    %v1741 = vadd.f32 %v302, %v1740
    %v1742 = vpop.f32.mrb[0].mxu0
    %1743 = vdwg.mxu0
    %1744 = vmatprep.subr.bf16.mxu0 0
    %1745 = vmatpush1.bf16.xpose.msra.mxu0 %v1153
    %1746 = vmatprep.subr.bf16.mxu0 0
    %1747 = vmatpush1.bf16.xpose.msra.mxu0 0
    %1748 = vmatprep.subr.bf16.mxu0 0
    %1749 = vmatpush1.bf16.xpose.msra.mxu0 0
    %1750 = vmatprep.subr.bf16.mxu0 0
    %1751 = vmatpush1.bf16.xpose.msra.mxu0 0
    %1752 = vmatprep.subr.bf16.mxu0 0
    %1753 = vmatpush1.bf16.xpose.msra.mxu0 0
    %1754 = vmatprep.subr.bf16.mxu0 0
    %1755 = vmatpush1.bf16.xpose.msra.mxu0 0
    %1756 = vmatprep.subr.bf16.mxu0 0
    %1757 = vmatpush1.bf16.xpose.msra.mxu0 0
    %1758 = vmatprep.subr.bf16.mxu0 0
    %1759 = vmatpush1.bf16.xpose.msra.mxu0 0
    %1760 = vmatprep.subr.bf16.mxu0 0
    %1761 = vmatpush1.bf16.xpose.msra.mxu0 0
    %1762 = vmatprep.subr.bf16.mxu0 0
    %1763 = vmatpush1.bf16.xpose.msra.mxu0 0
    %1764 = vmatprep.subr.bf16.mxu0 0
    %1765 = vmatpush1.bf16.xpose.msra.mxu0 0
    %1766 = vmatprep.subr.bf16.mxu0 0
    %1767 = vmatpush1.bf16.xpose.msra.mxu0 0
    %1768 = vmatprep.subr.bf16.mxu0 0
    %1769 = vmatpush1.bf16.xpose.msra.mxu0 0
    %1770 = vmatprep.subr.bf16.mxu0 0
    %1771 = vmatpush1.bf16.xpose.msra.mxu0 0
    %1772 = vmatprep.subr.bf16.mxu0 0
    %1773 = vmatpush1.bf16.xpose.msra.mxu0 0
    %1774 = vmatprep.subr.bf16.mxu0 0
    %1775 = vmatpush1.bf16.xpose.msra.mxu0 0
    %1776 = vmatprep.mubr.bf16.mxu0 0
    %1777 = vmatmul.mubr.bf16.gmra.mrb[0].mxu0 %v1149
    %v1778 = vpop.f32.mrb[0].mxu0
    %v1779 = vadd.f32 %v303, %v1778
    %v1780 = vpop.f32.mrb[0].mxu0
    %v1781 = vpop.f32.mrb[0].mxu0
    %v1782 = vadd.f32 %v304, %v1781
    %v1783 = vpop.f32.mrb[0].mxu0
    %1784 = vdwg.mxu0
    %1785 = vmatprep.subr.bf16.mxu0 0
    %1786 = vmatpush1.bf16.xpose.msra.mxu0 %v1165
    %1787 = vmatprep.subr.bf16.mxu0 0
    %1788 = vmatpush1.bf16.xpose.msra.mxu0 0
    %1789 = vmatprep.subr.bf16.mxu0 0
    %1790 = vmatpush1.bf16.xpose.msra.mxu0 0
    %1791 = vmatprep.subr.bf16.mxu0 0
    %1792 = vmatpush1.bf16.xpose.msra.mxu0 0
    %1793 = vmatprep.subr.bf16.mxu0 0
    %1794 = vmatpush1.bf16.xpose.msra.mxu0 0
    %1795 = vmatprep.subr.bf16.mxu0 0
    %1796 = vmatpush1.bf16.xpose.msra.mxu0 0
    %1797 = vmatprep.subr.bf16.mxu0 0
    %1798 = vmatpush1.bf16.xpose.msra.mxu0 0
    %1799 = vmatprep.subr.bf16.mxu0 0
    %1800 = vmatpush1.bf16.xpose.msra.mxu0 0
    %1801 = vmatprep.subr.bf16.mxu0 0
    %1802 = vmatpush1.bf16.xpose.msra.mxu0 0
    %1803 = vmatprep.subr.bf16.mxu0 0
    %1804 = vmatpush1.bf16.xpose.msra.mxu0 0
    %1805 = vmatprep.subr.bf16.mxu0 0
    %1806 = vmatpush1.bf16.xpose.msra.mxu0 0
    %1807 = vmatprep.subr.bf16.mxu0 0
    %1808 = vmatpush1.bf16.xpose.msra.mxu0 0
    %1809 = vmatprep.subr.bf16.mxu0 0
    %1810 = vmatpush1.bf16.xpose.msra.mxu0 0
    %1811 = vmatprep.subr.bf16.mxu0 0
    %1812 = vmatpush1.bf16.xpose.msra.mxu0 0
    %1813 = vmatprep.subr.bf16.mxu0 0
    %1814 = vmatpush1.bf16.xpose.msra.mxu0 0
    %1815 = vmatprep.subr.bf16.mxu0 0
    %1816 = vmatpush1.bf16.xpose.msra.mxu0 0
    %1817 = vmatprep.mubr.bf16.mxu0 0
    %1818 = vmatmul.mubr.bf16.gmra.mrb[0].mxu0 %v1161
    %v1819 = vpop.f32.mrb[0].mxu0
    %v1820 = vadd.f32 %v305, %v1819
    %v1821 = vpop.f32.mrb[0].mxu0
    %v1822 = vpop.f32.mrb[0].mxu0
    %v1823 = vadd.f32 %v306, %v1822
    %v1824 = vpop.f32.mrb[0].mxu0
    %1825 = vdwg.mxu0
    %vm1826 = vcmask 130048
    %v1827 = vsel %vm1826, %v1205, -inf
    %1828 = vmax.xlane.f32.xlu0 %v1827
    %v1829 = vpop.xlane.xlu0 %1828
    %v1830 = vsel %vm1826, %v1208, -inf
    %1831 = vmax.xlane.f32.xlu0 %v1830
    %v1832 = vpop.xlane.xlu0 %1831
    %v1833 = vsel %vm1826, %v1246, -inf
    %1834 = vmax.xlane.f32.xlu0 %v1833
    %v1835 = vpop.xlane.xlu0 %1834
    %v1836 = vsel %vm1826, %v1249, -inf
    %1837 = vmax.xlane.f32.xlu0 %v1836
    %v1838 = vpop.xlane.xlu0 %1837
    %v1839 = vsel %vm1826, %v1287, -inf
    %1840 = vmax.xlane.f32.xlu0 %v1839
    %v1841 = vpop.xlane.xlu0 %1840
    %v1842 = vsel %vm1826, %v1290, -inf
    %1843 = vmax.xlane.f32.xlu0 %v1842
    %v1844 = vpop.xlane.xlu0 %1843
    %v1845 = vsel %vm1826, %v1328, -inf
    %1846 = vmax.xlane.f32.xlu0 %v1845
    %v1847 = vpop.xlane.xlu0 %1846
    %v1848 = vsel %vm1826, %v1331, -inf
    %1849 = vmax.xlane.f32.xlu0 %v1848
    %v1850 = vpop.xlane.xlu0 %1849
    %v1851 = vsel %vm1826, %v1369, -inf
    %1852 = vmax.xlane.f32.xlu0 %v1851
    %v1853 = vpop.xlane.xlu0 %1852
    %v1854 = vsel %vm1826, %v1372, -inf
    %1855 = vmax.xlane.f32.xlu0 %v1854
    %v1856 = vpop.xlane.xlu0 %1855
    %v1857 = vsel %vm1826, %v1410, -inf
    %1858 = vmax.xlane.f32.xlu0 %v1857
    %v1859 = vpop.xlane.xlu0 %1858
    %v1860 = vsel %vm1826, %v1413, -inf
    %1861 = vmax.xlane.f32.xlu0 %v1860
    %v1862 = vpop.xlane.xlu0 %1861
    %v1863 = vsel %vm1826, %v1451, -inf
    %1864 = vmax.xlane.f32.xlu0 %v1863
    %v1865 = vpop.xlane.xlu0 %1864
    %v1866 = vsel %vm1826, %v1454, -inf
    %1867 = vmax.xlane.f32.xlu0 %v1866
    %v1868 = vpop.xlane.xlu0 %1867
    %v1869 = vsel %vm1826, %v1492, -inf
    %1870 = vmax.xlane.f32.xlu0 %v1869
    %v1871 = vpop.xlane.xlu0 %1870
    %v1872 = vsel %vm1826, %v1495, -inf
    %1873 = vmax.xlane.f32.xlu0 %v1872
    %v1874 = vpop.xlane.xlu0 %1873
    %v1875 = vsel %vm1826, %v1533, -inf
    %1876 = vmax.xlane.f32.xlu0 %v1875
    %v1877 = vpop.xlane.xlu0 %1876
    %v1878 = vsel %vm1826, %v1536, -inf
    %1879 = vmax.xlane.f32.xlu0 %v1878
    %v1880 = vpop.xlane.xlu0 %1879
    %v1881 = vsel %vm1826, %v1574, -inf
    %1882 = vmax.xlane.f32.xlu0 %v1881
    %v1883 = vpop.xlane.xlu0 %1882
    %v1884 = vsel %vm1826, %v1577, -inf
    %1885 = vmax.xlane.f32.xlu0 %v1884
    %v1886 = vpop.xlane.xlu0 %1885
    %v1887 = vsel %vm1826, %v1615, -inf
    %1888 = vmax.xlane.f32.xlu0 %v1887
    %v1889 = vpop.xlane.xlu0 %1888
    %v1890 = vsel %vm1826, %v1618, -inf
    %1891 = vmax.xlane.f32.xlu0 %v1890
    %v1892 = vpop.xlane.xlu0 %1891
    %v1893 = vsel %vm1826, %v1656, -inf
    %1894 = vmax.xlane.f32.xlu0 %v1893
    %v1895 = vpop.xlane.xlu0 %1894
    %v1896 = vsel %vm1826, %v1659, -inf
    %1897 = vmax.xlane.f32.xlu0 %v1896
    %v1898 = vpop.xlane.xlu0 %1897
    %v1899 = vsel %vm1826, %v1697, -inf
    %1900 = vmax.xlane.f32.xlu0 %v1899
    %v1901 = vpop.xlane.xlu0 %1900
    %v1902 = vsel %vm1826, %v1700, -inf
    %1903 = vmax.xlane.f32.xlu0 %v1902
    %v1904 = vpop.xlane.xlu0 %1903
    %v1905 = vsel %vm1826, %v1738, -inf
    %1906 = vmax.xlane.f32.xlu0 %v1905
    %v1907 = vpop.xlane.xlu0 %1906
    %v1908 = vsel %vm1826, %v1741, -inf
    %1909 = vmax.xlane.f32.xlu0 %v1908
    %v1910 = vpop.xlane.xlu0 %1909
    %v1911 = vsel %vm1826, %v1779, -inf
    %1912 = vmax.xlane.f32.xlu0 %v1911
    %v1913 = vpop.xlane.xlu0 %1912
    %v1914 = vsel %vm1826, %v1782, -inf
    %1915 = vmax.xlane.f32.xlu0 %v1914
    %v1916 = vpop.xlane.xlu0 %1915
    %v1917 = vsel %vm1826, %v1820, -inf
    %1918 = vmax.xlane.f32.xlu0 %v1917
    %v1919 = vpop.xlane.xlu0 %1918
    %v1920 = vsel %vm1826, %v1823, -inf
    %1921 = vmax.xlane.f32.xlu0 %v1920
    %v1922 = vpop.xlane.xlu0 %1921
    %v1923 = vsub.f32 %v1205, %v1829
    %v1924 = vsub.f32 %v1208, %v1832
    %v1925 = vsub.f32 %v1246, %v1835
    %v1926 = vsub.f32 %v1249, %v1838
    %v1927 = vsub.f32 %v1287, %v1841
    %v1928 = vsub.f32 %v1290, %v1844
    %v1929 = vsub.f32 %v1328, %v1847
    %v1930 = vsub.f32 %v1331, %v1850
    %v1931 = vsub.f32 %v1369, %v1853
    %v1932 = vsub.f32 %v1372, %v1856
    %v1933 = vsub.f32 %v1410, %v1859
    %v1934 = vsub.f32 %v1413, %v1862
    %v1935 = vsub.f32 %v1451, %v1865
    %v1936 = vsub.f32 %v1454, %v1868
    %v1937 = vsub.f32 %v1492, %v1871
    %v1938 = vsub.f32 %v1495, %v1874
    %v1939 = vsub.f32 %v1533, %v1877
    %v1940 = vsub.f32 %v1536, %v1880
    %v1941 = vsub.f32 %v1574, %v1883
    %v1942 = vsub.f32 %v1577, %v1886
    %v1943 = vsub.f32 %v1615, %v1889
    %v1944 = vsub.f32 %v1618, %v1892
    %v1945 = vsub.f32 %v1656, %v1895
    %v1946 = vsub.f32 %v1659, %v1898
    %v1947 = vsub.f32 %v1697, %v1901
    %v1948 = vsub.f32 %v1700, %v1904
    %v1949 = vsub.f32 %v1738, %v1907
    %v1950 = vsub.f32 %v1741, %v1910
    %v1951 = vsub.f32 %v1779, %v1913
    %v1952 = vsub.f32 %v1782, %v1916
    %v1953 = vsub.f32 %v1820, %v1919
    %v1954 = vsub.f32 %v1823, %v1922
    %v1955 = vmul.f32 %v1923, 1.442695
    %v1956 = vpow.pop %v1955
    %v1957 = vmul.f32 %v1924, 1.442695
    %v1958 = vpow.pop %v1957
    %v1959 = vmul.f32 %v1925, 1.442695
    %v1960 = vpow.pop %v1959
    %v1961 = vmul.f32 %v1926, 1.442695
    %v1962 = vpow.pop %v1961
    %v1963 = vmul.f32 %v1927, 1.442695
    %v1964 = vpow.pop %v1963
    %v1965 = vmul.f32 %v1928, 1.442695
    %v1966 = vpow.pop %v1965
    %v1967 = vmul.f32 %v1929, 1.442695
    %v1968 = vpow.pop %v1967
    %v1969 = vmul.f32 %v1930, 1.442695
    %v1970 = vpow.pop %v1969
    %v1971 = vmul.f32 %v1931, 1.442695
    %v1972 = vpow.pop %v1971
    %v1973 = vmul.f32 %v1932, 1.442695
    %v1974 = vpow.pop %v1973
    %v1975 = vmul.f32 %v1933, 1.442695
    %v1976 = vpow.pop %v1975
    %v1977 = vmul.f32 %v1934, 1.442695
    %v1978 = vpow.pop %v1977
    %v1979 = vmul.f32 %v1935, 1.442695
    %v1980 = vpow.pop %v1979
    %v1981 = vmul.f32 %v1936, 1.442695
    %v1982 = vpow.pop %v1981
    %v1983 = vmul.f32 %v1937, 1.442695
    %v1984 = vpow.pop %v1983
    %v1985 = vmul.f32 %v1938, 1.442695
    %v1986 = vpow.pop %v1985
    %v1987 = vmul.f32 %v1939, 1.442695
    %v1988 = vpow.pop %v1987
    %v1989 = vmul.f32 %v1940, 1.442695
    %v1990 = vpow.pop %v1989
    %v1991 = vmul.f32 %v1941, 1.442695
    %v1992 = vpow.pop %v1991
    %v1993 = vmul.f32 %v1942, 1.442695
    %v1994 = vpow.pop %v1993
    %v1995 = vmul.f32 %v1943, 1.442695
    %v1996 = vpow.pop %v1995
    %v1997 = vmul.f32 %v1944, 1.442695
    %v1998 = vpow.pop %v1997
    %v1999 = vmul.f32 %v1945, 1.442695
    %v2000 = vpow.pop %v1999
    %v2001 = vmul.f32 %v1946, 1.442695
    %v2002 = vpow.pop %v2001
    %v2003 = vmul.f32 %v1947, 1.442695
    %v2004 = vpow.pop %v2003
    %v2005 = vmul.f32 %v1948, 1.442695
    %v2006 = vpow.pop %v2005
    %v2007 = vmul.f32 %v1949, 1.442695
    %v2008 = vpow.pop %v2007
    %v2009 = vmul.f32 %v1950, 1.442695
    %v2010 = vpow.pop %v2009
    %v2011 = vmul.f32 %v1951, 1.442695
    %v2012 = vpow.pop %v2011
    %v2013 = vmul.f32 %v1952, 1.442695
    %v2014 = vpow.pop %v2013
    %v2015 = vmul.f32 %v1953, 1.442695
    %v2016 = vpow.pop %v2015
    %v2017 = vmul.f32 %v1954, 1.442695
    %v2018 = vpow.pop %v2017
    %v2019 = vsel %vm1826, %v1956, 0.0
    %2020 = vadd.xlane.f32.xlu0 %v2019
    %v2021 = vpop.xlane.xlu0 %2020
    %v2022 = vsel %vm1826, %v1958, 0.0
    %2023 = vadd.xlane.f32.xlu0 %v2022
    %v2024 = vpop.xlane.xlu0 %2023
    %v2025 = vsel %vm1826, %v1960, 0.0
    %2026 = vadd.xlane.f32.xlu0 %v2025
    %v2027 = vpop.xlane.xlu0 %2026
    %v2028 = vsel %vm1826, %v1962, 0.0
    %2029 = vadd.xlane.f32.xlu0 %v2028
    %v2030 = vpop.xlane.xlu0 %2029
    %v2031 = vsel %vm1826, %v1964, 0.0
    %2032 = vadd.xlane.f32.xlu0 %v2031
    %v2033 = vpop.xlane.xlu0 %2032
    %v2034 = vsel %vm1826, %v1966, 0.0
    %2035 = vadd.xlane.f32.xlu0 %v2034
    %v2036 = vpop.xlane.xlu0 %2035
    %v2037 = vsel %vm1826, %v1968, 0.0
    %2038 = vadd.xlane.f32.xlu0 %v2037
    %v2039 = vpop.xlane.xlu0 %2038
    %v2040 = vsel %vm1826, %v1970, 0.0
    %2041 = vadd.xlane.f32.xlu0 %v2040
    %v2042 = vpop.xlane.xlu0 %2041
    %v2043 = vsel %vm1826, %v1972, 0.0
    %2044 = vadd.xlane.f32.xlu0 %v2043
    %v2045 = vpop.xlane.xlu0 %2044
    %v2046 = vsel %vm1826, %v1974, 0.0
    %2047 = vadd.xlane.f32.xlu0 %v2046
    %v2048 = vpop.xlane.xlu0 %2047
    %v2049 = vsel %vm1826, %v1976, 0.0
    %2050 = vadd.xlane.f32.xlu0 %v2049
    %v2051 = vpop.xlane.xlu0 %2050
    %v2052 = vsel %vm1826, %v1978, 0.0
    %2053 = vadd.xlane.f32.xlu0 %v2052
    %v2054 = vpop.xlane.xlu0 %2053
    %v2055 = vsel %vm1826, %v1980, 0.0
    %2056 = vadd.xlane.f32.xlu0 %v2055
    %v2057 = vpop.xlane.xlu0 %2056
    %v2058 = vsel %vm1826, %v1982, 0.0
    %2059 = vadd.xlane.f32.xlu0 %v2058
    %v2060 = vpop.xlane.xlu0 %2059
    %v2061 = vsel %vm1826, %v1984, 0.0
    %2062 = vadd.xlane.f32.xlu0 %v2061
    %v2063 = vpop.xlane.xlu0 %2062
    %v2064 = vsel %vm1826, %v1986, 0.0
    %2065 = vadd.xlane.f32.xlu0 %v2064
    %v2066 = vpop.xlane.xlu0 %2065
    %v2067 = vsel %vm1826, %v1988, 0.0
    %2068 = vadd.xlane.f32.xlu0 %v2067
    %v2069 = vpop.xlane.xlu0 %2068
    %v2070 = vsel %vm1826, %v1990, 0.0
    %2071 = vadd.xlane.f32.xlu0 %v2070
    %v2072 = vpop.xlane.xlu0 %2071
    %v2073 = vsel %vm1826, %v1992, 0.0
    %2074 = vadd.xlane.f32.xlu0 %v2073
    %v2075 = vpop.xlane.xlu0 %2074
    %v2076 = vsel %vm1826, %v1994, 0.0
    %2077 = vadd.xlane.f32.xlu0 %v2076
    %v2078 = vpop.xlane.xlu0 %2077
    %v2079 = vsel %vm1826, %v1996, 0.0
    %2080 = vadd.xlane.f32.xlu0 %v2079
    %v2081 = vpop.xlane.xlu0 %2080
    %v2082 = vsel %vm1826, %v1998, 0.0
    %2083 = vadd.xlane.f32.xlu0 %v2082
    %v2084 = vpop.xlane.xlu0 %2083
    %v2085 = vsel %vm1826, %v2000, 0.0
    %2086 = vadd.xlane.f32.xlu0 %v2085
    %v2087 = vpop.xlane.xlu0 %2086
    %v2088 = vsel %vm1826, %v2002, 0.0
    %2089 = vadd.xlane.f32.xlu0 %v2088
    %v2090 = vpop.xlane.xlu0 %2089
    %v2091 = vsel %vm1826, %v2004, 0.0
    %2092 = vadd.xlane.f32.xlu0 %v2091
    %v2093 = vpop.xlane.xlu0 %2092
    %v2094 = vsel %vm1826, %v2006, 0.0
    %2095 = vadd.xlane.f32.xlu0 %v2094
    %v2096 = vpop.xlane.xlu0 %2095
    %v2097 = vsel %vm1826, %v2008, 0.0
    %2098 = vadd.xlane.f32.xlu0 %v2097
    %v2099 = vpop.xlane.xlu0 %2098
    %v2100 = vsel %vm1826, %v2010, 0.0
    %2101 = vadd.xlane.f32.xlu0 %v2100
    %v2102 = vpop.xlane.xlu0 %2101
    %v2103 = vsel %vm1826, %v2012, 0.0
    %2104 = vadd.xlane.f32.xlu0 %v2103
    %v2105 = vpop.xlane.xlu0 %2104
    %v2106 = vsel %vm1826, %v2014, 0.0
    %2107 = vadd.xlane.f32.xlu0 %v2106
    %v2108 = vpop.xlane.xlu0 %2107
    %v2109 = vsel %vm1826, %v2016, 0.0
    %2110 = vadd.xlane.f32.xlu0 %v2109
    %v2111 = vpop.xlane.xlu0 %2110
    %v2112 = vsel %vm1826, %v2018, 0.0
    %2113 = vadd.xlane.f32.xlu0 %v2112
    %v2114 = vpop.xlane.xlu0 %2113
    %v2115 = vpack.c.bf16 %v1958, %v1956
    %v2116 = vpack.c.bf16 %v1962, %v1960
    %v2117 = vpack.c.bf16 %v1966, %v1964
    %v2118 = vpack.c.bf16 %v1970, %v1968
    %v2119 = vpack.c.bf16 %v1974, %v1972
    %v2120 = vpack.c.bf16 %v1978, %v1976
    %v2121 = vpack.c.bf16 %v1982, %v1980
    %v2122 = vpack.c.bf16 %v1986, %v1984
    %v2123 = vpack.c.bf16 %v1990, %v1988
    %v2124 = vpack.c.bf16 %v1994, %v1992
    %v2125 = vpack.c.bf16 %v1998, %v1996
    %v2126 = vpack.c.bf16 %v2002, %v2000
    %v2127 = vpack.c.bf16 %v2006, %v2004
    %v2128 = vpack.c.bf16 %v2010, %v2008
    %v2129 = vpack.c.bf16 %v2014, %v2012
    %v2130 = vpack.c.bf16 %v2018, %v2016
    %v2132 = vsel %vm1826, %v2115, 0
    %2134 = vmatprep.subr.bf16.mxu0 0
    %2135 = vmatpush1.bf16.msra.mxu0 %v1130
    %2136 = vmatprep.subr.bf16.mxu0 0
    %2137 = vmatpush1.bf16.msra.mxu0 0
    %2138 = vmatprep.subr.bf16.mxu0 0
    %2139 = vmatpush1.bf16.msra.mxu0 0
    %2140 = vmatprep.subr.bf16.mxu0 0
    %2141 = vmatpush1.bf16.msra.mxu0 0
    %2142 = vmatprep.subr.bf16.mxu0 0
    %2143 = vmatpush1.bf16.msra.mxu0 0
    %2144 = vmatprep.subr.bf16.mxu0 0
    %2145 = vmatpush1.bf16.msra.mxu0 0
    %2146 = vmatprep.subr.bf16.mxu0 0
    %2147 = vmatpush1.bf16.msra.mxu0 0
    %2148 = vmatprep.subr.bf16.mxu0 0
    %2149 = vmatpush1.bf16.msra.mxu0 0
    %2150 = vmatprep.subr.bf16.mxu0 0
    %2151 = vmatpush1.bf16.msra.mxu0 0
    %2152 = vmatprep.subr.bf16.mxu0 0
    %2153 = vmatpush1.bf16.msra.mxu0 0
    %2154 = vmatprep.subr.bf16.mxu0 0
    %2155 = vmatpush1.bf16.msra.mxu0 0
    %2156 = vmatprep.subr.bf16.mxu0 0
    %2157 = vmatpush1.bf16.msra.mxu0 0
    %2158 = vmatprep.subr.bf16.mxu0 0
    %2159 = vmatpush1.bf16.msra.mxu0 0
    %2160 = vmatprep.subr.bf16.mxu0 0
    %2161 = vmatpush1.bf16.msra.mxu0 0
    %2162 = vmatprep.subr.bf16.mxu0 0
    %2163 = vmatpush1.bf16.msra.mxu0 0
    %2164 = vmatprep.subr.bf16.mxu0 0
    %2165 = vmatpush1.bf16.msra.mxu0 0
    %2166 = vmatprep.mubr.bf16.mxu0 0
    %2167 = vmatmul.mubr.bf16.gmra.mrb[0].mxu0 %v2132
    %v2168 = vpop.f32.mrb[0].mxu0
    %v2169 = vadd.f32 0.0, %v2168
    %v2170 = vpop.f32.mrb[0].mxu0
    %v2171 = vpop.f32.mrb[0].mxu0
    %v2172 = vadd.f32 0.0, %v2171
    %v2173 = vpop.f32.mrb[0].mxu0
    %2174 = vdwg.mxu0
    %v2176 = vsel %vm1826, %v2116, 0
    %2178 = vmatprep.subr.bf16.mxu0 0
    %2179 = vmatpush1.bf16.msra.mxu0 %v1142
    %2180 = vmatprep.subr.bf16.mxu0 0
    %2181 = vmatpush1.bf16.msra.mxu0 0
    %2182 = vmatprep.subr.bf16.mxu0 0
    %2183 = vmatpush1.bf16.msra.mxu0 0
    %2184 = vmatprep.subr.bf16.mxu0 0
    %2185 = vmatpush1.bf16.msra.mxu0 0
    %2186 = vmatprep.subr.bf16.mxu0 0
    %2187 = vmatpush1.bf16.msra.mxu0 0
    %2188 = vmatprep.subr.bf16.mxu0 0
    %2189 = vmatpush1.bf16.msra.mxu0 0
    %2190 = vmatprep.subr.bf16.mxu0 0
    %2191 = vmatpush1.bf16.msra.mxu0 0
    %2192 = vmatprep.subr.bf16.mxu0 0
    %2193 = vmatpush1.bf16.msra.mxu0 0
    %2194 = vmatprep.subr.bf16.mxu0 0
    %2195 = vmatpush1.bf16.msra.mxu0 0
    %2196 = vmatprep.subr.bf16.mxu0 0
    %2197 = vmatpush1.bf16.msra.mxu0 0
    %2198 = vmatprep.subr.bf16.mxu0 0
    %2199 = vmatpush1.bf16.msra.mxu0 0
    %2200 = vmatprep.subr.bf16.mxu0 0
    %2201 = vmatpush1.bf16.msra.mxu0 0
    %2202 = vmatprep.subr.bf16.mxu0 0
    %2203 = vmatpush1.bf16.msra.mxu0 0
    %2204 = vmatprep.subr.bf16.mxu0 0
    %2205 = vmatpush1.bf16.msra.mxu0 0
    %2206 = vmatprep.subr.bf16.mxu0 0
    %2207 = vmatpush1.bf16.msra.mxu0 0
    %2208 = vmatprep.subr.bf16.mxu0 0
    %2209 = vmatpush1.bf16.msra.mxu0 0
    %2210 = vmatprep.mubr.bf16.mxu0 0
    %2211 = vmatmul.mubr.bf16.gmra.mrb[0].mxu0 %v2176
    %v2212 = vpop.f32.mrb[0].mxu0
    %v2213 = vadd.f32 0.0, %v2212
    %v2214 = vpop.f32.mrb[0].mxu0
    %v2215 = vpop.f32.mrb[0].mxu0
    %v2216 = vadd.f32 0.0, %v2215
    %v2217 = vpop.f32.mrb[0].mxu0
    %2218 = vdwg.mxu0
    %v2220 = vsel %vm1826, %v2117, 0
    %2222 = vmatprep.subr.bf16.mxu0 0
    %2223 = vmatpush1.bf16.msra.mxu0 %v1154
    %2224 = vmatprep.subr.bf16.mxu0 0
    %2225 = vmatpush1.bf16.msra.mxu0 0
    %2226 = vmatprep.subr.bf16.mxu0 0
    %2227 = vmatpush1.bf16.msra.mxu0 0
    %2228 = vmatprep.subr.bf16.mxu0 0
    %2229 = vmatpush1.bf16.msra.mxu0 0
    %2230 = vmatprep.subr.bf16.mxu0 0
    %2231 = vmatpush1.bf16.msra.mxu0 0
    %2232 = vmatprep.subr.bf16.mxu0 0
    %2233 = vmatpush1.bf16.msra.mxu0 0
    %2234 = vmatprep.subr.bf16.mxu0 0
    %2235 = vmatpush1.bf16.msra.mxu0 0
    %2236 = vmatprep.subr.bf16.mxu0 0
    %2237 = vmatpush1.bf16.msra.mxu0 0
    %2238 = vmatprep.subr.bf16.mxu0 0
    %2239 = vmatpush1.bf16.msra.mxu0 0
    %2240 = vmatprep.subr.bf16.mxu0 0
    %2241 = vmatpush1.bf16.msra.mxu0 0
    %2242 = vmatprep.subr.bf16.mxu0 0
    %2243 = vmatpush1.bf16.msra.mxu0 0
    %2244 = vmatprep.subr.bf16.mxu0 0
    %2245 = vmatpush1.bf16.msra.mxu0 0
    %2246 = vmatprep.subr.bf16.mxu0 0
    %2247 = vmatpush1.bf16.msra.mxu0 0
    %2248 = vmatprep.subr.bf16.mxu0 0
    %2249 = vmatpush1.bf16.msra.mxu0 0
    %2250 = vmatprep.subr.bf16.mxu0 0
    %2251 = vmatpush1.bf16.msra.mxu0 0
    %2252 = vmatprep.subr.bf16.mxu0 0
    %2253 = vmatpush1.bf16.msra.mxu0 0
    %2254 = vmatprep.mubr.bf16.mxu0 0
    %2255 = vmatmul.mubr.bf16.gmra.mrb[0].mxu0 %v2220
    %v2256 = vpop.f32.mrb[0].mxu0
    %v2257 = vadd.f32 0.0, %v2256
    %v2258 = vpop.f32.mrb[0].mxu0
    %v2259 = vpop.f32.mrb[0].mxu0
    %v2260 = vadd.f32 0.0, %v2259
    %v2261 = vpop.f32.mrb[0].mxu0
    %2262 = vdwg.mxu0
    %v2264 = vsel %vm1826, %v2118, 0
    %2266 = vmatprep.subr.bf16.mxu0 0
    %2267 = vmatpush1.bf16.msra.mxu0 %v1166
    %2268 = vmatprep.subr.bf16.mxu0 0
    %2269 = vmatpush1.bf16.msra.mxu0 0
    %2270 = vmatprep.subr.bf16.mxu0 0
    %2271 = vmatpush1.bf16.msra.mxu0 0
    %2272 = vmatprep.subr.bf16.mxu0 0
    %2273 = vmatpush1.bf16.msra.mxu0 0
    %2274 = vmatprep.subr.bf16.mxu0 0
    %2275 = vmatpush1.bf16.msra.mxu0 0
    %2276 = vmatprep.subr.bf16.mxu0 0
    %2277 = vmatpush1.bf16.msra.mxu0 0
    %2278 = vmatprep.subr.bf16.mxu0 0
    %2279 = vmatpush1.bf16.msra.mxu0 0
    %2280 = vmatprep.subr.bf16.mxu0 0
    %2281 = vmatpush1.bf16.msra.mxu0 0
    %2282 = vmatprep.subr.bf16.mxu0 0
    %2283 = vmatpush1.bf16.msra.mxu0 0
    %2284 = vmatprep.subr.bf16.mxu0 0
    %2285 = vmatpush1.bf16.msra.mxu0 0
    %2286 = vmatprep.subr.bf16.mxu0 0
    %2287 = vmatpush1.bf16.msra.mxu0 0
    %2288 = vmatprep.subr.bf16.mxu0 0
    %2289 = vmatpush1.bf16.msra.mxu0 0
    %2290 = vmatprep.subr.bf16.mxu0 0
    %2291 = vmatpush1.bf16.msra.mxu0 0
    %2292 = vmatprep.subr.bf16.mxu0 0
    %2293 = vmatpush1.bf16.msra.mxu0 0
    %2294 = vmatprep.subr.bf16.mxu0 0
    %2295 = vmatpush1.bf16.msra.mxu0 0
    %2296 = vmatprep.subr.bf16.mxu0 0
    %2297 = vmatpush1.bf16.msra.mxu0 0
    %2298 = vmatprep.mubr.bf16.mxu0 0
    %2299 = vmatmul.mubr.bf16.gmra.mrb[0].mxu0 %v2264
    %v2300 = vpop.f32.mrb[0].mxu0
    %v2301 = vadd.f32 0.0, %v2300
    %v2302 = vpop.f32.mrb[0].mxu0
    %v2303 = vpop.f32.mrb[0].mxu0
    %v2304 = vadd.f32 0.0, %v2303
    %v2305 = vpop.f32.mrb[0].mxu0
    %2306 = vdwg.mxu0
    %v2308 = vsel %vm1826, %v2119, 0
    %2310 = vmatprep.subr.bf16.mxu0 0
    %2311 = vmatpush1.bf16.msra.mxu0 %v1131
    %2312 = vmatprep.subr.bf16.mxu0 0
    %2313 = vmatpush1.bf16.msra.mxu0 0
    %2314 = vmatprep.subr.bf16.mxu0 0
    %2315 = vmatpush1.bf16.msra.mxu0 0
    %2316 = vmatprep.subr.bf16.mxu0 0
    %2317 = vmatpush1.bf16.msra.mxu0 0
    %2318 = vmatprep.subr.bf16.mxu0 0
    %2319 = vmatpush1.bf16.msra.mxu0 0
    %2320 = vmatprep.subr.bf16.mxu0 0
    %2321 = vmatpush1.bf16.msra.mxu0 0
    %2322 = vmatprep.subr.bf16.mxu0 0
    %2323 = vmatpush1.bf16.msra.mxu0 0
    %2324 = vmatprep.subr.bf16.mxu0 0
    %2325 = vmatpush1.bf16.msra.mxu0 0
    %2326 = vmatprep.subr.bf16.mxu0 0
    %2327 = vmatpush1.bf16.msra.mxu0 0
    %2328 = vmatprep.subr.bf16.mxu0 0
    %2329 = vmatpush1.bf16.msra.mxu0 0
    %2330 = vmatprep.subr.bf16.mxu0 0
    %2331 = vmatpush1.bf16.msra.mxu0 0
    %2332 = vmatprep.subr.bf16.mxu0 0
    %2333 = vmatpush1.bf16.msra.mxu0 0
    %2334 = vmatprep.subr.bf16.mxu0 0
    %2335 = vmatpush1.bf16.msra.mxu0 0
    %2336 = vmatprep.subr.bf16.mxu0 0
    %2337 = vmatpush1.bf16.msra.mxu0 0
    %2338 = vmatprep.subr.bf16.mxu0 0
    %2339 = vmatpush1.bf16.msra.mxu0 0
    %2340 = vmatprep.subr.bf16.mxu0 0
    %2341 = vmatpush1.bf16.msra.mxu0 0
    %2342 = vmatprep.mubr.bf16.mxu0 0
    %2343 = vmatmul.mubr.bf16.gmra.mrb[0].mxu0 %v2308
    %v2344 = vpop.f32.mrb[0].mxu0
    %v2345 = vadd.f32 0.0, %v2344
    %v2346 = vpop.f32.mrb[0].mxu0
    %v2347 = vpop.f32.mrb[0].mxu0
    %v2348 = vadd.f32 0.0, %v2347
    %v2349 = vpop.f32.mrb[0].mxu0
    %2350 = vdwg.mxu0
    %v2352 = vsel %vm1826, %v2120, 0
    %2354 = vmatprep.subr.bf16.mxu0 0
    %2355 = vmatpush1.bf16.msra.mxu0 %v1143
    %2356 = vmatprep.subr.bf16.mxu0 0
    %2357 = vmatpush1.bf16.msra.mxu0 0
    %2358 = vmatprep.subr.bf16.mxu0 0
    %2359 = vmatpush1.bf16.msra.mxu0 0
    %2360 = vmatprep.subr.bf16.mxu0 0
    %2361 = vmatpush1.bf16.msra.mxu0 0
    %2362 = vmatprep.subr.bf16.mxu0 0
    %2363 = vmatpush1.bf16.msra.mxu0 0
    %2364 = vmatprep.subr.bf16.mxu0 0
    %2365 = vmatpush1.bf16.msra.mxu0 0
    %2366 = vmatprep.subr.bf16.mxu0 0
    %2367 = vmatpush1.bf16.msra.mxu0 0
    %2368 = vmatprep.subr.bf16.mxu0 0
    %2369 = vmatpush1.bf16.msra.mxu0 0
    %2370 = vmatprep.subr.bf16.mxu0 0
    %2371 = vmatpush1.bf16.msra.mxu0 0
    %2372 = vmatprep.subr.bf16.mxu0 0
    %2373 = vmatpush1.bf16.msra.mxu0 0
    %2374 = vmatprep.subr.bf16.mxu0 0
    %2375 = vmatpush1.bf16.msra.mxu0 0
    %2376 = vmatprep.subr.bf16.mxu0 0
    %2377 = vmatpush1.bf16.msra.mxu0 0
    %2378 = vmatprep.subr.bf16.mxu0 0
    %2379 = vmatpush1.bf16.msra.mxu0 0
    %2380 = vmatprep.subr.bf16.mxu0 0
    %2381 = vmatpush1.bf16.msra.mxu0 0
    %2382 = vmatprep.subr.bf16.mxu0 0
    %2383 = vmatpush1.bf16.msra.mxu0 0
    %2384 = vmatprep.subr.bf16.mxu0 0
    %2385 = vmatpush1.bf16.msra.mxu0 0
    %2386 = vmatprep.mubr.bf16.mxu0 0
    %2387 = vmatmul.mubr.bf16.gmra.mrb[0].mxu0 %v2352
    %v2388 = vpop.f32.mrb[0].mxu0
    %v2389 = vadd.f32 0.0, %v2388
    %v2390 = vpop.f32.mrb[0].mxu0
    %v2391 = vpop.f32.mrb[0].mxu0
    %v2392 = vadd.f32 0.0, %v2391
    %v2393 = vpop.f32.mrb[0].mxu0
    %2394 = vdwg.mxu0
    %v2396 = vsel %vm1826, %v2121, 0
    %2398 = vmatprep.subr.bf16.mxu0 0
    %2399 = vmatpush1.bf16.msra.mxu0 %v1155
    %2400 = vmatprep.subr.bf16.mxu0 0
    %2401 = vmatpush1.bf16.msra.mxu0 0
    %2402 = vmatprep.subr.bf16.mxu0 0
    %2403 = vmatpush1.bf16.msra.mxu0 0
    %2404 = vmatprep.subr.bf16.mxu0 0
    %2405 = vmatpush1.bf16.msra.mxu0 0
    %2406 = vmatprep.subr.bf16.mxu0 0
    %2407 = vmatpush1.bf16.msra.mxu0 0
    %2408 = vmatprep.subr.bf16.mxu0 0
    %2409 = vmatpush1.bf16.msra.mxu0 0
    %2410 = vmatprep.subr.bf16.mxu0 0
    %2411 = vmatpush1.bf16.msra.mxu0 0
    %2412 = vmatprep.subr.bf16.mxu0 0
    %2413 = vmatpush1.bf16.msra.mxu0 0
    %2414 = vmatprep.subr.bf16.mxu0 0
    %2415 = vmatpush1.bf16.msra.mxu0 0
    %2416 = vmatprep.subr.bf16.mxu0 0
    %2417 = vmatpush1.bf16.msra.mxu0 0
    %2418 = vmatprep.subr.bf16.mxu0 0
    %2419 = vmatpush1.bf16.msra.mxu0 0
    %2420 = vmatprep.subr.bf16.mxu0 0
    %2421 = vmatpush1.bf16.msra.mxu0 0
    %2422 = vmatprep.subr.bf16.mxu0 0
    %2423 = vmatpush1.bf16.msra.mxu0 0
    %2424 = vmatprep.subr.bf16.mxu0 0
    %2425 = vmatpush1.bf16.msra.mxu0 0
    %2426 = vmatprep.subr.bf16.mxu0 0
    %2427 = vmatpush1.bf16.msra.mxu0 0
    %2428 = vmatprep.subr.bf16.mxu0 0
    %2429 = vmatpush1.bf16.msra.mxu0 0
    %2430 = vmatprep.mubr.bf16.mxu0 0
    %2431 = vmatmul.mubr.bf16.gmra.mrb[0].mxu0 %v2396
    %v2432 = vpop.f32.mrb[0].mxu0
    %v2433 = vadd.f32 0.0, %v2432
    %v2434 = vpop.f32.mrb[0].mxu0
    %v2435 = vpop.f32.mrb[0].mxu0
    %v2436 = vadd.f32 0.0, %v2435
    %v2437 = vpop.f32.mrb[0].mxu0
    %2438 = vdwg.mxu0
    %v2440 = vsel %vm1826, %v2122, 0
    %2442 = vmatprep.subr.bf16.mxu0 0
    %2443 = vmatpush1.bf16.msra.mxu0 %v1167
    %2444 = vmatprep.subr.bf16.mxu0 0
    %2445 = vmatpush1.bf16.msra.mxu0 0
    %2446 = vmatprep.subr.bf16.mxu0 0
    %2447 = vmatpush1.bf16.msra.mxu0 0
    %2448 = vmatprep.subr.bf16.mxu0 0
    %2449 = vmatpush1.bf16.msra.mxu0 0
    %2450 = vmatprep.subr.bf16.mxu0 0
    %2451 = vmatpush1.bf16.msra.mxu0 0
    %2452 = vmatprep.subr.bf16.mxu0 0
    %2453 = vmatpush1.bf16.msra.mxu0 0
    %2454 = vmatprep.subr.bf16.mxu0 0
    %2455 = vmatpush1.bf16.msra.mxu0 0
    %2456 = vmatprep.subr.bf16.mxu0 0
    %2457 = vmatpush1.bf16.msra.mxu0 0
    %2458 = vmatprep.subr.bf16.mxu0 0
    %2459 = vmatpush1.bf16.msra.mxu0 0
    %2460 = vmatprep.subr.bf16.mxu0 0
    %2461 = vmatpush1.bf16.msra.mxu0 0
    %2462 = vmatprep.subr.bf16.mxu0 0
    %2463 = vmatpush1.bf16.msra.mxu0 0
    %2464 = vmatprep.subr.bf16.mxu0 0
    %2465 = vmatpush1.bf16.msra.mxu0 0
    %2466 = vmatprep.subr.bf16.mxu0 0
    %2467 = vmatpush1.bf16.msra.mxu0 0
    %2468 = vmatprep.subr.bf16.mxu0 0
    %2469 = vmatpush1.bf16.msra.mxu0 0
    %2470 = vmatprep.subr.bf16.mxu0 0
    %2471 = vmatpush1.bf16.msra.mxu0 0
    %2472 = vmatprep.subr.bf16.mxu0 0
    %2473 = vmatpush1.bf16.msra.mxu0 0
    %2474 = vmatprep.mubr.bf16.mxu0 0
    %2475 = vmatmul.mubr.bf16.gmra.mrb[0].mxu0 %v2440
    %v2476 = vpop.f32.mrb[0].mxu0
    %v2477 = vadd.f32 0.0, %v2476
    %v2478 = vpop.f32.mrb[0].mxu0
    %v2479 = vpop.f32.mrb[0].mxu0
    %v2480 = vadd.f32 0.0, %v2479
    %v2481 = vpop.f32.mrb[0].mxu0
    %2482 = vdwg.mxu0
    %v2484 = vsel %vm1826, %v2123, 0
    %2486 = vmatprep.subr.bf16.mxu0 0
    %2487 = vmatpush1.bf16.msra.mxu0 %v1132
    %2488 = vmatprep.subr.bf16.mxu0 0
    %2489 = vmatpush1.bf16.msra.mxu0 0
    %2490 = vmatprep.subr.bf16.mxu0 0
    %2491 = vmatpush1.bf16.msra.mxu0 0
    %2492 = vmatprep.subr.bf16.mxu0 0
    %2493 = vmatpush1.bf16.msra.mxu0 0
    %2494 = vmatprep.subr.bf16.mxu0 0
    %2495 = vmatpush1.bf16.msra.mxu0 0
    %2496 = vmatprep.subr.bf16.mxu0 0
    %2497 = vmatpush1.bf16.msra.mxu0 0
    %2498 = vmatprep.subr.bf16.mxu0 0
    %2499 = vmatpush1.bf16.msra.mxu0 0
    %2500 = vmatprep.subr.bf16.mxu0 0
    %2501 = vmatpush1.bf16.msra.mxu0 0
    %2502 = vmatprep.subr.bf16.mxu0 0
    %2503 = vmatpush1.bf16.msra.mxu0 0
    %2504 = vmatprep.subr.bf16.mxu0 0
    %2505 = vmatpush1.bf16.msra.mxu0 0
    %2506 = vmatprep.subr.bf16.mxu0 0
    %2507 = vmatpush1.bf16.msra.mxu0 0
    %2508 = vmatprep.subr.bf16.mxu0 0
    %2509 = vmatpush1.bf16.msra.mxu0 0
    %2510 = vmatprep.subr.bf16.mxu0 0
    %2511 = vmatpush1.bf16.msra.mxu0 0
    %2512 = vmatprep.subr.bf16.mxu0 0
    %2513 = vmatpush1.bf16.msra.mxu0 0
    %2514 = vmatprep.subr.bf16.mxu0 0
    %2515 = vmatpush1.bf16.msra.mxu0 0
    %2516 = vmatprep.subr.bf16.mxu0 0
    %2517 = vmatpush1.bf16.msra.mxu0 0
    %2518 = vmatprep.mubr.bf16.mxu0 0
    %2519 = vmatmul.mubr.bf16.gmra.mrb[0].mxu0 %v2484
    %v2520 = vpop.f32.mrb[0].mxu0
    %v2521 = vadd.f32 0.0, %v2520
    %v2522 = vpop.f32.mrb[0].mxu0
    %v2523 = vpop.f32.mrb[0].mxu0
    %v2524 = vadd.f32 0.0, %v2523
    %v2525 = vpop.f32.mrb[0].mxu0
    %2526 = vdwg.mxu0
    %v2528 = vsel %vm1826, %v2124, 0
    %2530 = vmatprep.subr.bf16.mxu0 0
    %2531 = vmatpush1.bf16.msra.mxu0 %v1144
    %2532 = vmatprep.subr.bf16.mxu0 0
    %2533 = vmatpush1.bf16.msra.mxu0 0
    %2534 = vmatprep.subr.bf16.mxu0 0
    %2535 = vmatpush1.bf16.msra.mxu0 0
    %2536 = vmatprep.subr.bf16.mxu0 0
    %2537 = vmatpush1.bf16.msra.mxu0 0
    %2538 = vmatprep.subr.bf16.mxu0 0
    %2539 = vmatpush1.bf16.msra.mxu0 0
    %2540 = vmatprep.subr.bf16.mxu0 0
    %2541 = vmatpush1.bf16.msra.mxu0 0
    %2542 = vmatprep.subr.bf16.mxu0 0
    %2543 = vmatpush1.bf16.msra.mxu0 0
    %2544 = vmatprep.subr.bf16.mxu0 0
    %2545 = vmatpush1.bf16.msra.mxu0 0
    %2546 = vmatprep.subr.bf16.mxu0 0
    %2547 = vmatpush1.bf16.msra.mxu0 0
    %2548 = vmatprep.subr.bf16.mxu0 0
    %2549 = vmatpush1.bf16.msra.mxu0 0
    %2550 = vmatprep.subr.bf16.mxu0 0
    %2551 = vmatpush1.bf16.msra.mxu0 0
    %2552 = vmatprep.subr.bf16.mxu0 0
    %2553 = vmatpush1.bf16.msra.mxu0 0
    %2554 = vmatprep.subr.bf16.mxu0 0
    %2555 = vmatpush1.bf16.msra.mxu0 0
    %2556 = vmatprep.subr.bf16.mxu0 0
    %2557 = vmatpush1.bf16.msra.mxu0 0
    %2558 = vmatprep.subr.bf16.mxu0 0
    %2559 = vmatpush1.bf16.msra.mxu0 0
    %2560 = vmatprep.subr.bf16.mxu0 0
    %2561 = vmatpush1.bf16.msra.mxu0 0
    %2562 = vmatprep.mubr.bf16.mxu0 0
    %2563 = vmatmul.mubr.bf16.gmra.mrb[0].mxu0 %v2528
    %v2564 = vpop.f32.mrb[0].mxu0
    %v2565 = vadd.f32 0.0, %v2564
    %v2566 = vpop.f32.mrb[0].mxu0
    %v2567 = vpop.f32.mrb[0].mxu0
    %v2568 = vadd.f32 0.0, %v2567
    %v2569 = vpop.f32.mrb[0].mxu0
    %2570 = vdwg.mxu0
    %v2572 = vsel %vm1826, %v2125, 0
    %2574 = vmatprep.subr.bf16.mxu0 0
    %2575 = vmatpush1.bf16.msra.mxu0 %v1156
    %2576 = vmatprep.subr.bf16.mxu0 0
    %2577 = vmatpush1.bf16.msra.mxu0 0
    %2578 = vmatprep.subr.bf16.mxu0 0
    %2579 = vmatpush1.bf16.msra.mxu0 0
    %2580 = vmatprep.subr.bf16.mxu0 0
    %2581 = vmatpush1.bf16.msra.mxu0 0
    %2582 = vmatprep.subr.bf16.mxu0 0
    %2583 = vmatpush1.bf16.msra.mxu0 0
    %2584 = vmatprep.subr.bf16.mxu0 0
    %2585 = vmatpush1.bf16.msra.mxu0 0
    %2586 = vmatprep.subr.bf16.mxu0 0
    %2587 = vmatpush1.bf16.msra.mxu0 0
    %2588 = vmatprep.subr.bf16.mxu0 0
    %2589 = vmatpush1.bf16.msra.mxu0 0
    %2590 = vmatprep.subr.bf16.mxu0 0
    %2591 = vmatpush1.bf16.msra.mxu0 0
    %2592 = vmatprep.subr.bf16.mxu0 0
    %2593 = vmatpush1.bf16.msra.mxu0 0
    %2594 = vmatprep.subr.bf16.mxu0 0
    %2595 = vmatpush1.bf16.msra.mxu0 0
    %2596 = vmatprep.subr.bf16.mxu0 0
    %2597 = vmatpush1.bf16.msra.mxu0 0
    %2598 = vmatprep.subr.bf16.mxu0 0
    %2599 = vmatpush1.bf16.msra.mxu0 0
    %2600 = vmatprep.subr.bf16.mxu0 0
    %2601 = vmatpush1.bf16.msra.mxu0 0
    %2602 = vmatprep.subr.bf16.mxu0 0
    %2603 = vmatpush1.bf16.msra.mxu0 0
    %2604 = vmatprep.subr.bf16.mxu0 0
    %2605 = vmatpush1.bf16.msra.mxu0 0
    %2606 = vmatprep.mubr.bf16.mxu0 0
    %2607 = vmatmul.mubr.bf16.gmra.mrb[0].mxu0 %v2572
    %v2608 = vpop.f32.mrb[0].mxu0
    %v2609 = vadd.f32 0.0, %v2608
    %v2610 = vpop.f32.mrb[0].mxu0
    %v2611 = vpop.f32.mrb[0].mxu0
    %v2612 = vadd.f32 0.0, %v2611
    %v2613 = vpop.f32.mrb[0].mxu0
    %2614 = vdwg.mxu0
    %v2616 = vsel %vm1826, %v2126, 0
    %2618 = vmatprep.subr.bf16.mxu0 0
    %2619 = vmatpush1.bf16.msra.mxu0 %v1168
    %2620 = vmatprep.subr.bf16.mxu0 0
    %2621 = vmatpush1.bf16.msra.mxu0 0
    %2622 = vmatprep.subr.bf16.mxu0 0
    %2623 = vmatpush1.bf16.msra.mxu0 0
    %2624 = vmatprep.subr.bf16.mxu0 0
    %2625 = vmatpush1.bf16.msra.mxu0 0
    %2626 = vmatprep.subr.bf16.mxu0 0
    %2627 = vmatpush1.bf16.msra.mxu0 0
    %2628 = vmatprep.subr.bf16.mxu0 0
    %2629 = vmatpush1.bf16.msra.mxu0 0
    %2630 = vmatprep.subr.bf16.mxu0 0
    %2631 = vmatpush1.bf16.msra.mxu0 0
    %2632 = vmatprep.subr.bf16.mxu0 0
    %2633 = vmatpush1.bf16.msra.mxu0 0
    %2634 = vmatprep.subr.bf16.mxu0 0
    %2635 = vmatpush1.bf16.msra.mxu0 0
    %2636 = vmatprep.subr.bf16.mxu0 0
    %2637 = vmatpush1.bf16.msra.mxu0 0
    %2638 = vmatprep.subr.bf16.mxu0 0
    %2639 = vmatpush1.bf16.msra.mxu0 0
    %2640 = vmatprep.subr.bf16.mxu0 0
    %2641 = vmatpush1.bf16.msra.mxu0 0
    %2642 = vmatprep.subr.bf16.mxu0 0
    %2643 = vmatpush1.bf16.msra.mxu0 0
    %2644 = vmatprep.subr.bf16.mxu0 0
    %2645 = vmatpush1.bf16.msra.mxu0 0
    %2646 = vmatprep.subr.bf16.mxu0 0
    %2647 = vmatpush1.bf16.msra.mxu0 0
    %2648 = vmatprep.subr.bf16.mxu0 0
    %2649 = vmatpush1.bf16.msra.mxu0 0
    %2650 = vmatprep.mubr.bf16.mxu0 0
    %2651 = vmatmul.mubr.bf16.gmra.mrb[0].mxu0 %v2616
    %v2652 = vpop.f32.mrb[0].mxu0
    %v2653 = vadd.f32 0.0, %v2652
    %v2654 = vpop.f32.mrb[0].mxu0
    %v2655 = vpop.f32.mrb[0].mxu0
    %v2656 = vadd.f32 0.0, %v2655
    %v2657 = vpop.f32.mrb[0].mxu0
    %2658 = vdwg.mxu0
    %v2660 = vsel %vm1826, %v2127, 0
    %2662 = vmatprep.subr.bf16.mxu0 0
    %2663 = vmatpush1.bf16.msra.mxu0 %v1133
    %2664 = vmatprep.subr.bf16.mxu0 0
    %2665 = vmatpush1.bf16.msra.mxu0 0
    %2666 = vmatprep.subr.bf16.mxu0 0
    %2667 = vmatpush1.bf16.msra.mxu0 0
    %2668 = vmatprep.subr.bf16.mxu0 0
    %2669 = vmatpush1.bf16.msra.mxu0 0
    %2670 = vmatprep.subr.bf16.mxu0 0
    %2671 = vmatpush1.bf16.msra.mxu0 0
    %2672 = vmatprep.subr.bf16.mxu0 0
    %2673 = vmatpush1.bf16.msra.mxu0 0
    %2674 = vmatprep.subr.bf16.mxu0 0
    %2675 = vmatpush1.bf16.msra.mxu0 0
    %2676 = vmatprep.subr.bf16.mxu0 0
    %2677 = vmatpush1.bf16.msra.mxu0 0
    %2678 = vmatprep.subr.bf16.mxu0 0
    %2679 = vmatpush1.bf16.msra.mxu0 0
    %2680 = vmatprep.subr.bf16.mxu0 0
    %2681 = vmatpush1.bf16.msra.mxu0 0
    %2682 = vmatprep.subr.bf16.mxu0 0
    %2683 = vmatpush1.bf16.msra.mxu0 0
    %2684 = vmatprep.subr.bf16.mxu0 0
    %2685 = vmatpush1.bf16.msra.mxu0 0
    %2686 = vmatprep.subr.bf16.mxu0 0
    %2687 = vmatpush1.bf16.msra.mxu0 0
    %2688 = vmatprep.subr.bf16.mxu0 0
    %2689 = vmatpush1.bf16.msra.mxu0 0
    %2690 = vmatprep.subr.bf16.mxu0 0
    %2691 = vmatpush1.bf16.msra.mxu0 0
    %2692 = vmatprep.subr.bf16.mxu0 0
    %2693 = vmatpush1.bf16.msra.mxu0 0
    %2694 = vmatprep.mubr.bf16.mxu0 0
    %2695 = vmatmul.mubr.bf16.gmra.mrb[0].mxu0 %v2660
    %v2696 = vpop.f32.mrb[0].mxu0
    %v2697 = vadd.f32 0.0, %v2696
    %v2698 = vpop.f32.mrb[0].mxu0
    %v2699 = vpop.f32.mrb[0].mxu0
    %v2700 = vadd.f32 0.0, %v2699
    %v2701 = vpop.f32.mrb[0].mxu0
    %2702 = vdwg.mxu0
    %v2704 = vsel %vm1826, %v2128, 0
    %2706 = vmatprep.subr.bf16.mxu0 0
    %2707 = vmatpush1.bf16.msra.mxu0 %v1145
    %2708 = vmatprep.subr.bf16.mxu0 0
    %2709 = vmatpush1.bf16.msra.mxu0 0
    %2710 = vmatprep.subr.bf16.mxu0 0
    %2711 = vmatpush1.bf16.msra.mxu0 0
    %2712 = vmatprep.subr.bf16.mxu0 0
    %2713 = vmatpush1.bf16.msra.mxu0 0
    %2714 = vmatprep.subr.bf16.mxu0 0
    %2715 = vmatpush1.bf16.msra.mxu0 0
    %2716 = vmatprep.subr.bf16.mxu0 0
    %2717 = vmatpush1.bf16.msra.mxu0 0
    %2718 = vmatprep.subr.bf16.mxu0 0
    %2719 = vmatpush1.bf16.msra.mxu0 0
    %2720 = vmatprep.subr.bf16.mxu0 0
    %2721 = vmatpush1.bf16.msra.mxu0 0
    %2722 = vmatprep.subr.bf16.mxu0 0
    %2723 = vmatpush1.bf16.msra.mxu0 0
    %2724 = vmatprep.subr.bf16.mxu0 0
    %2725 = vmatpush1.bf16.msra.mxu0 0
    %2726 = vmatprep.subr.bf16.mxu0 0
    %2727 = vmatpush1.bf16.msra.mxu0 0
    %2728 = vmatprep.subr.bf16.mxu0 0
    %2729 = vmatpush1.bf16.msra.mxu0 0
    %2730 = vmatprep.subr.bf16.mxu0 0
    %2731 = vmatpush1.bf16.msra.mxu0 0
    %2732 = vmatprep.subr.bf16.mxu0 0
    %2733 = vmatpush1.bf16.msra.mxu0 0
    %2734 = vmatprep.subr.bf16.mxu0 0
    %2735 = vmatpush1.bf16.msra.mxu0 0
    %2736 = vmatprep.subr.bf16.mxu0 0
    %2737 = vmatpush1.bf16.msra.mxu0 0
    %2738 = vmatprep.mubr.bf16.mxu0 0
    %2739 = vmatmul.mubr.bf16.gmra.mrb[0].mxu0 %v2704
    %v2740 = vpop.f32.mrb[0].mxu0
    %v2741 = vadd.f32 0.0, %v2740
    %v2742 = vpop.f32.mrb[0].mxu0
    %v2743 = vpop.f32.mrb[0].mxu0
    %v2744 = vadd.f32 0.0, %v2743
    %v2745 = vpop.f32.mrb[0].mxu0
    %2746 = vdwg.mxu0
    %v2748 = vsel %vm1826, %v2129, 0
    %2750 = vmatprep.subr.bf16.mxu0 0
    %2751 = vmatpush1.bf16.msra.mxu0 %v1157
    %2752 = vmatprep.subr.bf16.mxu0 0
    %2753 = vmatpush1.bf16.msra.mxu0 0
    %2754 = vmatprep.subr.bf16.mxu0 0
    %2755 = vmatpush1.bf16.msra.mxu0 0
    %2756 = vmatprep.subr.bf16.mxu0 0
    %2757 = vmatpush1.bf16.msra.mxu0 0
    %2758 = vmatprep.subr.bf16.mxu0 0
    %2759 = vmatpush1.bf16.msra.mxu0 0
    %2760 = vmatprep.subr.bf16.mxu0 0
    %2761 = vmatpush1.bf16.msra.mxu0 0
    %2762 = vmatprep.subr.bf16.mxu0 0
    %2763 = vmatpush1.bf16.msra.mxu0 0
    %2764 = vmatprep.subr.bf16.mxu0 0
    %2765 = vmatpush1.bf16.msra.mxu0 0
    %2766 = vmatprep.subr.bf16.mxu0 0
    %2767 = vmatpush1.bf16.msra.mxu0 0
    %2768 = vmatprep.subr.bf16.mxu0 0
    %2769 = vmatpush1.bf16.msra.mxu0 0
    %2770 = vmatprep.subr.bf16.mxu0 0
    %2771 = vmatpush1.bf16.msra.mxu0 0
    %2772 = vmatprep.subr.bf16.mxu0 0
    %2773 = vmatpush1.bf16.msra.mxu0 0
    %2774 = vmatprep.subr.bf16.mxu0 0
    %2775 = vmatpush1.bf16.msra.mxu0 0
    %2776 = vmatprep.subr.bf16.mxu0 0
    %2777 = vmatpush1.bf16.msra.mxu0 0
    %2778 = vmatprep.subr.bf16.mxu0 0
    %2779 = vmatpush1.bf16.msra.mxu0 0
    %2780 = vmatprep.subr.bf16.mxu0 0
    %2781 = vmatpush1.bf16.msra.mxu0 0
    %2782 = vmatprep.mubr.bf16.mxu0 0
    %2783 = vmatmul.mubr.bf16.gmra.mrb[0].mxu0 %v2748
    %v2784 = vpop.f32.mrb[0].mxu0
    %v2785 = vadd.f32 0.0, %v2784
    %v2786 = vpop.f32.mrb[0].mxu0
    %v2787 = vpop.f32.mrb[0].mxu0
    %v2788 = vadd.f32 0.0, %v2787
    %v2789 = vpop.f32.mrb[0].mxu0
    %2790 = vdwg.mxu0
    %v2792 = vsel %vm1826, %v2130, 0
    %2794 = vmatprep.subr.bf16.mxu0 0
    %2795 = vmatpush1.bf16.msra.mxu0 %v1169
    %2796 = vmatprep.subr.bf16.mxu0 0
    %2797 = vmatpush1.bf16.msra.mxu0 0
    %2798 = vmatprep.subr.bf16.mxu0 0
    %2799 = vmatpush1.bf16.msra.mxu0 0
    %2800 = vmatprep.subr.bf16.mxu0 0
    %2801 = vmatpush1.bf16.msra.mxu0 0
    %2802 = vmatprep.subr.bf16.mxu0 0
    %2803 = vmatpush1.bf16.msra.mxu0 0
    %2804 = vmatprep.subr.bf16.mxu0 0
    %2805 = vmatpush1.bf16.msra.mxu0 0
    %2806 = vmatprep.subr.bf16.mxu0 0
    %2807 = vmatpush1.bf16.msra.mxu0 0
    %2808 = vmatprep.subr.bf16.mxu0 0
    %2809 = vmatpush1.bf16.msra.mxu0 0
    %2810 = vmatprep.subr.bf16.mxu0 0
    %2811 = vmatpush1.bf16.msra.mxu0 0
    %2812 = vmatprep.subr.bf16.mxu0 0
    %2813 = vmatpush1.bf16.msra.mxu0 0
    %2814 = vmatprep.subr.bf16.mxu0 0
    %2815 = vmatpush1.bf16.msra.mxu0 0
    %2816 = vmatprep.subr.bf16.mxu0 0
    %2817 = vmatpush1.bf16.msra.mxu0 0
    %2818 = vmatprep.subr.bf16.mxu0 0
    %2819 = vmatpush1.bf16.msra.mxu0 0
    %2820 = vmatprep.subr.bf16.mxu0 0
    %2821 = vmatpush1.bf16.msra.mxu0 0
    %2822 = vmatprep.subr.bf16.mxu0 0
    %2823 = vmatpush1.bf16.msra.mxu0 0
    %2824 = vmatprep.subr.bf16.mxu0 0
    %2825 = vmatpush1.bf16.msra.mxu0 0
    %2826 = vmatprep.mubr.bf16.mxu0 0
    %2827 = vmatmul.mubr.bf16.gmra.mrb[0].mxu0 %v2792
    %v2828 = vpop.f32.mrb[0].mxu0
    %v2829 = vadd.f32 0.0, %v2828
    %v2830 = vpop.f32.mrb[0].mxu0
    %v2831 = vpop.f32.mrb[0].mxu0
    %v2832 = vadd.f32 0.0, %v2831
    %v2833 = vpop.f32.mrb[0].mxu0
    %2834 = vdwg.mxu0
    %v2835 = vrcp.pop %v2021
    %v2836 = vrcp.pop %v2024
    %v2837 = vrcp.pop %v2027
    %v2838 = vrcp.pop %v2030
    %v2839 = vrcp.pop %v2033
    %v2840 = vrcp.pop %v2036
    %v2841 = vrcp.pop %v2039
    %v2842 = vrcp.pop %v2042
    %v2843 = vrcp.pop %v2045
    %v2844 = vrcp.pop %v2048
    %v2845 = vrcp.pop %v2051
    %v2846 = vrcp.pop %v2054
    %v2847 = vrcp.pop %v2057
    %v2848 = vrcp.pop %v2060
    %v2849 = vrcp.pop %v2063
    %v2850 = vrcp.pop %v2066
    %v2851 = vrcp.pop %v2069
    %v2852 = vrcp.pop %v2072
    %v2853 = vrcp.pop %v2075
    %v2854 = vrcp.pop %v2078
    %v2855 = vrcp.pop %v2081
    %v2856 = vrcp.pop %v2084
    %v2857 = vrcp.pop %v2087
    %v2858 = vrcp.pop %v2090
    %v2859 = vrcp.pop %v2093
    %v2860 = vrcp.pop %v2096
    %v2861 = vrcp.pop %v2099
    %v2862 = vrcp.pop %v2102
    %v2863 = vrcp.pop %v2105
    %v2864 = vrcp.pop %v2108
    %v2865 = vrcp.pop %v2111
    %v2866 = vrcp.pop %v2114
    %v2867 = vmul.f32 %v2169, %v2835
    %v2868 = vmul.f32 %v2172, %v2836
    %v2869 = vmul.f32 %v2213, %v2837
    %v2870 = vmul.f32 %v2216, %v2838
    %v2871 = vmul.f32 %v2257, %v2839
    %v2872 = vmul.f32 %v2260, %v2840
    %v2873 = vmul.f32 %v2301, %v2841
    %v2874 = vmul.f32 %v2304, %v2842
    %v2875 = vmul.f32 %v2345, %v2843
    %v2876 = vmul.f32 %v2348, %v2844
    %v2877 = vmul.f32 %v2389, %v2845
    %v2878 = vmul.f32 %v2392, %v2846
    %v2879 = vmul.f32 %v2433, %v2847
    %v2880 = vmul.f32 %v2436, %v2848
    %v2881 = vmul.f32 %v2477, %v2849
    %v2882 = vmul.f32 %v2480, %v2850
    %v2883 = vmul.f32 %v2521, %v2851
    %v2884 = vmul.f32 %v2524, %v2852
    %v2885 = vmul.f32 %v2565, %v2853
    %v2886 = vmul.f32 %v2568, %v2854
    %v2887 = vmul.f32 %v2609, %v2855
    %v2888 = vmul.f32 %v2612, %v2856
    %v2889 = vmul.f32 %v2653, %v2857
    %v2890 = vmul.f32 %v2656, %v2858
    %v2891 = vmul.f32 %v2697, %v2859
    %v2892 = vmul.f32 %v2700, %v2860
    %v2893 = vmul.f32 %v2741, %v2861
    %v2894 = vmul.f32 %v2744, %v2862
    %v2895 = vmul.f32 %v2785, %v2863
    %v2896 = vmul.f32 %v2788, %v2864
    %v2897 = vmul.f32 %v2829, %v2865
    %v2898 = vmul.f32 %v2832, %v2866
    %v2899 = vld [vmem:[#allocation10] sm:$0xf]
    %v2900 = vld [vmem:[#allocation10 + $0x4] sm:$0xf]
    %v2901 = vld [vmem:[#allocation10 + $0x8] sm:$0xf]
    %v2902 = vld [vmem:[#allocation10 + $0xc] sm:$0xf]
    %v2903 = vld [vmem:[#allocation10 + $0x10] sm:$0xf]
    %v2904 = vld [vmem:[#allocation10 + $0x14] sm:$0xf]
    %v2905 = vld [vmem:[#allocation10 + $0x18] sm:$0xf]
    %v2906 = vld [vmem:[#allocation10 + $0x1c] sm:$0xf]
    %v2907 = vld [vmem:[#allocation10 + $0x20] sm:$0xf]
    %v2908 = vld [vmem:[#allocation10 + $0x24] sm:$0xf]
    %v2909 = vld [vmem:[#allocation10 + $0x28] sm:$0xf]
    %v2910 = vld [vmem:[#allocation10 + $0x2c] sm:$0xf]
    %v2911 = vld [vmem:[#allocation10 + $0x30] sm:$0xf]
    %v2912 = vld [vmem:[#allocation10 + $0x34] sm:$0xf]
    %v2913 = vld [vmem:[#allocation10 + $0x38] sm:$0xf]
    %v2914 = vld [vmem:[#allocation10 + $0x3c] sm:$0xf]
    %v2915 = vld [vmem:[#allocation10 + $0x40] sm:$0xf]
    %v2916 = vld [vmem:[#allocation10 + $0x44] sm:$0xf]
    %v2917 = vld [vmem:[#allocation10 + $0x48] sm:$0xf]
    %v2918 = vld [vmem:[#allocation10 + $0x4c] sm:$0xf]
    %v2919 = vld [vmem:[#allocation10 + $0x50] sm:$0xf]
    %v2920 = vld [vmem:[#allocation10 + $0x54] sm:$0xf]
    %v2921 = vld [vmem:[#allocation10 + $0x58] sm:$0xf]
    %v2922 = vld [vmem:[#allocation10 + $0x5c] sm:$0xf]
    %v2923 = vld [vmem:[#allocation10 + $0x60] sm:$0xf]
    %v2924 = vld [vmem:[#allocation10 + $0x64] sm:$0xf]
    %v2925 = vld [vmem:[#allocation10 + $0x68] sm:$0xf]
    %v2926 = vld [vmem:[#allocation10 + $0x6c] sm:$0xf]
    %v2927 = vld [vmem:[#allocation10 + $0x70] sm:$0xf]
    %v2928 = vld [vmem:[#allocation10 + $0x74] sm:$0xf]
    %v2929 = vld [vmem:[#allocation10 + $0x78] sm:$0xf]
    %v2930 = vld [vmem:[#allocation10 + $0x7c] sm:$0xf]
    %v2931 = vld [vmem:[#allocation10 + $0x80] sm:$0xf]
    %v2932 = vld [vmem:[#allocation10 + $0x84] sm:$0xf]
    %v2933 = vld [vmem:[#allocation10 + $0x88] sm:$0xf]
    %v2934 = vld [vmem:[#allocation10 + $0x8c] sm:$0xf]
    %v2935 = vld [vmem:[#allocation10 + $0x90] sm:$0xf]
    %v2936 = vld [vmem:[#allocation10 + $0x94] sm:$0xf]
    %v2937 = vld [vmem:[#allocation10 + $0x98] sm:$0xf]
    %v2938 = vld [vmem:[#allocation10 + $0x9c] sm:$0xf]
    %v2939 = vld [vmem:[#allocation10 + $0xa0] sm:$0xf]
    %v2940 = vld [vmem:[#allocation10 + $0xa4] sm:$0xf]
    %v2941 = vld [vmem:[#allocation10 + $0xa8] sm:$0xf]
    %v2942 = vld [vmem:[#allocation10 + $0xac] sm:$0xf]
    %v2943 = vld [vmem:[#allocation10 + $0xb0] sm:$0xf]
    %v2944 = vld [vmem:[#allocation10 + $0xb4] sm:$0xf]
    %v2945 = vld [vmem:[#allocation10 + $0xb8] sm:$0xf]
    %v2946 = vld [vmem:[#allocation10 + $0xbc] sm:$0xf]
    %v2947 = vld [vmem:[#allocation10 + $0xc0] sm:$0xf]
    %v2948 = vld [vmem:[#allocation10 + $0xc4] sm:$0xf]
    %v2949 = vld [vmem:[#allocation10 + $0xc8] sm:$0xf]
    %v2950 = vld [vmem:[#allocation10 + $0xcc] sm:$0xf]
    %v2951 = vld [vmem:[#allocation10 + $0xd0] sm:$0xf]
    %v2952 = vld [vmem:[#allocation10 + $0xd4] sm:$0xf]
    %v2953 = vld [vmem:[#allocation10 + $0xd8] sm:$0xf]
    %v2954 = vld [vmem:[#allocation10 + $0xdc] sm:$0xf]
    %v2955 = vld [vmem:[#allocation10 + $0xe0] sm:$0xf]
    %v2956 = vld [vmem:[#allocation10 + $0xe4] sm:$0xf]
    %v2957 = vld [vmem:[#allocation10 + $0xe8] sm:$0xf]
    %v2958 = vld [vmem:[#allocation10 + $0xec] sm:$0xf]
    %v2959 = vld [vmem:[#allocation10 + $0xf0] sm:$0xf]
    %v2960 = vld [vmem:[#allocation10 + $0xf4] sm:$0xf]
    %v2961 = vld [vmem:[#allocation10 + $0xf8] sm:$0xf]
    %v2962 = vld [vmem:[#allocation10 + $0xfc] sm:$0xf]
    %v2963 = vpack.c.bf16 %v2868, %v2867
    %v2964 = vpack.c.bf16 %v2876, %v2875
    %v2965 = vpack.c.bf16 %v2884, %v2883
    %v2966 = vpack.c.bf16 %v2892, %v2891
    %v2967 = vpack.c.bf16 %v2870, %v2869
    %v2968 = vpack.c.bf16 %v2878, %v2877
    %v2969 = vpack.c.bf16 %v2886, %v2885
    %v2970 = vpack.c.bf16 %v2894, %v2893
    %v2971 = vpack.c.bf16 %v2872, %v2871
    %v2972 = vpack.c.bf16 %v2880, %v2879
    %v2973 = vpack.c.bf16 %v2888, %v2887
    %v2974 = vpack.c.bf16 %v2896, %v2895
    %v2975 = vpack.c.bf16 %v2874, %v2873
    %v2976 = vpack.c.bf16 %v2882, %v2881
    %v2977 = vpack.c.bf16 %v2890, %v2889
    %v2978 = vpack.c.bf16 %v2898, %v2897
    %v2979 = vld [vmem:[#allocation11] sm:$0x1]
    %v2981 = vlaneseq
    %v2982 = vshrl.u32 %v2981, 7
    %v2983 = vsub.s32 0, %v2982
    %v2984 = vrot.slane %v2979, %v2983
    %v3050 = vunpack.c.l.b16 %v2899
    %v3051 = vunpack.c.l.b16 %v2900
    %v3052 = vunpack.c.l.b16 %v2901
    %v3053 = vunpack.c.l.b16 %v2902
    %v3054 = vunpack.c.l.b16 %v2903
    %v3055 = vunpack.c.l.b16 %v2904
    %v3056 = vunpack.c.l.b16 %v2905
    %v3057 = vunpack.c.l.b16 %v2906
    %v3058 = vunpack.c.l.b16 %v2907
    %v3059 = vunpack.c.l.b16 %v2908
    %v3060 = vunpack.c.l.b16 %v2909
    %v3061 = vunpack.c.l.b16 %v2910
    %v3062 = vunpack.c.l.b16 %v2911
    %v3063 = vunpack.c.l.b16 %v2912
    %v3064 = vunpack.c.l.b16 %v2913
    %v3065 = vunpack.c.l.b16 %v2914
    %v3066 = vunpack.c.l.b16 %v2915
    %v3067 = vunpack.c.l.b16 %v2916
    %v3068 = vunpack.c.l.b16 %v2917
    %v3069 = vunpack.c.l.b16 %v2918
    %v3070 = vunpack.c.l.b16 %v2919
    %v3071 = vunpack.c.l.b16 %v2920
    %v3072 = vunpack.c.l.b16 %v2921
    %v3073 = vunpack.c.l.b16 %v2922
    %v3074 = vunpack.c.l.b16 %v2923
    %v3075 = vunpack.c.l.b16 %v2924
    %v3076 = vunpack.c.l.b16 %v2925
    %v3077 = vunpack.c.l.b16 %v2926
    %v3078 = vunpack.c.l.b16 %v2927
    %v3079 = vunpack.c.l.b16 %v2928
    %v3080 = vunpack.c.l.b16 %v2929
    %v3081 = vunpack.c.l.b16 %v2930
    %v3082 = vunpack.c.l.b16 %v2931
    %v3083 = vunpack.c.l.b16 %v2932
    %v3084 = vunpack.c.l.b16 %v2933
    %v3085 = vunpack.c.l.b16 %v2934
    %v3086 = vunpack.c.l.b16 %v2935
    %v3087 = vunpack.c.l.b16 %v2936
    %v3088 = vunpack.c.l.b16 %v2937
    %v3089 = vunpack.c.l.b16 %v2938
    %v3090 = vunpack.c.l.b16 %v2939
    %v3091 = vunpack.c.l.b16 %v2940
    %v3092 = vunpack.c.l.b16 %v2941
    %v3093 = vunpack.c.l.b16 %v2942
    %v3094 = vunpack.c.l.b16 %v2943
    %v3095 = vunpack.c.l.b16 %v2944
    %v3096 = vunpack.c.l.b16 %v2945
    %v3097 = vunpack.c.l.b16 %v2946
    %v3098 = vunpack.c.l.b16 %v2947
    %v3099 = vunpack.c.l.b16 %v2948
    %v3100 = vunpack.c.l.b16 %v2949
    %v3101 = vunpack.c.l.b16 %v2950
    %v3102 = vunpack.c.l.b16 %v2951
    %v3103 = vunpack.c.l.b16 %v2952
    %v3104 = vunpack.c.l.b16 %v2953
    %v3105 = vunpack.c.l.b16 %v2954
    %v3106 = vunpack.c.l.b16 %v2955
    %v3107 = vunpack.c.l.b16 %v2956
    %v3108 = vunpack.c.l.b16 %v2957
    %v3109 = vunpack.c.l.b16 %v2958
    %v3110 = vunpack.c.l.b16 %v2959
    %v3111 = vunpack.c.l.b16 %v2960
    %v3112 = vunpack.c.l.b16 %v2961
    %v3113 = vunpack.c.l.b16 %v2962
    %v3114 = vpack.c.b16 %v3051, %v3050
    %v3115 = vpack.c.b16 %v3053, %v3052
    %v3116 = vpack.c.b16 %v3055, %v3054
    %v3117 = vpack.c.b16 %v3057, %v3056
    %v3118 = vpack.c.b16 %v3059, %v3058
    %v3119 = vpack.c.b16 %v3061, %v3060
    %v3120 = vpack.c.b16 %v3063, %v3062
    %v3121 = vpack.c.b16 %v3065, %v3064
    %v3122 = vpack.c.b16 %v3067, %v3066
    %v3123 = vpack.c.b16 %v3069, %v3068
    %v3124 = vpack.c.b16 %v3071, %v3070
    %v3125 = vpack.c.b16 %v3073, %v3072
    %v3126 = vpack.c.b16 %v3075, %v3074
    %v3127 = vpack.c.b16 %v3077, %v3076
    %v3128 = vpack.c.b16 %v3079, %v3078
    %v3129 = vpack.c.b16 %v3081, %v3080
    %v3130 = vpack.c.b16 %v3083, %v3082
    %v3131 = vpack.c.b16 %v3085, %v3084
    %v3132 = vpack.c.b16 %v3087, %v3086
    %v3133 = vpack.c.b16 %v3089, %v3088
    %v3134 = vpack.c.b16 %v3091, %v3090
    %v3135 = vpack.c.b16 %v3093, %v3092
    %v3136 = vpack.c.b16 %v3095, %v3094
    %v3137 = vpack.c.b16 %v3097, %v3096
    %v3138 = vpack.c.b16 %v3099, %v3098
    %v3139 = vpack.c.b16 %v3101, %v3100
    %v3140 = vpack.c.b16 %v3103, %v3102
    %v3141 = vpack.c.b16 %v3105, %v3104
    %v3142 = vpack.c.b16 %v3107, %v3106
    %v3143 = vpack.c.b16 %v3109, %v3108
    %v3144 = vpack.c.b16 %v3111, %v3110
    %v3145 = vpack.c.b16 %v3113, %v3112
    %3178 = vmatprep.subr.bf16.mxu0 0
    %3179 = vmatpush1.bf16.msra.mxu0 %v3114
    %3180 = vmatprep.subr.bf16.mxu0 0
    %3181 = vmatpush1.bf16.msra.mxu0 %v3115
    %3182 = vmatprep.subr.bf16.mxu0 0
    %3183 = vmatpush1.bf16.msra.mxu0 %v3116
    %3184 = vmatprep.subr.bf16.mxu0 0
    %3185 = vmatpush1.bf16.msra.mxu0 %v3117
    %3186 = vmatprep.subr.bf16.mxu0 0
    %3187 = vmatpush1.bf16.msra.mxu0 %v3118
    %3188 = vmatprep.subr.bf16.mxu0 0
    %3189 = vmatpush1.bf16.msra.mxu0 %v3119
    %3190 = vmatprep.subr.bf16.mxu0 0
    %3191 = vmatpush1.bf16.msra.mxu0 %v3120
    %3192 = vmatprep.subr.bf16.mxu0 0
    %3193 = vmatpush1.bf16.msra.mxu0 %v3121
    %3194 = vmatprep.subr.bf16.mxu0 0
    %3195 = vmatpush1.bf16.msra.mxu0 %v3122
    %3196 = vmatprep.subr.bf16.mxu0 0
    %3197 = vmatpush1.bf16.msra.mxu0 %v3123
    %3198 = vmatprep.subr.bf16.mxu0 0
    %3199 = vmatpush1.bf16.msra.mxu0 %v3124
    %3200 = vmatprep.subr.bf16.mxu0 0
    %3201 = vmatpush1.bf16.msra.mxu0 %v3125
    %3202 = vmatprep.subr.bf16.mxu0 0
    %3203 = vmatpush1.bf16.msra.mxu0 %v3126
    %3204 = vmatprep.subr.bf16.mxu0 0
    %3205 = vmatpush1.bf16.msra.mxu0 %v3127
    %3206 = vmatprep.subr.bf16.mxu0 0
    %3207 = vmatpush1.bf16.msra.mxu0 %v3128
    %3208 = vmatprep.subr.bf16.mxu0 0
    %3209 = vmatpush1.bf16.msra.mxu0 %v3129
    %3210 = vmatprep.mubr.bf16.mxu0 %v2964
    %3211 = vmatmul.mubr.bf16.gmra.mrb[0].mxu0 %v2963
    %v3212 = vpop.f32.mrb[0].mxu0
    %v3213 = vadd.f32 %v2984, %v3212
    %v3214 = vpop.f32.mrb[0].mxu0
    %v3215 = vpop.f32.mrb[0].mxu0
    %v3216 = vadd.f32 %v2984, %v3215
    %v3217 = vpop.f32.mrb[0].mxu0
    %3218 = vmatprep.mubr.bf16.mxu0 %v2968
    %3219 = vmatmul.mubr.bf16.gmra.mrb[0].mxu0 %v2967
    %v3220 = vpop.f32.mrb[0].mxu0
    %v3221 = vadd.f32 %v2984, %v3220
    %v3222 = vpop.f32.mrb[0].mxu0
    %v3223 = vpop.f32.mrb[0].mxu0
    %v3224 = vadd.f32 %v2984, %v3223
    %v3225 = vpop.f32.mrb[0].mxu0
    %3226 = vmatprep.mubr.bf16.mxu0 %v2972
    %3227 = vmatmul.mubr.bf16.gmra.mrb[0].mxu0 %v2971
    %v3228 = vpop.f32.mrb[0].mxu0
    %v3229 = vadd.f32 %v2984, %v3228
    %v3230 = vpop.f32.mrb[0].mxu0
    %v3231 = vpop.f32.mrb[0].mxu0
    %v3232 = vadd.f32 %v2984, %v3231
    %v3233 = vpop.f32.mrb[0].mxu0
    %3234 = vmatprep.mubr.bf16.mxu0 %v2976
    %3235 = vmatmul.mubr.bf16.gmra.mrb[0].mxu0 %v2975
    %v3236 = vpop.f32.mrb[0].mxu0
    %v3237 = vadd.f32 %v2984, %v3236
    %v3238 = vpop.f32.mrb[0].mxu0
    %v3239 = vpop.f32.mrb[0].mxu0
    %v3240 = vadd.f32 %v2984, %v3239
    %v3241 = vpop.f32.mrb[0].mxu0
    %3242 = vdwg.mxu0
    %3243 = vmatprep.subr.bf16.mxu0 0
    %3244 = vmatpush1.bf16.msra.mxu0 %v3130
    %3245 = vmatprep.subr.bf16.mxu0 0
    %3246 = vmatpush1.bf16.msra.mxu0 %v3131
    %3247 = vmatprep.subr.bf16.mxu0 0
    %3248 = vmatpush1.bf16.msra.mxu0 %v3132
    %3249 = vmatprep.subr.bf16.mxu0 0
    %3250 = vmatpush1.bf16.msra.mxu0 %v3133
    %3251 = vmatprep.subr.bf16.mxu0 0
    %3252 = vmatpush1.bf16.msra.mxu0 %v3134
    %3253 = vmatprep.subr.bf16.mxu0 0
    %3254 = vmatpush1.bf16.msra.mxu0 %v3135
    %3255 = vmatprep.subr.bf16.mxu0 0
    %3256 = vmatpush1.bf16.msra.mxu0 %v3136
    %3257 = vmatprep.subr.bf16.mxu0 0
    %3258 = vmatpush1.bf16.msra.mxu0 %v3137
    %3259 = vmatprep.subr.bf16.mxu0 0
    %3260 = vmatpush1.bf16.msra.mxu0 %v3138
    %3261 = vmatprep.subr.bf16.mxu0 0
    %3262 = vmatpush1.bf16.msra.mxu0 %v3139
    %3263 = vmatprep.subr.bf16.mxu0 0
    %3264 = vmatpush1.bf16.msra.mxu0 %v3140
    %3265 = vmatprep.subr.bf16.mxu0 0
    %3266 = vmatpush1.bf16.msra.mxu0 %v3141
    %3267 = vmatprep.subr.bf16.mxu0 0
    %3268 = vmatpush1.bf16.msra.mxu0 %v3142
    %3269 = vmatprep.subr.bf16.mxu0 0
    %3270 = vmatpush1.bf16.msra.mxu0 %v3143
    %3271 = vmatprep.subr.bf16.mxu0 0
    %3272 = vmatpush1.bf16.msra.mxu0 %v3144
    %3273 = vmatprep.subr.bf16.mxu0 0
    %3274 = vmatpush1.bf16.msra.mxu0 %v3145
    %3275 = vmatprep.mubr.bf16.mxu0 %v2966
    %3276 = vmatmul.mubr.bf16.gmra.mrb[0].mxu0 %v2965
    %v3277 = vpop.f32.mrb[0].mxu0
    %v3278 = vadd.f32 %v3213, %v3277
    %v3279 = vpop.f32.mrb[0].mxu0
    %v3280 = vpop.f32.mrb[0].mxu0
    %v3281 = vadd.f32 %v3216, %v3280
    %v3282 = vpop.f32.mrb[0].mxu0
    %3283 = vmatprep.mubr.bf16.mxu0 %v2970
    %3284 = vmatmul.mubr.bf16.gmra.mrb[0].mxu0 %v2969
    %v3285 = vpop.f32.mrb[0].mxu0
    %v3286 = vadd.f32 %v3221, %v3285
    %v3287 = vpop.f32.mrb[0].mxu0
    %v3288 = vpop.f32.mrb[0].mxu0
    %v3289 = vadd.f32 %v3224, %v3288
    %v3290 = vpop.f32.mrb[0].mxu0
    %3291 = vmatprep.mubr.bf16.mxu0 %v2974
    %3292 = vmatmul.mubr.bf16.gmra.mrb[0].mxu0 %v2973
    %v3293 = vpop.f32.mrb[0].mxu0
    %v3294 = vadd.f32 %v3229, %v3293
    %v3295 = vpop.f32.mrb[0].mxu0
    %v3296 = vpop.f32.mrb[0].mxu0
    %v3297 = vadd.f32 %v3232, %v3296
    %v3298 = vpop.f32.mrb[0].mxu0
    %3299 = vmatprep.mubr.bf16.mxu0 %v2978
    %3300 = vmatmul.mubr.bf16.gmra.mrb[0].mxu0 %v2977
    %v3301 = vpop.f32.mrb[0].mxu0
    %v3302 = vadd.f32 %v3237, %v3301
    %v3303 = vpop.f32.mrb[0].mxu0
    %v3304 = vpop.f32.mrb[0].mxu0
    %v3305 = vadd.f32 %v3240, %v3304
    %v3306 = vpop.f32.mrb[0].mxu0
    %3307 = vdwg.mxu0
    %v3308 = vadd.f32 %v307, %v3278
    %v3309 = vadd.f32 %v308, %v3281
    %v3310 = vadd.f32 %v309, %v3286
    %v3311 = vadd.f32 %v310, %v3289
    %v3312 = vadd.f32 %v311, %v3294
    %v3313 = vadd.f32 %v312, %v3297
    %v3314 = vadd.f32 %v313, %v3302
    %v3315 = vadd.f32 %v314, %v3305
    %v3316 = vld [vmem:[#allocation13] sm:$0x1]
    %v3317 = vld [vmem:[#allocation14] sm:$0x1]
    %v3318 = vsel %vm671, %v3308, 0.0
    %3319 = vadd.xlane.f32.xlu0 %v3318
    %v3320 = vpop.xlane.xlu0 %3319
    %v3321 = vsel %vm671, %v3309, 0.0
    %3322 = vadd.xlane.f32.xlu0 %v3321
    %v3323 = vpop.xlane.xlu0 %3322
    %v3324 = vsel %vm671, %v3310, 0.0
    %3325 = vadd.xlane.f32.xlu0 %v3324
    %v3326 = vpop.xlane.xlu0 %3325
    %v3327 = vsel %vm671, %v3311, 0.0
    %3328 = vadd.xlane.f32.xlu0 %v3327
    %v3329 = vpop.xlane.xlu0 %3328
    %v3330 = vsel %vm671, %v3312, 0.0
    %3331 = vadd.xlane.f32.xlu0 %v3330
    %v3332 = vpop.xlane.xlu0 %3331
    %v3333 = vsel %vm671, %v3313, 0.0
    %3334 = vadd.xlane.f32.xlu0 %v3333
    %v3335 = vpop.xlane.xlu0 %3334
    %v3336 = vsel %vm671, %v3314, 0.0
    %3337 = vadd.xlane.f32.xlu0 %v3336
    %v3338 = vpop.xlane.xlu0 %3337
    %v3339 = vsel %vm671, %v3315, 0.0
    %3340 = vadd.xlane.f32.xlu0 %v3339
    %v3341 = vpop.xlane.xlu0 %3340
    %v3342 = vrcp.pop 64.0
    %v3343 = vmul.f32 %v3320, %v3342
    %v3344 = vmul.f32 %v3323, %v3342
    %v3345 = vmul.f32 %v3326, %v3342
    %v3346 = vmul.f32 %v3329, %v3342
    %v3347 = vmul.f32 %v3332, %v3342
    %v3348 = vmul.f32 %v3335, %v3342
    %v3349 = vmul.f32 %v3338, %v3342
    %v3350 = vmul.f32 %v3341, %v3342
    %v3351 = vsub.f32 %v3308, %v3343
    %v3352 = vsub.f32 %v3309, %v3344
    %v3353 = vsub.f32 %v3310, %v3345
    %v3354 = vsub.f32 %v3311, %v3346
    %v3355 = vsub.f32 %v3312, %v3347
    %v3356 = vsub.f32 %v3313, %v3348
    %v3357 = vsub.f32 %v3314, %v3349
    %v3358 = vsub.f32 %v3315, %v3350
    %v3359 = vmul.f32 %v3351, %v3351
    %v3360 = vmul.f32 %v3352, %v3352
    %v3361 = vmul.f32 %v3353, %v3353
    %v3362 = vmul.f32 %v3354, %v3354
    %v3363 = vmul.f32 %v3355, %v3355
    %v3364 = vmul.f32 %v3356, %v3356
    %v3365 = vmul.f32 %v3357, %v3357
    %v3366 = vmul.f32 %v3358, %v3358
    %v3367 = vsel %vm671, %v3359, 0.0
    %3368 = vadd.xlane.f32.xlu0 %v3367
    %v3369 = vpop.xlane.xlu0 %3368
    %v3370 = vsel %vm671, %v3360, 0.0
    %3371 = vadd.xlane.f32.xlu0 %v3370
    %v3372 = vpop.xlane.xlu0 %3371
    %v3373 = vsel %vm671, %v3361, 0.0
    %3374 = vadd.xlane.f32.xlu0 %v3373
    %v3375 = vpop.xlane.xlu0 %3374
    %v3376 = vsel %vm671, %v3362, 0.0
    %3377 = vadd.xlane.f32.xlu0 %v3376
    %v3378 = vpop.xlane.xlu0 %3377
    %v3379 = vsel %vm671, %v3363, 0.0
    %3380 = vadd.xlane.f32.xlu0 %v3379
    %v3381 = vpop.xlane.xlu0 %3380
    %v3382 = vsel %vm671, %v3364, 0.0
    %3383 = vadd.xlane.f32.xlu0 %v3382
    %v3384 = vpop.xlane.xlu0 %3383
    %v3385 = vsel %vm671, %v3365, 0.0
    %3386 = vadd.xlane.f32.xlu0 %v3385
    %v3387 = vpop.xlane.xlu0 %3386
    %v3388 = vsel %vm671, %v3366, 0.0
    %3389 = vadd.xlane.f32.xlu0 %v3388
    %v3390 = vpop.xlane.xlu0 %3389
    %v3391 = vmul.f32 %v3369, %v3342
    %v3392 = vmul.f32 %v3372, %v3342
    %v3393 = vmul.f32 %v3375, %v3342
    %v3394 = vmul.f32 %v3378, %v3342
    %v3395 = vmul.f32 %v3381, %v3342
    %v3396 = vmul.f32 %v3384, %v3342
    %v3397 = vmul.f32 %v3387, %v3342
    %v3398 = vmul.f32 %v3390, %v3342
    %v3399 = vadd.f32 %v3391, 1e-05
    %v3400 = vadd.f32 %v3392, 1e-05
    %v3401 = vadd.f32 %v3393, 1e-05
    %v3402 = vadd.f32 %v3394, 1e-05
    %v3403 = vadd.f32 %v3395, 1e-05
    %v3404 = vadd.f32 %v3396, 1e-05
    %v3405 = vadd.f32 %v3397, 1e-05
    %v3406 = vadd.f32 %v3398, 1e-05
    %v3407 = vrsqrt.pop %v3399
    %v3408 = vrsqrt.pop %v3400
    %v3409 = vrsqrt.pop %v3401
    %v3410 = vrsqrt.pop %v3402
    %v3411 = vrsqrt.pop %v3403
    %v3412 = vrsqrt.pop %v3404
    %v3413 = vrsqrt.pop %v3405
    %v3414 = vrsqrt.pop %v3406
    %v3415 = vmul.f32 %v3351, %v3407
    %v3416 = vmul.f32 %v3352, %v3408
    %v3417 = vmul.f32 %v3353, %v3409
    %v3418 = vmul.f32 %v3354, %v3410
    %v3419 = vmul.f32 %v3355, %v3411
    %v3420 = vmul.f32 %v3356, %v3412
    %v3421 = vmul.f32 %v3357, %v3413
    %v3422 = vmul.f32 %v3358, %v3414
    %v3424 = vlaneseq
    %v3425 = vshrl.u32 %v3424, 7
    %v3426 = vsub.s32 0, %v3425
    %v3427 = vrot.slane %v3316, %v3426
    %v3429 = vmul.f32 %v3415, %v3427
    %v3430 = vmul.f32 %v3416, %v3427
    %v3431 = vmul.f32 %v3417, %v3427
    %v3432 = vmul.f32 %v3418, %v3427
    %v3433 = vmul.f32 %v3419, %v3427
    %v3434 = vmul.f32 %v3420, %v3427
    %v3435 = vmul.f32 %v3421, %v3427
    %v3436 = vmul.f32 %v3422, %v3427
    %v3438 = vlaneseq
    %v3439 = vshrl.u32 %v3438, 7
    %v3440 = vsub.s32 0, %v3439
    %v3441 = vrot.slane %v3317, %v3440
    %v3443 = vadd.f32 %v3429, %v3441
    %v3444 = vadd.f32 %v3430, %v3441
    %v3445 = vadd.f32 %v3431, %v3441
    %v3446 = vadd.f32 %v3432, %v3441
    %v3447 = vadd.f32 %v3433, %v3441
    %v3448 = vadd.f32 %v3434, %v3441
    %v3449 = vadd.f32 %v3435, %v3441
    %v3450 = vadd.f32 %v3436, %v3441
    %v3451 = vld [vmem:[#allocation16] sm:$0xf]
    %v3452 = vld [vmem:[#allocation16 + $0x4] sm:$0xf]
    %v3453 = vld [vmem:[#allocation16 + $0x8] sm:$0xf]
    %v3454 = vld [vmem:[#allocation16 + $0xc] sm:$0xf]
    %v3455 = vld [vmem:[#allocation16 + $0x10] sm:$0xf]
    %v3456 = vld [vmem:[#allocation16 + $0x14] sm:$0xf]
    %v3457 = vld [vmem:[#allocation16 + $0x18] sm:$0xf]
    %v3458 = vld [vmem:[#allocation16 + $0x1c] sm:$0xf]
    %v3459 = vpack.c.bf16 %v3444, %v3443
    %v3460 = vpack.c.bf16 %v3446, %v3445
    %v3461 = vpack.c.bf16 %v3448, %v3447
    %v3462 = vpack.c.bf16 %v3450, %v3449
    %v3463 = vld [vmem:[#allocation17] sm:$0x1]
    %v3465 = vlaneseq
    %v3466 = vshrl.u32 %v3465, 7
    %v3467 = vsub.s32 0, %v3466
    %v3468 = vrot.slane %v3463, %v3467
    %v3478 = vunpack.c.l.b16 %v3451
    %v3479 = vunpack.c.l.b16 %v3452
    %v3480 = vunpack.c.l.b16 %v3453
    %v3481 = vunpack.c.l.b16 %v3454
    %v3482 = vunpack.c.l.b16 %v3455
    %v3483 = vunpack.c.l.b16 %v3456
    %v3484 = vunpack.c.l.b16 %v3457
    %v3485 = vunpack.c.l.b16 %v3458
    %v3486 = vpack.c.b16 %v3479, %v3478
    %v3487 = vpack.c.b16 %v3481, %v3480
    %v3488 = vpack.c.b16 %v3483, %v3482
    %v3489 = vpack.c.b16 %v3485, %v3484
    %v3495 = vsel %vm671, %v3459, 0
    %v3498 = vsel %vm671, %v3460, 0
    %v3501 = vsel %vm671, %v3461, 0
    %v3504 = vsel %vm671, %v3462, 0
    %3506 = vmatprep.subr.bf16.mxu0 0
    %3507 = vmatpush1.bf16.msra.mxu0 %v3486
    %3508 = vmatprep.subr.bf16.mxu0 0
    %3509 = vmatpush1.bf16.msra.mxu0 %v3487
    %3510 = vmatprep.subr.bf16.mxu0 0
    %3511 = vmatpush1.bf16.msra.mxu0 %v3488
    %3512 = vmatprep.subr.bf16.mxu0 0
    %3513 = vmatpush1.bf16.msra.mxu0 %v3489
    %3514 = vmatprep.subr.bf16.mxu0 0
    %3515 = vmatpush1.bf16.msra.mxu0 0
    %3516 = vmatprep.subr.bf16.mxu0 0
    %3517 = vmatpush1.bf16.msra.mxu0 0
    %3518 = vmatprep.subr.bf16.mxu0 0
    %3519 = vmatpush1.bf16.msra.mxu0 0
    %3520 = vmatprep.subr.bf16.mxu0 0
    %3521 = vmatpush1.bf16.msra.mxu0 0
    %3522 = vmatprep.subr.bf16.mxu0 0
    %3523 = vmatpush1.bf16.msra.mxu0 0
    %3524 = vmatprep.subr.bf16.mxu0 0
    %3525 = vmatpush1.bf16.msra.mxu0 0
    %3526 = vmatprep.subr.bf16.mxu0 0
    %3527 = vmatpush1.bf16.msra.mxu0 0
    %3528 = vmatprep.subr.bf16.mxu0 0
    %3529 = vmatpush1.bf16.msra.mxu0 0
    %3530 = vmatprep.subr.bf16.mxu0 0
    %3531 = vmatpush1.bf16.msra.mxu0 0
    %3532 = vmatprep.subr.bf16.mxu0 0
    %3533 = vmatpush1.bf16.msra.mxu0 0
    %3534 = vmatprep.subr.bf16.mxu0 0
    %3535 = vmatpush1.bf16.msra.mxu0 0
    %3536 = vmatprep.subr.bf16.mxu0 0
    %3537 = vmatpush1.bf16.msra.mxu0 0
    %3538 = vmatprep.mubr.bf16.mxu0 0
    %3539 = vmatmul.mubr.bf16.gmra.mrb[0].mxu0 %v3495
    %v3540 = vpop.f32.mrb[0].mxu0
    %v3541 = vadd.f32 %v3468, %v3540
    %v3542 = vpop.f32.mrb[0].mxu0
    %v3543 = vpop.f32.mrb[0].mxu0
    %v3544 = vadd.f32 %v3468, %v3543
    %v3545 = vpop.f32.mrb[0].mxu0
    %3546 = vmatprep.mubr.bf16.mxu0 0
    %3547 = vmatmul.mubr.bf16.gmra.mrb[0].mxu0 %v3498
    %v3548 = vpop.f32.mrb[0].mxu0
    %v3549 = vadd.f32 %v3468, %v3548
    %v3550 = vpop.f32.mrb[0].mxu0
    %v3551 = vpop.f32.mrb[0].mxu0
    %v3552 = vadd.f32 %v3468, %v3551
    %v3553 = vpop.f32.mrb[0].mxu0
    %3554 = vmatprep.mubr.bf16.mxu0 0
    %3555 = vmatmul.mubr.bf16.gmra.mrb[0].mxu0 %v3501
    %v3556 = vpop.f32.mrb[0].mxu0
    %v3557 = vadd.f32 %v3468, %v3556
    %v3558 = vpop.f32.mrb[0].mxu0
    %v3559 = vpop.f32.mrb[0].mxu0
    %v3560 = vadd.f32 %v3468, %v3559
    %v3561 = vpop.f32.mrb[0].mxu0
    %3562 = vmatprep.mubr.bf16.mxu0 0
    %3563 = vmatmul.mubr.bf16.gmra.mrb[0].mxu0 %v3504
    %v3564 = vpop.f32.mrb[0].mxu0
    %v3565 = vadd.f32 %v3468, %v3564
    %v3566 = vpop.f32.mrb[0].mxu0
    %v3567 = vpop.f32.mrb[0].mxu0
    %v3568 = vadd.f32 %v3468, %v3567
    %v3569 = vpop.f32.mrb[0].mxu0
    %3570 = vdwg.mxu0
    %v3571 = vmax.f32 %v3541, 0.0
    %v3572 = vmax.f32 %v3544, 0.0
    %v3573 = vmax.f32 %v3549, 0.0
    %v3574 = vmax.f32 %v3552, 0.0
    %v3575 = vmax.f32 %v3557, 0.0
    %v3576 = vmax.f32 %v3560, 0.0
    %v3577 = vmax.f32 %v3565, 0.0
    %v3578 = vmax.f32 %v3568, 0.0
    %v3579 = vld [vmem:[#allocation19] sm:$0xf]
    %v3580 = vld [vmem:[#allocation19 + $0x4] sm:$0xf]
    %v3581 = vld [vmem:[#allocation19 + $0x8] sm:$0xf]
    %v3582 = vld [vmem:[#allocation19 + $0xc] sm:$0xf]
    %v3583 = vld [vmem:[#allocation19 + $0x10] sm:$0xf]
    %v3584 = vld [vmem:[#allocation19 + $0x14] sm:$0xf]
    %v3585 = vld [vmem:[#allocation19 + $0x18] sm:$0xf]
    %v3586 = vld [vmem:[#allocation19 + $0x1c] sm:$0xf]
    %v3587 = vpack.c.bf16 %v3572, %v3571
    %v3588 = vpack.c.bf16 %v3574, %v3573
    %v3589 = vpack.c.bf16 %v3576, %v3575
    %v3590 = vpack.c.bf16 %v3578, %v3577
    %v3591 = vld [vmem:[#allocation20] sm:$0x1]
    %v3593 = vlaneseq
    %v3594 = vshrl.u32 %v3593, 7
    %v3595 = vsub.s32 0, %v3594
    %v3596 = vrot.slane %v3591, %v3595
    %v3606 = vunpack.c.l.b16 %v3579
    %v3607 = vunpack.c.l.b16 %v3580
    %v3608 = vunpack.c.l.b16 %v3581
    %v3609 = vunpack.c.l.b16 %v3582
    %v3610 = vunpack.c.l.b16 %v3583
    %v3611 = vunpack.c.l.b16 %v3584
    %v3612 = vunpack.c.l.b16 %v3585
    %v3613 = vunpack.c.l.b16 %v3586
    %v3614 = vpack.c.b16 %v3607, %v3606
    %v3615 = vpack.c.b16 %v3609, %v3608
    %v3616 = vpack.c.b16 %v3611, %v3610
    %v3617 = vpack.c.b16 %v3613, %v3612
    %v3623 = vsel %vm671, %v3587, 0
    %v3626 = vsel %vm671, %v3588, 0
    %v3629 = vsel %vm671, %v3589, 0
    %v3632 = vsel %vm671, %v3590, 0
    %3634 = vmatprep.subr.bf16.mxu0 0
    %3635 = vmatpush1.bf16.msra.mxu0 %v3614
    %3636 = vmatprep.subr.bf16.mxu0 0
    %3637 = vmatpush1.bf16.msra.mxu0 %v3615
    %3638 = vmatprep.subr.bf16.mxu0 0
    %3639 = vmatpush1.bf16.msra.mxu0 %v3616
    %3640 = vmatprep.subr.bf16.mxu0 0
    %3641 = vmatpush1.bf16.msra.mxu0 %v3617
    %3642 = vmatprep.subr.bf16.mxu0 0
    %3643 = vmatpush1.bf16.msra.mxu0 0
    %3644 = vmatprep.subr.bf16.mxu0 0
    %3645 = vmatpush1.bf16.msra.mxu0 0
    %3646 = vmatprep.subr.bf16.mxu0 0
    %3647 = vmatpush1.bf16.msra.mxu0 0
    %3648 = vmatprep.subr.bf16.mxu0 0
    %3649 = vmatpush1.bf16.msra.mxu0 0
    %3650 = vmatprep.subr.bf16.mxu0 0
    %3651 = vmatpush1.bf16.msra.mxu0 0
    %3652 = vmatprep.subr.bf16.mxu0 0
    %3653 = vmatpush1.bf16.msra.mxu0 0
    %3654 = vmatprep.subr.bf16.mxu0 0
    %3655 = vmatpush1.bf16.msra.mxu0 0
    %3656 = vmatprep.subr.bf16.mxu0 0
    %3657 = vmatpush1.bf16.msra.mxu0 0
    %3658 = vmatprep.subr.bf16.mxu0 0
    %3659 = vmatpush1.bf16.msra.mxu0 0
    %3660 = vmatprep.subr.bf16.mxu0 0
    %3661 = vmatpush1.bf16.msra.mxu0 0
    %3662 = vmatprep.subr.bf16.mxu0 0
    %3663 = vmatpush1.bf16.msra.mxu0 0
    %3664 = vmatprep.subr.bf16.mxu0 0
    %3665 = vmatpush1.bf16.msra.mxu0 0
    %3666 = vmatprep.mubr.bf16.mxu0 0
    %3667 = vmatmul.mubr.bf16.gmra.mrb[0].mxu0 %v3623
    %v3668 = vpop.f32.mrb[0].mxu0
    %v3669 = vadd.f32 %v3596, %v3668
    %v3670 = vpop.f32.mrb[0].mxu0
    %v3671 = vpop.f32.mrb[0].mxu0
    %v3672 = vadd.f32 %v3596, %v3671
    %v3673 = vpop.f32.mrb[0].mxu0
    %3674 = vmatprep.mubr.bf16.mxu0 0
    %3675 = vmatmul.mubr.bf16.gmra.mrb[0].mxu0 %v3626
    %v3676 = vpop.f32.mrb[0].mxu0
    %v3677 = vadd.f32 %v3596, %v3676
    %v3678 = vpop.f32.mrb[0].mxu0
    %v3679 = vpop.f32.mrb[0].mxu0
    %v3680 = vadd.f32 %v3596, %v3679
    %v3681 = vpop.f32.mrb[0].mxu0
    %3682 = vmatprep.mubr.bf16.mxu0 0
    %3683 = vmatmul.mubr.bf16.gmra.mrb[0].mxu0 %v3629
    %v3684 = vpop.f32.mrb[0].mxu0
    %v3685 = vadd.f32 %v3596, %v3684
    %v3686 = vpop.f32.mrb[0].mxu0
    %v3687 = vpop.f32.mrb[0].mxu0
    %v3688 = vadd.f32 %v3596, %v3687
    %v3689 = vpop.f32.mrb[0].mxu0
    %3690 = vmatprep.mubr.bf16.mxu0 0
    %3691 = vmatmul.mubr.bf16.gmra.mrb[0].mxu0 %v3632
    %v3692 = vpop.f32.mrb[0].mxu0
    %v3693 = vadd.f32 %v3596, %v3692
    %v3694 = vpop.f32.mrb[0].mxu0
    %v3695 = vpop.f32.mrb[0].mxu0
    %v3696 = vadd.f32 %v3596, %v3695
    %v3697 = vpop.f32.mrb[0].mxu0
    %3698 = vdwg.mxu0
    %v3699 = vadd.f32 %v3443, %v3669
    %v3700 = vadd.f32 %v3444, %v3672
    %v3701 = vadd.f32 %v3445, %v3677
    %v3702 = vadd.f32 %v3446, %v3680
    %v3703 = vadd.f32 %v3447, %v3685
    %v3704 = vadd.f32 %v3448, %v3688
    %v3705 = vadd.f32 %v3449, %v3693
    %v3706 = vadd.f32 %v3450, %v3696
    %v3707 = vld [vmem:[#allocation22] sm:$0x1]
    %v3708 = vld [vmem:[#allocation23] sm:$0x1]
    %v3709 = vsel %vm671, %v3699, 0.0
    %3710 = vadd.xlane.f32.xlu0 %v3709
    %v3711 = vpop.xlane.xlu0 %3710
    %v3712 = vsel %vm671, %v3700, 0.0
    %3713 = vadd.xlane.f32.xlu0 %v3712
    %v3714 = vpop.xlane.xlu0 %3713
    %v3715 = vsel %vm671, %v3701, 0.0
    %3716 = vadd.xlane.f32.xlu0 %v3715
    %v3717 = vpop.xlane.xlu0 %3716
    %v3718 = vsel %vm671, %v3702, 0.0
    %3719 = vadd.xlane.f32.xlu0 %v3718
    %v3720 = vpop.xlane.xlu0 %3719
    %v3721 = vsel %vm671, %v3703, 0.0
    %3722 = vadd.xlane.f32.xlu0 %v3721
    %v3723 = vpop.xlane.xlu0 %3722
    %v3724 = vsel %vm671, %v3704, 0.0
    %3725 = vadd.xlane.f32.xlu0 %v3724
    %v3726 = vpop.xlane.xlu0 %3725
    %v3727 = vsel %vm671, %v3705, 0.0
    %3728 = vadd.xlane.f32.xlu0 %v3727
    %v3729 = vpop.xlane.xlu0 %3728
    %v3730 = vsel %vm671, %v3706, 0.0
    %3731 = vadd.xlane.f32.xlu0 %v3730
    %v3732 = vpop.xlane.xlu0 %3731
    %v3733 = vmul.f32 %v3711, %v3342
    %v3734 = vmul.f32 %v3714, %v3342
    %v3735 = vmul.f32 %v3717, %v3342
    %v3736 = vmul.f32 %v3720, %v3342
    %v3737 = vmul.f32 %v3723, %v3342
    %v3738 = vmul.f32 %v3726, %v3342
    %v3739 = vmul.f32 %v3729, %v3342
    %v3740 = vmul.f32 %v3732, %v3342
    %v3741 = vsub.f32 %v3699, %v3733
    %v3742 = vsub.f32 %v3700, %v3734
    %v3743 = vsub.f32 %v3701, %v3735
    %v3744 = vsub.f32 %v3702, %v3736
    %v3745 = vsub.f32 %v3703, %v3737
    %v3746 = vsub.f32 %v3704, %v3738
    %v3747 = vsub.f32 %v3705, %v3739
    %v3748 = vsub.f32 %v3706, %v3740
    %v3749 = vmul.f32 %v3741, %v3741
    %v3750 = vmul.f32 %v3742, %v3742
    %v3751 = vmul.f32 %v3743, %v3743
    %v3752 = vmul.f32 %v3744, %v3744
    %v3753 = vmul.f32 %v3745, %v3745
    %v3754 = vmul.f32 %v3746, %v3746
    %v3755 = vmul.f32 %v3747, %v3747
    %v3756 = vmul.f32 %v3748, %v3748
    %v3757 = vsel %vm671, %v3749, 0.0
    %3758 = vadd.xlane.f32.xlu0 %v3757
    %v3759 = vpop.xlane.xlu0 %3758
    %v3760 = vsel %vm671, %v3750, 0.0
    %3761 = vadd.xlane.f32.xlu0 %v3760
    %v3762 = vpop.xlane.xlu0 %3761
    %v3763 = vsel %vm671, %v3751, 0.0
    %3764 = vadd.xlane.f32.xlu0 %v3763
    %v3765 = vpop.xlane.xlu0 %3764
    %v3766 = vsel %vm671, %v3752, 0.0
    %3767 = vadd.xlane.f32.xlu0 %v3766
    %v3768 = vpop.xlane.xlu0 %3767
    %v3769 = vsel %vm671, %v3753, 0.0
    %3770 = vadd.xlane.f32.xlu0 %v3769
    %v3771 = vpop.xlane.xlu0 %3770
    %v3772 = vsel %vm671, %v3754, 0.0
    %3773 = vadd.xlane.f32.xlu0 %v3772
    %v3774 = vpop.xlane.xlu0 %3773
    %v3775 = vsel %vm671, %v3755, 0.0
    %3776 = vadd.xlane.f32.xlu0 %v3775
    %v3777 = vpop.xlane.xlu0 %3776
    %v3778 = vsel %vm671, %v3756, 0.0
    %3779 = vadd.xlane.f32.xlu0 %v3778
    %v3780 = vpop.xlane.xlu0 %3779
    %v3781 = vmul.f32 %v3759, %v3342
    %v3782 = vmul.f32 %v3762, %v3342
    %v3783 = vmul.f32 %v3765, %v3342
    %v3784 = vmul.f32 %v3768, %v3342
    %v3785 = vmul.f32 %v3771, %v3342
    %v3786 = vmul.f32 %v3774, %v3342
    %v3787 = vmul.f32 %v3777, %v3342
    %v3788 = vmul.f32 %v3780, %v3342
    %v3789 = vadd.f32 %v3781, 1e-05
    %v3790 = vadd.f32 %v3782, 1e-05
    %v3791 = vadd.f32 %v3783, 1e-05
    %v3792 = vadd.f32 %v3784, 1e-05
    %v3793 = vadd.f32 %v3785, 1e-05
    %v3794 = vadd.f32 %v3786, 1e-05
    %v3795 = vadd.f32 %v3787, 1e-05
    %v3796 = vadd.f32 %v3788, 1e-05
    %v3797 = vrsqrt.pop %v3789
    %v3798 = vrsqrt.pop %v3790
    %v3799 = vrsqrt.pop %v3791
    %v3800 = vrsqrt.pop %v3792
    %v3801 = vrsqrt.pop %v3793
    %v3802 = vrsqrt.pop %v3794
    %v3803 = vrsqrt.pop %v3795
    %v3804 = vrsqrt.pop %v3796
    %v3805 = vmul.f32 %v3741, %v3797
    %v3806 = vmul.f32 %v3742, %v3798
    %v3807 = vmul.f32 %v3743, %v3799
    %v3808 = vmul.f32 %v3744, %v3800
    %v3809 = vmul.f32 %v3745, %v3801
    %v3810 = vmul.f32 %v3746, %v3802
    %v3811 = vmul.f32 %v3747, %v3803
    %v3812 = vmul.f32 %v3748, %v3804
    %v3814 = vlaneseq
    %v3815 = vshrl.u32 %v3814, 7
    %v3816 = vsub.s32 0, %v3815
    %v3817 = vrot.slane %v3707, %v3816
    %v3819 = vmul.f32 %v3805, %v3817
    %v3820 = vmul.f32 %v3806, %v3817
    %v3821 = vmul.f32 %v3807, %v3817
    %v3822 = vmul.f32 %v3808, %v3817
    %v3823 = vmul.f32 %v3809, %v3817
    %v3824 = vmul.f32 %v3810, %v3817
    %v3825 = vmul.f32 %v3811, %v3817
    %v3826 = vmul.f32 %v3812, %v3817
    %v3828 = vlaneseq
    %v3829 = vshrl.u32 %v3828, 7
    %v3830 = vsub.s32 0, %v3829
    %v3831 = vrot.slane %v3708, %v3830
    %v3833 = vadd.f32 %v3819, %v3831
    %v3834 = vadd.f32 %v3820, %v3831
    %v3835 = vadd.f32 %v3821, %v3831
    %v3836 = vadd.f32 %v3822, %v3831
    %v3837 = vadd.f32 %v3823, %v3831
    %v3838 = vadd.f32 %v3824, %v3831
    %v3839 = vadd.f32 %v3825, %v3831
    %v3840 = vadd.f32 %v3826, %v3831
    %s3841 = scalar_lea.vmem [#allocation7], 384
    %v3842 = vld [vmem:[%s3841] sm:$0xff]
    %v3843 = vld [vmem:[%s3841 + $0x8] sm:$0xff]
    %v3844 = vld [vmem:[%s3841 + $0x10] sm:$0xff]
    %v3845 = vld [vmem:[%s3841 + $0x18] sm:$0xff]
    %v3846 = vld [vmem:[%s3841 + $0x20] sm:$0xff]
    %v3847 = vld [vmem:[%s3841 + $0x28] sm:$0xff]
    %v3848 = vld [vmem:[%s3841 + $0x30] sm:$0xff]
    %v3849 = vld [vmem:[%s3841 + $0x38] sm:$0xff]
    %v3850 = vld [vmem:[%s3841 + $0x40] sm:$0xff]
    %v3851 = vld [vmem:[%s3841 + $0x48] sm:$0xff]
    %v3852 = vld [vmem:[%s3841 + $0x50] sm:$0xff]
    %v3853 = vld [vmem:[%s3841 + $0x58] sm:$0xff]
    %v3854 = vld [vmem:[%s3841 + $0x60] sm:$0xff]
    %v3855 = vld [vmem:[%s3841 + $0x68] sm:$0xff]
    %v3856 = vld [vmem:[%s3841 + $0x70] sm:$0xff]
    %v3857 = vld [vmem:[%s3841 + $0x78] sm:$0xff]
    %v3858 = vld [vmem:[%s3841 + $0x80] sm:$0xff]
    %v3859 = vld [vmem:[%s3841 + $0x88] sm:$0xff]
    %v3860 = vld [vmem:[%s3841 + $0x90] sm:$0xff]
    %v3861 = vld [vmem:[%s3841 + $0x98] sm:$0xff]
    %v3862 = vld [vmem:[%s3841 + $0xa0] sm:$0xff]
    %v3863 = vld [vmem:[%s3841 + $0xa8] sm:$0xff]
    %v3864 = vld [vmem:[%s3841 + $0xb0] sm:$0xff]
    %v3865 = vld [vmem:[%s3841 + $0xb8] sm:$0xff]
    %v3866 = vld [vmem:[%s3841 + $0xc0] sm:$0xff]
    %v3867 = vld [vmem:[%s3841 + $0xc8] sm:$0xff]
    %v3868 = vld [vmem:[%s3841 + $0xd0] sm:$0xff]
    %v3869 = vld [vmem:[%s3841 + $0xd8] sm:$0xff]
    %v3870 = vld [vmem:[%s3841 + $0xe0] sm:$0xff]
    %v3871 = vld [vmem:[%s3841 + $0xe8] sm:$0xff]
    %v3872 = vld [vmem:[%s3841 + $0xf0] sm:$0xff]
    %v3873 = vld [vmem:[%s3841 + $0xf8] sm:$0xff]
    %v3874 = vld [vmem:[%s3841 + $0x100] sm:$0xff]
    %v3875 = vld [vmem:[%s3841 + $0x108] sm:$0xff]
    %v3876 = vld [vmem:[%s3841 + $0x110] sm:$0xff]
    %v3877 = vld [vmem:[%s3841 + $0x118] sm:$0xff]
    %v3878 = vld [vmem:[%s3841 + $0x120] sm:$0xff]
    %v3879 = vld [vmem:[%s3841 + $0x128] sm:$0xff]
    %v3880 = vld [vmem:[%s3841 + $0x130] sm:$0xff]
    %v3881 = vld [vmem:[%s3841 + $0x138] sm:$0xff]
    %v3882 = vld [vmem:[%s3841 + $0x140] sm:$0xff]
    %v3883 = vld [vmem:[%s3841 + $0x148] sm:$0xff]
    %v3884 = vld [vmem:[%s3841 + $0x150] sm:$0xff]
    %v3885 = vld [vmem:[%s3841 + $0x158] sm:$0xff]
    %v3886 = vld [vmem:[%s3841 + $0x160] sm:$0xff]
    %v3887 = vld [vmem:[%s3841 + $0x168] sm:$0xff]
    %v3888 = vld [vmem:[%s3841 + $0x170] sm:$0xff]
    %v3889 = vld [vmem:[%s3841 + $0x178] sm:$0xff]
    %v3890 = vpack.c.bf16 %v3834, %v3833
    %v3891 = vpack.c.bf16 %v3836, %v3835
    %v3892 = vpack.c.bf16 %v3838, %v3837
    %v3893 = vpack.c.bf16 %v3840, %v3839
    %s3894 = scalar_lea.vmem [#allocation8], 12
    %v3895 = vld [vmem:[%s3894] sm:$0xff]
    %v3896 = vld [vmem:[%s3894 + $0x8] sm:$0xf]
    %v3899 = vlaneseq
    %v3900 = vshrl.u32 %v3899, 7
    %v3901 = vsub.s32 0, %v3900
    %v3902 = vrot.slane %v3895, %v3901
    %v3903 = vlaneseq
    %v3904 = vshrl.u32 %v3903, 7
    %v3905 = vsub.s32 1, %v3904
    %v3906 = vrot.slane %v3895, %v3905
    %v3907 = vlaneseq
    %v3908 = vshrl.u32 %v3907, 7
    %v3909 = vsub.s32 2, %v3908
    %v3910 = vrot.slane %v3895, %v3909
    %v3911 = vlaneseq
    %v3912 = vshrl.u32 %v3911, 7
    %v3913 = vsub.s32 3, %v3912
    %v3914 = vrot.slane %v3895, %v3913
    %v3915 = vlaneseq
    %v3916 = vshrl.u32 %v3915, 7
    %v3917 = vsub.s32 4, %v3916
    %v3918 = vrot.slane %v3895, %v3917
    %v3919 = vlaneseq
    %v3920 = vshrl.u32 %v3919, 7
    %v3921 = vsub.s32 5, %v3920
    %v3922 = vrot.slane %v3895, %v3921
    %v3923 = vlaneseq
    %v3924 = vshrl.u32 %v3923, 7
    %v3925 = vsub.s32 6, %v3924
    %v3926 = vrot.slane %v3895, %v3925
    %v3927 = vlaneseq
    %v3928 = vshrl.u32 %v3927, 7
    %v3929 = vsub.s32 7, %v3928
    %v3930 = vrot.slane %v3895, %v3929
    %v3931 = vlaneseq
    %v3932 = vshrl.u32 %v3931, 7
    %v3933 = vsub.s32 0, %v3932
    %v3934 = vrot.slane %v3896, %v3933
    %v3935 = vlaneseq
    %v3936 = vshrl.u32 %v3935, 7
    %v3937 = vsub.s32 1, %v3936
    %v3938 = vrot.slane %v3896, %v3937
    %v3939 = vlaneseq
    %v3940 = vshrl.u32 %v3939, 7
    %v3941 = vsub.s32 2, %v3940
    %v3942 = vrot.slane %v3896, %v3941
    %v3943 = vlaneseq
    %v3944 = vshrl.u32 %v3943, 7
    %v3945 = vsub.s32 3, %v3944
    %v3946 = vrot.slane %v3896, %v3945
    %v4007 = vunpack.c.l.b16 %v3842
    %v4008 = vunpack.c.h.b16 %v3842
    %v4009 = vunpack.c.l.b16 %v3843
    %v4010 = vunpack.c.h.b16 %v3843
    %v4011 = vunpack.c.l.b16 %v3844
    %v4012 = vunpack.c.h.b16 %v3844
    %v4013 = vunpack.c.l.b16 %v3845
    %v4014 = vunpack.c.h.b16 %v3845
    %v4015 = vunpack.c.l.b16 %v3846
    %v4016 = vunpack.c.h.b16 %v3846
    %v4017 = vunpack.c.l.b16 %v3847
    %v4018 = vunpack.c.h.b16 %v3847
    %v4019 = vunpack.c.l.b16 %v3848
    %v4020 = vunpack.c.h.b16 %v3848
    %v4021 = vunpack.c.l.b16 %v3849
    %v4022 = vunpack.c.h.b16 %v3849
    %v4023 = vunpack.c.l.b16 %v3850
    %v4024 = vunpack.c.h.b16 %v3850
    %v4025 = vunpack.c.l.b16 %v3851
    %v4026 = vunpack.c.h.b16 %v3851
    %v4027 = vunpack.c.l.b16 %v3852
    %v4028 = vunpack.c.h.b16 %v3852
    %v4029 = vunpack.c.l.b16 %v3853
    %v4030 = vunpack.c.h.b16 %v3853
    %v4031 = vunpack.c.l.b16 %v3854
    %v4032 = vunpack.c.h.b16 %v3854
    %v4033 = vunpack.c.l.b16 %v3855
    %v4034 = vunpack.c.h.b16 %v3855
    %v4035 = vunpack.c.l.b16 %v3856
    %v4036 = vunpack.c.h.b16 %v3856
    %v4037 = vunpack.c.l.b16 %v3857
    %v4038 = vunpack.c.h.b16 %v3857
    %v4039 = vunpack.c.l.b16 %v3858
    %v4040 = vunpack.c.h.b16 %v3858
    %v4041 = vunpack.c.l.b16 %v3859
    %v4042 = vunpack.c.h.b16 %v3859
    %v4043 = vunpack.c.l.b16 %v3860
    %v4044 = vunpack.c.h.b16 %v3860
    %v4045 = vunpack.c.l.b16 %v3861
    %v4046 = vunpack.c.h.b16 %v3861
    %v4047 = vunpack.c.l.b16 %v3862
    %v4048 = vunpack.c.h.b16 %v3862
    %v4049 = vunpack.c.l.b16 %v3863
    %v4050 = vunpack.c.h.b16 %v3863
    %v4051 = vunpack.c.l.b16 %v3864
    %v4052 = vunpack.c.h.b16 %v3864
    %v4053 = vunpack.c.l.b16 %v3865
    %v4054 = vunpack.c.h.b16 %v3865
    %v4055 = vunpack.c.l.b16 %v3866
    %v4056 = vunpack.c.h.b16 %v3866
    %v4057 = vunpack.c.l.b16 %v3867
    %v4058 = vunpack.c.h.b16 %v3867
    %v4059 = vunpack.c.l.b16 %v3868
    %v4060 = vunpack.c.h.b16 %v3868
    %v4061 = vunpack.c.l.b16 %v3869
    %v4062 = vunpack.c.h.b16 %v3869
    %v4063 = vunpack.c.l.b16 %v3870
    %v4064 = vunpack.c.h.b16 %v3870
    %v4065 = vunpack.c.l.b16 %v3871
    %v4066 = vunpack.c.h.b16 %v3871
    %v4067 = vunpack.c.l.b16 %v3872
    %v4068 = vunpack.c.h.b16 %v3872
    %v4069 = vunpack.c.l.b16 %v3873
    %v4070 = vunpack.c.h.b16 %v3873
    %v4071 = vunpack.c.l.b16 %v3874
    %v4072 = vunpack.c.h.b16 %v3874
    %v4073 = vunpack.c.l.b16 %v3875
    %v4074 = vunpack.c.h.b16 %v3875
    %v4075 = vunpack.c.l.b16 %v3876
    %v4076 = vunpack.c.h.b16 %v3876
    %v4077 = vunpack.c.l.b16 %v3877
    %v4078 = vunpack.c.h.b16 %v3877
    %v4079 = vunpack.c.l.b16 %v3878
    %v4080 = vunpack.c.h.b16 %v3878
    %v4081 = vunpack.c.l.b16 %v3879
    %v4082 = vunpack.c.h.b16 %v3879
    %v4083 = vunpack.c.l.b16 %v3880
    %v4084 = vunpack.c.h.b16 %v3880
    %v4085 = vunpack.c.l.b16 %v3881
    %v4086 = vunpack.c.h.b16 %v3881
    %v4087 = vunpack.c.l.b16 %v3882
    %v4088 = vunpack.c.h.b16 %v3882
    %v4089 = vunpack.c.l.b16 %v3883
    %v4090 = vunpack.c.h.b16 %v3883
    %v4091 = vunpack.c.l.b16 %v3884
    %v4092 = vunpack.c.h.b16 %v3884
    %v4093 = vunpack.c.l.b16 %v3885
    %v4094 = vunpack.c.h.b16 %v3885
    %v4095 = vunpack.c.l.b16 %v3886
    %v4096 = vunpack.c.h.b16 %v3886
    %v4097 = vunpack.c.l.b16 %v3887
    %v4098 = vunpack.c.h.b16 %v3887
    %v4099 = vunpack.c.l.b16 %v3888
    %v4100 = vunpack.c.h.b16 %v3888
    %v4101 = vunpack.c.l.b16 %v3889
    %v4102 = vunpack.c.h.b16 %v3889
    %v4103 = vpack.c.b16 %v4019, %v4007
    %v4104 = vpack.c.b16 %v4020, %v4008
    %v4105 = vpack.c.b16 %v4021, %v4009
    %v4106 = vpack.c.b16 %v4022, %v4010
    %v4107 = vpack.c.b16 %v4023, %v4011
    %v4108 = vpack.c.b16 %v4024, %v4012
    %v4109 = vpack.c.b16 %v4025, %v4013
    %v4110 = vpack.c.b16 %v4026, %v4014
    %v4111 = vpack.c.b16 %v4027, %v4015
    %v4112 = vpack.c.b16 %v4028, %v4016
    %v4113 = vpack.c.b16 %v4029, %v4017
    %v4114 = vpack.c.b16 %v4030, %v4018
    %v4115 = vpack.c.b16 %v4043, %v4031
    %v4116 = vpack.c.b16 %v4044, %v4032
    %v4117 = vpack.c.b16 %v4045, %v4033
    %v4118 = vpack.c.b16 %v4046, %v4034
    %v4119 = vpack.c.b16 %v4047, %v4035
    %v4120 = vpack.c.b16 %v4048, %v4036
    %v4121 = vpack.c.b16 %v4049, %v4037
    %v4122 = vpack.c.b16 %v4050, %v4038
    %v4123 = vpack.c.b16 %v4051, %v4039
    %v4124 = vpack.c.b16 %v4052, %v4040
    %v4125 = vpack.c.b16 %v4053, %v4041
    %v4126 = vpack.c.b16 %v4054, %v4042
    %v4127 = vpack.c.b16 %v4067, %v4055
    %v4128 = vpack.c.b16 %v4068, %v4056
    %v4129 = vpack.c.b16 %v4069, %v4057
    %v4130 = vpack.c.b16 %v4070, %v4058
    %v4131 = vpack.c.b16 %v4071, %v4059
    %v4132 = vpack.c.b16 %v4072, %v4060
    %v4133 = vpack.c.b16 %v4073, %v4061
    %v4134 = vpack.c.b16 %v4074, %v4062
    %v4135 = vpack.c.b16 %v4075, %v4063
    %v4136 = vpack.c.b16 %v4076, %v4064
    %v4137 = vpack.c.b16 %v4077, %v4065
    %v4138 = vpack.c.b16 %v4078, %v4066
    %v4139 = vpack.c.b16 %v4091, %v4079
    %v4140 = vpack.c.b16 %v4092, %v4080
    %v4141 = vpack.c.b16 %v4093, %v4081
    %v4142 = vpack.c.b16 %v4094, %v4082
    %v4143 = vpack.c.b16 %v4095, %v4083
    %v4144 = vpack.c.b16 %v4096, %v4084
    %v4145 = vpack.c.b16 %v4097, %v4085
    %v4146 = vpack.c.b16 %v4098, %v4086
    %v4147 = vpack.c.b16 %v4099, %v4087
    %v4148 = vpack.c.b16 %v4100, %v4088
    %v4149 = vpack.c.b16 %v4101, %v4089
    %v4150 = vpack.c.b16 %v4102, %v4090
    %v4200 = vsel %vm671, %v3890, 0
    %v4203 = vsel %vm671, %v3891, 0
    %v4206 = vsel %vm671, %v3892, 0
    %v4209 = vsel %vm671, %v3893, 0
    %4211 = vmatprep.subr.bf16.mxu0 %v4104
    %4212 = vmatpush1.bf16.msra.mxu0 %v4103
    %4213 = vmatprep.subr.bf16.mxu0 %v4116
    %4214 = vmatpush1.bf16.msra.mxu0 %v4115
    %4215 = vmatprep.subr.bf16.mxu0 %v4128
    %4216 = vmatpush1.bf16.msra.mxu0 %v4127
    %4217 = vmatprep.subr.bf16.mxu0 %v4140
    %4218 = vmatpush1.bf16.msra.mxu0 %v4139
    %4219 = vmatprep.subr.bf16.mxu0 0
    %4220 = vmatpush1.bf16.msra.mxu0 0
    %4221 = vmatprep.subr.bf16.mxu0 0
    %4222 = vmatpush1.bf16.msra.mxu0 0
    %4223 = vmatprep.subr.bf16.mxu0 0
    %4224 = vmatpush1.bf16.msra.mxu0 0
    %4225 = vmatprep.subr.bf16.mxu0 0
    %4226 = vmatpush1.bf16.msra.mxu0 0
    %4227 = vmatprep.subr.bf16.mxu0 0
    %4228 = vmatpush1.bf16.msra.mxu0 0
    %4229 = vmatprep.subr.bf16.mxu0 0
    %4230 = vmatpush1.bf16.msra.mxu0 0
    %4231 = vmatprep.subr.bf16.mxu0 0
    %4232 = vmatpush1.bf16.msra.mxu0 0
    %4233 = vmatprep.subr.bf16.mxu0 0
    %4234 = vmatpush1.bf16.msra.mxu0 0
    %4235 = vmatprep.subr.bf16.mxu0 0
    %4236 = vmatpush1.bf16.msra.mxu0 0
    %4237 = vmatprep.subr.bf16.mxu0 0
    %4238 = vmatpush1.bf16.msra.mxu0 0
    %4239 = vmatprep.subr.bf16.mxu0 0
    %4240 = vmatpush1.bf16.msra.mxu0 0
    %4241 = vmatprep.subr.bf16.mxu0 0
    %4242 = vmatpush1.bf16.msra.mxu0 0
    %4243 = vmatprep.mubr.bf16.mxu0 0
    %4244 = vmatmul.mubr.bf16.gmra.mrb[0].mxu0 %v4200
    %v4245 = vpop.f32.mrb[0].mxu0
    %v4246 = vadd.f32 %v3902, %v4245
    %v4247 = vpop.f32.mrb[0].mxu0
    %v4248 = vadd.f32 %v3906, %v4247
    %v4249 = vpop.f32.mrb[0].mxu0
    %v4250 = vadd.f32 %v3902, %v4249
    %v4251 = vpop.f32.mrb[0].mxu0
    %v4252 = vadd.f32 %v3906, %v4251
    %4253 = vmatprep.mubr.bf16.mxu0 0
    %4254 = vmatmul.mubr.bf16.gmra.mrb[0].mxu0 %v4203
    %v4255 = vpop.f32.mrb[0].mxu0
    %v4256 = vadd.f32 %v3902, %v4255
    %v4257 = vpop.f32.mrb[0].mxu0
    %v4258 = vadd.f32 %v3906, %v4257
    %v4259 = vpop.f32.mrb[0].mxu0
    %v4260 = vadd.f32 %v3902, %v4259
    %v4261 = vpop.f32.mrb[0].mxu0
    %v4262 = vadd.f32 %v3906, %v4261
    %4263 = vmatprep.mubr.bf16.mxu0 0
    %4264 = vmatmul.mubr.bf16.gmra.mrb[0].mxu0 %v4206
    %v4265 = vpop.f32.mrb[0].mxu0
    %v4266 = vadd.f32 %v3902, %v4265
    %v4267 = vpop.f32.mrb[0].mxu0
    %v4268 = vadd.f32 %v3906, %v4267
    %v4269 = vpop.f32.mrb[0].mxu0
    %v4270 = vadd.f32 %v3902, %v4269
    %v4271 = vpop.f32.mrb[0].mxu0
    %v4272 = vadd.f32 %v3906, %v4271
    %4273 = vmatprep.mubr.bf16.mxu0 0
    %4274 = vmatmul.mubr.bf16.gmra.mrb[0].mxu0 %v4209
    %v4275 = vpop.f32.mrb[0].mxu0
    %v4276 = vadd.f32 %v3902, %v4275
    %v4277 = vpop.f32.mrb[0].mxu0
    %v4278 = vadd.f32 %v3906, %v4277
    %v4279 = vpop.f32.mrb[0].mxu0
    %v4280 = vadd.f32 %v3902, %v4279
    %v4281 = vpop.f32.mrb[0].mxu0
    %v4282 = vadd.f32 %v3906, %v4281
    %4283 = vdwg.mxu0
    %4284 = vmatprep.subr.bf16.mxu0 %v4106
    %4285 = vmatpush1.bf16.msra.mxu0 %v4105
    %4286 = vmatprep.subr.bf16.mxu0 %v4118
    %4287 = vmatpush1.bf16.msra.mxu0 %v4117
    %4288 = vmatprep.subr.bf16.mxu0 %v4130
    %4289 = vmatpush1.bf16.msra.mxu0 %v4129
    %4290 = vmatprep.subr.bf16.mxu0 %v4142
    %4291 = vmatpush1.bf16.msra.mxu0 %v4141
    %4292 = vmatprep.subr.bf16.mxu0 0
    %4293 = vmatpush1.bf16.msra.mxu0 0
    %4294 = vmatprep.subr.bf16.mxu0 0
    %4295 = vmatpush1.bf16.msra.mxu0 0
    %4296 = vmatprep.subr.bf16.mxu0 0
    %4297 = vmatpush1.bf16.msra.mxu0 0
    %4298 = vmatprep.subr.bf16.mxu0 0
    %4299 = vmatpush1.bf16.msra.mxu0 0
    %4300 = vmatprep.subr.bf16.mxu0 0
    %4301 = vmatpush1.bf16.msra.mxu0 0
    %4302 = vmatprep.subr.bf16.mxu0 0
    %4303 = vmatpush1.bf16.msra.mxu0 0
    %4304 = vmatprep.subr.bf16.mxu0 0
    %4305 = vmatpush1.bf16.msra.mxu0 0
    %4306 = vmatprep.subr.bf16.mxu0 0
    %4307 = vmatpush1.bf16.msra.mxu0 0
    %4308 = vmatprep.subr.bf16.mxu0 0
    %4309 = vmatpush1.bf16.msra.mxu0 0
    %4310 = vmatprep.subr.bf16.mxu0 0
    %4311 = vmatpush1.bf16.msra.mxu0 0
    %4312 = vmatprep.subr.bf16.mxu0 0
    %4313 = vmatpush1.bf16.msra.mxu0 0
    %4314 = vmatprep.subr.bf16.mxu0 0
    %4315 = vmatpush1.bf16.msra.mxu0 0
    %4316 = vmatprep.mubr.bf16.mxu0 0
    %4317 = vmatmul.mubr.bf16.gmra.mrb[0].mxu0 %v4200
    %v4318 = vpop.f32.mrb[0].mxu0
    %v4319 = vadd.f32 %v3910, %v4318
    %v4320 = vpop.f32.mrb[0].mxu0
    %v4321 = vadd.f32 %v3914, %v4320
    %v4322 = vpop.f32.mrb[0].mxu0
    %v4323 = vadd.f32 %v3910, %v4322
    %v4324 = vpop.f32.mrb[0].mxu0
    %v4325 = vadd.f32 %v3914, %v4324
    %4326 = vmatprep.mubr.bf16.mxu0 0
    %4327 = vmatmul.mubr.bf16.gmra.mrb[0].mxu0 %v4203
    %v4328 = vpop.f32.mrb[0].mxu0
    %v4329 = vadd.f32 %v3910, %v4328
    %v4330 = vpop.f32.mrb[0].mxu0
    %v4331 = vadd.f32 %v3914, %v4330
    %v4332 = vpop.f32.mrb[0].mxu0
    %v4333 = vadd.f32 %v3910, %v4332
    %v4334 = vpop.f32.mrb[0].mxu0
    %v4335 = vadd.f32 %v3914, %v4334
    %4336 = vmatprep.mubr.bf16.mxu0 0
    %4337 = vmatmul.mubr.bf16.gmra.mrb[0].mxu0 %v4206
    %v4338 = vpop.f32.mrb[0].mxu0
    %v4339 = vadd.f32 %v3910, %v4338
    %v4340 = vpop.f32.mrb[0].mxu0
    %v4341 = vadd.f32 %v3914, %v4340
    %v4342 = vpop.f32.mrb[0].mxu0
    %v4343 = vadd.f32 %v3910, %v4342
    %v4344 = vpop.f32.mrb[0].mxu0
    %v4345 = vadd.f32 %v3914, %v4344
    %4346 = vmatprep.mubr.bf16.mxu0 0
    %4347 = vmatmul.mubr.bf16.gmra.mrb[0].mxu0 %v4209
    %v4348 = vpop.f32.mrb[0].mxu0
    %v4349 = vadd.f32 %v3910, %v4348
    %v4350 = vpop.f32.mrb[0].mxu0
    %v4351 = vadd.f32 %v3914, %v4350
    %v4352 = vpop.f32.mrb[0].mxu0
    %v4353 = vadd.f32 %v3910, %v4352
    %v4354 = vpop.f32.mrb[0].mxu0
    %v4355 = vadd.f32 %v3914, %v4354
    %4356 = vdwg.mxu0
    %4357 = vmatprep.subr.bf16.mxu0 %v4108
    %4358 = vmatpush1.bf16.msra.mxu0 %v4107
    %4359 = vmatprep.subr.bf16.mxu0 %v4120
    %4360 = vmatpush1.bf16.msra.mxu0 %v4119
    %4361 = vmatprep.subr.bf16.mxu0 %v4132
    %4362 = vmatpush1.bf16.msra.mxu0 %v4131
    %4363 = vmatprep.subr.bf16.mxu0 %v4144
    %4364 = vmatpush1.bf16.msra.mxu0 %v4143
    %4365 = vmatprep.subr.bf16.mxu0 0
    %4366 = vmatpush1.bf16.msra.mxu0 0
    %4367 = vmatprep.subr.bf16.mxu0 0
    %4368 = vmatpush1.bf16.msra.mxu0 0
    %4369 = vmatprep.subr.bf16.mxu0 0
    %4370 = vmatpush1.bf16.msra.mxu0 0
    %4371 = vmatprep.subr.bf16.mxu0 0
    %4372 = vmatpush1.bf16.msra.mxu0 0
    %4373 = vmatprep.subr.bf16.mxu0 0
    %4374 = vmatpush1.bf16.msra.mxu0 0
    %4375 = vmatprep.subr.bf16.mxu0 0
    %4376 = vmatpush1.bf16.msra.mxu0 0
    %4377 = vmatprep.subr.bf16.mxu0 0
    %4378 = vmatpush1.bf16.msra.mxu0 0
    %4379 = vmatprep.subr.bf16.mxu0 0
    %4380 = vmatpush1.bf16.msra.mxu0 0
    %4381 = vmatprep.subr.bf16.mxu0 0
    %4382 = vmatpush1.bf16.msra.mxu0 0
    %4383 = vmatprep.subr.bf16.mxu0 0
    %4384 = vmatpush1.bf16.msra.mxu0 0
    %4385 = vmatprep.subr.bf16.mxu0 0
    %4386 = vmatpush1.bf16.msra.mxu0 0
    %4387 = vmatprep.subr.bf16.mxu0 0
    %4388 = vmatpush1.bf16.msra.mxu0 0
    %4389 = vmatprep.mubr.bf16.mxu0 0
    %4390 = vmatmul.mubr.bf16.gmra.mrb[0].mxu0 %v4200
    %v4391 = vpop.f32.mrb[0].mxu0
    %v4392 = vadd.f32 %v3918, %v4391
    %v4393 = vpop.f32.mrb[0].mxu0
    %v4394 = vadd.f32 %v3922, %v4393
    %v4395 = vpop.f32.mrb[0].mxu0
    %v4396 = vadd.f32 %v3918, %v4395
    %v4397 = vpop.f32.mrb[0].mxu0
    %v4398 = vadd.f32 %v3922, %v4397
    %4399 = vmatprep.mubr.bf16.mxu0 0
    %4400 = vmatmul.mubr.bf16.gmra.mrb[0].mxu0 %v4203
    %v4401 = vpop.f32.mrb[0].mxu0
    %v4402 = vadd.f32 %v3918, %v4401
    %v4403 = vpop.f32.mrb[0].mxu0
    %v4404 = vadd.f32 %v3922, %v4403
    %v4405 = vpop.f32.mrb[0].mxu0
    %v4406 = vadd.f32 %v3918, %v4405
    %v4407 = vpop.f32.mrb[0].mxu0
    %v4408 = vadd.f32 %v3922, %v4407
    %4409 = vmatprep.mubr.bf16.mxu0 0
    %4410 = vmatmul.mubr.bf16.gmra.mrb[0].mxu0 %v4206
    %v4411 = vpop.f32.mrb[0].mxu0
    %v4412 = vadd.f32 %v3918, %v4411
    %v4413 = vpop.f32.mrb[0].mxu0
    %v4414 = vadd.f32 %v3922, %v4413
    %v4415 = vpop.f32.mrb[0].mxu0
    %v4416 = vadd.f32 %v3918, %v4415
    %v4417 = vpop.f32.mrb[0].mxu0
    %v4418 = vadd.f32 %v3922, %v4417
    %4419 = vmatprep.mubr.bf16.mxu0 0
    %4420 = vmatmul.mubr.bf16.gmra.mrb[0].mxu0 %v4209
    %v4421 = vpop.f32.mrb[0].mxu0
    %v4422 = vadd.f32 %v3918, %v4421
    %v4423 = vpop.f32.mrb[0].mxu0
    %v4424 = vadd.f32 %v3922, %v4423
    %v4425 = vpop.f32.mrb[0].mxu0
    %v4426 = vadd.f32 %v3918, %v4425
    %v4427 = vpop.f32.mrb[0].mxu0
    %v4428 = vadd.f32 %v3922, %v4427
    %4429 = vdwg.mxu0
    %4430 = vmatprep.subr.bf16.mxu0 %v4110
    %4431 = vmatpush1.bf16.msra.mxu0 %v4109
    %4432 = vmatprep.subr.bf16.mxu0 %v4122
    %4433 = vmatpush1.bf16.msra.mxu0 %v4121
    %4434 = vmatprep.subr.bf16.mxu0 %v4134
    %4435 = vmatpush1.bf16.msra.mxu0 %v4133
    %4436 = vmatprep.subr.bf16.mxu0 %v4146
    %4437 = vmatpush1.bf16.msra.mxu0 %v4145
    %4438 = vmatprep.subr.bf16.mxu0 0
    %4439 = vmatpush1.bf16.msra.mxu0 0
    %4440 = vmatprep.subr.bf16.mxu0 0
    %4441 = vmatpush1.bf16.msra.mxu0 0
    %4442 = vmatprep.subr.bf16.mxu0 0
    %4443 = vmatpush1.bf16.msra.mxu0 0
    %4444 = vmatprep.subr.bf16.mxu0 0
    %4445 = vmatpush1.bf16.msra.mxu0 0
    %4446 = vmatprep.subr.bf16.mxu0 0
    %4447 = vmatpush1.bf16.msra.mxu0 0
    %4448 = vmatprep.subr.bf16.mxu0 0
    %4449 = vmatpush1.bf16.msra.mxu0 0
    %4450 = vmatprep.subr.bf16.mxu0 0
    %4451 = vmatpush1.bf16.msra.mxu0 0
    %4452 = vmatprep.subr.bf16.mxu0 0
    %4453 = vmatpush1.bf16.msra.mxu0 0
    %4454 = vmatprep.subr.bf16.mxu0 0
    %4455 = vmatpush1.bf16.msra.mxu0 0
    %4456 = vmatprep.subr.bf16.mxu0 0
    %4457 = vmatpush1.bf16.msra.mxu0 0
    %4458 = vmatprep.subr.bf16.mxu0 0
    %4459 = vmatpush1.bf16.msra.mxu0 0
    %4460 = vmatprep.subr.bf16.mxu0 0
    %4461 = vmatpush1.bf16.msra.mxu0 0
    %4462 = vmatprep.mubr.bf16.mxu0 0
    %4463 = vmatmul.mubr.bf16.gmra.mrb[0].mxu0 %v4200
    %v4464 = vpop.f32.mrb[0].mxu0
    %v4465 = vadd.f32 %v3926, %v4464
    %v4466 = vpop.f32.mrb[0].mxu0
    %v4467 = vadd.f32 %v3930, %v4466
    %v4468 = vpop.f32.mrb[0].mxu0
    %v4469 = vadd.f32 %v3926, %v4468
    %v4470 = vpop.f32.mrb[0].mxu0
    %v4471 = vadd.f32 %v3930, %v4470
    %4472 = vmatprep.mubr.bf16.mxu0 0
    %4473 = vmatmul.mubr.bf16.gmra.mrb[0].mxu0 %v4203
    %v4474 = vpop.f32.mrb[0].mxu0
    %v4475 = vadd.f32 %v3926, %v4474
    %v4476 = vpop.f32.mrb[0].mxu0
    %v4477 = vadd.f32 %v3930, %v4476
    %v4478 = vpop.f32.mrb[0].mxu0
    %v4479 = vadd.f32 %v3926, %v4478
    %v4480 = vpop.f32.mrb[0].mxu0
    %v4481 = vadd.f32 %v3930, %v4480
    %4482 = vmatprep.mubr.bf16.mxu0 0
    %4483 = vmatmul.mubr.bf16.gmra.mrb[0].mxu0 %v4206
    %v4484 = vpop.f32.mrb[0].mxu0
    %v4485 = vadd.f32 %v3926, %v4484
    %v4486 = vpop.f32.mrb[0].mxu0
    %v4487 = vadd.f32 %v3930, %v4486
    %v4488 = vpop.f32.mrb[0].mxu0
    %v4489 = vadd.f32 %v3926, %v4488
    %v4490 = vpop.f32.mrb[0].mxu0
    %v4491 = vadd.f32 %v3930, %v4490
    %4492 = vmatprep.mubr.bf16.mxu0 0
    %4493 = vmatmul.mubr.bf16.gmra.mrb[0].mxu0 %v4209
    %v4494 = vpop.f32.mrb[0].mxu0
    %v4495 = vadd.f32 %v3926, %v4494
    %v4496 = vpop.f32.mrb[0].mxu0
    %v4497 = vadd.f32 %v3930, %v4496
    %v4498 = vpop.f32.mrb[0].mxu0
    %v4499 = vadd.f32 %v3926, %v4498
    %v4500 = vpop.f32.mrb[0].mxu0
    %v4501 = vadd.f32 %v3930, %v4500
    %4502 = vdwg.mxu0
    %4503 = vmatprep.subr.bf16.mxu0 %v4112
    %4504 = vmatpush1.bf16.msra.mxu0 %v4111
    %4505 = vmatprep.subr.bf16.mxu0 %v4124
    %4506 = vmatpush1.bf16.msra.mxu0 %v4123
    %4507 = vmatprep.subr.bf16.mxu0 %v4136
    %4508 = vmatpush1.bf16.msra.mxu0 %v4135
    %4509 = vmatprep.subr.bf16.mxu0 %v4148
    %4510 = vmatpush1.bf16.msra.mxu0 %v4147
    %4511 = vmatprep.subr.bf16.mxu0 0
    %4512 = vmatpush1.bf16.msra.mxu0 0
    %4513 = vmatprep.subr.bf16.mxu0 0
    %4514 = vmatpush1.bf16.msra.mxu0 0
    %4515 = vmatprep.subr.bf16.mxu0 0
    %4516 = vmatpush1.bf16.msra.mxu0 0
    %4517 = vmatprep.subr.bf16.mxu0 0
    %4518 = vmatpush1.bf16.msra.mxu0 0
    %4519 = vmatprep.subr.bf16.mxu0 0
    %4520 = vmatpush1.bf16.msra.mxu0 0
    %4521 = vmatprep.subr.bf16.mxu0 0
    %4522 = vmatpush1.bf16.msra.mxu0 0
    %4523 = vmatprep.subr.bf16.mxu0 0
    %4524 = vmatpush1.bf16.msra.mxu0 0
    %4525 = vmatprep.subr.bf16.mxu0 0
    %4526 = vmatpush1.bf16.msra.mxu0 0
    %4527 = vmatprep.subr.bf16.mxu0 0
    %4528 = vmatpush1.bf16.msra.mxu0 0
    %4529 = vmatprep.subr.bf16.mxu0 0
    %4530 = vmatpush1.bf16.msra.mxu0 0
    %4531 = vmatprep.subr.bf16.mxu0 0
    %4532 = vmatpush1.bf16.msra.mxu0 0
    %4533 = vmatprep.subr.bf16.mxu0 0
    %4534 = vmatpush1.bf16.msra.mxu0 0
    %4535 = vmatprep.mubr.bf16.mxu0 0
    %4536 = vmatmul.mubr.bf16.gmra.mrb[0].mxu0 %v4200
    %v4537 = vpop.f32.mrb[0].mxu0
    %v4538 = vadd.f32 %v3934, %v4537
    %v4539 = vpop.f32.mrb[0].mxu0
    %v4540 = vadd.f32 %v3938, %v4539
    %v4541 = vpop.f32.mrb[0].mxu0
    %v4542 = vadd.f32 %v3934, %v4541
    %v4543 = vpop.f32.mrb[0].mxu0
    %v4544 = vadd.f32 %v3938, %v4543
    %4545 = vmatprep.mubr.bf16.mxu0 0
    %4546 = vmatmul.mubr.bf16.gmra.mrb[0].mxu0 %v4203
    %v4547 = vpop.f32.mrb[0].mxu0
    %v4548 = vadd.f32 %v3934, %v4547
    %v4549 = vpop.f32.mrb[0].mxu0
    %v4550 = vadd.f32 %v3938, %v4549
    %v4551 = vpop.f32.mrb[0].mxu0
    %v4552 = vadd.f32 %v3934, %v4551
    %v4553 = vpop.f32.mrb[0].mxu0
    %v4554 = vadd.f32 %v3938, %v4553
    %4555 = vmatprep.mubr.bf16.mxu0 0
    %4556 = vmatmul.mubr.bf16.gmra.mrb[0].mxu0 %v4206
    %v4557 = vpop.f32.mrb[0].mxu0
    %v4558 = vadd.f32 %v3934, %v4557
    %v4559 = vpop.f32.mrb[0].mxu0
    %v4560 = vadd.f32 %v3938, %v4559
    %v4561 = vpop.f32.mrb[0].mxu0
    %v4562 = vadd.f32 %v3934, %v4561
    %v4563 = vpop.f32.mrb[0].mxu0
    %v4564 = vadd.f32 %v3938, %v4563
    %4565 = vmatprep.mubr.bf16.mxu0 0
    %4566 = vmatmul.mubr.bf16.gmra.mrb[0].mxu0 %v4209
    %v4567 = vpop.f32.mrb[0].mxu0
    %v4568 = vadd.f32 %v3934, %v4567
    %v4569 = vpop.f32.mrb[0].mxu0
    %v4570 = vadd.f32 %v3938, %v4569
    %v4571 = vpop.f32.mrb[0].mxu0
    %v4572 = vadd.f32 %v3934, %v4571
    %v4573 = vpop.f32.mrb[0].mxu0
    %v4574 = vadd.f32 %v3938, %v4573
    %4575 = vdwg.mxu0
    %4576 = vmatprep.subr.bf16.mxu0 %v4114
    %4577 = vmatpush1.bf16.msra.mxu0 %v4113
    %4578 = vmatprep.subr.bf16.mxu0 %v4126
    %4579 = vmatpush1.bf16.msra.mxu0 %v4125
    %4580 = vmatprep.subr.bf16.mxu0 %v4138
    %4581 = vmatpush1.bf16.msra.mxu0 %v4137
    %4582 = vmatprep.subr.bf16.mxu0 %v4150
    %4583 = vmatpush1.bf16.msra.mxu0 %v4149
    %4584 = vmatprep.subr.bf16.mxu0 0
    %4585 = vmatpush1.bf16.msra.mxu0 0
    %4586 = vmatprep.subr.bf16.mxu0 0
    %4587 = vmatpush1.bf16.msra.mxu0 0
    %4588 = vmatprep.subr.bf16.mxu0 0
    %4589 = vmatpush1.bf16.msra.mxu0 0
    %4590 = vmatprep.subr.bf16.mxu0 0
    %4591 = vmatpush1.bf16.msra.mxu0 0
    %4592 = vmatprep.subr.bf16.mxu0 0
    %4593 = vmatpush1.bf16.msra.mxu0 0
    %4594 = vmatprep.subr.bf16.mxu0 0
    %4595 = vmatpush1.bf16.msra.mxu0 0
    %4596 = vmatprep.subr.bf16.mxu0 0
    %4597 = vmatpush1.bf16.msra.mxu0 0
    %4598 = vmatprep.subr.bf16.mxu0 0
    %4599 = vmatpush1.bf16.msra.mxu0 0
    %4600 = vmatprep.subr.bf16.mxu0 0
    %4601 = vmatpush1.bf16.msra.mxu0 0
    %4602 = vmatprep.subr.bf16.mxu0 0
    %4603 = vmatpush1.bf16.msra.mxu0 0
    %4604 = vmatprep.subr.bf16.mxu0 0
    %4605 = vmatpush1.bf16.msra.mxu0 0
    %4606 = vmatprep.subr.bf16.mxu0 0
    %4607 = vmatpush1.bf16.msra.mxu0 0
    %4608 = vmatprep.mubr.bf16.mxu0 0
    %4609 = vmatmul.mubr.bf16.gmra.mrb[0].mxu0 %v4200
    %v4610 = vpop.f32.mrb[0].mxu0
    %v4611 = vadd.f32 %v3942, %v4610
    %v4612 = vpop.f32.mrb[0].mxu0
    %v4613 = vadd.f32 %v3946, %v4612
    %v4614 = vpop.f32.mrb[0].mxu0
    %v4615 = vadd.f32 %v3942, %v4614
    %v4616 = vpop.f32.mrb[0].mxu0
    %v4617 = vadd.f32 %v3946, %v4616
    %4618 = vmatprep.mubr.bf16.mxu0 0
    %4619 = vmatmul.mubr.bf16.gmra.mrb[0].mxu0 %v4203
    %v4620 = vpop.f32.mrb[0].mxu0
    %v4621 = vadd.f32 %v3942, %v4620
    %v4622 = vpop.f32.mrb[0].mxu0
    %v4623 = vadd.f32 %v3946, %v4622
    %v4624 = vpop.f32.mrb[0].mxu0
    %v4625 = vadd.f32 %v3942, %v4624
    %v4626 = vpop.f32.mrb[0].mxu0
    %v4627 = vadd.f32 %v3946, %v4626
    %4628 = vmatprep.mubr.bf16.mxu0 0
    %4629 = vmatmul.mubr.bf16.gmra.mrb[0].mxu0 %v4206
    %v4630 = vpop.f32.mrb[0].mxu0
    %v4631 = vadd.f32 %v3942, %v4630
    %v4632 = vpop.f32.mrb[0].mxu0
    %v4633 = vadd.f32 %v3946, %v4632
    %v4634 = vpop.f32.mrb[0].mxu0
    %v4635 = vadd.f32 %v3942, %v4634
    %v4636 = vpop.f32.mrb[0].mxu0
    %v4637 = vadd.f32 %v3946, %v4636
    %4638 = vmatprep.mubr.bf16.mxu0 0
    %4639 = vmatmul.mubr.bf16.gmra.mrb[0].mxu0 %v4209
    %v4640 = vpop.f32.mrb[0].mxu0
    %v4641 = vadd.f32 %v3942, %v4640
    %v4642 = vpop.f32.mrb[0].mxu0
    %v4643 = vadd.f32 %v3946, %v4642
    %v4644 = vpop.f32.mrb[0].mxu0
    %v4645 = vadd.f32 %v3942, %v4644
    %v4646 = vpop.f32.mrb[0].mxu0
    %v4647 = vadd.f32 %v3946, %v4646
    %4648 = vdwg.mxu0
    %v4649 = vpack.c.bf16 %v4250, %v4246
    %v4650 = vpack.c.bf16 %v4252, %v4248
    %v4651 = vpack.c.bf16 %v4323, %v4319
    %v4652 = vpack.c.bf16 %v4325, %v4321
    %v4653 = vpack.c.bf16 %v4396, %v4392
    %v4654 = vpack.c.bf16 %v4398, %v4394
    %v4655 = vpack.c.bf16 %v4469, %v4465
    %v4656 = vpack.c.bf16 %v4471, %v4467
    %v4657 = vpack.c.bf16 %v4542, %v4538
    %v4658 = vpack.c.bf16 %v4544, %v4540
    %v4659 = vpack.c.bf16 %v4615, %v4611
    %v4660 = vpack.c.bf16 %v4617, %v4613
    %v4661 = vpack.c.bf16 %v4260, %v4256
    %v4662 = vpack.c.bf16 %v4262, %v4258
    %v4663 = vpack.c.bf16 %v4333, %v4329
    %v4664 = vpack.c.bf16 %v4335, %v4331
    %v4665 = vpack.c.bf16 %v4406, %v4402
    %v4666 = vpack.c.bf16 %v4408, %v4404
    %v4667 = vpack.c.bf16 %v4479, %v4475
    %v4668 = vpack.c.bf16 %v4481, %v4477
    %v4669 = vpack.c.bf16 %v4552, %v4548
    %v4670 = vpack.c.bf16 %v4554, %v4550
    %v4671 = vpack.c.bf16 %v4625, %v4621
    %v4672 = vpack.c.bf16 %v4627, %v4623
    %v4673 = vpack.c.bf16 %v4270, %v4266
    %v4674 = vpack.c.bf16 %v4272, %v4268
    %v4675 = vpack.c.bf16 %v4343, %v4339
    %v4676 = vpack.c.bf16 %v4345, %v4341
    %v4677 = vpack.c.bf16 %v4416, %v4412
    %v4678 = vpack.c.bf16 %v4418, %v4414
    %v4679 = vpack.c.bf16 %v4489, %v4485
    %v4680 = vpack.c.bf16 %v4491, %v4487
    %v4681 = vpack.c.bf16 %v4562, %v4558
    %v4682 = vpack.c.bf16 %v4564, %v4560
    %v4683 = vpack.c.bf16 %v4635, %v4631
    %v4684 = vpack.c.bf16 %v4637, %v4633
    %v4685 = vpack.c.bf16 %v4280, %v4276
    %v4686 = vpack.c.bf16 %v4282, %v4278
    %v4687 = vpack.c.bf16 %v4353, %v4349
    %v4688 = vpack.c.bf16 %v4355, %v4351
    %v4689 = vpack.c.bf16 %v4426, %v4422
    %v4690 = vpack.c.bf16 %v4428, %v4424
    %v4691 = vpack.c.bf16 %v4499, %v4495
    %v4692 = vpack.c.bf16 %v4501, %v4497
    %v4693 = vpack.c.bf16 %v4572, %v4568
    %v4694 = vpack.c.bf16 %v4574, %v4570
    %v4695 = vpack.c.bf16 %v4645, %v4641
    %v4696 = vpack.c.bf16 %v4647, %v4643
    %4697 = vmatprep.subr.bf16.mxu0 0
    %4698 = vmatpush1.bf16.xpose.msra.mxu0 %v4653
    %4699 = vmatprep.subr.bf16.mxu0 0
    %4700 = vmatpush1.bf16.xpose.msra.mxu0 0
    %4701 = vmatprep.subr.bf16.mxu0 0
    %4702 = vmatpush1.bf16.xpose.msra.mxu0 0
    %4703 = vmatprep.subr.bf16.mxu0 0
    %4704 = vmatpush1.bf16.xpose.msra.mxu0 0
    %4705 = vmatprep.subr.bf16.mxu0 0
    %4706 = vmatpush1.bf16.xpose.msra.mxu0 0
    %4707 = vmatprep.subr.bf16.mxu0 0
    %4708 = vmatpush1.bf16.xpose.msra.mxu0 0
    %4709 = vmatprep.subr.bf16.mxu0 0
    %4710 = vmatpush1.bf16.xpose.msra.mxu0 0
    %4711 = vmatprep.subr.bf16.mxu0 0
    %4712 = vmatpush1.bf16.xpose.msra.mxu0 0
    %4713 = vmatprep.subr.bf16.mxu0 0
    %4714 = vmatpush1.bf16.xpose.msra.mxu0 0
    %4715 = vmatprep.subr.bf16.mxu0 0
    %4716 = vmatpush1.bf16.xpose.msra.mxu0 0
    %4717 = vmatprep.subr.bf16.mxu0 0
    %4718 = vmatpush1.bf16.xpose.msra.mxu0 0
    %4719 = vmatprep.subr.bf16.mxu0 0
    %4720 = vmatpush1.bf16.xpose.msra.mxu0 0
    %4721 = vmatprep.subr.bf16.mxu0 0
    %4722 = vmatpush1.bf16.xpose.msra.mxu0 0
    %4723 = vmatprep.subr.bf16.mxu0 0
    %4724 = vmatpush1.bf16.xpose.msra.mxu0 0
    %4725 = vmatprep.subr.bf16.mxu0 0
    %4726 = vmatpush1.bf16.xpose.msra.mxu0 0
    %4727 = vmatprep.subr.bf16.mxu0 0
    %4728 = vmatpush1.bf16.xpose.msra.mxu0 0
    %4729 = vmatprep.mubr.bf16.mxu0 0
    %4730 = vmatmul.mubr.bf16.gmra.mrb[0].mxu0 %v4649
    %v4731 = vpop.f32.mrb[0].mxu0
    %v4732 = vadd.f32 %v299, %v4731
    %v4733 = vpop.f32.mrb[0].mxu0
    %v4734 = vpop.f32.mrb[0].mxu0
    %v4735 = vadd.f32 %v300, %v4734
    %v4736 = vpop.f32.mrb[0].mxu0
    %4737 = vdwg.mxu0
    %4738 = vmatprep.subr.bf16.mxu0 0
    %4739 = vmatpush1.bf16.xpose.msra.mxu0 %v4665
    %4740 = vmatprep.subr.bf16.mxu0 0
    %4741 = vmatpush1.bf16.xpose.msra.mxu0 0
    %4742 = vmatprep.subr.bf16.mxu0 0
    %4743 = vmatpush1.bf16.xpose.msra.mxu0 0
    %4744 = vmatprep.subr.bf16.mxu0 0
    %4745 = vmatpush1.bf16.xpose.msra.mxu0 0
    %4746 = vmatprep.subr.bf16.mxu0 0
    %4747 = vmatpush1.bf16.xpose.msra.mxu0 0
    %4748 = vmatprep.subr.bf16.mxu0 0
    %4749 = vmatpush1.bf16.xpose.msra.mxu0 0
    %4750 = vmatprep.subr.bf16.mxu0 0
    %4751 = vmatpush1.bf16.xpose.msra.mxu0 0
    %4752 = vmatprep.subr.bf16.mxu0 0
    %4753 = vmatpush1.bf16.xpose.msra.mxu0 0
    %4754 = vmatprep.subr.bf16.mxu0 0
    %4755 = vmatpush1.bf16.xpose.msra.mxu0 0
    %4756 = vmatprep.subr.bf16.mxu0 0
    %4757 = vmatpush1.bf16.xpose.msra.mxu0 0
    %4758 = vmatprep.subr.bf16.mxu0 0
    %4759 = vmatpush1.bf16.xpose.msra.mxu0 0
    %4760 = vmatprep.subr.bf16.mxu0 0
    %4761 = vmatpush1.bf16.xpose.msra.mxu0 0
    %4762 = vmatprep.subr.bf16.mxu0 0
    %4763 = vmatpush1.bf16.xpose.msra.mxu0 0
    %4764 = vmatprep.subr.bf16.mxu0 0
    %4765 = vmatpush1.bf16.xpose.msra.mxu0 0
    %4766 = vmatprep.subr.bf16.mxu0 0
    %4767 = vmatpush1.bf16.xpose.msra.mxu0 0
    %4768 = vmatprep.subr.bf16.mxu0 0
    %4769 = vmatpush1.bf16.xpose.msra.mxu0 0
    %4770 = vmatprep.mubr.bf16.mxu0 0
    %4771 = vmatmul.mubr.bf16.gmra.mrb[0].mxu0 %v4661
    %v4772 = vpop.f32.mrb[0].mxu0
    %v4773 = vadd.f32 %v301, %v4772
    %v4774 = vpop.f32.mrb[0].mxu0
    %v4775 = vpop.f32.mrb[0].mxu0
    %v4776 = vadd.f32 %v302, %v4775
    %v4777 = vpop.f32.mrb[0].mxu0
    %4778 = vdwg.mxu0
    %4779 = vmatprep.subr.bf16.mxu0 0
    %4780 = vmatpush1.bf16.xpose.msra.mxu0 %v4677
    %4781 = vmatprep.subr.bf16.mxu0 0
    %4782 = vmatpush1.bf16.xpose.msra.mxu0 0
    %4783 = vmatprep.subr.bf16.mxu0 0
    %4784 = vmatpush1.bf16.xpose.msra.mxu0 0
    %4785 = vmatprep.subr.bf16.mxu0 0
    %4786 = vmatpush1.bf16.xpose.msra.mxu0 0
    %4787 = vmatprep.subr.bf16.mxu0 0
    %4788 = vmatpush1.bf16.xpose.msra.mxu0 0
    %4789 = vmatprep.subr.bf16.mxu0 0
    %4790 = vmatpush1.bf16.xpose.msra.mxu0 0
    %4791 = vmatprep.subr.bf16.mxu0 0
    %4792 = vmatpush1.bf16.xpose.msra.mxu0 0
    %4793 = vmatprep.subr.bf16.mxu0 0
    %4794 = vmatpush1.bf16.xpose.msra.mxu0 0
    %4795 = vmatprep.subr.bf16.mxu0 0
    %4796 = vmatpush1.bf16.xpose.msra.mxu0 0
    %4797 = vmatprep.subr.bf16.mxu0 0
    %4798 = vmatpush1.bf16.xpose.msra.mxu0 0
    %4799 = vmatprep.subr.bf16.mxu0 0
    %4800 = vmatpush1.bf16.xpose.msra.mxu0 0
    %4801 = vmatprep.subr.bf16.mxu0 0
    %4802 = vmatpush1.bf16.xpose.msra.mxu0 0
    %4803 = vmatprep.subr.bf16.mxu0 0
    %4804 = vmatpush1.bf16.xpose.msra.mxu0 0
    %4805 = vmatprep.subr.bf16.mxu0 0
    %4806 = vmatpush1.bf16.xpose.msra.mxu0 0
    %4807 = vmatprep.subr.bf16.mxu0 0
    %4808 = vmatpush1.bf16.xpose.msra.mxu0 0
    %4809 = vmatprep.subr.bf16.mxu0 0
    %4810 = vmatpush1.bf16.xpose.msra.mxu0 0
    %4811 = vmatprep.mubr.bf16.mxu0 0
    %4812 = vmatmul.mubr.bf16.gmra.mrb[0].mxu0 %v4673
    %v4813 = vpop.f32.mrb[0].mxu0
    %v4814 = vadd.f32 %v303, %v4813
    %v4815 = vpop.f32.mrb[0].mxu0
    %v4816 = vpop.f32.mrb[0].mxu0
    %v4817 = vadd.f32 %v304, %v4816
    %v4818 = vpop.f32.mrb[0].mxu0
    %4819 = vdwg.mxu0
    %4820 = vmatprep.subr.bf16.mxu0 0
    %4821 = vmatpush1.bf16.xpose.msra.mxu0 %v4689
    %4822 = vmatprep.subr.bf16.mxu0 0
    %4823 = vmatpush1.bf16.xpose.msra.mxu0 0
    %4824 = vmatprep.subr.bf16.mxu0 0
    %4825 = vmatpush1.bf16.xpose.msra.mxu0 0
    %4826 = vmatprep.subr.bf16.mxu0 0
    %4827 = vmatpush1.bf16.xpose.msra.mxu0 0
    %4828 = vmatprep.subr.bf16.mxu0 0
    %4829 = vmatpush1.bf16.xpose.msra.mxu0 0
    %4830 = vmatprep.subr.bf16.mxu0 0
    %4831 = vmatpush1.bf16.xpose.msra.mxu0 0
    %4832 = vmatprep.subr.bf16.mxu0 0
    %4833 = vmatpush1.bf16.xpose.msra.mxu0 0
    %4834 = vmatprep.subr.bf16.mxu0 0
    %4835 = vmatpush1.bf16.xpose.msra.mxu0 0
    %4836 = vmatprep.subr.bf16.mxu0 0
    %4837 = vmatpush1.bf16.xpose.msra.mxu0 0
    %4838 = vmatprep.subr.bf16.mxu0 0
    %4839 = vmatpush1.bf16.xpose.msra.mxu0 0
    %4840 = vmatprep.subr.bf16.mxu0 0
    %4841 = vmatpush1.bf16.xpose.msra.mxu0 0
    %4842 = vmatprep.subr.bf16.mxu0 0
    %4843 = vmatpush1.bf16.xpose.msra.mxu0 0
    %4844 = vmatprep.subr.bf16.mxu0 0
    %4845 = vmatpush1.bf16.xpose.msra.mxu0 0
    %4846 = vmatprep.subr.bf16.mxu0 0
    %4847 = vmatpush1.bf16.xpose.msra.mxu0 0
    %4848 = vmatprep.subr.bf16.mxu0 0
    %4849 = vmatpush1.bf16.xpose.msra.mxu0 0
    %4850 = vmatprep.subr.bf16.mxu0 0
    %4851 = vmatpush1.bf16.xpose.msra.mxu0 0
    %4852 = vmatprep.mubr.bf16.mxu0 0
    %4853 = vmatmul.mubr.bf16.gmra.mrb[0].mxu0 %v4685
    %v4854 = vpop.f32.mrb[0].mxu0
    %v4855 = vadd.f32 %v305, %v4854
    %v4856 = vpop.f32.mrb[0].mxu0
    %v4857 = vpop.f32.mrb[0].mxu0
    %v4858 = vadd.f32 %v306, %v4857
    %v4859 = vpop.f32.mrb[0].mxu0
    %4860 = vdwg.mxu0
    %4861 = vmatprep.subr.bf16.mxu0 0
    %4862 = vmatpush1.bf16.xpose.msra.mxu0 %v4654
    %4863 = vmatprep.subr.bf16.mxu0 0
    %4864 = vmatpush1.bf16.xpose.msra.mxu0 0
    %4865 = vmatprep.subr.bf16.mxu0 0
    %4866 = vmatpush1.bf16.xpose.msra.mxu0 0
    %4867 = vmatprep.subr.bf16.mxu0 0
    %4868 = vmatpush1.bf16.xpose.msra.mxu0 0
    %4869 = vmatprep.subr.bf16.mxu0 0
    %4870 = vmatpush1.bf16.xpose.msra.mxu0 0
    %4871 = vmatprep.subr.bf16.mxu0 0
    %4872 = vmatpush1.bf16.xpose.msra.mxu0 0
    %4873 = vmatprep.subr.bf16.mxu0 0
    %4874 = vmatpush1.bf16.xpose.msra.mxu0 0
    %4875 = vmatprep.subr.bf16.mxu0 0
    %4876 = vmatpush1.bf16.xpose.msra.mxu0 0
    %4877 = vmatprep.subr.bf16.mxu0 0
    %4878 = vmatpush1.bf16.xpose.msra.mxu0 0
    %4879 = vmatprep.subr.bf16.mxu0 0
    %4880 = vmatpush1.bf16.xpose.msra.mxu0 0
    %4881 = vmatprep.subr.bf16.mxu0 0
    %4882 = vmatpush1.bf16.xpose.msra.mxu0 0
    %4883 = vmatprep.subr.bf16.mxu0 0
    %4884 = vmatpush1.bf16.xpose.msra.mxu0 0
    %4885 = vmatprep.subr.bf16.mxu0 0
    %4886 = vmatpush1.bf16.xpose.msra.mxu0 0
    %4887 = vmatprep.subr.bf16.mxu0 0
    %4888 = vmatpush1.bf16.xpose.msra.mxu0 0
    %4889 = vmatprep.subr.bf16.mxu0 0
    %4890 = vmatpush1.bf16.xpose.msra.mxu0 0
    %4891 = vmatprep.subr.bf16.mxu0 0
    %4892 = vmatpush1.bf16.xpose.msra.mxu0 0
    %4893 = vmatprep.mubr.bf16.mxu0 0
    %4894 = vmatmul.mubr.bf16.gmra.mrb[0].mxu0 %v4650
    %v4895 = vpop.f32.mrb[0].mxu0
    %v4896 = vadd.f32 %v299, %v4895
    %v4897 = vpop.f32.mrb[0].mxu0
    %v4898 = vpop.f32.mrb[0].mxu0
    %v4899 = vadd.f32 %v300, %v4898
    %v4900 = vpop.f32.mrb[0].mxu0
    %4901 = vdwg.mxu0
    %4902 = vmatprep.subr.bf16.mxu0 0
    %4903 = vmatpush1.bf16.xpose.msra.mxu0 %v4666
    %4904 = vmatprep.subr.bf16.mxu0 0
    %4905 = vmatpush1.bf16.xpose.msra.mxu0 0
    %4906 = vmatprep.subr.bf16.mxu0 0
    %4907 = vmatpush1.bf16.xpose.msra.mxu0 0
    %4908 = vmatprep.subr.bf16.mxu0 0
    %4909 = vmatpush1.bf16.xpose.msra.mxu0 0
    %4910 = vmatprep.subr.bf16.mxu0 0
    %4911 = vmatpush1.bf16.xpose.msra.mxu0 0
    %4912 = vmatprep.subr.bf16.mxu0 0
    %4913 = vmatpush1.bf16.xpose.msra.mxu0 0
    %4914 = vmatprep.subr.bf16.mxu0 0
    %4915 = vmatpush1.bf16.xpose.msra.mxu0 0
    %4916 = vmatprep.subr.bf16.mxu0 0
    %4917 = vmatpush1.bf16.xpose.msra.mxu0 0
    %4918 = vmatprep.subr.bf16.mxu0 0
    %4919 = vmatpush1.bf16.xpose.msra.mxu0 0
    %4920 = vmatprep.subr.bf16.mxu0 0
    %4921 = vmatpush1.bf16.xpose.msra.mxu0 0
    %4922 = vmatprep.subr.bf16.mxu0 0
    %4923 = vmatpush1.bf16.xpose.msra.mxu0 0
    %4924 = vmatprep.subr.bf16.mxu0 0
    %4925 = vmatpush1.bf16.xpose.msra.mxu0 0
    %4926 = vmatprep.subr.bf16.mxu0 0
    %4927 = vmatpush1.bf16.xpose.msra.mxu0 0
    %4928 = vmatprep.subr.bf16.mxu0 0
    %4929 = vmatpush1.bf16.xpose.msra.mxu0 0
    %4930 = vmatprep.subr.bf16.mxu0 0
    %4931 = vmatpush1.bf16.xpose.msra.mxu0 0
    %4932 = vmatprep.subr.bf16.mxu0 0
    %4933 = vmatpush1.bf16.xpose.msra.mxu0 0
    %4934 = vmatprep.mubr.bf16.mxu0 0
    %4935 = vmatmul.mubr.bf16.gmra.mrb[0].mxu0 %v4662
    %v4936 = vpop.f32.mrb[0].mxu0
    %v4937 = vadd.f32 %v301, %v4936
    %v4938 = vpop.f32.mrb[0].mxu0
    %v4939 = vpop.f32.mrb[0].mxu0
    %v4940 = vadd.f32 %v302, %v4939
    %v4941 = vpop.f32.mrb[0].mxu0
    %4942 = vdwg.mxu0
    %4943 = vmatprep.subr.bf16.mxu0 0
    %4944 = vmatpush1.bf16.xpose.msra.mxu0 %v4678
    %4945 = vmatprep.subr.bf16.mxu0 0
    %4946 = vmatpush1.bf16.xpose.msra.mxu0 0
    %4947 = vmatprep.subr.bf16.mxu0 0
    %4948 = vmatpush1.bf16.xpose.msra.mxu0 0
    %4949 = vmatprep.subr.bf16.mxu0 0
    %4950 = vmatpush1.bf16.xpose.msra.mxu0 0
    %4951 = vmatprep.subr.bf16.mxu0 0
    %4952 = vmatpush1.bf16.xpose.msra.mxu0 0
    %4953 = vmatprep.subr.bf16.mxu0 0
    %4954 = vmatpush1.bf16.xpose.msra.mxu0 0
    %4955 = vmatprep.subr.bf16.mxu0 0
    %4956 = vmatpush1.bf16.xpose.msra.mxu0 0
    %4957 = vmatprep.subr.bf16.mxu0 0
    %4958 = vmatpush1.bf16.xpose.msra.mxu0 0
    %4959 = vmatprep.subr.bf16.mxu0 0
    %4960 = vmatpush1.bf16.xpose.msra.mxu0 0
    %4961 = vmatprep.subr.bf16.mxu0 0
    %4962 = vmatpush1.bf16.xpose.msra.mxu0 0
    %4963 = vmatprep.subr.bf16.mxu0 0
    %4964 = vmatpush1.bf16.xpose.msra.mxu0 0
    %4965 = vmatprep.subr.bf16.mxu0 0
    %4966 = vmatpush1.bf16.xpose.msra.mxu0 0
    %4967 = vmatprep.subr.bf16.mxu0 0
    %4968 = vmatpush1.bf16.xpose.msra.mxu0 0
    %4969 = vmatprep.subr.bf16.mxu0 0
    %4970 = vmatpush1.bf16.xpose.msra.mxu0 0
    %4971 = vmatprep.subr.bf16.mxu0 0
    %4972 = vmatpush1.bf16.xpose.msra.mxu0 0
    %4973 = vmatprep.subr.bf16.mxu0 0
    %4974 = vmatpush1.bf16.xpose.msra.mxu0 0
    %4975 = vmatprep.mubr.bf16.mxu0 0
    %4976 = vmatmul.mubr.bf16.gmra.mrb[0].mxu0 %v4674
    %v4977 = vpop.f32.mrb[0].mxu0
    %v4978 = vadd.f32 %v303, %v4977
    %v4979 = vpop.f32.mrb[0].mxu0
    %v4980 = vpop.f32.mrb[0].mxu0
    %v4981 = vadd.f32 %v304, %v4980
    %v4982 = vpop.f32.mrb[0].mxu0
    %4983 = vdwg.mxu0
    %4984 = vmatprep.subr.bf16.mxu0 0
    %4985 = vmatpush1.bf16.xpose.msra.mxu0 %v4690
    %4986 = vmatprep.subr.bf16.mxu0 0
    %4987 = vmatpush1.bf16.xpose.msra.mxu0 0
    %4988 = vmatprep.subr.bf16.mxu0 0
    %4989 = vmatpush1.bf16.xpose.msra.mxu0 0
    %4990 = vmatprep.subr.bf16.mxu0 0
    %4991 = vmatpush1.bf16.xpose.msra.mxu0 0
    %4992 = vmatprep.subr.bf16.mxu0 0
    %4993 = vmatpush1.bf16.xpose.msra.mxu0 0
    %4994 = vmatprep.subr.bf16.mxu0 0
    %4995 = vmatpush1.bf16.xpose.msra.mxu0 0
    %4996 = vmatprep.subr.bf16.mxu0 0
    %4997 = vmatpush1.bf16.xpose.msra.mxu0 0
    %4998 = vmatprep.subr.bf16.mxu0 0
    %4999 = vmatpush1.bf16.xpose.msra.mxu0 0
    %5000 = vmatprep.subr.bf16.mxu0 0
    %5001 = vmatpush1.bf16.xpose.msra.mxu0 0
    %5002 = vmatprep.subr.bf16.mxu0 0
    %5003 = vmatpush1.bf16.xpose.msra.mxu0 0
    %5004 = vmatprep.subr.bf16.mxu0 0
    %5005 = vmatpush1.bf16.xpose.msra.mxu0 0
    %5006 = vmatprep.subr.bf16.mxu0 0
    %5007 = vmatpush1.bf16.xpose.msra.mxu0 0
    %5008 = vmatprep.subr.bf16.mxu0 0
    %5009 = vmatpush1.bf16.xpose.msra.mxu0 0
    %5010 = vmatprep.subr.bf16.mxu0 0
    %5011 = vmatpush1.bf16.xpose.msra.mxu0 0
    %5012 = vmatprep.subr.bf16.mxu0 0
    %5013 = vmatpush1.bf16.xpose.msra.mxu0 0
    %5014 = vmatprep.subr.bf16.mxu0 0
    %5015 = vmatpush1.bf16.xpose.msra.mxu0 0
    %5016 = vmatprep.mubr.bf16.mxu0 0
    %5017 = vmatmul.mubr.bf16.gmra.mrb[0].mxu0 %v4686
    %v5018 = vpop.f32.mrb[0].mxu0
    %v5019 = vadd.f32 %v305, %v5018
    %v5020 = vpop.f32.mrb[0].mxu0
    %v5021 = vpop.f32.mrb[0].mxu0
    %v5022 = vadd.f32 %v306, %v5021
    %v5023 = vpop.f32.mrb[0].mxu0
    %5024 = vdwg.mxu0
    %5025 = vmatprep.subr.bf16.mxu0 0
    %5026 = vmatpush1.bf16.xpose.msra.mxu0 %v4655
    %5027 = vmatprep.subr.bf16.mxu0 0
    %5028 = vmatpush1.bf16.xpose.msra.mxu0 0
    %5029 = vmatprep.subr.bf16.mxu0 0
    %5030 = vmatpush1.bf16.xpose.msra.mxu0 0
    %5031 = vmatprep.subr.bf16.mxu0 0
    %5032 = vmatpush1.bf16.xpose.msra.mxu0 0
    %5033 = vmatprep.subr.bf16.mxu0 0
    %5034 = vmatpush1.bf16.xpose.msra.mxu0 0
    %5035 = vmatprep.subr.bf16.mxu0 0
    %5036 = vmatpush1.bf16.xpose.msra.mxu0 0
    %5037 = vmatprep.subr.bf16.mxu0 0
    %5038 = vmatpush1.bf16.xpose.msra.mxu0 0
    %5039 = vmatprep.subr.bf16.mxu0 0
    %5040 = vmatpush1.bf16.xpose.msra.mxu0 0
    %5041 = vmatprep.subr.bf16.mxu0 0
    %5042 = vmatpush1.bf16.xpose.msra.mxu0 0
    %5043 = vmatprep.subr.bf16.mxu0 0
    %5044 = vmatpush1.bf16.xpose.msra.mxu0 0
    %5045 = vmatprep.subr.bf16.mxu0 0
    %5046 = vmatpush1.bf16.xpose.msra.mxu0 0
    %5047 = vmatprep.subr.bf16.mxu0 0
    %5048 = vmatpush1.bf16.xpose.msra.mxu0 0
    %5049 = vmatprep.subr.bf16.mxu0 0
    %5050 = vmatpush1.bf16.xpose.msra.mxu0 0
    %5051 = vmatprep.subr.bf16.mxu0 0
    %5052 = vmatpush1.bf16.xpose.msra.mxu0 0
    %5053 = vmatprep.subr.bf16.mxu0 0
    %5054 = vmatpush1.bf16.xpose.msra.mxu0 0
    %5055 = vmatprep.subr.bf16.mxu0 0
    %5056 = vmatpush1.bf16.xpose.msra.mxu0 0
    %5057 = vmatprep.mubr.bf16.mxu0 0
    %5058 = vmatmul.mubr.bf16.gmra.mrb[0].mxu0 %v4651
    %v5059 = vpop.f32.mrb[0].mxu0
    %v5060 = vadd.f32 %v299, %v5059
    %v5061 = vpop.f32.mrb[0].mxu0
    %v5062 = vpop.f32.mrb[0].mxu0
    %v5063 = vadd.f32 %v300, %v5062
    %v5064 = vpop.f32.mrb[0].mxu0
    %5065 = vdwg.mxu0
    %5066 = vmatprep.subr.bf16.mxu0 0
    %5067 = vmatpush1.bf16.xpose.msra.mxu0 %v4667
    %5068 = vmatprep.subr.bf16.mxu0 0
    %5069 = vmatpush1.bf16.xpose.msra.mxu0 0
    %5070 = vmatprep.subr.bf16.mxu0 0
    %5071 = vmatpush1.bf16.xpose.msra.mxu0 0
    %5072 = vmatprep.subr.bf16.mxu0 0
    %5073 = vmatpush1.bf16.xpose.msra.mxu0 0
    %5074 = vmatprep.subr.bf16.mxu0 0
    %5075 = vmatpush1.bf16.xpose.msra.mxu0 0
    %5076 = vmatprep.subr.bf16.mxu0 0
    %5077 = vmatpush1.bf16.xpose.msra.mxu0 0
    %5078 = vmatprep.subr.bf16.mxu0 0
    %5079 = vmatpush1.bf16.xpose.msra.mxu0 0
    %5080 = vmatprep.subr.bf16.mxu0 0
    %5081 = vmatpush1.bf16.xpose.msra.mxu0 0
    %5082 = vmatprep.subr.bf16.mxu0 0
    %5083 = vmatpush1.bf16.xpose.msra.mxu0 0
    %5084 = vmatprep.subr.bf16.mxu0 0
    %5085 = vmatpush1.bf16.xpose.msra.mxu0 0
    %5086 = vmatprep.subr.bf16.mxu0 0
    %5087 = vmatpush1.bf16.xpose.msra.mxu0 0
    %5088 = vmatprep.subr.bf16.mxu0 0
    %5089 = vmatpush1.bf16.xpose.msra.mxu0 0
    %5090 = vmatprep.subr.bf16.mxu0 0
    %5091 = vmatpush1.bf16.xpose.msra.mxu0 0
    %5092 = vmatprep.subr.bf16.mxu0 0
    %5093 = vmatpush1.bf16.xpose.msra.mxu0 0
    %5094 = vmatprep.subr.bf16.mxu0 0
    %5095 = vmatpush1.bf16.xpose.msra.mxu0 0
    %5096 = vmatprep.subr.bf16.mxu0 0
    %5097 = vmatpush1.bf16.xpose.msra.mxu0 0
    %5098 = vmatprep.mubr.bf16.mxu0 0
    %5099 = vmatmul.mubr.bf16.gmra.mrb[0].mxu0 %v4663
    %v5100 = vpop.f32.mrb[0].mxu0
    %v5101 = vadd.f32 %v301, %v5100
    %v5102 = vpop.f32.mrb[0].mxu0
    %v5103 = vpop.f32.mrb[0].mxu0
    %v5104 = vadd.f32 %v302, %v5103
    %v5105 = vpop.f32.mrb[0].mxu0
    %5106 = vdwg.mxu0
    %5107 = vmatprep.subr.bf16.mxu0 0
    %5108 = vmatpush1.bf16.xpose.msra.mxu0 %v4679
    %5109 = vmatprep.subr.bf16.mxu0 0
    %5110 = vmatpush1.bf16.xpose.msra.mxu0 0
    %5111 = vmatprep.subr.bf16.mxu0 0
    %5112 = vmatpush1.bf16.xpose.msra.mxu0 0
    %5113 = vmatprep.subr.bf16.mxu0 0
    %5114 = vmatpush1.bf16.xpose.msra.mxu0 0
    %5115 = vmatprep.subr.bf16.mxu0 0
    %5116 = vmatpush1.bf16.xpose.msra.mxu0 0
    %5117 = vmatprep.subr.bf16.mxu0 0
    %5118 = vmatpush1.bf16.xpose.msra.mxu0 0
    %5119 = vmatprep.subr.bf16.mxu0 0
    %5120 = vmatpush1.bf16.xpose.msra.mxu0 0
    %5121 = vmatprep.subr.bf16.mxu0 0
    %5122 = vmatpush1.bf16.xpose.msra.mxu0 0
    %5123 = vmatprep.subr.bf16.mxu0 0
    %5124 = vmatpush1.bf16.xpose.msra.mxu0 0
    %5125 = vmatprep.subr.bf16.mxu0 0
    %5126 = vmatpush1.bf16.xpose.msra.mxu0 0
    %5127 = vmatprep.subr.bf16.mxu0 0
    %5128 = vmatpush1.bf16.xpose.msra.mxu0 0
    %5129 = vmatprep.subr.bf16.mxu0 0
    %5130 = vmatpush1.bf16.xpose.msra.mxu0 0
    %5131 = vmatprep.subr.bf16.mxu0 0
    %5132 = vmatpush1.bf16.xpose.msra.mxu0 0
    %5133 = vmatprep.subr.bf16.mxu0 0
    %5134 = vmatpush1.bf16.xpose.msra.mxu0 0
    %5135 = vmatprep.subr.bf16.mxu0 0
    %5136 = vmatpush1.bf16.xpose.msra.mxu0 0
    %5137 = vmatprep.subr.bf16.mxu0 0
    %5138 = vmatpush1.bf16.xpose.msra.mxu0 0
    %5139 = vmatprep.mubr.bf16.mxu0 0
    %5140 = vmatmul.mubr.bf16.gmra.mrb[0].mxu0 %v4675
    %v5141 = vpop.f32.mrb[0].mxu0
    %v5142 = vadd.f32 %v303, %v5141
    %v5143 = vpop.f32.mrb[0].mxu0
    %v5144 = vpop.f32.mrb[0].mxu0
    %v5145 = vadd.f32 %v304, %v5144
    %v5146 = vpop.f32.mrb[0].mxu0
    %5147 = vdwg.mxu0
    %5148 = vmatprep.subr.bf16.mxu0 0
    %5149 = vmatpush1.bf16.xpose.msra.mxu0 %v4691
    %5150 = vmatprep.subr.bf16.mxu0 0
    %5151 = vmatpush1.bf16.xpose.msra.mxu0 0
    %5152 = vmatprep.subr.bf16.mxu0 0
    %5153 = vmatpush1.bf16.xpose.msra.mxu0 0
    %5154 = vmatprep.subr.bf16.mxu0 0
    %5155 = vmatpush1.bf16.xpose.msra.mxu0 0
    %5156 = vmatprep.subr.bf16.mxu0 0
    %5157 = vmatpush1.bf16.xpose.msra.mxu0 0
    %5158 = vmatprep.subr.bf16.mxu0 0
    %5159 = vmatpush1.bf16.xpose.msra.mxu0 0
    %5160 = vmatprep.subr.bf16.mxu0 0
    %5161 = vmatpush1.bf16.xpose.msra.mxu0 0
    %5162 = vmatprep.subr.bf16.mxu0 0
    %5163 = vmatpush1.bf16.xpose.msra.mxu0 0
    %5164 = vmatprep.subr.bf16.mxu0 0
    %5165 = vmatpush1.bf16.xpose.msra.mxu0 0
    %5166 = vmatprep.subr.bf16.mxu0 0
    %5167 = vmatpush1.bf16.xpose.msra.mxu0 0
    %5168 = vmatprep.subr.bf16.mxu0 0
    %5169 = vmatpush1.bf16.xpose.msra.mxu0 0
    %5170 = vmatprep.subr.bf16.mxu0 0
    %5171 = vmatpush1.bf16.xpose.msra.mxu0 0
    %5172 = vmatprep.subr.bf16.mxu0 0
    %5173 = vmatpush1.bf16.xpose.msra.mxu0 0
    %5174 = vmatprep.subr.bf16.mxu0 0
    %5175 = vmatpush1.bf16.xpose.msra.mxu0 0
    %5176 = vmatprep.subr.bf16.mxu0 0
    %5177 = vmatpush1.bf16.xpose.msra.mxu0 0
    %5178 = vmatprep.subr.bf16.mxu0 0
    %5179 = vmatpush1.bf16.xpose.msra.mxu0 0
    %5180 = vmatprep.mubr.bf16.mxu0 0
    %5181 = vmatmul.mubr.bf16.gmra.mrb[0].mxu0 %v4687
    %v5182 = vpop.f32.mrb[0].mxu0
    %v5183 = vadd.f32 %v305, %v5182
    %v5184 = vpop.f32.mrb[0].mxu0
    %v5185 = vpop.f32.mrb[0].mxu0
    %v5186 = vadd.f32 %v306, %v5185
    %v5187 = vpop.f32.mrb[0].mxu0
    %5188 = vdwg.mxu0
    %5189 = vmatprep.subr.bf16.mxu0 0
    %5190 = vmatpush1.bf16.xpose.msra.mxu0 %v4656
    %5191 = vmatprep.subr.bf16.mxu0 0
    %5192 = vmatpush1.bf16.xpose.msra.mxu0 0
    %5193 = vmatprep.subr.bf16.mxu0 0
    %5194 = vmatpush1.bf16.xpose.msra.mxu0 0
    %5195 = vmatprep.subr.bf16.mxu0 0
    %5196 = vmatpush1.bf16.xpose.msra.mxu0 0
    %5197 = vmatprep.subr.bf16.mxu0 0
    %5198 = vmatpush1.bf16.xpose.msra.mxu0 0
    %5199 = vmatprep.subr.bf16.mxu0 0
    %5200 = vmatpush1.bf16.xpose.msra.mxu0 0
    %5201 = vmatprep.subr.bf16.mxu0 0
    %5202 = vmatpush1.bf16.xpose.msra.mxu0 0
    %5203 = vmatprep.subr.bf16.mxu0 0
    %5204 = vmatpush1.bf16.xpose.msra.mxu0 0
    %5205 = vmatprep.subr.bf16.mxu0 0
    %5206 = vmatpush1.bf16.xpose.msra.mxu0 0
    %5207 = vmatprep.subr.bf16.mxu0 0
    %5208 = vmatpush1.bf16.xpose.msra.mxu0 0
    %5209 = vmatprep.subr.bf16.mxu0 0
    %5210 = vmatpush1.bf16.xpose.msra.mxu0 0
    %5211 = vmatprep.subr.bf16.mxu0 0
    %5212 = vmatpush1.bf16.xpose.msra.mxu0 0
    %5213 = vmatprep.subr.bf16.mxu0 0
    %5214 = vmatpush1.bf16.xpose.msra.mxu0 0
    %5215 = vmatprep.subr.bf16.mxu0 0
    %5216 = vmatpush1.bf16.xpose.msra.mxu0 0
    %5217 = vmatprep.subr.bf16.mxu0 0
    %5218 = vmatpush1.bf16.xpose.msra.mxu0 0
    %5219 = vmatprep.subr.bf16.mxu0 0
    %5220 = vmatpush1.bf16.xpose.msra.mxu0 0
    %5221 = vmatprep.mubr.bf16.mxu0 0
    %5222 = vmatmul.mubr.bf16.gmra.mrb[0].mxu0 %v4652
    %v5223 = vpop.f32.mrb[0].mxu0
    %v5224 = vadd.f32 %v299, %v5223
    %v5225 = vpop.f32.mrb[0].mxu0
    %v5226 = vpop.f32.mrb[0].mxu0
    %v5227 = vadd.f32 %v300, %v5226
    %v5228 = vpop.f32.mrb[0].mxu0
    %5229 = vdwg.mxu0
    %5230 = vmatprep.subr.bf16.mxu0 0
    %5231 = vmatpush1.bf16.xpose.msra.mxu0 %v4668
    %5232 = vmatprep.subr.bf16.mxu0 0
    %5233 = vmatpush1.bf16.xpose.msra.mxu0 0
    %5234 = vmatprep.subr.bf16.mxu0 0
    %5235 = vmatpush1.bf16.xpose.msra.mxu0 0
    %5236 = vmatprep.subr.bf16.mxu0 0
    %5237 = vmatpush1.bf16.xpose.msra.mxu0 0
    %5238 = vmatprep.subr.bf16.mxu0 0
    %5239 = vmatpush1.bf16.xpose.msra.mxu0 0
    %5240 = vmatprep.subr.bf16.mxu0 0
    %5241 = vmatpush1.bf16.xpose.msra.mxu0 0
    %5242 = vmatprep.subr.bf16.mxu0 0
    %5243 = vmatpush1.bf16.xpose.msra.mxu0 0
    %5244 = vmatprep.subr.bf16.mxu0 0
    %5245 = vmatpush1.bf16.xpose.msra.mxu0 0
    %5246 = vmatprep.subr.bf16.mxu0 0
    %5247 = vmatpush1.bf16.xpose.msra.mxu0 0
    %5248 = vmatprep.subr.bf16.mxu0 0
    %5249 = vmatpush1.bf16.xpose.msra.mxu0 0
    %5250 = vmatprep.subr.bf16.mxu0 0
    %5251 = vmatpush1.bf16.xpose.msra.mxu0 0
    %5252 = vmatprep.subr.bf16.mxu0 0
    %5253 = vmatpush1.bf16.xpose.msra.mxu0 0
    %5254 = vmatprep.subr.bf16.mxu0 0
    %5255 = vmatpush1.bf16.xpose.msra.mxu0 0
    %5256 = vmatprep.subr.bf16.mxu0 0
    %5257 = vmatpush1.bf16.xpose.msra.mxu0 0
    %5258 = vmatprep.subr.bf16.mxu0 0
    %5259 = vmatpush1.bf16.xpose.msra.mxu0 0
    %5260 = vmatprep.subr.bf16.mxu0 0
    %5261 = vmatpush1.bf16.xpose.msra.mxu0 0
    %5262 = vmatprep.mubr.bf16.mxu0 0
    %5263 = vmatmul.mubr.bf16.gmra.mrb[0].mxu0 %v4664
    %v5264 = vpop.f32.mrb[0].mxu0
    %v5265 = vadd.f32 %v301, %v5264
    %v5266 = vpop.f32.mrb[0].mxu0
    %v5267 = vpop.f32.mrb[0].mxu0
    %v5268 = vadd.f32 %v302, %v5267
    %v5269 = vpop.f32.mrb[0].mxu0
    %5270 = vdwg.mxu0
    %5271 = vmatprep.subr.bf16.mxu0 0
    %5272 = vmatpush1.bf16.xpose.msra.mxu0 %v4680
    %5273 = vmatprep.subr.bf16.mxu0 0
    %5274 = vmatpush1.bf16.xpose.msra.mxu0 0
    %5275 = vmatprep.subr.bf16.mxu0 0
    %5276 = vmatpush1.bf16.xpose.msra.mxu0 0
    %5277 = vmatprep.subr.bf16.mxu0 0
    %5278 = vmatpush1.bf16.xpose.msra.mxu0 0
    %5279 = vmatprep.subr.bf16.mxu0 0
    %5280 = vmatpush1.bf16.xpose.msra.mxu0 0
    %5281 = vmatprep.subr.bf16.mxu0 0
    %5282 = vmatpush1.bf16.xpose.msra.mxu0 0
    %5283 = vmatprep.subr.bf16.mxu0 0
    %5284 = vmatpush1.bf16.xpose.msra.mxu0 0
    %5285 = vmatprep.subr.bf16.mxu0 0
    %5286 = vmatpush1.bf16.xpose.msra.mxu0 0
    %5287 = vmatprep.subr.bf16.mxu0 0
    %5288 = vmatpush1.bf16.xpose.msra.mxu0 0
    %5289 = vmatprep.subr.bf16.mxu0 0
    %5290 = vmatpush1.bf16.xpose.msra.mxu0 0
    %5291 = vmatprep.subr.bf16.mxu0 0
    %5292 = vmatpush1.bf16.xpose.msra.mxu0 0
    %5293 = vmatprep.subr.bf16.mxu0 0
    %5294 = vmatpush1.bf16.xpose.msra.mxu0 0
    %5295 = vmatprep.subr.bf16.mxu0 0
    %5296 = vmatpush1.bf16.xpose.msra.mxu0 0
    %5297 = vmatprep.subr.bf16.mxu0 0
    %5298 = vmatpush1.bf16.xpose.msra.mxu0 0
    %5299 = vmatprep.subr.bf16.mxu0 0
    %5300 = vmatpush1.bf16.xpose.msra.mxu0 0
    %5301 = vmatprep.subr.bf16.mxu0 0
    %5302 = vmatpush1.bf16.xpose.msra.mxu0 0
    %5303 = vmatprep.mubr.bf16.mxu0 0
    %5304 = vmatmul.mubr.bf16.gmra.mrb[0].mxu0 %v4676
    %v5305 = vpop.f32.mrb[0].mxu0
    %v5306 = vadd.f32 %v303, %v5305
    %v5307 = vpop.f32.mrb[0].mxu0
    %v5308 = vpop.f32.mrb[0].mxu0
    %v5309 = vadd.f32 %v304, %v5308
    %v5310 = vpop.f32.mrb[0].mxu0
    %5311 = vdwg.mxu0
    %5312 = vmatprep.subr.bf16.mxu0 0
    %5313 = vmatpush1.bf16.xpose.msra.mxu0 %v4692
    %5314 = vmatprep.subr.bf16.mxu0 0
    %5315 = vmatpush1.bf16.xpose.msra.mxu0 0
    %5316 = vmatprep.subr.bf16.mxu0 0
    %5317 = vmatpush1.bf16.xpose.msra.mxu0 0
    %5318 = vmatprep.subr.bf16.mxu0 0
    %5319 = vmatpush1.bf16.xpose.msra.mxu0 0
    %5320 = vmatprep.subr.bf16.mxu0 0
    %5321 = vmatpush1.bf16.xpose.msra.mxu0 0
    %5322 = vmatprep.subr.bf16.mxu0 0
    %5323 = vmatpush1.bf16.xpose.msra.mxu0 0
    %5324 = vmatprep.subr.bf16.mxu0 0
    %5325 = vmatpush1.bf16.xpose.msra.mxu0 0
    %5326 = vmatprep.subr.bf16.mxu0 0
    %5327 = vmatpush1.bf16.xpose.msra.mxu0 0
    %5328 = vmatprep.subr.bf16.mxu0 0
    %5329 = vmatpush1.bf16.xpose.msra.mxu0 0
    %5330 = vmatprep.subr.bf16.mxu0 0
    %5331 = vmatpush1.bf16.xpose.msra.mxu0 0
    %5332 = vmatprep.subr.bf16.mxu0 0
    %5333 = vmatpush1.bf16.xpose.msra.mxu0 0
    %5334 = vmatprep.subr.bf16.mxu0 0
    %5335 = vmatpush1.bf16.xpose.msra.mxu0 0
    %5336 = vmatprep.subr.bf16.mxu0 0
    %5337 = vmatpush1.bf16.xpose.msra.mxu0 0
    %5338 = vmatprep.subr.bf16.mxu0 0
    %5339 = vmatpush1.bf16.xpose.msra.mxu0 0
    %5340 = vmatprep.subr.bf16.mxu0 0
    %5341 = vmatpush1.bf16.xpose.msra.mxu0 0
    %5342 = vmatprep.subr.bf16.mxu0 0
    %5343 = vmatpush1.bf16.xpose.msra.mxu0 0
    %5344 = vmatprep.mubr.bf16.mxu0 0
    %5345 = vmatmul.mubr.bf16.gmra.mrb[0].mxu0 %v4688
    %v5346 = vpop.f32.mrb[0].mxu0
    %v5347 = vadd.f32 %v305, %v5346
    %v5348 = vpop.f32.mrb[0].mxu0
    %v5349 = vpop.f32.mrb[0].mxu0
    %v5350 = vadd.f32 %v306, %v5349
    %v5351 = vpop.f32.mrb[0].mxu0
    %5352 = vdwg.mxu0
    %v5353 = vsel %vm1826, %v4732, -inf
    %5354 = vmax.xlane.f32.xlu0 %v5353
    %v5355 = vpop.xlane.xlu0 %5354
    %v5356 = vsel %vm1826, %v4735, -inf
    %5357 = vmax.xlane.f32.xlu0 %v5356
    %v5358 = vpop.xlane.xlu0 %5357
    %v5359 = vsel %vm1826, %v4773, -inf
    %5360 = vmax.xlane.f32.xlu0 %v5359
    %v5361 = vpop.xlane.xlu0 %5360
    %v5362 = vsel %vm1826, %v4776, -inf
    %5363 = vmax.xlane.f32.xlu0 %v5362
    %v5364 = vpop.xlane.xlu0 %5363
    %v5365 = vsel %vm1826, %v4814, -inf
    %5366 = vmax.xlane.f32.xlu0 %v5365
    %v5367 = vpop.xlane.xlu0 %5366
    %v5368 = vsel %vm1826, %v4817, -inf
    %5369 = vmax.xlane.f32.xlu0 %v5368
    %v5370 = vpop.xlane.xlu0 %5369
    %v5371 = vsel %vm1826, %v4855, -inf
    %5372 = vmax.xlane.f32.xlu0 %v5371
    %v5373 = vpop.xlane.xlu0 %5372
    %v5374 = vsel %vm1826, %v4858, -inf
    %5375 = vmax.xlane.f32.xlu0 %v5374
    %v5376 = vpop.xlane.xlu0 %5375
    %v5377 = vsel %vm1826, %v4896, -inf
    %5378 = vmax.xlane.f32.xlu0 %v5377
    %v5379 = vpop.xlane.xlu0 %5378
    %v5380 = vsel %vm1826, %v4899, -inf
    %5381 = vmax.xlane.f32.xlu0 %v5380
    %v5382 = vpop.xlane.xlu0 %5381
    %v5383 = vsel %vm1826, %v4937, -inf
    %5384 = vmax.xlane.f32.xlu0 %v5383
    %v5385 = vpop.xlane.xlu0 %5384
    %v5386 = vsel %vm1826, %v4940, -inf
    %5387 = vmax.xlane.f32.xlu0 %v5386
    %v5388 = vpop.xlane.xlu0 %5387
    %v5389 = vsel %vm1826, %v4978, -inf
    %5390 = vmax.xlane.f32.xlu0 %v5389
    %v5391 = vpop.xlane.xlu0 %5390
    %v5392 = vsel %vm1826, %v4981, -inf
    %5393 = vmax.xlane.f32.xlu0 %v5392
    %v5394 = vpop.xlane.xlu0 %5393
    %v5395 = vsel %vm1826, %v5019, -inf
    %5396 = vmax.xlane.f32.xlu0 %v5395
    %v5397 = vpop.xlane.xlu0 %5396
    %v5398 = vsel %vm1826, %v5022, -inf
    %5399 = vmax.xlane.f32.xlu0 %v5398
    %v5400 = vpop.xlane.xlu0 %5399
    %v5401 = vsel %vm1826, %v5060, -inf
    %5402 = vmax.xlane.f32.xlu0 %v5401
    %v5403 = vpop.xlane.xlu0 %5402
    %v5404 = vsel %vm1826, %v5063, -inf
    %5405 = vmax.xlane.f32.xlu0 %v5404
    %v5406 = vpop.xlane.xlu0 %5405
    %v5407 = vsel %vm1826, %v5101, -inf
    %5408 = vmax.xlane.f32.xlu0 %v5407
    %v5409 = vpop.xlane.xlu0 %5408
    %v5410 = vsel %vm1826, %v5104, -inf
    %5411 = vmax.xlane.f32.xlu0 %v5410
    %v5412 = vpop.xlane.xlu0 %5411
    %v5413 = vsel %vm1826, %v5142, -inf
    %5414 = vmax.xlane.f32.xlu0 %v5413
    %v5415 = vpop.xlane.xlu0 %5414
    %v5416 = vsel %vm1826, %v5145, -inf
    %5417 = vmax.xlane.f32.xlu0 %v5416
    %v5418 = vpop.xlane.xlu0 %5417
    %v5419 = vsel %vm1826, %v5183, -inf
    %5420 = vmax.xlane.f32.xlu0 %v5419
    %v5421 = vpop.xlane.xlu0 %5420
    %v5422 = vsel %vm1826, %v5186, -inf
    %5423 = vmax.xlane.f32.xlu0 %v5422
    %v5424 = vpop.xlane.xlu0 %5423
    %v5425 = vsel %vm1826, %v5224, -inf
    %5426 = vmax.xlane.f32.xlu0 %v5425
    %v5427 = vpop.xlane.xlu0 %5426
    %v5428 = vsel %vm1826, %v5227, -inf
    %5429 = vmax.xlane.f32.xlu0 %v5428
    %v5430 = vpop.xlane.xlu0 %5429
    %v5431 = vsel %vm1826, %v5265, -inf
    %5432 = vmax.xlane.f32.xlu0 %v5431
    %v5433 = vpop.xlane.xlu0 %5432
    %v5434 = vsel %vm1826, %v5268, -inf
    %5435 = vmax.xlane.f32.xlu0 %v5434
    %v5436 = vpop.xlane.xlu0 %5435
    %v5437 = vsel %vm1826, %v5306, -inf
    %5438 = vmax.xlane.f32.xlu0 %v5437
    %v5439 = vpop.xlane.xlu0 %5438
    %v5440 = vsel %vm1826, %v5309, -inf
    %5441 = vmax.xlane.f32.xlu0 %v5440
    %v5442 = vpop.xlane.xlu0 %5441
    %v5443 = vsel %vm1826, %v5347, -inf
    %5444 = vmax.xlane.f32.xlu0 %v5443
    %v5445 = vpop.xlane.xlu0 %5444
    %v5446 = vsel %vm1826, %v5350, -inf
    %5447 = vmax.xlane.f32.xlu0 %v5446
    %v5448 = vpop.xlane.xlu0 %5447
    %v5449 = vsub.f32 %v4732, %v5355
    %v5450 = vsub.f32 %v4735, %v5358
    %v5451 = vsub.f32 %v4773, %v5361
    %v5452 = vsub.f32 %v4776, %v5364
    %v5453 = vsub.f32 %v4814, %v5367
    %v5454 = vsub.f32 %v4817, %v5370
    %v5455 = vsub.f32 %v4855, %v5373
    %v5456 = vsub.f32 %v4858, %v5376
    %v5457 = vsub.f32 %v4896, %v5379
    %v5458 = vsub.f32 %v4899, %v5382
    %v5459 = vsub.f32 %v4937, %v5385
    %v5460 = vsub.f32 %v4940, %v5388
    %v5461 = vsub.f32 %v4978, %v5391
    %v5462 = vsub.f32 %v4981, %v5394
    %v5463 = vsub.f32 %v5019, %v5397
    %v5464 = vsub.f32 %v5022, %v5400
    %v5465 = vsub.f32 %v5060, %v5403
    %v5466 = vsub.f32 %v5063, %v5406
    %v5467 = vsub.f32 %v5101, %v5409
    %v5468 = vsub.f32 %v5104, %v5412
    %v5469 = vsub.f32 %v5142, %v5415
    %v5470 = vsub.f32 %v5145, %v5418
    %v5471 = vsub.f32 %v5183, %v5421
    %v5472 = vsub.f32 %v5186, %v5424
    %v5473 = vsub.f32 %v5224, %v5427
    %v5474 = vsub.f32 %v5227, %v5430
    %v5475 = vsub.f32 %v5265, %v5433
    %v5476 = vsub.f32 %v5268, %v5436
    %v5477 = vsub.f32 %v5306, %v5439
    %v5478 = vsub.f32 %v5309, %v5442
    %v5479 = vsub.f32 %v5347, %v5445
    %v5480 = vsub.f32 %v5350, %v5448
    %v5481 = vmul.f32 %v5449, 1.442695
    %v5482 = vpow.pop %v5481
    %v5483 = vmul.f32 %v5450, 1.442695
    %v5484 = vpow.pop %v5483
    %v5485 = vmul.f32 %v5451, 1.442695
    %v5486 = vpow.pop %v5485
    %v5487 = vmul.f32 %v5452, 1.442695
    %v5488 = vpow.pop %v5487
    %v5489 = vmul.f32 %v5453, 1.442695
    %v5490 = vpow.pop %v5489
    %v5491 = vmul.f32 %v5454, 1.442695
    %v5492 = vpow.pop %v5491
    %v5493 = vmul.f32 %v5455, 1.442695
    %v5494 = vpow.pop %v5493
    %v5495 = vmul.f32 %v5456, 1.442695
    %v5496 = vpow.pop %v5495
    %v5497 = vmul.f32 %v5457, 1.442695
    %v5498 = vpow.pop %v5497
    %v5499 = vmul.f32 %v5458, 1.442695
    %v5500 = vpow.pop %v5499
    %v5501 = vmul.f32 %v5459, 1.442695
    %v5502 = vpow.pop %v5501
    %v5503 = vmul.f32 %v5460, 1.442695
    %v5504 = vpow.pop %v5503
    %v5505 = vmul.f32 %v5461, 1.442695
    %v5506 = vpow.pop %v5505
    %v5507 = vmul.f32 %v5462, 1.442695
    %v5508 = vpow.pop %v5507
    %v5509 = vmul.f32 %v5463, 1.442695
    %v5510 = vpow.pop %v5509
    %v5511 = vmul.f32 %v5464, 1.442695
    %v5512 = vpow.pop %v5511
    %v5513 = vmul.f32 %v5465, 1.442695
    %v5514 = vpow.pop %v5513
    %v5515 = vmul.f32 %v5466, 1.442695
    %v5516 = vpow.pop %v5515
    %v5517 = vmul.f32 %v5467, 1.442695
    %v5518 = vpow.pop %v5517
    %v5519 = vmul.f32 %v5468, 1.442695
    %v5520 = vpow.pop %v5519
    %v5521 = vmul.f32 %v5469, 1.442695
    %v5522 = vpow.pop %v5521
    %v5523 = vmul.f32 %v5470, 1.442695
    %v5524 = vpow.pop %v5523
    %v5525 = vmul.f32 %v5471, 1.442695
    %v5526 = vpow.pop %v5525
    %v5527 = vmul.f32 %v5472, 1.442695
    %v5528 = vpow.pop %v5527
    %v5529 = vmul.f32 %v5473, 1.442695
    %v5530 = vpow.pop %v5529
    %v5531 = vmul.f32 %v5474, 1.442695
    %v5532 = vpow.pop %v5531
    %v5533 = vmul.f32 %v5475, 1.442695
    %v5534 = vpow.pop %v5533
    %v5535 = vmul.f32 %v5476, 1.442695
    %v5536 = vpow.pop %v5535
    %v5537 = vmul.f32 %v5477, 1.442695
    %v5538 = vpow.pop %v5537
    %v5539 = vmul.f32 %v5478, 1.442695
    %v5540 = vpow.pop %v5539
    %v5541 = vmul.f32 %v5479, 1.442695
    %v5542 = vpow.pop %v5541
    %v5543 = vmul.f32 %v5480, 1.442695
    %v5544 = vpow.pop %v5543
    %v5545 = vsel %vm1826, %v5482, 0.0
    %5546 = vadd.xlane.f32.xlu0 %v5545
    %v5547 = vpop.xlane.xlu0 %5546
    %v5548 = vsel %vm1826, %v5484, 0.0
    %5549 = vadd.xlane.f32.xlu0 %v5548
    %v5550 = vpop.xlane.xlu0 %5549
    %v5551 = vsel %vm1826, %v5486, 0.0
    %5552 = vadd.xlane.f32.xlu0 %v5551
    %v5553 = vpop.xlane.xlu0 %5552
    %v5554 = vsel %vm1826, %v5488, 0.0
    %5555 = vadd.xlane.f32.xlu0 %v5554
    %v5556 = vpop.xlane.xlu0 %5555
    %v5557 = vsel %vm1826, %v5490, 0.0
    %5558 = vadd.xlane.f32.xlu0 %v5557
    %v5559 = vpop.xlane.xlu0 %5558
    %v5560 = vsel %vm1826, %v5492, 0.0
    %5561 = vadd.xlane.f32.xlu0 %v5560
    %v5562 = vpop.xlane.xlu0 %5561
    %v5563 = vsel %vm1826, %v5494, 0.0
    %5564 = vadd.xlane.f32.xlu0 %v5563
    %v5565 = vpop.xlane.xlu0 %5564
    %v5566 = vsel %vm1826, %v5496, 0.0
    %5567 = vadd.xlane.f32.xlu0 %v5566
    %v5568 = vpop.xlane.xlu0 %5567
    %v5569 = vsel %vm1826, %v5498, 0.0
    %5570 = vadd.xlane.f32.xlu0 %v5569
    %v5571 = vpop.xlane.xlu0 %5570
    %v5572 = vsel %vm1826, %v5500, 0.0
    %5573 = vadd.xlane.f32.xlu0 %v5572
    %v5574 = vpop.xlane.xlu0 %5573
    %v5575 = vsel %vm1826, %v5502, 0.0
    %5576 = vadd.xlane.f32.xlu0 %v5575
    %v5577 = vpop.xlane.xlu0 %5576
    %v5578 = vsel %vm1826, %v5504, 0.0
    %5579 = vadd.xlane.f32.xlu0 %v5578
    %v5580 = vpop.xlane.xlu0 %5579
    %v5581 = vsel %vm1826, %v5506, 0.0
    %5582 = vadd.xlane.f32.xlu0 %v5581
    %v5583 = vpop.xlane.xlu0 %5582
    %v5584 = vsel %vm1826, %v5508, 0.0
    %5585 = vadd.xlane.f32.xlu0 %v5584
    %v5586 = vpop.xlane.xlu0 %5585
    %v5587 = vsel %vm1826, %v5510, 0.0
    %5588 = vadd.xlane.f32.xlu0 %v5587
    %v5589 = vpop.xlane.xlu0 %5588
    %v5590 = vsel %vm1826, %v5512, 0.0
    %5591 = vadd.xlane.f32.xlu0 %v5590
    %v5592 = vpop.xlane.xlu0 %5591
    %v5593 = vsel %vm1826, %v5514, 0.0
    %5594 = vadd.xlane.f32.xlu0 %v5593
    %v5595 = vpop.xlane.xlu0 %5594
    %v5596 = vsel %vm1826, %v5516, 0.0
    %5597 = vadd.xlane.f32.xlu0 %v5596
    %v5598 = vpop.xlane.xlu0 %5597
    %v5599 = vsel %vm1826, %v5518, 0.0
    %5600 = vadd.xlane.f32.xlu0 %v5599
    %v5601 = vpop.xlane.xlu0 %5600
    %v5602 = vsel %vm1826, %v5520, 0.0
    %5603 = vadd.xlane.f32.xlu0 %v5602
    %v5604 = vpop.xlane.xlu0 %5603
    %v5605 = vsel %vm1826, %v5522, 0.0
    %5606 = vadd.xlane.f32.xlu0 %v5605
    %v5607 = vpop.xlane.xlu0 %5606
    %v5608 = vsel %vm1826, %v5524, 0.0
    %5609 = vadd.xlane.f32.xlu0 %v5608
    %v5610 = vpop.xlane.xlu0 %5609
    %v5611 = vsel %vm1826, %v5526, 0.0
    %5612 = vadd.xlane.f32.xlu0 %v5611
    %v5613 = vpop.xlane.xlu0 %5612
    %v5614 = vsel %vm1826, %v5528, 0.0
    %5615 = vadd.xlane.f32.xlu0 %v5614
    %v5616 = vpop.xlane.xlu0 %5615
    %v5617 = vsel %vm1826, %v5530, 0.0
    %5618 = vadd.xlane.f32.xlu0 %v5617
    %v5619 = vpop.xlane.xlu0 %5618
    %v5620 = vsel %vm1826, %v5532, 0.0
    %5621 = vadd.xlane.f32.xlu0 %v5620
    %v5622 = vpop.xlane.xlu0 %5621
    %v5623 = vsel %vm1826, %v5534, 0.0
    %5624 = vadd.xlane.f32.xlu0 %v5623
    %v5625 = vpop.xlane.xlu0 %5624
    %v5626 = vsel %vm1826, %v5536, 0.0
    %5627 = vadd.xlane.f32.xlu0 %v5626
    %v5628 = vpop.xlane.xlu0 %5627
    %v5629 = vsel %vm1826, %v5538, 0.0
    %5630 = vadd.xlane.f32.xlu0 %v5629
    %v5631 = vpop.xlane.xlu0 %5630
    %v5632 = vsel %vm1826, %v5540, 0.0
    %5633 = vadd.xlane.f32.xlu0 %v5632
    %v5634 = vpop.xlane.xlu0 %5633
    %v5635 = vsel %vm1826, %v5542, 0.0
    %5636 = vadd.xlane.f32.xlu0 %v5635
    %v5637 = vpop.xlane.xlu0 %5636
    %v5638 = vsel %vm1826, %v5544, 0.0
    %5639 = vadd.xlane.f32.xlu0 %v5638
    %v5640 = vpop.xlane.xlu0 %5639
    %v5641 = vpack.c.bf16 %v5484, %v5482
    %v5642 = vpack.c.bf16 %v5488, %v5486
    %v5643 = vpack.c.bf16 %v5492, %v5490
    %v5644 = vpack.c.bf16 %v5496, %v5494
    %v5645 = vpack.c.bf16 %v5500, %v5498
    %v5646 = vpack.c.bf16 %v5504, %v5502
    %v5647 = vpack.c.bf16 %v5508, %v5506
    %v5648 = vpack.c.bf16 %v5512, %v5510
    %v5649 = vpack.c.bf16 %v5516, %v5514
    %v5650 = vpack.c.bf16 %v5520, %v5518
    %v5651 = vpack.c.bf16 %v5524, %v5522
    %v5652 = vpack.c.bf16 %v5528, %v5526
    %v5653 = vpack.c.bf16 %v5532, %v5530
    %v5654 = vpack.c.bf16 %v5536, %v5534
    %v5655 = vpack.c.bf16 %v5540, %v5538
    %v5656 = vpack.c.bf16 %v5544, %v5542
    %v5658 = vsel %vm1826, %v5641, 0
    %5660 = vmatprep.subr.bf16.mxu0 0
    %5661 = vmatpush1.bf16.msra.mxu0 %v4657
    %5662 = vmatprep.subr.bf16.mxu0 0
    %5663 = vmatpush1.bf16.msra.mxu0 0
    %5664 = vmatprep.subr.bf16.mxu0 0
    %5665 = vmatpush1.bf16.msra.mxu0 0
    %5666 = vmatprep.subr.bf16.mxu0 0
    %5667 = vmatpush1.bf16.msra.mxu0 0
    %5668 = vmatprep.subr.bf16.mxu0 0
    %5669 = vmatpush1.bf16.msra.mxu0 0
    %5670 = vmatprep.subr.bf16.mxu0 0
    %5671 = vmatpush1.bf16.msra.mxu0 0
    %5672 = vmatprep.subr.bf16.mxu0 0
    %5673 = vmatpush1.bf16.msra.mxu0 0
    %5674 = vmatprep.subr.bf16.mxu0 0
    %5675 = vmatpush1.bf16.msra.mxu0 0
    %5676 = vmatprep.subr.bf16.mxu0 0
    %5677 = vmatpush1.bf16.msra.mxu0 0
    %5678 = vmatprep.subr.bf16.mxu0 0
    %5679 = vmatpush1.bf16.msra.mxu0 0
    %5680 = vmatprep.subr.bf16.mxu0 0
    %5681 = vmatpush1.bf16.msra.mxu0 0
    %5682 = vmatprep.subr.bf16.mxu0 0
    %5683 = vmatpush1.bf16.msra.mxu0 0
    %5684 = vmatprep.subr.bf16.mxu0 0
    %5685 = vmatpush1.bf16.msra.mxu0 0
    %5686 = vmatprep.subr.bf16.mxu0 0
    %5687 = vmatpush1.bf16.msra.mxu0 0
    %5688 = vmatprep.subr.bf16.mxu0 0
    %5689 = vmatpush1.bf16.msra.mxu0 0
    %5690 = vmatprep.subr.bf16.mxu0 0
    %5691 = vmatpush1.bf16.msra.mxu0 0
    %5692 = vmatprep.mubr.bf16.mxu0 0
    %5693 = vmatmul.mubr.bf16.gmra.mrb[0].mxu0 %v5658
    %v5694 = vpop.f32.mrb[0].mxu0
    %v5695 = vadd.f32 0.0, %v5694
    %v5696 = vpop.f32.mrb[0].mxu0
    %v5697 = vpop.f32.mrb[0].mxu0
    %v5698 = vadd.f32 0.0, %v5697
    %v5699 = vpop.f32.mrb[0].mxu0
    %5700 = vdwg.mxu0
    %v5702 = vsel %vm1826, %v5642, 0
    %5704 = vmatprep.subr.bf16.mxu0 0
    %5705 = vmatpush1.bf16.msra.mxu0 %v4669
    %5706 = vmatprep.subr.bf16.mxu0 0
    %5707 = vmatpush1.bf16.msra.mxu0 0
    %5708 = vmatprep.subr.bf16.mxu0 0
    %5709 = vmatpush1.bf16.msra.mxu0 0
    %5710 = vmatprep.subr.bf16.mxu0 0
    %5711 = vmatpush1.bf16.msra.mxu0 0
    %5712 = vmatprep.subr.bf16.mxu0 0
    %5713 = vmatpush1.bf16.msra.mxu0 0
    %5714 = vmatprep.subr.bf16.mxu0 0
    %5715 = vmatpush1.bf16.msra.mxu0 0
    %5716 = vmatprep.subr.bf16.mxu0 0
    %5717 = vmatpush1.bf16.msra.mxu0 0
    %5718 = vmatprep.subr.bf16.mxu0 0
    %5719 = vmatpush1.bf16.msra.mxu0 0
    %5720 = vmatprep.subr.bf16.mxu0 0
    %5721 = vmatpush1.bf16.msra.mxu0 0
    %5722 = vmatprep.subr.bf16.mxu0 0
    %5723 = vmatpush1.bf16.msra.mxu0 0
    %5724 = vmatprep.subr.bf16.mxu0 0
    %5725 = vmatpush1.bf16.msra.mxu0 0
    %5726 = vmatprep.subr.bf16.mxu0 0
    %5727 = vmatpush1.bf16.msra.mxu0 0
    %5728 = vmatprep.subr.bf16.mxu0 0
    %5729 = vmatpush1.bf16.msra.mxu0 0
    %5730 = vmatprep.subr.bf16.mxu0 0
    %5731 = vmatpush1.bf16.msra.mxu0 0
    %5732 = vmatprep.subr.bf16.mxu0 0
    %5733 = vmatpush1.bf16.msra.mxu0 0
    %5734 = vmatprep.subr.bf16.mxu0 0
    %5735 = vmatpush1.bf16.msra.mxu0 0
    %5736 = vmatprep.mubr.bf16.mxu0 0
    %5737 = vmatmul.mubr.bf16.gmra.mrb[0].mxu0 %v5702
    %v5738 = vpop.f32.mrb[0].mxu0
    %v5739 = vadd.f32 0.0, %v5738
    %v5740 = vpop.f32.mrb[0].mxu0
    %v5741 = vpop.f32.mrb[0].mxu0
    %v5742 = vadd.f32 0.0, %v5741
    %v5743 = vpop.f32.mrb[0].mxu0
    %5744 = vdwg.mxu0
    %v5746 = vsel %vm1826, %v5643, 0
    %5748 = vmatprep.subr.bf16.mxu0 0
    %5749 = vmatpush1.bf16.msra.mxu0 %v4681
    %5750 = vmatprep.subr.bf16.mxu0 0
    %5751 = vmatpush1.bf16.msra.mxu0 0
    %5752 = vmatprep.subr.bf16.mxu0 0
    %5753 = vmatpush1.bf16.msra.mxu0 0
    %5754 = vmatprep.subr.bf16.mxu0 0
    %5755 = vmatpush1.bf16.msra.mxu0 0
    %5756 = vmatprep.subr.bf16.mxu0 0
    %5757 = vmatpush1.bf16.msra.mxu0 0
    %5758 = vmatprep.subr.bf16.mxu0 0
    %5759 = vmatpush1.bf16.msra.mxu0 0
    %5760 = vmatprep.subr.bf16.mxu0 0
    %5761 = vmatpush1.bf16.msra.mxu0 0
    %5762 = vmatprep.subr.bf16.mxu0 0
    %5763 = vmatpush1.bf16.msra.mxu0 0
    %5764 = vmatprep.subr.bf16.mxu0 0
    %5765 = vmatpush1.bf16.msra.mxu0 0
    %5766 = vmatprep.subr.bf16.mxu0 0
    %5767 = vmatpush1.bf16.msra.mxu0 0
    %5768 = vmatprep.subr.bf16.mxu0 0
    %5769 = vmatpush1.bf16.msra.mxu0 0
    %5770 = vmatprep.subr.bf16.mxu0 0
    %5771 = vmatpush1.bf16.msra.mxu0 0
    %5772 = vmatprep.subr.bf16.mxu0 0
    %5773 = vmatpush1.bf16.msra.mxu0 0
    %5774 = vmatprep.subr.bf16.mxu0 0
    %5775 = vmatpush1.bf16.msra.mxu0 0
    %5776 = vmatprep.subr.bf16.mxu0 0
    %5777 = vmatpush1.bf16.msra.mxu0 0
    %5778 = vmatprep.subr.bf16.mxu0 0
    %5779 = vmatpush1.bf16.msra.mxu0 0
    %5780 = vmatprep.mubr.bf16.mxu0 0
    %5781 = vmatmul.mubr.bf16.gmra.mrb[0].mxu0 %v5746
    %v5782 = vpop.f32.mrb[0].mxu0
    %v5783 = vadd.f32 0.0, %v5782
    %v5784 = vpop.f32.mrb[0].mxu0
    %v5785 = vpop.f32.mrb[0].mxu0
    %v5786 = vadd.f32 0.0, %v5785
    %v5787 = vpop.f32.mrb[0].mxu0
    %5788 = vdwg.mxu0
    %v5790 = vsel %vm1826, %v5644, 0
    %5792 = vmatprep.subr.bf16.mxu0 0
    %5793 = vmatpush1.bf16.msra.mxu0 %v4693
    %5794 = vmatprep.subr.bf16.mxu0 0
    %5795 = vmatpush1.bf16.msra.mxu0 0
    %5796 = vmatprep.subr.bf16.mxu0 0
    %5797 = vmatpush1.bf16.msra.mxu0 0
    %5798 = vmatprep.subr.bf16.mxu0 0
    %5799 = vmatpush1.bf16.msra.mxu0 0
    %5800 = vmatprep.subr.bf16.mxu0 0
    %5801 = vmatpush1.bf16.msra.mxu0 0
    %5802 = vmatprep.subr.bf16.mxu0 0
    %5803 = vmatpush1.bf16.msra.mxu0 0
    %5804 = vmatprep.subr.bf16.mxu0 0
    %5805 = vmatpush1.bf16.msra.mxu0 0
    %5806 = vmatprep.subr.bf16.mxu0 0
    %5807 = vmatpush1.bf16.msra.mxu0 0
    %5808 = vmatprep.subr.bf16.mxu0 0
    %5809 = vmatpush1.bf16.msra.mxu0 0
    %5810 = vmatprep.subr.bf16.mxu0 0
    %5811 = vmatpush1.bf16.msra.mxu0 0
    %5812 = vmatprep.subr.bf16.mxu0 0
    %5813 = vmatpush1.bf16.msra.mxu0 0
    %5814 = vmatprep.subr.bf16.mxu0 0
    %5815 = vmatpush1.bf16.msra.mxu0 0
    %5816 = vmatprep.subr.bf16.mxu0 0
    %5817 = vmatpush1.bf16.msra.mxu0 0
    %5818 = vmatprep.subr.bf16.mxu0 0
    %5819 = vmatpush1.bf16.msra.mxu0 0
    %5820 = vmatprep.subr.bf16.mxu0 0
    %5821 = vmatpush1.bf16.msra.mxu0 0
    %5822 = vmatprep.subr.bf16.mxu0 0
    %5823 = vmatpush1.bf16.msra.mxu0 0
    %5824 = vmatprep.mubr.bf16.mxu0 0
    %5825 = vmatmul.mubr.bf16.gmra.mrb[0].mxu0 %v5790
    %v5826 = vpop.f32.mrb[0].mxu0
    %v5827 = vadd.f32 0.0, %v5826
    %v5828 = vpop.f32.mrb[0].mxu0
    %v5829 = vpop.f32.mrb[0].mxu0
    %v5830 = vadd.f32 0.0, %v5829
    %v5831 = vpop.f32.mrb[0].mxu0
    %5832 = vdwg.mxu0
    %v5834 = vsel %vm1826, %v5645, 0
    %5836 = vmatprep.subr.bf16.mxu0 0
    %5837 = vmatpush1.bf16.msra.mxu0 %v4658
    %5838 = vmatprep.subr.bf16.mxu0 0
    %5839 = vmatpush1.bf16.msra.mxu0 0
    %5840 = vmatprep.subr.bf16.mxu0 0
    %5841 = vmatpush1.bf16.msra.mxu0 0
    %5842 = vmatprep.subr.bf16.mxu0 0
    %5843 = vmatpush1.bf16.msra.mxu0 0
    %5844 = vmatprep.subr.bf16.mxu0 0
    %5845 = vmatpush1.bf16.msra.mxu0 0
    %5846 = vmatprep.subr.bf16.mxu0 0
    %5847 = vmatpush1.bf16.msra.mxu0 0
    %5848 = vmatprep.subr.bf16.mxu0 0
    %5849 = vmatpush1.bf16.msra.mxu0 0
    %5850 = vmatprep.subr.bf16.mxu0 0
    %5851 = vmatpush1.bf16.msra.mxu0 0
    %5852 = vmatprep.subr.bf16.mxu0 0
    %5853 = vmatpush1.bf16.msra.mxu0 0
    %5854 = vmatprep.subr.bf16.mxu0 0
    %5855 = vmatpush1.bf16.msra.mxu0 0
    %5856 = vmatprep.subr.bf16.mxu0 0
    %5857 = vmatpush1.bf16.msra.mxu0 0
    %5858 = vmatprep.subr.bf16.mxu0 0
    %5859 = vmatpush1.bf16.msra.mxu0 0
    %5860 = vmatprep.subr.bf16.mxu0 0
    %5861 = vmatpush1.bf16.msra.mxu0 0
    %5862 = vmatprep.subr.bf16.mxu0 0
    %5863 = vmatpush1.bf16.msra.mxu0 0
    %5864 = vmatprep.subr.bf16.mxu0 0
    %5865 = vmatpush1.bf16.msra.mxu0 0
    %5866 = vmatprep.subr.bf16.mxu0 0
    %5867 = vmatpush1.bf16.msra.mxu0 0
    %5868 = vmatprep.mubr.bf16.mxu0 0
    %5869 = vmatmul.mubr.bf16.gmra.mrb[0].mxu0 %v5834
    %v5870 = vpop.f32.mrb[0].mxu0
    %v5871 = vadd.f32 0.0, %v5870
    %v5872 = vpop.f32.mrb[0].mxu0
    %v5873 = vpop.f32.mrb[0].mxu0
    %v5874 = vadd.f32 0.0, %v5873
    %v5875 = vpop.f32.mrb[0].mxu0
    %5876 = vdwg.mxu0
    %v5878 = vsel %vm1826, %v5646, 0
    %5880 = vmatprep.subr.bf16.mxu0 0
    %5881 = vmatpush1.bf16.msra.mxu0 %v4670
    %5882 = vmatprep.subr.bf16.mxu0 0
    %5883 = vmatpush1.bf16.msra.mxu0 0
    %5884 = vmatprep.subr.bf16.mxu0 0
    %5885 = vmatpush1.bf16.msra.mxu0 0
    %5886 = vmatprep.subr.bf16.mxu0 0
    %5887 = vmatpush1.bf16.msra.mxu0 0
    %5888 = vmatprep.subr.bf16.mxu0 0
    %5889 = vmatpush1.bf16.msra.mxu0 0
    %5890 = vmatprep.subr.bf16.mxu0 0
    %5891 = vmatpush1.bf16.msra.mxu0 0
    %5892 = vmatprep.subr.bf16.mxu0 0
    %5893 = vmatpush1.bf16.msra.mxu0 0
    %5894 = vmatprep.subr.bf16.mxu0 0
    %5895 = vmatpush1.bf16.msra.mxu0 0
    %5896 = vmatprep.subr.bf16.mxu0 0
    %5897 = vmatpush1.bf16.msra.mxu0 0
    %5898 = vmatprep.subr.bf16.mxu0 0
    %5899 = vmatpush1.bf16.msra.mxu0 0
    %5900 = vmatprep.subr.bf16.mxu0 0
    %5901 = vmatpush1.bf16.msra.mxu0 0
    %5902 = vmatprep.subr.bf16.mxu0 0
    %5903 = vmatpush1.bf16.msra.mxu0 0
    %5904 = vmatprep.subr.bf16.mxu0 0
    %5905 = vmatpush1.bf16.msra.mxu0 0
    %5906 = vmatprep.subr.bf16.mxu0 0
    %5907 = vmatpush1.bf16.msra.mxu0 0
    %5908 = vmatprep.subr.bf16.mxu0 0
    %5909 = vmatpush1.bf16.msra.mxu0 0
    %5910 = vmatprep.subr.bf16.mxu0 0
    %5911 = vmatpush1.bf16.msra.mxu0 0
    %5912 = vmatprep.mubr.bf16.mxu0 0
    %5913 = vmatmul.mubr.bf16.gmra.mrb[0].mxu0 %v5878
    %v5914 = vpop.f32.mrb[0].mxu0
    %v5915 = vadd.f32 0.0, %v5914
    %v5916 = vpop.f32.mrb[0].mxu0
    %v5917 = vpop.f32.mrb[0].mxu0
    %v5918 = vadd.f32 0.0, %v5917
    %v5919 = vpop.f32.mrb[0].mxu0
    %5920 = vdwg.mxu0
    %v5922 = vsel %vm1826, %v5647, 0
    %5924 = vmatprep.subr.bf16.mxu0 0
    %5925 = vmatpush1.bf16.msra.mxu0 %v4682
    %5926 = vmatprep.subr.bf16.mxu0 0
    %5927 = vmatpush1.bf16.msra.mxu0 0
    %5928 = vmatprep.subr.bf16.mxu0 0
    %5929 = vmatpush1.bf16.msra.mxu0 0
    %5930 = vmatprep.subr.bf16.mxu0 0
    %5931 = vmatpush1.bf16.msra.mxu0 0
    %5932 = vmatprep.subr.bf16.mxu0 0
    %5933 = vmatpush1.bf16.msra.mxu0 0
    %5934 = vmatprep.subr.bf16.mxu0 0
    %5935 = vmatpush1.bf16.msra.mxu0 0
    %5936 = vmatprep.subr.bf16.mxu0 0
    %5937 = vmatpush1.bf16.msra.mxu0 0
    %5938 = vmatprep.subr.bf16.mxu0 0
    %5939 = vmatpush1.bf16.msra.mxu0 0
    %5940 = vmatprep.subr.bf16.mxu0 0
    %5941 = vmatpush1.bf16.msra.mxu0 0
    %5942 = vmatprep.subr.bf16.mxu0 0
    %5943 = vmatpush1.bf16.msra.mxu0 0
    %5944 = vmatprep.subr.bf16.mxu0 0
    %5945 = vmatpush1.bf16.msra.mxu0 0
    %5946 = vmatprep.subr.bf16.mxu0 0
    %5947 = vmatpush1.bf16.msra.mxu0 0
    %5948 = vmatprep.subr.bf16.mxu0 0
    %5949 = vmatpush1.bf16.msra.mxu0 0
    %5950 = vmatprep.subr.bf16.mxu0 0
    %5951 = vmatpush1.bf16.msra.mxu0 0
    %5952 = vmatprep.subr.bf16.mxu0 0
    %5953 = vmatpush1.bf16.msra.mxu0 0
    %5954 = vmatprep.subr.bf16.mxu0 0
    %5955 = vmatpush1.bf16.msra.mxu0 0
    %5956 = vmatprep.mubr.bf16.mxu0 0
    %5957 = vmatmul.mubr.bf16.gmra.mrb[0].mxu0 %v5922
    %v5958 = vpop.f32.mrb[0].mxu0
    %v5959 = vadd.f32 0.0, %v5958
    %v5960 = vpop.f32.mrb[0].mxu0
    %v5961 = vpop.f32.mrb[0].mxu0
    %v5962 = vadd.f32 0.0, %v5961
    %v5963 = vpop.f32.mrb[0].mxu0
    %5964 = vdwg.mxu0
    %v5966 = vsel %vm1826, %v5648, 0
    %5968 = vmatprep.subr.bf16.mxu0 0
    %5969 = vmatpush1.bf16.msra.mxu0 %v4694
    %5970 = vmatprep.subr.bf16.mxu0 0
    %5971 = vmatpush1.bf16.msra.mxu0 0
    %5972 = vmatprep.subr.bf16.mxu0 0
    %5973 = vmatpush1.bf16.msra.mxu0 0
    %5974 = vmatprep.subr.bf16.mxu0 0
    %5975 = vmatpush1.bf16.msra.mxu0 0
    %5976 = vmatprep.subr.bf16.mxu0 0
    %5977 = vmatpush1.bf16.msra.mxu0 0
    %5978 = vmatprep.subr.bf16.mxu0 0
    %5979 = vmatpush1.bf16.msra.mxu0 0
    %5980 = vmatprep.subr.bf16.mxu0 0
    %5981 = vmatpush1.bf16.msra.mxu0 0
    %5982 = vmatprep.subr.bf16.mxu0 0
    %5983 = vmatpush1.bf16.msra.mxu0 0
    %5984 = vmatprep.subr.bf16.mxu0 0
    %5985 = vmatpush1.bf16.msra.mxu0 0
    %5986 = vmatprep.subr.bf16.mxu0 0
    %5987 = vmatpush1.bf16.msra.mxu0 0
    %5988 = vmatprep.subr.bf16.mxu0 0
    %5989 = vmatpush1.bf16.msra.mxu0 0
    %5990 = vmatprep.subr.bf16.mxu0 0
    %5991 = vmatpush1.bf16.msra.mxu0 0
    %5992 = vmatprep.subr.bf16.mxu0 0
    %5993 = vmatpush1.bf16.msra.mxu0 0
    %5994 = vmatprep.subr.bf16.mxu0 0
    %5995 = vmatpush1.bf16.msra.mxu0 0
    %5996 = vmatprep.subr.bf16.mxu0 0
    %5997 = vmatpush1.bf16.msra.mxu0 0
    %5998 = vmatprep.subr.bf16.mxu0 0
    %5999 = vmatpush1.bf16.msra.mxu0 0
    %6000 = vmatprep.mubr.bf16.mxu0 0
    %6001 = vmatmul.mubr.bf16.gmra.mrb[0].mxu0 %v5966
    %v6002 = vpop.f32.mrb[0].mxu0
    %v6003 = vadd.f32 0.0, %v6002
    %v6004 = vpop.f32.mrb[0].mxu0
    %v6005 = vpop.f32.mrb[0].mxu0
    %v6006 = vadd.f32 0.0, %v6005
    %v6007 = vpop.f32.mrb[0].mxu0
    %6008 = vdwg.mxu0
    %v6010 = vsel %vm1826, %v5649, 0
    %6012 = vmatprep.subr.bf16.mxu0 0
    %6013 = vmatpush1.bf16.msra.mxu0 %v4659
    %6014 = vmatprep.subr.bf16.mxu0 0
    %6015 = vmatpush1.bf16.msra.mxu0 0
    %6016 = vmatprep.subr.bf16.mxu0 0
    %6017 = vmatpush1.bf16.msra.mxu0 0
    %6018 = vmatprep.subr.bf16.mxu0 0
    %6019 = vmatpush1.bf16.msra.mxu0 0
    %6020 = vmatprep.subr.bf16.mxu0 0
    %6021 = vmatpush1.bf16.msra.mxu0 0
    %6022 = vmatprep.subr.bf16.mxu0 0
    %6023 = vmatpush1.bf16.msra.mxu0 0
    %6024 = vmatprep.subr.bf16.mxu0 0
    %6025 = vmatpush1.bf16.msra.mxu0 0
    %6026 = vmatprep.subr.bf16.mxu0 0
    %6027 = vmatpush1.bf16.msra.mxu0 0
    %6028 = vmatprep.subr.bf16.mxu0 0
    %6029 = vmatpush1.bf16.msra.mxu0 0
    %6030 = vmatprep.subr.bf16.mxu0 0
    %6031 = vmatpush1.bf16.msra.mxu0 0
    %6032 = vmatprep.subr.bf16.mxu0 0
    %6033 = vmatpush1.bf16.msra.mxu0 0
    %6034 = vmatprep.subr.bf16.mxu0 0
    %6035 = vmatpush1.bf16.msra.mxu0 0
    %6036 = vmatprep.subr.bf16.mxu0 0
    %6037 = vmatpush1.bf16.msra.mxu0 0
    %6038 = vmatprep.subr.bf16.mxu0 0
    %6039 = vmatpush1.bf16.msra.mxu0 0
    %6040 = vmatprep.subr.bf16.mxu0 0
    %6041 = vmatpush1.bf16.msra.mxu0 0
    %6042 = vmatprep.subr.bf16.mxu0 0
    %6043 = vmatpush1.bf16.msra.mxu0 0
    %6044 = vmatprep.mubr.bf16.mxu0 0
    %6045 = vmatmul.mubr.bf16.gmra.mrb[0].mxu0 %v6010
    %v6046 = vpop.f32.mrb[0].mxu0
    %v6047 = vadd.f32 0.0, %v6046
    %v6048 = vpop.f32.mrb[0].mxu0
    %v6049 = vpop.f32.mrb[0].mxu0
    %v6050 = vadd.f32 0.0, %v6049
    %v6051 = vpop.f32.mrb[0].mxu0
    %6052 = vdwg.mxu0
    %v6054 = vsel %vm1826, %v5650, 0
    %6056 = vmatprep.subr.bf16.mxu0 0
    %6057 = vmatpush1.bf16.msra.mxu0 %v4671
    %6058 = vmatprep.subr.bf16.mxu0 0
    %6059 = vmatpush1.bf16.msra.mxu0 0
    %6060 = vmatprep.subr.bf16.mxu0 0
    %6061 = vmatpush1.bf16.msra.mxu0 0
    %6062 = vmatprep.subr.bf16.mxu0 0
    %6063 = vmatpush1.bf16.msra.mxu0 0
    %6064 = vmatprep.subr.bf16.mxu0 0
    %6065 = vmatpush1.bf16.msra.mxu0 0
    %6066 = vmatprep.subr.bf16.mxu0 0
    %6067 = vmatpush1.bf16.msra.mxu0 0
    %6068 = vmatprep.subr.bf16.mxu0 0
    %6069 = vmatpush1.bf16.msra.mxu0 0
    %6070 = vmatprep.subr.bf16.mxu0 0
    %6071 = vmatpush1.bf16.msra.mxu0 0
    %6072 = vmatprep.subr.bf16.mxu0 0
    %6073 = vmatpush1.bf16.msra.mxu0 0
    %6074 = vmatprep.subr.bf16.mxu0 0
    %6075 = vmatpush1.bf16.msra.mxu0 0
    %6076 = vmatprep.subr.bf16.mxu0 0
    %6077 = vmatpush1.bf16.msra.mxu0 0
    %6078 = vmatprep.subr.bf16.mxu0 0
    %6079 = vmatpush1.bf16.msra.mxu0 0
    %6080 = vmatprep.subr.bf16.mxu0 0
    %6081 = vmatpush1.bf16.msra.mxu0 0
    %6082 = vmatprep.subr.bf16.mxu0 0
    %6083 = vmatpush1.bf16.msra.mxu0 0
    %6084 = vmatprep.subr.bf16.mxu0 0
    %6085 = vmatpush1.bf16.msra.mxu0 0
    %6086 = vmatprep.subr.bf16.mxu0 0
    %6087 = vmatpush1.bf16.msra.mxu0 0
    %6088 = vmatprep.mubr.bf16.mxu0 0
    %6089 = vmatmul.mubr.bf16.gmra.mrb[0].mxu0 %v6054
    %v6090 = vpop.f32.mrb[0].mxu0
    %v6091 = vadd.f32 0.0, %v6090
    %v6092 = vpop.f32.mrb[0].mxu0
    %v6093 = vpop.f32.mrb[0].mxu0
    %v6094 = vadd.f32 0.0, %v6093
    %v6095 = vpop.f32.mrb[0].mxu0
    %6096 = vdwg.mxu0
    %v6098 = vsel %vm1826, %v5651, 0
    %6100 = vmatprep.subr.bf16.mxu0 0
    %6101 = vmatpush1.bf16.msra.mxu0 %v4683
    %6102 = vmatprep.subr.bf16.mxu0 0
    %6103 = vmatpush1.bf16.msra.mxu0 0
    %6104 = vmatprep.subr.bf16.mxu0 0
    %6105 = vmatpush1.bf16.msra.mxu0 0
    %6106 = vmatprep.subr.bf16.mxu0 0
    %6107 = vmatpush1.bf16.msra.mxu0 0
    %6108 = vmatprep.subr.bf16.mxu0 0
    %6109 = vmatpush1.bf16.msra.mxu0 0
    %6110 = vmatprep.subr.bf16.mxu0 0
    %6111 = vmatpush1.bf16.msra.mxu0 0
    %6112 = vmatprep.subr.bf16.mxu0 0
    %6113 = vmatpush1.bf16.msra.mxu0 0
    %6114 = vmatprep.subr.bf16.mxu0 0
    %6115 = vmatpush1.bf16.msra.mxu0 0
    %6116 = vmatprep.subr.bf16.mxu0 0
    %6117 = vmatpush1.bf16.msra.mxu0 0
    %6118 = vmatprep.subr.bf16.mxu0 0
    %6119 = vmatpush1.bf16.msra.mxu0 0
    %6120 = vmatprep.subr.bf16.mxu0 0
    %6121 = vmatpush1.bf16.msra.mxu0 0
    %6122 = vmatprep.subr.bf16.mxu0 0
    %6123 = vmatpush1.bf16.msra.mxu0 0
    %6124 = vmatprep.subr.bf16.mxu0 0
    %6125 = vmatpush1.bf16.msra.mxu0 0
    %6126 = vmatprep.subr.bf16.mxu0 0
    %6127 = vmatpush1.bf16.msra.mxu0 0
    %6128 = vmatprep.subr.bf16.mxu0 0
    %6129 = vmatpush1.bf16.msra.mxu0 0
    %6130 = vmatprep.subr.bf16.mxu0 0
    %6131 = vmatpush1.bf16.msra.mxu0 0
    %6132 = vmatprep.mubr.bf16.mxu0 0
    %6133 = vmatmul.mubr.bf16.gmra.mrb[0].mxu0 %v6098
    %v6134 = vpop.f32.mrb[0].mxu0
    %v6135 = vadd.f32 0.0, %v6134
    %v6136 = vpop.f32.mrb[0].mxu0
    %v6137 = vpop.f32.mrb[0].mxu0
    %v6138 = vadd.f32 0.0, %v6137
    %v6139 = vpop.f32.mrb[0].mxu0
    %6140 = vdwg.mxu0
    %v6142 = vsel %vm1826, %v5652, 0
    %6144 = vmatprep.subr.bf16.mxu0 0
    %6145 = vmatpush1.bf16.msra.mxu0 %v4695
    %6146 = vmatprep.subr.bf16.mxu0 0
    %6147 = vmatpush1.bf16.msra.mxu0 0
    %6148 = vmatprep.subr.bf16.mxu0 0
    %6149 = vmatpush1.bf16.msra.mxu0 0
    %6150 = vmatprep.subr.bf16.mxu0 0
    %6151 = vmatpush1.bf16.msra.mxu0 0
    %6152 = vmatprep.subr.bf16.mxu0 0
    %6153 = vmatpush1.bf16.msra.mxu0 0
    %6154 = vmatprep.subr.bf16.mxu0 0
    %6155 = vmatpush1.bf16.msra.mxu0 0
    %6156 = vmatprep.subr.bf16.mxu0 0
    %6157 = vmatpush1.bf16.msra.mxu0 0
    %6158 = vmatprep.subr.bf16.mxu0 0
    %6159 = vmatpush1.bf16.msra.mxu0 0
    %6160 = vmatprep.subr.bf16.mxu0 0
    %6161 = vmatpush1.bf16.msra.mxu0 0
    %6162 = vmatprep.subr.bf16.mxu0 0
    %6163 = vmatpush1.bf16.msra.mxu0 0
    %6164 = vmatprep.subr.bf16.mxu0 0
    %6165 = vmatpush1.bf16.msra.mxu0 0
    %6166 = vmatprep.subr.bf16.mxu0 0
    %6167 = vmatpush1.bf16.msra.mxu0 0
    %6168 = vmatprep.subr.bf16.mxu0 0
    %6169 = vmatpush1.bf16.msra.mxu0 0
    %6170 = vmatprep.subr.bf16.mxu0 0
    %6171 = vmatpush1.bf16.msra.mxu0 0
    %6172 = vmatprep.subr.bf16.mxu0 0
    %6173 = vmatpush1.bf16.msra.mxu0 0
    %6174 = vmatprep.subr.bf16.mxu0 0
    %6175 = vmatpush1.bf16.msra.mxu0 0
    %6176 = vmatprep.mubr.bf16.mxu0 0
    %6177 = vmatmul.mubr.bf16.gmra.mrb[0].mxu0 %v6142
    %v6178 = vpop.f32.mrb[0].mxu0
    %v6179 = vadd.f32 0.0, %v6178
    %v6180 = vpop.f32.mrb[0].mxu0
    %v6181 = vpop.f32.mrb[0].mxu0
    %v6182 = vadd.f32 0.0, %v6181
    %v6183 = vpop.f32.mrb[0].mxu0
    %6184 = vdwg.mxu0
    %v6186 = vsel %vm1826, %v5653, 0
    %6188 = vmatprep.subr.bf16.mxu0 0
    %6189 = vmatpush1.bf16.msra.mxu0 %v4660
    %6190 = vmatprep.subr.bf16.mxu0 0
    %6191 = vmatpush1.bf16.msra.mxu0 0
    %6192 = vmatprep.subr.bf16.mxu0 0
    %6193 = vmatpush1.bf16.msra.mxu0 0
    %6194 = vmatprep.subr.bf16.mxu0 0
    %6195 = vmatpush1.bf16.msra.mxu0 0
    %6196 = vmatprep.subr.bf16.mxu0 0
    %6197 = vmatpush1.bf16.msra.mxu0 0
    %6198 = vmatprep.subr.bf16.mxu0 0
    %6199 = vmatpush1.bf16.msra.mxu0 0
    %6200 = vmatprep.subr.bf16.mxu0 0
    %6201 = vmatpush1.bf16.msra.mxu0 0
    %6202 = vmatprep.subr.bf16.mxu0 0
    %6203 = vmatpush1.bf16.msra.mxu0 0
    %6204 = vmatprep.subr.bf16.mxu0 0
    %6205 = vmatpush1.bf16.msra.mxu0 0
    %6206 = vmatprep.subr.bf16.mxu0 0
    %6207 = vmatpush1.bf16.msra.mxu0 0
    %6208 = vmatprep.subr.bf16.mxu0 0
    %6209 = vmatpush1.bf16.msra.mxu0 0
    %6210 = vmatprep.subr.bf16.mxu0 0
    %6211 = vmatpush1.bf16.msra.mxu0 0
    %6212 = vmatprep.subr.bf16.mxu0 0
    %6213 = vmatpush1.bf16.msra.mxu0 0
    %6214 = vmatprep.subr.bf16.mxu0 0
    %6215 = vmatpush1.bf16.msra.mxu0 0
    %6216 = vmatprep.subr.bf16.mxu0 0
    %6217 = vmatpush1.bf16.msra.mxu0 0
    %6218 = vmatprep.subr.bf16.mxu0 0
    %6219 = vmatpush1.bf16.msra.mxu0 0
    %6220 = vmatprep.mubr.bf16.mxu0 0
    %6221 = vmatmul.mubr.bf16.gmra.mrb[0].mxu0 %v6186
    %v6222 = vpop.f32.mrb[0].mxu0
    %v6223 = vadd.f32 0.0, %v6222
    %v6224 = vpop.f32.mrb[0].mxu0
    %v6225 = vpop.f32.mrb[0].mxu0
    %v6226 = vadd.f32 0.0, %v6225
    %v6227 = vpop.f32.mrb[0].mxu0
    %6228 = vdwg.mxu0
    %v6230 = vsel %vm1826, %v5654, 0
    %6232 = vmatprep.subr.bf16.mxu0 0
    %6233 = vmatpush1.bf16.msra.mxu0 %v4672
    %6234 = vmatprep.subr.bf16.mxu0 0
    %6235 = vmatpush1.bf16.msra.mxu0 0
    %6236 = vmatprep.subr.bf16.mxu0 0
    %6237 = vmatpush1.bf16.msra.mxu0 0
    %6238 = vmatprep.subr.bf16.mxu0 0
    %6239 = vmatpush1.bf16.msra.mxu0 0
    %6240 = vmatprep.subr.bf16.mxu0 0
    %6241 = vmatpush1.bf16.msra.mxu0 0
    %6242 = vmatprep.subr.bf16.mxu0 0
    %6243 = vmatpush1.bf16.msra.mxu0 0
    %6244 = vmatprep.subr.bf16.mxu0 0
    %6245 = vmatpush1.bf16.msra.mxu0 0
    %6246 = vmatprep.subr.bf16.mxu0 0
    %6247 = vmatpush1.bf16.msra.mxu0 0
    %6248 = vmatprep.subr.bf16.mxu0 0
    %6249 = vmatpush1.bf16.msra.mxu0 0
    %6250 = vmatprep.subr.bf16.mxu0 0
    %6251 = vmatpush1.bf16.msra.mxu0 0
    %6252 = vmatprep.subr.bf16.mxu0 0
    %6253 = vmatpush1.bf16.msra.mxu0 0
    %6254 = vmatprep.subr.bf16.mxu0 0
    %6255 = vmatpush1.bf16.msra.mxu0 0
    %6256 = vmatprep.subr.bf16.mxu0 0
    %6257 = vmatpush1.bf16.msra.mxu0 0
    %6258 = vmatprep.subr.bf16.mxu0 0
    %6259 = vmatpush1.bf16.msra.mxu0 0
    %6260 = vmatprep.subr.bf16.mxu0 0
    %6261 = vmatpush1.bf16.msra.mxu0 0
    %6262 = vmatprep.subr.bf16.mxu0 0
    %6263 = vmatpush1.bf16.msra.mxu0 0
    %6264 = vmatprep.mubr.bf16.mxu0 0
    %6265 = vmatmul.mubr.bf16.gmra.mrb[0].mxu0 %v6230
    %v6266 = vpop.f32.mrb[0].mxu0
    %v6267 = vadd.f32 0.0, %v6266
    %v6268 = vpop.f32.mrb[0].mxu0
    %v6269 = vpop.f32.mrb[0].mxu0
    %v6270 = vadd.f32 0.0, %v6269
    %v6271 = vpop.f32.mrb[0].mxu0
    %6272 = vdwg.mxu0
    %v6274 = vsel %vm1826, %v5655, 0
    %6276 = vmatprep.subr.bf16.mxu0 0
    %6277 = vmatpush1.bf16.msra.mxu0 %v4684
    %6278 = vmatprep.subr.bf16.mxu0 0
    %6279 = vmatpush1.bf16.msra.mxu0 0
    %6280 = vmatprep.subr.bf16.mxu0 0
    %6281 = vmatpush1.bf16.msra.mxu0 0
    %6282 = vmatprep.subr.bf16.mxu0 0
    %6283 = vmatpush1.bf16.msra.mxu0 0
    %6284 = vmatprep.subr.bf16.mxu0 0
    %6285 = vmatpush1.bf16.msra.mxu0 0
    %6286 = vmatprep.subr.bf16.mxu0 0
    %6287 = vmatpush1.bf16.msra.mxu0 0
    %6288 = vmatprep.subr.bf16.mxu0 0
    %6289 = vmatpush1.bf16.msra.mxu0 0
    %6290 = vmatprep.subr.bf16.mxu0 0
    %6291 = vmatpush1.bf16.msra.mxu0 0
    %6292 = vmatprep.subr.bf16.mxu0 0
    %6293 = vmatpush1.bf16.msra.mxu0 0
    %6294 = vmatprep.subr.bf16.mxu0 0
    %6295 = vmatpush1.bf16.msra.mxu0 0
    %6296 = vmatprep.subr.bf16.mxu0 0
    %6297 = vmatpush1.bf16.msra.mxu0 0
    %6298 = vmatprep.subr.bf16.mxu0 0
    %6299 = vmatpush1.bf16.msra.mxu0 0
    %6300 = vmatprep.subr.bf16.mxu0 0
    %6301 = vmatpush1.bf16.msra.mxu0 0
    %6302 = vmatprep.subr.bf16.mxu0 0
    %6303 = vmatpush1.bf16.msra.mxu0 0
    %6304 = vmatprep.subr.bf16.mxu0 0
    %6305 = vmatpush1.bf16.msra.mxu0 0
    %6306 = vmatprep.subr.bf16.mxu0 0
    %6307 = vmatpush1.bf16.msra.mxu0 0
    %6308 = vmatprep.mubr.bf16.mxu0 0
    %6309 = vmatmul.mubr.bf16.gmra.mrb[0].mxu0 %v6274
    %v6310 = vpop.f32.mrb[0].mxu0
    %v6311 = vadd.f32 0.0, %v6310
    %v6312 = vpop.f32.mrb[0].mxu0
    %v6313 = vpop.f32.mrb[0].mxu0
    %v6314 = vadd.f32 0.0, %v6313
    %v6315 = vpop.f32.mrb[0].mxu0
    %6316 = vdwg.mxu0
    %v6318 = vsel %vm1826, %v5656, 0
    %6320 = vmatprep.subr.bf16.mxu0 0
    %6321 = vmatpush1.bf16.msra.mxu0 %v4696
    %6322 = vmatprep.subr.bf16.mxu0 0
    %6323 = vmatpush1.bf16.msra.mxu0 0
    %6324 = vmatprep.subr.bf16.mxu0 0
    %6325 = vmatpush1.bf16.msra.mxu0 0
    %6326 = vmatprep.subr.bf16.mxu0 0
    %6327 = vmatpush1.bf16.msra.mxu0 0
    %6328 = vmatprep.subr.bf16.mxu0 0
    %6329 = vmatpush1.bf16.msra.mxu0 0
    %6330 = vmatprep.subr.bf16.mxu0 0
    %6331 = vmatpush1.bf16.msra.mxu0 0
    %6332 = vmatprep.subr.bf16.mxu0 0
    %6333 = vmatpush1.bf16.msra.mxu0 0
    %6334 = vmatprep.subr.bf16.mxu0 0
    %6335 = vmatpush1.bf16.msra.mxu0 0
    %6336 = vmatprep.subr.bf16.mxu0 0
    %6337 = vmatpush1.bf16.msra.mxu0 0
    %6338 = vmatprep.subr.bf16.mxu0 0
    %6339 = vmatpush1.bf16.msra.mxu0 0
    %6340 = vmatprep.subr.bf16.mxu0 0
    %6341 = vmatpush1.bf16.msra.mxu0 0
    %6342 = vmatprep.subr.bf16.mxu0 0
    %6343 = vmatpush1.bf16.msra.mxu0 0
    %6344 = vmatprep.subr.bf16.mxu0 0
    %6345 = vmatpush1.bf16.msra.mxu0 0
    %6346 = vmatprep.subr.bf16.mxu0 0
    %6347 = vmatpush1.bf16.msra.mxu0 0
    %6348 = vmatprep.subr.bf16.mxu0 0
    %6349 = vmatpush1.bf16.msra.mxu0 0
    %6350 = vmatprep.subr.bf16.mxu0 0
    %6351 = vmatpush1.bf16.msra.mxu0 0
    %6352 = vmatprep.mubr.bf16.mxu0 0
    %6353 = vmatmul.mubr.bf16.gmra.mrb[0].mxu0 %v6318
    %v6354 = vpop.f32.mrb[0].mxu0
    %v6355 = vadd.f32 0.0, %v6354
    %v6356 = vpop.f32.mrb[0].mxu0
    %v6357 = vpop.f32.mrb[0].mxu0
    %v6358 = vadd.f32 0.0, %v6357
    %v6359 = vpop.f32.mrb[0].mxu0
    %6360 = vdwg.mxu0
    %v6361 = vrcp.pop %v5547
    %v6362 = vrcp.pop %v5550
    %v6363 = vrcp.pop %v5553
    %v6364 = vrcp.pop %v5556
    %v6365 = vrcp.pop %v5559
    %v6366 = vrcp.pop %v5562
    %v6367 = vrcp.pop %v5565
    %v6368 = vrcp.pop %v5568
    %v6369 = vrcp.pop %v5571
    %v6370 = vrcp.pop %v5574
    %v6371 = vrcp.pop %v5577
    %v6372 = vrcp.pop %v5580
    %v6373 = vrcp.pop %v5583
    %v6374 = vrcp.pop %v5586
    %v6375 = vrcp.pop %v5589
    %v6376 = vrcp.pop %v5592
    %v6377 = vrcp.pop %v5595
    %v6378 = vrcp.pop %v5598
    %v6379 = vrcp.pop %v5601
    %v6380 = vrcp.pop %v5604
    %v6381 = vrcp.pop %v5607
    %v6382 = vrcp.pop %v5610
    %v6383 = vrcp.pop %v5613
    %v6384 = vrcp.pop %v5616
    %v6385 = vrcp.pop %v5619
    %v6386 = vrcp.pop %v5622
    %v6387 = vrcp.pop %v5625
    %v6388 = vrcp.pop %v5628
    %v6389 = vrcp.pop %v5631
    %v6390 = vrcp.pop %v5634
    %v6391 = vrcp.pop %v5637
    %v6392 = vrcp.pop %v5640
    %v6393 = vmul.f32 %v5695, %v6361
    %v6394 = vmul.f32 %v5698, %v6362
    %v6395 = vmul.f32 %v5739, %v6363
    %v6396 = vmul.f32 %v5742, %v6364
    %v6397 = vmul.f32 %v5783, %v6365
    %v6398 = vmul.f32 %v5786, %v6366
    %v6399 = vmul.f32 %v5827, %v6367
    %v6400 = vmul.f32 %v5830, %v6368
    %v6401 = vmul.f32 %v5871, %v6369
    %v6402 = vmul.f32 %v5874, %v6370
    %v6403 = vmul.f32 %v5915, %v6371
    %v6404 = vmul.f32 %v5918, %v6372
    %v6405 = vmul.f32 %v5959, %v6373
    %v6406 = vmul.f32 %v5962, %v6374
    %v6407 = vmul.f32 %v6003, %v6375
    %v6408 = vmul.f32 %v6006, %v6376
    %v6409 = vmul.f32 %v6047, %v6377
    %v6410 = vmul.f32 %v6050, %v6378
    %v6411 = vmul.f32 %v6091, %v6379
    %v6412 = vmul.f32 %v6094, %v6380
    %v6413 = vmul.f32 %v6135, %v6381
    %v6414 = vmul.f32 %v6138, %v6382
    %v6415 = vmul.f32 %v6179, %v6383
    %v6416 = vmul.f32 %v6182, %v6384
    %v6417 = vmul.f32 %v6223, %v6385
    %v6418 = vmul.f32 %v6226, %v6386
    %v6419 = vmul.f32 %v6267, %v6387
    %v6420 = vmul.f32 %v6270, %v6388
    %v6421 = vmul.f32 %v6311, %v6389
    %v6422 = vmul.f32 %v6314, %v6390
    %v6423 = vmul.f32 %v6355, %v6391
    %v6424 = vmul.f32 %v6358, %v6392
    %s6425 = scalar_lea.vmem [#allocation10], 256
    %v6426 = vld [vmem:[%s6425] sm:$0xf]
    %v6427 = vld [vmem:[%s6425 + $0x4] sm:$0xf]
    %v6428 = vld [vmem:[%s6425 + $0x8] sm:$0xf]
    %v6429 = vld [vmem:[%s6425 + $0xc] sm:$0xf]
    %v6430 = vld [vmem:[%s6425 + $0x10] sm:$0xf]
    %v6431 = vld [vmem:[%s6425 + $0x14] sm:$0xf]
    %v6432 = vld [vmem:[%s6425 + $0x18] sm:$0xf]
    %v6433 = vld [vmem:[%s6425 + $0x1c] sm:$0xf]
    %v6434 = vld [vmem:[%s6425 + $0x20] sm:$0xf]
    %v6435 = vld [vmem:[%s6425 + $0x24] sm:$0xf]
    %v6436 = vld [vmem:[%s6425 + $0x28] sm:$0xf]
    %v6437 = vld [vmem:[%s6425 + $0x2c] sm:$0xf]
    %v6438 = vld [vmem:[%s6425 + $0x30] sm:$0xf]
    %v6439 = vld [vmem:[%s6425 + $0x34] sm:$0xf]
    %v6440 = vld [vmem:[%s6425 + $0x38] sm:$0xf]
    %v6441 = vld [vmem:[%s6425 + $0x3c] sm:$0xf]
    %v6442 = vld [vmem:[%s6425 + $0x40] sm:$0xf]
    %v6443 = vld [vmem:[%s6425 + $0x44] sm:$0xf]
    %v6444 = vld [vmem:[%s6425 + $0x48] sm:$0xf]
    %v6445 = vld [vmem:[%s6425 + $0x4c] sm:$0xf]
    %v6446 = vld [vmem:[%s6425 + $0x50] sm:$0xf]
    %v6447 = vld [vmem:[%s6425 + $0x54] sm:$0xf]
    %v6448 = vld [vmem:[%s6425 + $0x58] sm:$0xf]
    %v6449 = vld [vmem:[%s6425 + $0x5c] sm:$0xf]
    %v6450 = vld [vmem:[%s6425 + $0x60] sm:$0xf]
    %v6451 = vld [vmem:[%s6425 + $0x64] sm:$0xf]
    %v6452 = vld [vmem:[%s6425 + $0x68] sm:$0xf]
    %v6453 = vld [vmem:[%s6425 + $0x6c] sm:$0xf]
    %v6454 = vld [vmem:[%s6425 + $0x70] sm:$0xf]
    %v6455 = vld [vmem:[%s6425 + $0x74] sm:$0xf]
    %v6456 = vld [vmem:[%s6425 + $0x78] sm:$0xf]
    %v6457 = vld [vmem:[%s6425 + $0x7c] sm:$0xf]
    %v6458 = vld [vmem:[%s6425 + $0x80] sm:$0xf]
    %v6459 = vld [vmem:[%s6425 + $0x84] sm:$0xf]
    %v6460 = vld [vmem:[%s6425 + $0x88] sm:$0xf]
    %v6461 = vld [vmem:[%s6425 + $0x8c] sm:$0xf]
    %v6462 = vld [vmem:[%s6425 + $0x90] sm:$0xf]
    %v6463 = vld [vmem:[%s6425 + $0x94] sm:$0xf]
    %v6464 = vld [vmem:[%s6425 + $0x98] sm:$0xf]
    %v6465 = vld [vmem:[%s6425 + $0x9c] sm:$0xf]
    %v6466 = vld [vmem:[%s6425 + $0xa0] sm:$0xf]
    %v6467 = vld [vmem:[%s6425 + $0xa4] sm:$0xf]
    %v6468 = vld [vmem:[%s6425 + $0xa8] sm:$0xf]
    %v6469 = vld [vmem:[%s6425 + $0xac] sm:$0xf]
    %v6470 = vld [vmem:[%s6425 + $0xb0] sm:$0xf]
    %v6471 = vld [vmem:[%s6425 + $0xb4] sm:$0xf]
    %v6472 = vld [vmem:[%s6425 + $0xb8] sm:$0xf]
    %v6473 = vld [vmem:[%s6425 + $0xbc] sm:$0xf]
    %v6474 = vld [vmem:[%s6425 + $0xc0] sm:$0xf]
    %v6475 = vld [vmem:[%s6425 + $0xc4] sm:$0xf]
    %v6476 = vld [vmem:[%s6425 + $0xc8] sm:$0xf]
    %v6477 = vld [vmem:[%s6425 + $0xcc] sm:$0xf]
    %v6478 = vld [vmem:[%s6425 + $0xd0] sm:$0xf]
    %v6479 = vld [vmem:[%s6425 + $0xd4] sm:$0xf]
    %v6480 = vld [vmem:[%s6425 + $0xd8] sm:$0xf]
    %v6481 = vld [vmem:[%s6425 + $0xdc] sm:$0xf]
    %v6482 = vld [vmem:[%s6425 + $0xe0] sm:$0xf]
    %v6483 = vld [vmem:[%s6425 + $0xe4] sm:$0xf]
    %v6484 = vld [vmem:[%s6425 + $0xe8] sm:$0xf]
    %v6485 = vld [vmem:[%s6425 + $0xec] sm:$0xf]
    %v6486 = vld [vmem:[%s6425 + $0xf0] sm:$0xf]
    %v6487 = vld [vmem:[%s6425 + $0xf4] sm:$0xf]
    %v6488 = vld [vmem:[%s6425 + $0xf8] sm:$0xf]
    %v6489 = vld [vmem:[%s6425 + $0xfc] sm:$0xf]
    %v6490 = vpack.c.bf16 %v6394, %v6393
    %v6491 = vpack.c.bf16 %v6402, %v6401
    %v6492 = vpack.c.bf16 %v6410, %v6409
    %v6493 = vpack.c.bf16 %v6418, %v6417
    %v6494 = vpack.c.bf16 %v6396, %v6395
    %v6495 = vpack.c.bf16 %v6404, %v6403
    %v6496 = vpack.c.bf16 %v6412, %v6411
    %v6497 = vpack.c.bf16 %v6420, %v6419
    %v6498 = vpack.c.bf16 %v6398, %v6397
    %v6499 = vpack.c.bf16 %v6406, %v6405
    %v6500 = vpack.c.bf16 %v6414, %v6413
    %v6501 = vpack.c.bf16 %v6422, %v6421
    %v6502 = vpack.c.bf16 %v6400, %v6399
    %v6503 = vpack.c.bf16 %v6408, %v6407
    %v6504 = vpack.c.bf16 %v6416, %v6415
    %v6505 = vpack.c.bf16 %v6424, %v6423
    %s6506 = scalar_lea.vmem [#allocation11], 1
    %v6507 = vld [vmem:[%s6506] sm:$0x1]
    %v6509 = vlaneseq
    %v6510 = vshrl.u32 %v6509, 7
    %v6511 = vsub.s32 0, %v6510
    %v6512 = vrot.slane %v6507, %v6511
    %v6578 = vunpack.c.l.b16 %v6426
    %v6579 = vunpack.c.l.b16 %v6427
    %v6580 = vunpack.c.l.b16 %v6428
    %v6581 = vunpack.c.l.b16 %v6429
    %v6582 = vunpack.c.l.b16 %v6430
    %v6583 = vunpack.c.l.b16 %v6431
    %v6584 = vunpack.c.l.b16 %v6432
    %v6585 = vunpack.c.l.b16 %v6433
    %v6586 = vunpack.c.l.b16 %v6434
    %v6587 = vunpack.c.l.b16 %v6435
    %v6588 = vunpack.c.l.b16 %v6436
    %v6589 = vunpack.c.l.b16 %v6437
    %v6590 = vunpack.c.l.b16 %v6438
    %v6591 = vunpack.c.l.b16 %v6439
    %v6592 = vunpack.c.l.b16 %v6440
    %v6593 = vunpack.c.l.b16 %v6441
    %v6594 = vunpack.c.l.b16 %v6442
    %v6595 = vunpack.c.l.b16 %v6443
    %v6596 = vunpack.c.l.b16 %v6444
    %v6597 = vunpack.c.l.b16 %v6445
    %v6598 = vunpack.c.l.b16 %v6446
    %v6599 = vunpack.c.l.b16 %v6447
    %v6600 = vunpack.c.l.b16 %v6448
    %v6601 = vunpack.c.l.b16 %v6449
    %v6602 = vunpack.c.l.b16 %v6450
    %v6603 = vunpack.c.l.b16 %v6451
    %v6604 = vunpack.c.l.b16 %v6452
    %v6605 = vunpack.c.l.b16 %v6453
    %v6606 = vunpack.c.l.b16 %v6454
    %v6607 = vunpack.c.l.b16 %v6455
    %v6608 = vunpack.c.l.b16 %v6456
    %v6609 = vunpack.c.l.b16 %v6457
    %v6610 = vunpack.c.l.b16 %v6458
    %v6611 = vunpack.c.l.b16 %v6459
    %v6612 = vunpack.c.l.b16 %v6460
    %v6613 = vunpack.c.l.b16 %v6461
    %v6614 = vunpack.c.l.b16 %v6462
    %v6615 = vunpack.c.l.b16 %v6463
    %v6616 = vunpack.c.l.b16 %v6464
    %v6617 = vunpack.c.l.b16 %v6465
    %v6618 = vunpack.c.l.b16 %v6466
    %v6619 = vunpack.c.l.b16 %v6467
    %v6620 = vunpack.c.l.b16 %v6468
    %v6621 = vunpack.c.l.b16 %v6469
    %v6622 = vunpack.c.l.b16 %v6470
    %v6623 = vunpack.c.l.b16 %v6471
    %v6624 = vunpack.c.l.b16 %v6472
    %v6625 = vunpack.c.l.b16 %v6473
    %v6626 = vunpack.c.l.b16 %v6474
    %v6627 = vunpack.c.l.b16 %v6475
    %v6628 = vunpack.c.l.b16 %v6476
    %v6629 = vunpack.c.l.b16 %v6477
    %v6630 = vunpack.c.l.b16 %v6478
    %v6631 = vunpack.c.l.b16 %v6479
    %v6632 = vunpack.c.l.b16 %v6480
    %v6633 = vunpack.c.l.b16 %v6481
    %v6634 = vunpack.c.l.b16 %v6482
    %v6635 = vunpack.c.l.b16 %v6483
    %v6636 = vunpack.c.l.b16 %v6484
    %v6637 = vunpack.c.l.b16 %v6485
    %v6638 = vunpack.c.l.b16 %v6486
    %v6639 = vunpack.c.l.b16 %v6487
    %v6640 = vunpack.c.l.b16 %v6488
    %v6641 = vunpack.c.l.b16 %v6489
    %v6642 = vpack.c.b16 %v6579, %v6578
    %v6643 = vpack.c.b16 %v6581, %v6580
    %v6644 = vpack.c.b16 %v6583, %v6582
    %v6645 = vpack.c.b16 %v6585, %v6584
    %v6646 = vpack.c.b16 %v6587, %v6586
    %v6647 = vpack.c.b16 %v6589, %v6588
    %v6648 = vpack.c.b16 %v6591, %v6590
    %v6649 = vpack.c.b16 %v6593, %v6592
    %v6650 = vpack.c.b16 %v6595, %v6594
    %v6651 = vpack.c.b16 %v6597, %v6596
    %v6652 = vpack.c.b16 %v6599, %v6598
    %v6653 = vpack.c.b16 %v6601, %v6600
    %v6654 = vpack.c.b16 %v6603, %v6602
    %v6655 = vpack.c.b16 %v6605, %v6604
    %v6656 = vpack.c.b16 %v6607, %v6606
    %v6657 = vpack.c.b16 %v6609, %v6608
    %v6658 = vpack.c.b16 %v6611, %v6610
    %v6659 = vpack.c.b16 %v6613, %v6612
    %v6660 = vpack.c.b16 %v6615, %v6614
    %v6661 = vpack.c.b16 %v6617, %v6616
    %v6662 = vpack.c.b16 %v6619, %v6618
    %v6663 = vpack.c.b16 %v6621, %v6620
    %v6664 = vpack.c.b16 %v6623, %v6622
    %v6665 = vpack.c.b16 %v6625, %v6624
    %v6666 = vpack.c.b16 %v6627, %v6626
    %v6667 = vpack.c.b16 %v6629, %v6628
    %v6668 = vpack.c.b16 %v6631, %v6630
    %v6669 = vpack.c.b16 %v6633, %v6632
    %v6670 = vpack.c.b16 %v6635, %v6634
    %v6671 = vpack.c.b16 %v6637, %v6636
    %v6672 = vpack.c.b16 %v6639, %v6638
    %v6673 = vpack.c.b16 %v6641, %v6640
    %6706 = vmatprep.subr.bf16.mxu0 0
    %6707 = vmatpush1.bf16.msra.mxu0 %v6642
    %6708 = vmatprep.subr.bf16.mxu0 0
    %6709 = vmatpush1.bf16.msra.mxu0 %v6643
    %6710 = vmatprep.subr.bf16.mxu0 0
    %6711 = vmatpush1.bf16.msra.mxu0 %v6644
    %6712 = vmatprep.subr.bf16.mxu0 0
    %6713 = vmatpush1.bf16.msra.mxu0 %v6645
    %6714 = vmatprep.subr.bf16.mxu0 0
    %6715 = vmatpush1.bf16.msra.mxu0 %v6646
    %6716 = vmatprep.subr.bf16.mxu0 0
    %6717 = vmatpush1.bf16.msra.mxu0 %v6647
    %6718 = vmatprep.subr.bf16.mxu0 0
    %6719 = vmatpush1.bf16.msra.mxu0 %v6648
    %6720 = vmatprep.subr.bf16.mxu0 0
    %6721 = vmatpush1.bf16.msra.mxu0 %v6649
    %6722 = vmatprep.subr.bf16.mxu0 0
    %6723 = vmatpush1.bf16.msra.mxu0 %v6650
    %6724 = vmatprep.subr.bf16.mxu0 0
    %6725 = vmatpush1.bf16.msra.mxu0 %v6651
    %6726 = vmatprep.subr.bf16.mxu0 0
    %6727 = vmatpush1.bf16.msra.mxu0 %v6652
    %6728 = vmatprep.subr.bf16.mxu0 0
    %6729 = vmatpush1.bf16.msra.mxu0 %v6653
    %6730 = vmatprep.subr.bf16.mxu0 0
    %6731 = vmatpush1.bf16.msra.mxu0 %v6654
    %6732 = vmatprep.subr.bf16.mxu0 0
    %6733 = vmatpush1.bf16.msra.mxu0 %v6655
    %6734 = vmatprep.subr.bf16.mxu0 0
    %6735 = vmatpush1.bf16.msra.mxu0 %v6656
    %6736 = vmatprep.subr.bf16.mxu0 0
    %6737 = vmatpush1.bf16.msra.mxu0 %v6657
    %6738 = vmatprep.mubr.bf16.mxu0 %v6491
    %6739 = vmatmul.mubr.bf16.gmra.mrb[0].mxu0 %v6490
    %v6740 = vpop.f32.mrb[0].mxu0
    %v6741 = vadd.f32 %v6512, %v6740
    %v6742 = vpop.f32.mrb[0].mxu0
    %v6743 = vpop.f32.mrb[0].mxu0
    %v6744 = vadd.f32 %v6512, %v6743
    %v6745 = vpop.f32.mrb[0].mxu0
    %6746 = vmatprep.mubr.bf16.mxu0 %v6495
    %6747 = vmatmul.mubr.bf16.gmra.mrb[0].mxu0 %v6494
    %v6748 = vpop.f32.mrb[0].mxu0
    %v6749 = vadd.f32 %v6512, %v6748
    %v6750 = vpop.f32.mrb[0].mxu0
    %v6751 = vpop.f32.mrb[0].mxu0
    %v6752 = vadd.f32 %v6512, %v6751
    %v6753 = vpop.f32.mrb[0].mxu0
    %6754 = vmatprep.mubr.bf16.mxu0 %v6499
    %6755 = vmatmul.mubr.bf16.gmra.mrb[0].mxu0 %v6498
    %v6756 = vpop.f32.mrb[0].mxu0
    %v6757 = vadd.f32 %v6512, %v6756
    %v6758 = vpop.f32.mrb[0].mxu0
    %v6759 = vpop.f32.mrb[0].mxu0
    %v6760 = vadd.f32 %v6512, %v6759
    %v6761 = vpop.f32.mrb[0].mxu0
    %6762 = vmatprep.mubr.bf16.mxu0 %v6503
    %6763 = vmatmul.mubr.bf16.gmra.mrb[0].mxu0 %v6502
    %v6764 = vpop.f32.mrb[0].mxu0
    %v6765 = vadd.f32 %v6512, %v6764
    %v6766 = vpop.f32.mrb[0].mxu0
    %v6767 = vpop.f32.mrb[0].mxu0
    %v6768 = vadd.f32 %v6512, %v6767
    %v6769 = vpop.f32.mrb[0].mxu0
    %6770 = vdwg.mxu0
    %6771 = vmatprep.subr.bf16.mxu0 0
    %6772 = vmatpush1.bf16.msra.mxu0 %v6658
    %6773 = vmatprep.subr.bf16.mxu0 0
    %6774 = vmatpush1.bf16.msra.mxu0 %v6659
    %6775 = vmatprep.subr.bf16.mxu0 0
    %6776 = vmatpush1.bf16.msra.mxu0 %v6660
    %6777 = vmatprep.subr.bf16.mxu0 0
    %6778 = vmatpush1.bf16.msra.mxu0 %v6661
    %6779 = vmatprep.subr.bf16.mxu0 0
    %6780 = vmatpush1.bf16.msra.mxu0 %v6662
    %6781 = vmatprep.subr.bf16.mxu0 0
    %6782 = vmatpush1.bf16.msra.mxu0 %v6663
    %6783 = vmatprep.subr.bf16.mxu0 0
    %6784 = vmatpush1.bf16.msra.mxu0 %v6664
    %6785 = vmatprep.subr.bf16.mxu0 0
    %6786 = vmatpush1.bf16.msra.mxu0 %v6665
    %6787 = vmatprep.subr.bf16.mxu0 0
    %6788 = vmatpush1.bf16.msra.mxu0 %v6666
    %6789 = vmatprep.subr.bf16.mxu0 0
    %6790 = vmatpush1.bf16.msra.mxu0 %v6667
    %6791 = vmatprep.subr.bf16.mxu0 0
    %6792 = vmatpush1.bf16.msra.mxu0 %v6668
    %6793 = vmatprep.subr.bf16.mxu0 0
    %6794 = vmatpush1.bf16.msra.mxu0 %v6669
    %6795 = vmatprep.subr.bf16.mxu0 0
    %6796 = vmatpush1.bf16.msra.mxu0 %v6670
    %6797 = vmatprep.subr.bf16.mxu0 0
    %6798 = vmatpush1.bf16.msra.mxu0 %v6671
    %6799 = vmatprep.subr.bf16.mxu0 0
    %6800 = vmatpush1.bf16.msra.mxu0 %v6672
    %6801 = vmatprep.subr.bf16.mxu0 0
    %6802 = vmatpush1.bf16.msra.mxu0 %v6673
    %6803 = vmatprep.mubr.bf16.mxu0 %v6493
    %6804 = vmatmul.mubr.bf16.gmra.mrb[0].mxu0 %v6492
    %v6805 = vpop.f32.mrb[0].mxu0
    %v6806 = vadd.f32 %v6741, %v6805
    %v6807 = vpop.f32.mrb[0].mxu0
    %v6808 = vpop.f32.mrb[0].mxu0
    %v6809 = vadd.f32 %v6744, %v6808
    %v6810 = vpop.f32.mrb[0].mxu0
    %6811 = vmatprep.mubr.bf16.mxu0 %v6497
    %6812 = vmatmul.mubr.bf16.gmra.mrb[0].mxu0 %v6496
    %v6813 = vpop.f32.mrb[0].mxu0
    %v6814 = vadd.f32 %v6749, %v6813
    %v6815 = vpop.f32.mrb[0].mxu0
    %v6816 = vpop.f32.mrb[0].mxu0
    %v6817 = vadd.f32 %v6752, %v6816
    %v6818 = vpop.f32.mrb[0].mxu0
    %6819 = vmatprep.mubr.bf16.mxu0 %v6501
    %6820 = vmatmul.mubr.bf16.gmra.mrb[0].mxu0 %v6500
    %v6821 = vpop.f32.mrb[0].mxu0
    %v6822 = vadd.f32 %v6757, %v6821
    %v6823 = vpop.f32.mrb[0].mxu0
    %v6824 = vpop.f32.mrb[0].mxu0
    %v6825 = vadd.f32 %v6760, %v6824
    %v6826 = vpop.f32.mrb[0].mxu0
    %6827 = vmatprep.mubr.bf16.mxu0 %v6505
    %6828 = vmatmul.mubr.bf16.gmra.mrb[0].mxu0 %v6504
    %v6829 = vpop.f32.mrb[0].mxu0
    %v6830 = vadd.f32 %v6765, %v6829
    %v6831 = vpop.f32.mrb[0].mxu0
    %v6832 = vpop.f32.mrb[0].mxu0
    %v6833 = vadd.f32 %v6768, %v6832
    %v6834 = vpop.f32.mrb[0].mxu0
    %6835 = vdwg.mxu0
    %v6836 = vadd.f32 %v3833, %v6806
    %v6837 = vadd.f32 %v3834, %v6809
    %v6838 = vadd.f32 %v3835, %v6814
    %v6839 = vadd.f32 %v3836, %v6817
    %v6840 = vadd.f32 %v3837, %v6822
    %v6841 = vadd.f32 %v3838, %v6825
    %v6842 = vadd.f32 %v3839, %v6830
    %v6843 = vadd.f32 %v3840, %v6833
    %s6844 = scalar_lea.vmem [#allocation13], 1
    %v6845 = vld [vmem:[%s6844] sm:$0x1]
    %s6846 = scalar_lea.vmem [#allocation14], 1
    %v6847 = vld [vmem:[%s6846] sm:$0x1]
    %v6848 = vsel %vm671, %v6836, 0.0
    %6849 = vadd.xlane.f32.xlu0 %v6848
    %v6850 = vpop.xlane.xlu0 %6849
    %v6851 = vsel %vm671, %v6837, 0.0
    %6852 = vadd.xlane.f32.xlu0 %v6851
    %v6853 = vpop.xlane.xlu0 %6852
    %v6854 = vsel %vm671, %v6838, 0.0
    %6855 = vadd.xlane.f32.xlu0 %v6854
    %v6856 = vpop.xlane.xlu0 %6855
    %v6857 = vsel %vm671, %v6839, 0.0
    %6858 = vadd.xlane.f32.xlu0 %v6857
    %v6859 = vpop.xlane.xlu0 %6858
    %v6860 = vsel %vm671, %v6840, 0.0
    %6861 = vadd.xlane.f32.xlu0 %v6860
    %v6862 = vpop.xlane.xlu0 %6861
    %v6863 = vsel %vm671, %v6841, 0.0
    %6864 = vadd.xlane.f32.xlu0 %v6863
    %v6865 = vpop.xlane.xlu0 %6864
    %v6866 = vsel %vm671, %v6842, 0.0
    %6867 = vadd.xlane.f32.xlu0 %v6866
    %v6868 = vpop.xlane.xlu0 %6867
    %v6869 = vsel %vm671, %v6843, 0.0
    %6870 = vadd.xlane.f32.xlu0 %v6869
    %v6871 = vpop.xlane.xlu0 %6870
    %v6872 = vmul.f32 %v6850, %v3342
    %v6873 = vmul.f32 %v6853, %v3342
    %v6874 = vmul.f32 %v6856, %v3342
    %v6875 = vmul.f32 %v6859, %v3342
    %v6876 = vmul.f32 %v6862, %v3342
    %v6877 = vmul.f32 %v6865, %v3342
    %v6878 = vmul.f32 %v6868, %v3342
    %v6879 = vmul.f32 %v6871, %v3342
    %v6880 = vsub.f32 %v6836, %v6872
    %v6881 = vsub.f32 %v6837, %v6873
    %v6882 = vsub.f32 %v6838, %v6874
    %v6883 = vsub.f32 %v6839, %v6875
    %v6884 = vsub.f32 %v6840, %v6876
    %v6885 = vsub.f32 %v6841, %v6877
    %v6886 = vsub.f32 %v6842, %v6878
    %v6887 = vsub.f32 %v6843, %v6879
    %v6888 = vmul.f32 %v6880, %v6880
    %v6889 = vmul.f32 %v6881, %v6881
    %v6890 = vmul.f32 %v6882, %v6882
    %v6891 = vmul.f32 %v6883, %v6883
    %v6892 = vmul.f32 %v6884, %v6884
    %v6893 = vmul.f32 %v6885, %v6885
    %v6894 = vmul.f32 %v6886, %v6886
    %v6895 = vmul.f32 %v6887, %v6887
    %v6896 = vsel %vm671, %v6888, 0.0
    %6897 = vadd.xlane.f32.xlu0 %v6896
    %v6898 = vpop.xlane.xlu0 %6897
    %v6899 = vsel %vm671, %v6889, 0.0
    %6900 = vadd.xlane.f32.xlu0 %v6899
    %v6901 = vpop.xlane.xlu0 %6900
    %v6902 = vsel %vm671, %v6890, 0.0
    %6903 = vadd.xlane.f32.xlu0 %v6902
    %v6904 = vpop.xlane.xlu0 %6903
    %v6905 = vsel %vm671, %v6891, 0.0
    %6906 = vadd.xlane.f32.xlu0 %v6905
    %v6907 = vpop.xlane.xlu0 %6906
    %v6908 = vsel %vm671, %v6892, 0.0
    %6909 = vadd.xlane.f32.xlu0 %v6908
    %v6910 = vpop.xlane.xlu0 %6909
    %v6911 = vsel %vm671, %v6893, 0.0
    %6912 = vadd.xlane.f32.xlu0 %v6911
    %v6913 = vpop.xlane.xlu0 %6912
    %v6914 = vsel %vm671, %v6894, 0.0
    %6915 = vadd.xlane.f32.xlu0 %v6914
    %v6916 = vpop.xlane.xlu0 %6915
    %v6917 = vsel %vm671, %v6895, 0.0
    %6918 = vadd.xlane.f32.xlu0 %v6917
    %v6919 = vpop.xlane.xlu0 %6918
    %v6920 = vmul.f32 %v6898, %v3342
    %v6921 = vmul.f32 %v6901, %v3342
    %v6922 = vmul.f32 %v6904, %v3342
    %v6923 = vmul.f32 %v6907, %v3342
    %v6924 = vmul.f32 %v6910, %v3342
    %v6925 = vmul.f32 %v6913, %v3342
    %v6926 = vmul.f32 %v6916, %v3342
    %v6927 = vmul.f32 %v6919, %v3342
    %v6928 = vadd.f32 %v6920, 1e-05
    %v6929 = vadd.f32 %v6921, 1e-05
    %v6930 = vadd.f32 %v6922, 1e-05
    %v6931 = vadd.f32 %v6923, 1e-05
    %v6932 = vadd.f32 %v6924, 1e-05
    %v6933 = vadd.f32 %v6925, 1e-05
    %v6934 = vadd.f32 %v6926, 1e-05
    %v6935 = vadd.f32 %v6927, 1e-05
    %v6936 = vrsqrt.pop %v6928
    %v6937 = vrsqrt.pop %v6929
    %v6938 = vrsqrt.pop %v6930
    %v6939 = vrsqrt.pop %v6931
    %v6940 = vrsqrt.pop %v6932
    %v6941 = vrsqrt.pop %v6933
    %v6942 = vrsqrt.pop %v6934
    %v6943 = vrsqrt.pop %v6935
    %v6944 = vmul.f32 %v6880, %v6936
    %v6945 = vmul.f32 %v6881, %v6937
    %v6946 = vmul.f32 %v6882, %v6938
    %v6947 = vmul.f32 %v6883, %v6939
    %v6948 = vmul.f32 %v6884, %v6940
    %v6949 = vmul.f32 %v6885, %v6941
    %v6950 = vmul.f32 %v6886, %v6942
    %v6951 = vmul.f32 %v6887, %v6943
    %v6953 = vlaneseq
    %v6954 = vshrl.u32 %v6953, 7
    %v6955 = vsub.s32 0, %v6954
    %v6956 = vrot.slane %v6845, %v6955
    %v6958 = vmul.f32 %v6944, %v6956
    %v6959 = vmul.f32 %v6945, %v6956
    %v6960 = vmul.f32 %v6946, %v6956
    %v6961 = vmul.f32 %v6947, %v6956
    %v6962 = vmul.f32 %v6948, %v6956
    %v6963 = vmul.f32 %v6949, %v6956
    %v6964 = vmul.f32 %v6950, %v6956
    %v6965 = vmul.f32 %v6951, %v6956
    %v6967 = vlaneseq
    %v6968 = vshrl.u32 %v6967, 7
    %v6969 = vsub.s32 0, %v6968
    %v6970 = vrot.slane %v6847, %v6969
    %v6972 = vadd.f32 %v6958, %v6970
    %v6973 = vadd.f32 %v6959, %v6970
    %v6974 = vadd.f32 %v6960, %v6970
    %v6975 = vadd.f32 %v6961, %v6970
    %v6976 = vadd.f32 %v6962, %v6970
    %v6977 = vadd.f32 %v6963, %v6970
    %v6978 = vadd.f32 %v6964, %v6970
    %v6979 = vadd.f32 %v6965, %v6970
    %s6980 = scalar_lea.vmem [#allocation16], 32
    %v6981 = vld [vmem:[%s6980] sm:$0xf]
    %v6982 = vld [vmem:[%s6980 + $0x4] sm:$0xf]
    %v6983 = vld [vmem:[%s6980 + $0x8] sm:$0xf]
    %v6984 = vld [vmem:[%s6980 + $0xc] sm:$0xf]
    %v6985 = vld [vmem:[%s6980 + $0x10] sm:$0xf]
    %v6986 = vld [vmem:[%s6980 + $0x14] sm:$0xf]
    %v6987 = vld [vmem:[%s6980 + $0x18] sm:$0xf]
    %v6988 = vld [vmem:[%s6980 + $0x1c] sm:$0xf]
    %v6989 = vpack.c.bf16 %v6973, %v6972
    %v6990 = vpack.c.bf16 %v6975, %v6974
    %v6991 = vpack.c.bf16 %v6977, %v6976
    %v6992 = vpack.c.bf16 %v6979, %v6978
    %s6993 = scalar_lea.vmem [#allocation17], 1
    %v6994 = vld [vmem:[%s6993] sm:$0x1]
    %v6996 = vlaneseq
    %v6997 = vshrl.u32 %v6996, 7
    %v6998 = vsub.s32 0, %v6997
    %v6999 = vrot.slane %v6994, %v6998
    %v7009 = vunpack.c.l.b16 %v6981
    %v7010 = vunpack.c.l.b16 %v6982
    %v7011 = vunpack.c.l.b16 %v6983
    %v7012 = vunpack.c.l.b16 %v6984
    %v7013 = vunpack.c.l.b16 %v6985
    %v7014 = vunpack.c.l.b16 %v6986
    %v7015 = vunpack.c.l.b16 %v6987
    %v7016 = vunpack.c.l.b16 %v6988
    %v7017 = vpack.c.b16 %v7010, %v7009
    %v7018 = vpack.c.b16 %v7012, %v7011
    %v7019 = vpack.c.b16 %v7014, %v7013
    %v7020 = vpack.c.b16 %v7016, %v7015
    %v7026 = vsel %vm671, %v6989, 0
    %v7029 = vsel %vm671, %v6990, 0
    %v7032 = vsel %vm671, %v6991, 0
    %v7035 = vsel %vm671, %v6992, 0
    %7037 = vmatprep.subr.bf16.mxu0 0
    %7038 = vmatpush1.bf16.msra.mxu0 %v7017
    %7039 = vmatprep.subr.bf16.mxu0 0
    %7040 = vmatpush1.bf16.msra.mxu0 %v7018
    %7041 = vmatprep.subr.bf16.mxu0 0
    %7042 = vmatpush1.bf16.msra.mxu0 %v7019
    %7043 = vmatprep.subr.bf16.mxu0 0
    %7044 = vmatpush1.bf16.msra.mxu0 %v7020
    %7045 = vmatprep.subr.bf16.mxu0 0
    %7046 = vmatpush1.bf16.msra.mxu0 0
    %7047 = vmatprep.subr.bf16.mxu0 0
    %7048 = vmatpush1.bf16.msra.mxu0 0
    %7049 = vmatprep.subr.bf16.mxu0 0
    %7050 = vmatpush1.bf16.msra.mxu0 0
    %7051 = vmatprep.subr.bf16.mxu0 0
    %7052 = vmatpush1.bf16.msra.mxu0 0
    %7053 = vmatprep.subr.bf16.mxu0 0
    %7054 = vmatpush1.bf16.msra.mxu0 0
    %7055 = vmatprep.subr.bf16.mxu0 0
    %7056 = vmatpush1.bf16.msra.mxu0 0
    %7057 = vmatprep.subr.bf16.mxu0 0
    %7058 = vmatpush1.bf16.msra.mxu0 0
    %7059 = vmatprep.subr.bf16.mxu0 0
    %7060 = vmatpush1.bf16.msra.mxu0 0
    %7061 = vmatprep.subr.bf16.mxu0 0
    %7062 = vmatpush1.bf16.msra.mxu0 0
    %7063 = vmatprep.subr.bf16.mxu0 0
    %7064 = vmatpush1.bf16.msra.mxu0 0
    %7065 = vmatprep.subr.bf16.mxu0 0
    %7066 = vmatpush1.bf16.msra.mxu0 0
    %7067 = vmatprep.subr.bf16.mxu0 0
    %7068 = vmatpush1.bf16.msra.mxu0 0
    %7069 = vmatprep.mubr.bf16.mxu0 0
    %7070 = vmatmul.mubr.bf16.gmra.mrb[0].mxu0 %v7026
    %v7071 = vpop.f32.mrb[0].mxu0
    %v7072 = vadd.f32 %v6999, %v7071
    %v7073 = vpop.f32.mrb[0].mxu0
    %v7074 = vpop.f32.mrb[0].mxu0
    %v7075 = vadd.f32 %v6999, %v7074
    %v7076 = vpop.f32.mrb[0].mxu0
    %7077 = vmatprep.mubr.bf16.mxu0 0
    %7078 = vmatmul.mubr.bf16.gmra.mrb[0].mxu0 %v7029
    %v7079 = vpop.f32.mrb[0].mxu0
    %v7080 = vadd.f32 %v6999, %v7079
    %v7081 = vpop.f32.mrb[0].mxu0
    %v7082 = vpop.f32.mrb[0].mxu0
    %v7083 = vadd.f32 %v6999, %v7082
    %v7084 = vpop.f32.mrb[0].mxu0
    %7085 = vmatprep.mubr.bf16.mxu0 0
    %7086 = vmatmul.mubr.bf16.gmra.mrb[0].mxu0 %v7032
    %v7087 = vpop.f32.mrb[0].mxu0
    %v7088 = vadd.f32 %v6999, %v7087
    %v7089 = vpop.f32.mrb[0].mxu0
    %v7090 = vpop.f32.mrb[0].mxu0
    %v7091 = vadd.f32 %v6999, %v7090
    %v7092 = vpop.f32.mrb[0].mxu0
    %7093 = vmatprep.mubr.bf16.mxu0 0
    %7094 = vmatmul.mubr.bf16.gmra.mrb[0].mxu0 %v7035
    %v7095 = vpop.f32.mrb[0].mxu0
    %v7096 = vadd.f32 %v6999, %v7095
    %v7097 = vpop.f32.mrb[0].mxu0
    %v7098 = vpop.f32.mrb[0].mxu0
    %v7099 = vadd.f32 %v6999, %v7098
    %v7100 = vpop.f32.mrb[0].mxu0
    %7101 = vdwg.mxu0
    %v7102 = vmax.f32 %v7072, 0.0
    %v7103 = vmax.f32 %v7075, 0.0
    %v7104 = vmax.f32 %v7080, 0.0
    %v7105 = vmax.f32 %v7083, 0.0
    %v7106 = vmax.f32 %v7088, 0.0
    %v7107 = vmax.f32 %v7091, 0.0
    %v7108 = vmax.f32 %v7096, 0.0
    %v7109 = vmax.f32 %v7099, 0.0
    %s7110 = scalar_lea.vmem [#allocation19], 32
    %v7111 = vld [vmem:[%s7110] sm:$0xf]
    %v7112 = vld [vmem:[%s7110 + $0x4] sm:$0xf]
    %v7113 = vld [vmem:[%s7110 + $0x8] sm:$0xf]
    %v7114 = vld [vmem:[%s7110 + $0xc] sm:$0xf]
    %v7115 = vld [vmem:[%s7110 + $0x10] sm:$0xf]
    %v7116 = vld [vmem:[%s7110 + $0x14] sm:$0xf]
    %v7117 = vld [vmem:[%s7110 + $0x18] sm:$0xf]
    %v7118 = vld [vmem:[%s7110 + $0x1c] sm:$0xf]
    %v7119 = vpack.c.bf16 %v7103, %v7102
    %v7120 = vpack.c.bf16 %v7105, %v7104
    %v7121 = vpack.c.bf16 %v7107, %v7106
    %v7122 = vpack.c.bf16 %v7109, %v7108
    %s7123 = scalar_lea.vmem [#allocation20], 1
    %v7124 = vld [vmem:[%s7123] sm:$0x1]
    %v7126 = vlaneseq
    %v7127 = vshrl.u32 %v7126, 7
    %v7128 = vsub.s32 0, %v7127
    %v7129 = vrot.slane %v7124, %v7128
    %v7139 = vunpack.c.l.b16 %v7111
    %v7140 = vunpack.c.l.b16 %v7112
    %v7141 = vunpack.c.l.b16 %v7113
    %v7142 = vunpack.c.l.b16 %v7114
    %v7143 = vunpack.c.l.b16 %v7115
    %v7144 = vunpack.c.l.b16 %v7116
    %v7145 = vunpack.c.l.b16 %v7117
    %v7146 = vunpack.c.l.b16 %v7118
    %v7147 = vpack.c.b16 %v7140, %v7139
    %v7148 = vpack.c.b16 %v7142, %v7141
    %v7149 = vpack.c.b16 %v7144, %v7143
    %v7150 = vpack.c.b16 %v7146, %v7145
    %v7156 = vsel %vm671, %v7119, 0
    %v7159 = vsel %vm671, %v7120, 0
    %v7162 = vsel %vm671, %v7121, 0
    %v7165 = vsel %vm671, %v7122, 0
    %7167 = vmatprep.subr.bf16.mxu0 0
    %7168 = vmatpush1.bf16.msra.mxu0 %v7147
    %7169 = vmatprep.subr.bf16.mxu0 0
    %7170 = vmatpush1.bf16.msra.mxu0 %v7148
    %7171 = vmatprep.subr.bf16.mxu0 0
    %7172 = vmatpush1.bf16.msra.mxu0 %v7149
    %7173 = vmatprep.subr.bf16.mxu0 0
    %7174 = vmatpush1.bf16.msra.mxu0 %v7150
    %7175 = vmatprep.subr.bf16.mxu0 0
    %7176 = vmatpush1.bf16.msra.mxu0 0
    %7177 = vmatprep.subr.bf16.mxu0 0
    %7178 = vmatpush1.bf16.msra.mxu0 0
    %7179 = vmatprep.subr.bf16.mxu0 0
    %7180 = vmatpush1.bf16.msra.mxu0 0
    %7181 = vmatprep.subr.bf16.mxu0 0
    %7182 = vmatpush1.bf16.msra.mxu0 0
    %7183 = vmatprep.subr.bf16.mxu0 0
    %7184 = vmatpush1.bf16.msra.mxu0 0
    %7185 = vmatprep.subr.bf16.mxu0 0
    %7186 = vmatpush1.bf16.msra.mxu0 0
    %7187 = vmatprep.subr.bf16.mxu0 0
    %7188 = vmatpush1.bf16.msra.mxu0 0
    %7189 = vmatprep.subr.bf16.mxu0 0
    %7190 = vmatpush1.bf16.msra.mxu0 0
    %7191 = vmatprep.subr.bf16.mxu0 0
    %7192 = vmatpush1.bf16.msra.mxu0 0
    %7193 = vmatprep.subr.bf16.mxu0 0
    %7194 = vmatpush1.bf16.msra.mxu0 0
    %7195 = vmatprep.subr.bf16.mxu0 0
    %7196 = vmatpush1.bf16.msra.mxu0 0
    %7197 = vmatprep.subr.bf16.mxu0 0
    %7198 = vmatpush1.bf16.msra.mxu0 0
    %7199 = vmatprep.mubr.bf16.mxu0 0
    %7200 = vmatmul.mubr.bf16.gmra.mrb[0].mxu0 %v7156
    %v7201 = vpop.f32.mrb[0].mxu0
    %v7202 = vadd.f32 %v7129, %v7201
    %v7203 = vpop.f32.mrb[0].mxu0
    %v7204 = vpop.f32.mrb[0].mxu0
    %v7205 = vadd.f32 %v7129, %v7204
    %v7206 = vpop.f32.mrb[0].mxu0
    %7207 = vmatprep.mubr.bf16.mxu0 0
    %7208 = vmatmul.mubr.bf16.gmra.mrb[0].mxu0 %v7159
    %v7209 = vpop.f32.mrb[0].mxu0
    %v7210 = vadd.f32 %v7129, %v7209
    %v7211 = vpop.f32.mrb[0].mxu0
    %v7212 = vpop.f32.mrb[0].mxu0
    %v7213 = vadd.f32 %v7129, %v7212
    %v7214 = vpop.f32.mrb[0].mxu0
    %7215 = vmatprep.mubr.bf16.mxu0 0
    %7216 = vmatmul.mubr.bf16.gmra.mrb[0].mxu0 %v7162
    %v7217 = vpop.f32.mrb[0].mxu0
    %v7218 = vadd.f32 %v7129, %v7217
    %v7219 = vpop.f32.mrb[0].mxu0
    %v7220 = vpop.f32.mrb[0].mxu0
    %v7221 = vadd.f32 %v7129, %v7220
    %v7222 = vpop.f32.mrb[0].mxu0
    %7223 = vmatprep.mubr.bf16.mxu0 0
    %7224 = vmatmul.mubr.bf16.gmra.mrb[0].mxu0 %v7165
    %v7225 = vpop.f32.mrb[0].mxu0
    %v7226 = vadd.f32 %v7129, %v7225
    %v7227 = vpop.f32.mrb[0].mxu0
    %v7228 = vpop.f32.mrb[0].mxu0
    %v7229 = vadd.f32 %v7129, %v7228
    %v7230 = vpop.f32.mrb[0].mxu0
    %7231 = vdwg.mxu0
    %v7232 = vadd.f32 %v6972, %v7202
    %v7233 = vadd.f32 %v6973, %v7205
    %v7234 = vadd.f32 %v6974, %v7210
    %v7235 = vadd.f32 %v6975, %v7213
    %v7236 = vadd.f32 %v6976, %v7218
    %v7237 = vadd.f32 %v6977, %v7221
    %v7238 = vadd.f32 %v6978, %v7226
    %v7239 = vadd.f32 %v6979, %v7229
    %s7240 = scalar_lea.vmem [#allocation22], 1
    %v7241 = vld [vmem:[%s7240] sm:$0x1]
    %s7242 = scalar_lea.vmem [#allocation23], 1
    %v7243 = vld [vmem:[%s7242] sm:$0x1]
    %v7244 = vsel %vm671, %v7232, 0.0
    %7245 = vadd.xlane.f32.xlu0 %v7244
    %v7246 = vpop.xlane.xlu0 %7245
    %v7247 = vsel %vm671, %v7233, 0.0
    %7248 = vadd.xlane.f32.xlu0 %v7247
    %v7249 = vpop.xlane.xlu0 %7248
    %v7250 = vsel %vm671, %v7234, 0.0
    %7251 = vadd.xlane.f32.xlu0 %v7250
    %v7252 = vpop.xlane.xlu0 %7251
    %v7253 = vsel %vm671, %v7235, 0.0
    %7254 = vadd.xlane.f32.xlu0 %v7253
    %v7255 = vpop.xlane.xlu0 %7254
    %v7256 = vsel %vm671, %v7236, 0.0
    %7257 = vadd.xlane.f32.xlu0 %v7256
    %v7258 = vpop.xlane.xlu0 %7257
    %v7259 = vsel %vm671, %v7237, 0.0
    %7260 = vadd.xlane.f32.xlu0 %v7259
    %v7261 = vpop.xlane.xlu0 %7260
    %v7262 = vsel %vm671, %v7238, 0.0
    %7263 = vadd.xlane.f32.xlu0 %v7262
    %v7264 = vpop.xlane.xlu0 %7263
    %v7265 = vsel %vm671, %v7239, 0.0
    %7266 = vadd.xlane.f32.xlu0 %v7265
    %v7267 = vpop.xlane.xlu0 %7266
    %v7268 = vmul.f32 %v7246, %v3342
    %v7269 = vmul.f32 %v7249, %v3342
    %v7270 = vmul.f32 %v7252, %v3342
    %v7271 = vmul.f32 %v7255, %v3342
    %v7272 = vmul.f32 %v7258, %v3342
    %v7273 = vmul.f32 %v7261, %v3342
    %v7274 = vmul.f32 %v7264, %v3342
    %v7275 = vmul.f32 %v7267, %v3342
    %v7276 = vsub.f32 %v7232, %v7268
    %v7277 = vsub.f32 %v7233, %v7269
    %v7278 = vsub.f32 %v7234, %v7270
    %v7279 = vsub.f32 %v7235, %v7271
    %v7280 = vsub.f32 %v7236, %v7272
    %v7281 = vsub.f32 %v7237, %v7273
    %v7282 = vsub.f32 %v7238, %v7274
    %v7283 = vsub.f32 %v7239, %v7275
    %v7284 = vmul.f32 %v7276, %v7276
    %v7285 = vmul.f32 %v7277, %v7277
    %v7286 = vmul.f32 %v7278, %v7278
    %v7287 = vmul.f32 %v7279, %v7279
    %v7288 = vmul.f32 %v7280, %v7280
    %v7289 = vmul.f32 %v7281, %v7281
    %v7290 = vmul.f32 %v7282, %v7282
    %v7291 = vmul.f32 %v7283, %v7283
    %v7292 = vsel %vm671, %v7284, 0.0
    %7293 = vadd.xlane.f32.xlu0 %v7292
    %v7294 = vpop.xlane.xlu0 %7293
    %v7295 = vsel %vm671, %v7285, 0.0
    %7296 = vadd.xlane.f32.xlu0 %v7295
    %v7297 = vpop.xlane.xlu0 %7296
    %v7298 = vsel %vm671, %v7286, 0.0
    %7299 = vadd.xlane.f32.xlu0 %v7298
    %v7300 = vpop.xlane.xlu0 %7299
    %v7301 = vsel %vm671, %v7287, 0.0
    %7302 = vadd.xlane.f32.xlu0 %v7301
    %v7303 = vpop.xlane.xlu0 %7302
    %v7304 = vsel %vm671, %v7288, 0.0
    %7305 = vadd.xlane.f32.xlu0 %v7304
    %v7306 = vpop.xlane.xlu0 %7305
    %v7307 = vsel %vm671, %v7289, 0.0
    %7308 = vadd.xlane.f32.xlu0 %v7307
    %v7309 = vpop.xlane.xlu0 %7308
    %v7310 = vsel %vm671, %v7290, 0.0
    %7311 = vadd.xlane.f32.xlu0 %v7310
    %v7312 = vpop.xlane.xlu0 %7311
    %v7313 = vsel %vm671, %v7291, 0.0
    %7314 = vadd.xlane.f32.xlu0 %v7313
    %v7315 = vpop.xlane.xlu0 %7314
    %v7316 = vmul.f32 %v7294, %v3342
    %v7317 = vmul.f32 %v7297, %v3342
    %v7318 = vmul.f32 %v7300, %v3342
    %v7319 = vmul.f32 %v7303, %v3342
    %v7320 = vmul.f32 %v7306, %v3342
    %v7321 = vmul.f32 %v7309, %v3342
    %v7322 = vmul.f32 %v7312, %v3342
    %v7323 = vmul.f32 %v7315, %v3342
    %v7324 = vadd.f32 %v7316, 1e-05
    %v7325 = vadd.f32 %v7317, 1e-05
    %v7326 = vadd.f32 %v7318, 1e-05
    %v7327 = vadd.f32 %v7319, 1e-05
    %v7328 = vadd.f32 %v7320, 1e-05
    %v7329 = vadd.f32 %v7321, 1e-05
    %v7330 = vadd.f32 %v7322, 1e-05
    %v7331 = vadd.f32 %v7323, 1e-05
    %v7332 = vrsqrt.pop %v7324
    %v7333 = vrsqrt.pop %v7325
    %v7334 = vrsqrt.pop %v7326
    %v7335 = vrsqrt.pop %v7327
    %v7336 = vrsqrt.pop %v7328
    %v7337 = vrsqrt.pop %v7329
    %v7338 = vrsqrt.pop %v7330
    %v7339 = vrsqrt.pop %v7331
    %v7340 = vmul.f32 %v7276, %v7332
    %v7341 = vmul.f32 %v7277, %v7333
    %v7342 = vmul.f32 %v7278, %v7334
    %v7343 = vmul.f32 %v7279, %v7335
    %v7344 = vmul.f32 %v7280, %v7336
    %v7345 = vmul.f32 %v7281, %v7337
    %v7346 = vmul.f32 %v7282, %v7338
    %v7347 = vmul.f32 %v7283, %v7339
    %v7349 = vlaneseq
    %v7350 = vshrl.u32 %v7349, 7
    %v7351 = vsub.s32 0, %v7350
    %v7352 = vrot.slane %v7241, %v7351
    %v7354 = vmul.f32 %v7340, %v7352
    %v7355 = vmul.f32 %v7341, %v7352
    %v7356 = vmul.f32 %v7342, %v7352
    %v7357 = vmul.f32 %v7343, %v7352
    %v7358 = vmul.f32 %v7344, %v7352
    %v7359 = vmul.f32 %v7345, %v7352
    %v7360 = vmul.f32 %v7346, %v7352
    %v7361 = vmul.f32 %v7347, %v7352
    %v7363 = vlaneseq
    %v7364 = vshrl.u32 %v7363, 7
    %v7365 = vsub.s32 0, %v7364
    %v7366 = vrot.slane %v7243, %v7365
    %v7368 = vadd.f32 %v7354, %v7366
    %v7369 = vadd.f32 %v7355, %v7366
    %v7370 = vadd.f32 %v7356, %v7366
    %v7371 = vadd.f32 %v7357, %v7366
    %v7372 = vadd.f32 %v7358, %v7366
    %v7373 = vadd.f32 %v7359, %v7366
    %v7374 = vadd.f32 %v7360, %v7366
    %v7375 = vadd.f32 %v7361, %v7366
    %s7376 = scalar_lea.vmem [#allocation7], 768
    %v7377 = vld [vmem:[%s7376] sm:$0xff]
    %v7378 = vld [vmem:[%s7376 + $0x8] sm:$0xff]
    %v7379 = vld [vmem:[%s7376 + $0x10] sm:$0xff]
    %v7380 = vld [vmem:[%s7376 + $0x18] sm:$0xff]
    %v7381 = vld [vmem:[%s7376 + $0x20] sm:$0xff]
    %v7382 = vld [vmem:[%s7376 + $0x28] sm:$0xff]
    %v7383 = vld [vmem:[%s7376 + $0x30] sm:$0xff]
    %v7384 = vld [vmem:[%s7376 + $0x38] sm:$0xff]
    %v7385 = vld [vmem:[%s7376 + $0x40] sm:$0xff]
    %v7386 = vld [vmem:[%s7376 + $0x48] sm:$0xff]
    %v7387 = vld [vmem:[%s7376 + $0x50] sm:$0xff]
    %v7388 = vld [vmem:[%s7376 + $0x58] sm:$0xff]
    %v7389 = vld [vmem:[%s7376 + $0x60] sm:$0xff]
    %v7390 = vld [vmem:[%s7376 + $0x68] sm:$0xff]
    %v7391 = vld [vmem:[%s7376 + $0x70] sm:$0xff]
    %v7392 = vld [vmem:[%s7376 + $0x78] sm:$0xff]
    %v7393 = vld [vmem:[%s7376 + $0x80] sm:$0xff]
    %v7394 = vld [vmem:[%s7376 + $0x88] sm:$0xff]
    %v7395 = vld [vmem:[%s7376 + $0x90] sm:$0xff]
    %v7396 = vld [vmem:[%s7376 + $0x98] sm:$0xff]
    %v7397 = vld [vmem:[%s7376 + $0xa0] sm:$0xff]
    %v7398 = vld [vmem:[%s7376 + $0xa8] sm:$0xff]
    %v7399 = vld [vmem:[%s7376 + $0xb0] sm:$0xff]
    %v7400 = vld [vmem:[%s7376 + $0xb8] sm:$0xff]
    %v7401 = vld [vmem:[%s7376 + $0xc0] sm:$0xff]
    %v7402 = vld [vmem:[%s7376 + $0xc8] sm:$0xff]
    %v7403 = vld [vmem:[%s7376 + $0xd0] sm:$0xff]
    %v7404 = vld [vmem:[%s7376 + $0xd8] sm:$0xff]
    %v7405 = vld [vmem:[%s7376 + $0xe0] sm:$0xff]
    %v7406 = vld [vmem:[%s7376 + $0xe8] sm:$0xff]
    %v7407 = vld [vmem:[%s7376 + $0xf0] sm:$0xff]
    %v7408 = vld [vmem:[%s7376 + $0xf8] sm:$0xff]
    %v7409 = vld [vmem:[%s7376 + $0x100] sm:$0xff]
    %v7410 = vld [vmem:[%s7376 + $0x108] sm:$0xff]
    %v7411 = vld [vmem:[%s7376 + $0x110] sm:$0xff]
    %v7412 = vld [vmem:[%s7376 + $0x118] sm:$0xff]
    %v7413 = vld [vmem:[%s7376 + $0x120] sm:$0xff]
    %v7414 = vld [vmem:[%s7376 + $0x128] sm:$0xff]
    %v7415 = vld [vmem:[%s7376 + $0x130] sm:$0xff]
    %v7416 = vld [vmem:[%s7376 + $0x138] sm:$0xff]
    %v7417 = vld [vmem:[%s7376 + $0x140] sm:$0xff]
    %v7418 = vld [vmem:[%s7376 + $0x148] sm:$0xff]
    %v7419 = vld [vmem:[%s7376 + $0x150] sm:$0xff]
    %v7420 = vld [vmem:[%s7376 + $0x158] sm:$0xff]
    %v7421 = vld [vmem:[%s7376 + $0x160] sm:$0xff]
    %v7422 = vld [vmem:[%s7376 + $0x168] sm:$0xff]
    %v7423 = vld [vmem:[%s7376 + $0x170] sm:$0xff]
    %v7424 = vld [vmem:[%s7376 + $0x178] sm:$0xff]
    %v7425 = vpack.c.bf16 %v7369, %v7368
    %v7426 = vpack.c.bf16 %v7371, %v7370
    %v7427 = vpack.c.bf16 %v7373, %v7372
    %v7428 = vpack.c.bf16 %v7375, %v7374
    %s7429 = scalar_lea.vmem [#allocation8], 24
    %v7430 = vld [vmem:[%s7429] sm:$0xff]
    %v7431 = vld [vmem:[%s7429 + $0x8] sm:$0xf]
    %v7434 = vlaneseq
    %v7435 = vshrl.u32 %v7434, 7
    %v7436 = vsub.s32 0, %v7435
    %v7437 = vrot.slane %v7430, %v7436
    %v7438 = vlaneseq
    %v7439 = vshrl.u32 %v7438, 7
    %v7440 = vsub.s32 1, %v7439
    %v7441 = vrot.slane %v7430, %v7440
    %v7442 = vlaneseq
    %v7443 = vshrl.u32 %v7442, 7
    %v7444 = vsub.s32 2, %v7443
    %v7445 = vrot.slane %v7430, %v7444
    %v7446 = vlaneseq
    %v7447 = vshrl.u32 %v7446, 7
    %v7448 = vsub.s32 3, %v7447
    %v7449 = vrot.slane %v7430, %v7448
    %v7450 = vlaneseq
    %v7451 = vshrl.u32 %v7450, 7
    %v7452 = vsub.s32 4, %v7451
    %v7453 = vrot.slane %v7430, %v7452
    %v7454 = vlaneseq
    %v7455 = vshrl.u32 %v7454, 7
    %v7456 = vsub.s32 5, %v7455
    %v7457 = vrot.slane %v7430, %v7456
    %v7458 = vlaneseq
    %v7459 = vshrl.u32 %v7458, 7
    %v7460 = vsub.s32 6, %v7459
    %v7461 = vrot.slane %v7430, %v7460
    %v7462 = vlaneseq
    %v7463 = vshrl.u32 %v7462, 7
    %v7464 = vsub.s32 7, %v7463
    %v7465 = vrot.slane %v7430, %v7464
    %v7466 = vlaneseq
    %v7467 = vshrl.u32 %v7466, 7
    %v7468 = vsub.s32 0, %v7467
    %v7469 = vrot.slane %v7431, %v7468
    %v7470 = vlaneseq
    %v7471 = vshrl.u32 %v7470, 7
    %v7472 = vsub.s32 1, %v7471
    %v7473 = vrot.slane %v7431, %v7472
    %v7474 = vlaneseq
    %v7475 = vshrl.u32 %v7474, 7
    %v7476 = vsub.s32 2, %v7475
    %v7477 = vrot.slane %v7431, %v7476
    %v7478 = vlaneseq
    %v7479 = vshrl.u32 %v7478, 7
    %v7480 = vsub.s32 3, %v7479
    %v7481 = vrot.slane %v7431, %v7480
    %v7542 = vunpack.c.l.b16 %v7377
    %v7543 = vunpack.c.h.b16 %v7377
    %v7544 = vunpack.c.l.b16 %v7378
    %v7545 = vunpack.c.h.b16 %v7378
    %v7546 = vunpack.c.l.b16 %v7379
    %v7547 = vunpack.c.h.b16 %v7379
    %v7548 = vunpack.c.l.b16 %v7380
    %v7549 = vunpack.c.h.b16 %v7380
    %v7550 = vunpack.c.l.b16 %v7381
    %v7551 = vunpack.c.h.b16 %v7381
    %v7552 = vunpack.c.l.b16 %v7382
    %v7553 = vunpack.c.h.b16 %v7382
    %v7554 = vunpack.c.l.b16 %v7383
    %v7555 = vunpack.c.h.b16 %v7383
    %v7556 = vunpack.c.l.b16 %v7384
    %v7557 = vunpack.c.h.b16 %v7384
    %v7558 = vunpack.c.l.b16 %v7385
    %v7559 = vunpack.c.h.b16 %v7385
    %v7560 = vunpack.c.l.b16 %v7386
    %v7561 = vunpack.c.h.b16 %v7386
    %v7562 = vunpack.c.l.b16 %v7387
    %v7563 = vunpack.c.h.b16 %v7387
    %v7564 = vunpack.c.l.b16 %v7388
    %v7565 = vunpack.c.h.b16 %v7388
    %v7566 = vunpack.c.l.b16 %v7389
    %v7567 = vunpack.c.h.b16 %v7389
    %v7568 = vunpack.c.l.b16 %v7390
    %v7569 = vunpack.c.h.b16 %v7390
    %v7570 = vunpack.c.l.b16 %v7391
    %v7571 = vunpack.c.h.b16 %v7391
    %v7572 = vunpack.c.l.b16 %v7392
    %v7573 = vunpack.c.h.b16 %v7392
    %v7574 = vunpack.c.l.b16 %v7393
    %v7575 = vunpack.c.h.b16 %v7393
    %v7576 = vunpack.c.l.b16 %v7394
    %v7577 = vunpack.c.h.b16 %v7394
    %v7578 = vunpack.c.l.b16 %v7395
    %v7579 = vunpack.c.h.b16 %v7395
    %v7580 = vunpack.c.l.b16 %v7396
    %v7581 = vunpack.c.h.b16 %v7396
    %v7582 = vunpack.c.l.b16 %v7397
    %v7583 = vunpack.c.h.b16 %v7397
    %v7584 = vunpack.c.l.b16 %v7398
    %v7585 = vunpack.c.h.b16 %v7398
    %v7586 = vunpack.c.l.b16 %v7399
    %v7587 = vunpack.c.h.b16 %v7399
    %v7588 = vunpack.c.l.b16 %v7400
    %v7589 = vunpack.c.h.b16 %v7400
    %v7590 = vunpack.c.l.b16 %v7401
    %v7591 = vunpack.c.h.b16 %v7401
    %v7592 = vunpack.c.l.b16 %v7402
    %v7593 = vunpack.c.h.b16 %v7402
    %v7594 = vunpack.c.l.b16 %v7403
    %v7595 = vunpack.c.h.b16 %v7403
    %v7596 = vunpack.c.l.b16 %v7404
    %v7597 = vunpack.c.h.b16 %v7404
    %v7598 = vunpack.c.l.b16 %v7405
    %v7599 = vunpack.c.h.b16 %v7405
    %v7600 = vunpack.c.l.b16 %v7406
    %v7601 = vunpack.c.h.b16 %v7406
    %v7602 = vunpack.c.l.b16 %v7407
    %v7603 = vunpack.c.h.b16 %v7407
    %v7604 = vunpack.c.l.b16 %v7408
    %v7605 = vunpack.c.h.b16 %v7408
    %v7606 = vunpack.c.l.b16 %v7409
    %v7607 = vunpack.c.h.b16 %v7409
    %v7608 = vunpack.c.l.b16 %v7410
    %v7609 = vunpack.c.h.b16 %v7410
    %v7610 = vunpack.c.l.b16 %v7411
    %v7611 = vunpack.c.h.b16 %v7411
    %v7612 = vunpack.c.l.b16 %v7412
    %v7613 = vunpack.c.h.b16 %v7412
    %v7614 = vunpack.c.l.b16 %v7413
    %v7615 = vunpack.c.h.b16 %v7413
    %v7616 = vunpack.c.l.b16 %v7414
    %v7617 = vunpack.c.h.b16 %v7414
    %v7618 = vunpack.c.l.b16 %v7415
    %v7619 = vunpack.c.h.b16 %v7415
    %v7620 = vunpack.c.l.b16 %v7416
    %v7621 = vunpack.c.h.b16 %v7416
    %v7622 = vunpack.c.l.b16 %v7417
    %v7623 = vunpack.c.h.b16 %v7417
    %v7624 = vunpack.c.l.b16 %v7418
    %v7625 = vunpack.c.h.b16 %v7418
    %v7626 = vunpack.c.l.b16 %v7419
    %v7627 = vunpack.c.h.b16 %v7419
    %v7628 = vunpack.c.l.b16 %v7420
    %v7629 = vunpack.c.h.b16 %v7420
    %v7630 = vunpack.c.l.b16 %v7421
    %v7631 = vunpack.c.h.b16 %v7421
    %v7632 = vunpack.c.l.b16 %v7422
    %v7633 = vunpack.c.h.b16 %v7422
    %v7634 = vunpack.c.l.b16 %v7423
    %v7635 = vunpack.c.h.b16 %v7423
    %v7636 = vunpack.c.l.b16 %v7424
    %v7637 = vunpack.c.h.b16 %v7424
    %v7638 = vpack.c.b16 %v7554, %v7542
    %v7639 = vpack.c.b16 %v7555, %v7543
    %v7640 = vpack.c.b16 %v7556, %v7544
    %v7641 = vpack.c.b16 %v7557, %v7545
    %v7642 = vpack.c.b16 %v7558, %v7546
    %v7643 = vpack.c.b16 %v7559, %v7547
    %v7644 = vpack.c.b16 %v7560, %v7548
    %v7645 = vpack.c.b16 %v7561, %v7549
    %v7646 = vpack.c.b16 %v7562, %v7550
    %v7647 = vpack.c.b16 %v7563, %v7551
    %v7648 = vpack.c.b16 %v7564, %v7552
    %v7649 = vpack.c.b16 %v7565, %v7553
    %v7650 = vpack.c.b16 %v7578, %v7566
    %v7651 = vpack.c.b16 %v7579, %v7567
    %v7652 = vpack.c.b16 %v7580, %v7568
    %v7653 = vpack.c.b16 %v7581, %v7569
    %v7654 = vpack.c.b16 %v7582, %v7570
    %v7655 = vpack.c.b16 %v7583, %v7571
    %v7656 = vpack.c.b16 %v7584, %v7572
    %v7657 = vpack.c.b16 %v7585, %v7573
    %v7658 = vpack.c.b16 %v7586, %v7574
    %v7659 = vpack.c.b16 %v7587, %v7575
    %v7660 = vpack.c.b16 %v7588, %v7576
    %v7661 = vpack.c.b16 %v7589, %v7577
    %v7662 = vpack.c.b16 %v7602, %v7590
    %v7663 = vpack.c.b16 %v7603, %v7591
    %v7664 = vpack.c.b16 %v7604, %v7592
    %v7665 = vpack.c.b16 %v7605, %v7593
    %v7666 = vpack.c.b16 %v7606, %v7594
    %v7667 = vpack.c.b16 %v7607, %v7595
    %v7668 = vpack.c.b16 %v7608, %v7596
    %v7669 = vpack.c.b16 %v7609, %v7597
    %v7670 = vpack.c.b16 %v7610, %v7598
    %v7671 = vpack.c.b16 %v7611, %v7599
    %v7672 = vpack.c.b16 %v7612, %v7600
    %v7673 = vpack.c.b16 %v7613, %v7601
    %v7674 = vpack.c.b16 %v7626, %v7614
    %v7675 = vpack.c.b16 %v7627, %v7615
    %v7676 = vpack.c.b16 %v7628, %v7616
    %v7677 = vpack.c.b16 %v7629, %v7617
    %v7678 = vpack.c.b16 %v7630, %v7618
    %v7679 = vpack.c.b16 %v7631, %v7619
    %v7680 = vpack.c.b16 %v7632, %v7620
    %v7681 = vpack.c.b16 %v7633, %v7621
    %v7682 = vpack.c.b16 %v7634, %v7622
    %v7683 = vpack.c.b16 %v7635, %v7623
    %v7684 = vpack.c.b16 %v7636, %v7624
    %v7685 = vpack.c.b16 %v7637, %v7625
    %v7735 = vsel %vm671, %v7425, 0
    %v7738 = vsel %vm671, %v7426, 0
    %v7741 = vsel %vm671, %v7427, 0
    %v7744 = vsel %vm671, %v7428, 0
    %7746 = vmatprep.subr.bf16.mxu0 %v7639
    %7747 = vmatpush1.bf16.msra.mxu0 %v7638
    %7748 = vmatprep.subr.bf16.mxu0 %v7651
    %7749 = vmatpush1.bf16.msra.mxu0 %v7650
    %7750 = vmatprep.subr.bf16.mxu0 %v7663
    %7751 = vmatpush1.bf16.msra.mxu0 %v7662
    %7752 = vmatprep.subr.bf16.mxu0 %v7675
    %7753 = vmatpush1.bf16.msra.mxu0 %v7674
    %7754 = vmatprep.subr.bf16.mxu0 0
    %7755 = vmatpush1.bf16.msra.mxu0 0
    %7756 = vmatprep.subr.bf16.mxu0 0
    %7757 = vmatpush1.bf16.msra.mxu0 0
    %7758 = vmatprep.subr.bf16.mxu0 0
    %7759 = vmatpush1.bf16.msra.mxu0 0
    %7760 = vmatprep.subr.bf16.mxu0 0
    %7761 = vmatpush1.bf16.msra.mxu0 0
    %7762 = vmatprep.subr.bf16.mxu0 0
    %7763 = vmatpush1.bf16.msra.mxu0 0
    %7764 = vmatprep.subr.bf16.mxu0 0
    %7765 = vmatpush1.bf16.msra.mxu0 0
    %7766 = vmatprep.subr.bf16.mxu0 0
    %7767 = vmatpush1.bf16.msra.mxu0 0
    %7768 = vmatprep.subr.bf16.mxu0 0
    %7769 = vmatpush1.bf16.msra.mxu0 0
    %7770 = vmatprep.subr.bf16.mxu0 0
    %7771 = vmatpush1.bf16.msra.mxu0 0
    %7772 = vmatprep.subr.bf16.mxu0 0
    %7773 = vmatpush1.bf16.msra.mxu0 0
    %7774 = vmatprep.subr.bf16.mxu0 0
    %7775 = vmatpush1.bf16.msra.mxu0 0
    %7776 = vmatprep.subr.bf16.mxu0 0
    %7777 = vmatpush1.bf16.msra.mxu0 0
    %7778 = vmatprep.mubr.bf16.mxu0 0
    %7779 = vmatmul.mubr.bf16.gmra.mrb[0].mxu0 %v7735
    %v7780 = vpop.f32.mrb[0].mxu0
    %v7781 = vadd.f32 %v7437, %v7780
    %v7782 = vpop.f32.mrb[0].mxu0
    %v7783 = vadd.f32 %v7441, %v7782
    %v7784 = vpop.f32.mrb[0].mxu0
    %v7785 = vadd.f32 %v7437, %v7784
    %v7786 = vpop.f32.mrb[0].mxu0
    %v7787 = vadd.f32 %v7441, %v7786
    %7788 = vmatprep.mubr.bf16.mxu0 0
    %7789 = vmatmul.mubr.bf16.gmra.mrb[0].mxu0 %v7738
    %v7790 = vpop.f32.mrb[0].mxu0
    %v7791 = vadd.f32 %v7437, %v7790
    %v7792 = vpop.f32.mrb[0].mxu0
    %v7793 = vadd.f32 %v7441, %v7792
    %v7794 = vpop.f32.mrb[0].mxu0
    %v7795 = vadd.f32 %v7437, %v7794
    %v7796 = vpop.f32.mrb[0].mxu0
    %v7797 = vadd.f32 %v7441, %v7796
    %7798 = vmatprep.mubr.bf16.mxu0 0
    %7799 = vmatmul.mubr.bf16.gmra.mrb[0].mxu0 %v7741
    %v7800 = vpop.f32.mrb[0].mxu0
    %v7801 = vadd.f32 %v7437, %v7800
    %v7802 = vpop.f32.mrb[0].mxu0
    %v7803 = vadd.f32 %v7441, %v7802
    %v7804 = vpop.f32.mrb[0].mxu0
    %v7805 = vadd.f32 %v7437, %v7804
    %v7806 = vpop.f32.mrb[0].mxu0
    %v7807 = vadd.f32 %v7441, %v7806
    %7808 = vmatprep.mubr.bf16.mxu0 0
    %7809 = vmatmul.mubr.bf16.gmra.mrb[0].mxu0 %v7744
    %v7810 = vpop.f32.mrb[0].mxu0
    %v7811 = vadd.f32 %v7437, %v7810
    %v7812 = vpop.f32.mrb[0].mxu0
    %v7813 = vadd.f32 %v7441, %v7812
    %v7814 = vpop.f32.mrb[0].mxu0
    %v7815 = vadd.f32 %v7437, %v7814
    %v7816 = vpop.f32.mrb[0].mxu0
    %v7817 = vadd.f32 %v7441, %v7816
    %7818 = vdwg.mxu0
    %7819 = vmatprep.subr.bf16.mxu0 %v7641
    %7820 = vmatpush1.bf16.msra.mxu0 %v7640
    %7821 = vmatprep.subr.bf16.mxu0 %v7653
    %7822 = vmatpush1.bf16.msra.mxu0 %v7652
    %7823 = vmatprep.subr.bf16.mxu0 %v7665
    %7824 = vmatpush1.bf16.msra.mxu0 %v7664
    %7825 = vmatprep.subr.bf16.mxu0 %v7677
    %7826 = vmatpush1.bf16.msra.mxu0 %v7676
    %7827 = vmatprep.subr.bf16.mxu0 0
    %7828 = vmatpush1.bf16.msra.mxu0 0
    %7829 = vmatprep.subr.bf16.mxu0 0
    %7830 = vmatpush1.bf16.msra.mxu0 0
    %7831 = vmatprep.subr.bf16.mxu0 0
    %7832 = vmatpush1.bf16.msra.mxu0 0
    %7833 = vmatprep.subr.bf16.mxu0 0
    %7834 = vmatpush1.bf16.msra.mxu0 0
    %7835 = vmatprep.subr.bf16.mxu0 0
    %7836 = vmatpush1.bf16.msra.mxu0 0
    %7837 = vmatprep.subr.bf16.mxu0 0
    %7838 = vmatpush1.bf16.msra.mxu0 0
    %7839 = vmatprep.subr.bf16.mxu0 0
    %7840 = vmatpush1.bf16.msra.mxu0 0
    %7841 = vmatprep.subr.bf16.mxu0 0
    %7842 = vmatpush1.bf16.msra.mxu0 0
    %7843 = vmatprep.subr.bf16.mxu0 0
    %7844 = vmatpush1.bf16.msra.mxu0 0
    %7845 = vmatprep.subr.bf16.mxu0 0
    %7846 = vmatpush1.bf16.msra.mxu0 0
    %7847 = vmatprep.subr.bf16.mxu0 0
    %7848 = vmatpush1.bf16.msra.mxu0 0
    %7849 = vmatprep.subr.bf16.mxu0 0
    %7850 = vmatpush1.bf16.msra.mxu0 0
    %7851 = vmatprep.mubr.bf16.mxu0 0
    %7852 = vmatmul.mubr.bf16.gmra.mrb[0].mxu0 %v7735
    %v7853 = vpop.f32.mrb[0].mxu0
    %v7854 = vadd.f32 %v7445, %v7853
    %v7855 = vpop.f32.mrb[0].mxu0
    %v7856 = vadd.f32 %v7449, %v7855
    %v7857 = vpop.f32.mrb[0].mxu0
    %v7858 = vadd.f32 %v7445, %v7857
    %v7859 = vpop.f32.mrb[0].mxu0
    %v7860 = vadd.f32 %v7449, %v7859
    %7861 = vmatprep.mubr.bf16.mxu0 0
    %7862 = vmatmul.mubr.bf16.gmra.mrb[0].mxu0 %v7738
    %v7863 = vpop.f32.mrb[0].mxu0
    %v7864 = vadd.f32 %v7445, %v7863
    %v7865 = vpop.f32.mrb[0].mxu0
    %v7866 = vadd.f32 %v7449, %v7865
    %v7867 = vpop.f32.mrb[0].mxu0
    %v7868 = vadd.f32 %v7445, %v7867
    %v7869 = vpop.f32.mrb[0].mxu0
    %v7870 = vadd.f32 %v7449, %v7869
    %7871 = vmatprep.mubr.bf16.mxu0 0
    %7872 = vmatmul.mubr.bf16.gmra.mrb[0].mxu0 %v7741
    %v7873 = vpop.f32.mrb[0].mxu0
    %v7874 = vadd.f32 %v7445, %v7873
    %v7875 = vpop.f32.mrb[0].mxu0
    %v7876 = vadd.f32 %v7449, %v7875
    %v7877 = vpop.f32.mrb[0].mxu0
    %v7878 = vadd.f32 %v7445, %v7877
    %v7879 = vpop.f32.mrb[0].mxu0
    %v7880 = vadd.f32 %v7449, %v7879
    %7881 = vmatprep.mubr.bf16.mxu0 0
    %7882 = vmatmul.mubr.bf16.gmra.mrb[0].mxu0 %v7744
    %v7883 = vpop.f32.mrb[0].mxu0
    %v7884 = vadd.f32 %v7445, %v7883
    %v7885 = vpop.f32.mrb[0].mxu0
    %v7886 = vadd.f32 %v7449, %v7885
    %v7887 = vpop.f32.mrb[0].mxu0
    %v7888 = vadd.f32 %v7445, %v7887
    %v7889 = vpop.f32.mrb[0].mxu0
    %v7890 = vadd.f32 %v7449, %v7889
    %7891 = vdwg.mxu0
    %7892 = vmatprep.subr.bf16.mxu0 %v7643
    %7893 = vmatpush1.bf16.msra.mxu0 %v7642
    %7894 = vmatprep.subr.bf16.mxu0 %v7655
    %7895 = vmatpush1.bf16.msra.mxu0 %v7654
    %7896 = vmatprep.subr.bf16.mxu0 %v7667
    %7897 = vmatpush1.bf16.msra.mxu0 %v7666
    %7898 = vmatprep.subr.bf16.mxu0 %v7679
    %7899 = vmatpush1.bf16.msra.mxu0 %v7678
    %7900 = vmatprep.subr.bf16.mxu0 0
    %7901 = vmatpush1.bf16.msra.mxu0 0
    %7902 = vmatprep.subr.bf16.mxu0 0
    %7903 = vmatpush1.bf16.msra.mxu0 0
    %7904 = vmatprep.subr.bf16.mxu0 0
    %7905 = vmatpush1.bf16.msra.mxu0 0
    %7906 = vmatprep.subr.bf16.mxu0 0
    %7907 = vmatpush1.bf16.msra.mxu0 0
    %7908 = vmatprep.subr.bf16.mxu0 0
    %7909 = vmatpush1.bf16.msra.mxu0 0
    %7910 = vmatprep.subr.bf16.mxu0 0
    %7911 = vmatpush1.bf16.msra.mxu0 0
    %7912 = vmatprep.subr.bf16.mxu0 0
    %7913 = vmatpush1.bf16.msra.mxu0 0
    %7914 = vmatprep.subr.bf16.mxu0 0
    %7915 = vmatpush1.bf16.msra.mxu0 0
    %7916 = vmatprep.subr.bf16.mxu0 0
    %7917 = vmatpush1.bf16.msra.mxu0 0
    %7918 = vmatprep.subr.bf16.mxu0 0
    %7919 = vmatpush1.bf16.msra.mxu0 0
    %7920 = vmatprep.subr.bf16.mxu0 0
    %7921 = vmatpush1.bf16.msra.mxu0 0
    %7922 = vmatprep.subr.bf16.mxu0 0
    %7923 = vmatpush1.bf16.msra.mxu0 0
    %7924 = vmatprep.mubr.bf16.mxu0 0
    %7925 = vmatmul.mubr.bf16.gmra.mrb[0].mxu0 %v7735
    %v7926 = vpop.f32.mrb[0].mxu0
    %v7927 = vadd.f32 %v7453, %v7926
    %v7928 = vpop.f32.mrb[0].mxu0
    %v7929 = vadd.f32 %v7457, %v7928
    %v7930 = vpop.f32.mrb[0].mxu0
    %v7931 = vadd.f32 %v7453, %v7930
    %v7932 = vpop.f32.mrb[0].mxu0
    %v7933 = vadd.f32 %v7457, %v7932
    %7934 = vmatprep.mubr.bf16.mxu0 0
    %7935 = vmatmul.mubr.bf16.gmra.mrb[0].mxu0 %v7738
    %v7936 = vpop.f32.mrb[0].mxu0
    %v7937 = vadd.f32 %v7453, %v7936
    %v7938 = vpop.f32.mrb[0].mxu0
    %v7939 = vadd.f32 %v7457, %v7938
    %v7940 = vpop.f32.mrb[0].mxu0
    %v7941 = vadd.f32 %v7453, %v7940
    %v7942 = vpop.f32.mrb[0].mxu0
    %v7943 = vadd.f32 %v7457, %v7942
    %7944 = vmatprep.mubr.bf16.mxu0 0
    %7945 = vmatmul.mubr.bf16.gmra.mrb[0].mxu0 %v7741
    %v7946 = vpop.f32.mrb[0].mxu0
    %v7947 = vadd.f32 %v7453, %v7946
    %v7948 = vpop.f32.mrb[0].mxu0
    %v7949 = vadd.f32 %v7457, %v7948
    %v7950 = vpop.f32.mrb[0].mxu0
    %v7951 = vadd.f32 %v7453, %v7950
    %v7952 = vpop.f32.mrb[0].mxu0
    %v7953 = vadd.f32 %v7457, %v7952
    %7954 = vmatprep.mubr.bf16.mxu0 0
    %7955 = vmatmul.mubr.bf16.gmra.mrb[0].mxu0 %v7744
    %v7956 = vpop.f32.mrb[0].mxu0
    %v7957 = vadd.f32 %v7453, %v7956
    %v7958 = vpop.f32.mrb[0].mxu0
    %v7959 = vadd.f32 %v7457, %v7958
    %v7960 = vpop.f32.mrb[0].mxu0
    %v7961 = vadd.f32 %v7453, %v7960
    %v7962 = vpop.f32.mrb[0].mxu0
    %v7963 = vadd.f32 %v7457, %v7962
    %7964 = vdwg.mxu0
    %7965 = vmatprep.subr.bf16.mxu0 %v7645
    %7966 = vmatpush1.bf16.msra.mxu0 %v7644
    %7967 = vmatprep.subr.bf16.mxu0 %v7657
    %7968 = vmatpush1.bf16.msra.mxu0 %v7656
    %7969 = vmatprep.subr.bf16.mxu0 %v7669
    %7970 = vmatpush1.bf16.msra.mxu0 %v7668
    %7971 = vmatprep.subr.bf16.mxu0 %v7681
    %7972 = vmatpush1.bf16.msra.mxu0 %v7680
    %7973 = vmatprep.subr.bf16.mxu0 0
    %7974 = vmatpush1.bf16.msra.mxu0 0
    %7975 = vmatprep.subr.bf16.mxu0 0
    %7976 = vmatpush1.bf16.msra.mxu0 0
    %7977 = vmatprep.subr.bf16.mxu0 0
    %7978 = vmatpush1.bf16.msra.mxu0 0
    %7979 = vmatprep.subr.bf16.mxu0 0
    %7980 = vmatpush1.bf16.msra.mxu0 0
    %7981 = vmatprep.subr.bf16.mxu0 0
    %7982 = vmatpush1.bf16.msra.mxu0 0
    %7983 = vmatprep.subr.bf16.mxu0 0
    %7984 = vmatpush1.bf16.msra.mxu0 0
    %7985 = vmatprep.subr.bf16.mxu0 0
    %7986 = vmatpush1.bf16.msra.mxu0 0
    %7987 = vmatprep.subr.bf16.mxu0 0
    %7988 = vmatpush1.bf16.msra.mxu0 0
    %7989 = vmatprep.subr.bf16.mxu0 0
    %7990 = vmatpush1.bf16.msra.mxu0 0
    %7991 = vmatprep.subr.bf16.mxu0 0
    %7992 = vmatpush1.bf16.msra.mxu0 0
    %7993 = vmatprep.subr.bf16.mxu0 0
    %7994 = vmatpush1.bf16.msra.mxu0 0
    %7995 = vmatprep.subr.bf16.mxu0 0
    %7996 = vmatpush1.bf16.msra.mxu0 0
    %7997 = vmatprep.mubr.bf16.mxu0 0
    %7998 = vmatmul.mubr.bf16.gmra.mrb[0].mxu0 %v7735
    %v7999 = vpop.f32.mrb[0].mxu0
    %v8000 = vadd.f32 %v7461, %v7999
    %v8001 = vpop.f32.mrb[0].mxu0
    %v8002 = vadd.f32 %v7465, %v8001
    %v8003 = vpop.f32.mrb[0].mxu0
    %v8004 = vadd.f32 %v7461, %v8003
    %v8005 = vpop.f32.mrb[0].mxu0
    %v8006 = vadd.f32 %v7465, %v8005
    %8007 = vmatprep.mubr.bf16.mxu0 0
    %8008 = vmatmul.mubr.bf16.gmra.mrb[0].mxu0 %v7738
    %v8009 = vpop.f32.mrb[0].mxu0
    %v8010 = vadd.f32 %v7461, %v8009
    %v8011 = vpop.f32.mrb[0].mxu0
    %v8012 = vadd.f32 %v7465, %v8011
    %v8013 = vpop.f32.mrb[0].mxu0
    %v8014 = vadd.f32 %v7461, %v8013
    %v8015 = vpop.f32.mrb[0].mxu0
    %v8016 = vadd.f32 %v7465, %v8015
    %8017 = vmatprep.mubr.bf16.mxu0 0
    %8018 = vmatmul.mubr.bf16.gmra.mrb[0].mxu0 %v7741
    %v8019 = vpop.f32.mrb[0].mxu0
    %v8020 = vadd.f32 %v7461, %v8019
    %v8021 = vpop.f32.mrb[0].mxu0
    %v8022 = vadd.f32 %v7465, %v8021
    %v8023 = vpop.f32.mrb[0].mxu0
    %v8024 = vadd.f32 %v7461, %v8023
    %v8025 = vpop.f32.mrb[0].mxu0
    %v8026 = vadd.f32 %v7465, %v8025
    %8027 = vmatprep.mubr.bf16.mxu0 0
    %8028 = vmatmul.mubr.bf16.gmra.mrb[0].mxu0 %v7744
    %v8029 = vpop.f32.mrb[0].mxu0
    %v8030 = vadd.f32 %v7461, %v8029
    %v8031 = vpop.f32.mrb[0].mxu0
    %v8032 = vadd.f32 %v7465, %v8031
    %v8033 = vpop.f32.mrb[0].mxu0
    %v8034 = vadd.f32 %v7461, %v8033
    %v8035 = vpop.f32.mrb[0].mxu0
    %v8036 = vadd.f32 %v7465, %v8035
    %8037 = vdwg.mxu0
    %8038 = vmatprep.subr.bf16.mxu0 %v7647
    %8039 = vmatpush1.bf16.msra.mxu0 %v7646
    %8040 = vmatprep.subr.bf16.mxu0 %v7659
    %8041 = vmatpush1.bf16.msra.mxu0 %v7658
    %8042 = vmatprep.subr.bf16.mxu0 %v7671
    %8043 = vmatpush1.bf16.msra.mxu0 %v7670
    %8044 = vmatprep.subr.bf16.mxu0 %v7683
    %8045 = vmatpush1.bf16.msra.mxu0 %v7682
    %8046 = vmatprep.subr.bf16.mxu0 0
    %8047 = vmatpush1.bf16.msra.mxu0 0
    %8048 = vmatprep.subr.bf16.mxu0 0
    %8049 = vmatpush1.bf16.msra.mxu0 0
    %8050 = vmatprep.subr.bf16.mxu0 0
    %8051 = vmatpush1.bf16.msra.mxu0 0
    %8052 = vmatprep.subr.bf16.mxu0 0
    %8053 = vmatpush1.bf16.msra.mxu0 0
    %8054 = vmatprep.subr.bf16.mxu0 0
    %8055 = vmatpush1.bf16.msra.mxu0 0
    %8056 = vmatprep.subr.bf16.mxu0 0
    %8057 = vmatpush1.bf16.msra.mxu0 0
    %8058 = vmatprep.subr.bf16.mxu0 0
    %8059 = vmatpush1.bf16.msra.mxu0 0
    %8060 = vmatprep.subr.bf16.mxu0 0
    %8061 = vmatpush1.bf16.msra.mxu0 0
    %8062 = vmatprep.subr.bf16.mxu0 0
    %8063 = vmatpush1.bf16.msra.mxu0 0
    %8064 = vmatprep.subr.bf16.mxu0 0
    %8065 = vmatpush1.bf16.msra.mxu0 0
    %8066 = vmatprep.subr.bf16.mxu0 0
    %8067 = vmatpush1.bf16.msra.mxu0 0
    %8068 = vmatprep.subr.bf16.mxu0 0
    %8069 = vmatpush1.bf16.msra.mxu0 0
    %8070 = vmatprep.mubr.bf16.mxu0 0
    %8071 = vmatmul.mubr.bf16.gmra.mrb[0].mxu0 %v7735
    %v8072 = vpop.f32.mrb[0].mxu0
    %v8073 = vadd.f32 %v7469, %v8072
    %v8074 = vpop.f32.mrb[0].mxu0
    %v8075 = vadd.f32 %v7473, %v8074
    %v8076 = vpop.f32.mrb[0].mxu0
    %v8077 = vadd.f32 %v7469, %v8076
    %v8078 = vpop.f32.mrb[0].mxu0
    %v8079 = vadd.f32 %v7473, %v8078
    %8080 = vmatprep.mubr.bf16.mxu0 0
    %8081 = vmatmul.mubr.bf16.gmra.mrb[0].mxu0 %v7738
    %v8082 = vpop.f32.mrb[0].mxu0
    %v8083 = vadd.f32 %v7469, %v8082
    %v8084 = vpop.f32.mrb[0].mxu0
    %v8085 = vadd.f32 %v7473, %v8084
    %v8086 = vpop.f32.mrb[0].mxu0
    %v8087 = vadd.f32 %v7469, %v8086
    %v8088 = vpop.f32.mrb[0].mxu0
    %v8089 = vadd.f32 %v7473, %v8088
    %8090 = vmatprep.mubr.bf16.mxu0 0
    %8091 = vmatmul.mubr.bf16.gmra.mrb[0].mxu0 %v7741
    %v8092 = vpop.f32.mrb[0].mxu0
    %v8093 = vadd.f32 %v7469, %v8092
    %v8094 = vpop.f32.mrb[0].mxu0
    %v8095 = vadd.f32 %v7473, %v8094
    %v8096 = vpop.f32.mrb[0].mxu0
    %v8097 = vadd.f32 %v7469, %v8096
    %v8098 = vpop.f32.mrb[0].mxu0
    %v8099 = vadd.f32 %v7473, %v8098
    %8100 = vmatprep.mubr.bf16.mxu0 0
    %8101 = vmatmul.mubr.bf16.gmra.mrb[0].mxu0 %v7744
    %v8102 = vpop.f32.mrb[0].mxu0
    %v8103 = vadd.f32 %v7469, %v8102
    %v8104 = vpop.f32.mrb[0].mxu0
    %v8105 = vadd.f32 %v7473, %v8104
    %v8106 = vpop.f32.mrb[0].mxu0
    %v8107 = vadd.f32 %v7469, %v8106
    %v8108 = vpop.f32.mrb[0].mxu0
    %v8109 = vadd.f32 %v7473, %v8108
    %8110 = vdwg.mxu0
    %8111 = vmatprep.subr.bf16.mxu0 %v7649
    %8112 = vmatpush1.bf16.msra.mxu0 %v7648
    %8113 = vmatprep.subr.bf16.mxu0 %v7661
    %8114 = vmatpush1.bf16.msra.mxu0 %v7660
    %8115 = vmatprep.subr.bf16.mxu0 %v7673
    %8116 = vmatpush1.bf16.msra.mxu0 %v7672
    %8117 = vmatprep.subr.bf16.mxu0 %v7685
    %8118 = vmatpush1.bf16.msra.mxu0 %v7684
    %8119 = vmatprep.subr.bf16.mxu0 0
    %8120 = vmatpush1.bf16.msra.mxu0 0
    %8121 = vmatprep.subr.bf16.mxu0 0
    %8122 = vmatpush1.bf16.msra.mxu0 0
    %8123 = vmatprep.subr.bf16.mxu0 0
    %8124 = vmatpush1.bf16.msra.mxu0 0
    %8125 = vmatprep.subr.bf16.mxu0 0
    %8126 = vmatpush1.bf16.msra.mxu0 0
    %8127 = vmatprep.subr.bf16.mxu0 0
    %8128 = vmatpush1.bf16.msra.mxu0 0
    %8129 = vmatprep.subr.bf16.mxu0 0
    %8130 = vmatpush1.bf16.msra.mxu0 0
    %8131 = vmatprep.subr.bf16.mxu0 0
    %8132 = vmatpush1.bf16.msra.mxu0 0
    %8133 = vmatprep.subr.bf16.mxu0 0
    %8134 = vmatpush1.bf16.msra.mxu0 0
    %8135 = vmatprep.subr.bf16.mxu0 0
    %8136 = vmatpush1.bf16.msra.mxu0 0
    %8137 = vmatprep.subr.bf16.mxu0 0
    %8138 = vmatpush1.bf16.msra.mxu0 0
    %8139 = vmatprep.subr.bf16.mxu0 0
    %8140 = vmatpush1.bf16.msra.mxu0 0
    %8141 = vmatprep.subr.bf16.mxu0 0
    %8142 = vmatpush1.bf16.msra.mxu0 0
    %8143 = vmatprep.mubr.bf16.mxu0 0
    %8144 = vmatmul.mubr.bf16.gmra.mrb[0].mxu0 %v7735
    %v8145 = vpop.f32.mrb[0].mxu0
    %v8146 = vadd.f32 %v7477, %v8145
    %v8147 = vpop.f32.mrb[0].mxu0
    %v8148 = vadd.f32 %v7481, %v8147
    %v8149 = vpop.f32.mrb[0].mxu0
    %v8150 = vadd.f32 %v7477, %v8149
    %v8151 = vpop.f32.mrb[0].mxu0
    %v8152 = vadd.f32 %v7481, %v8151
    %8153 = vmatprep.mubr.bf16.mxu0 0
    %8154 = vmatmul.mubr.bf16.gmra.mrb[0].mxu0 %v7738
    %v8155 = vpop.f32.mrb[0].mxu0
    %v8156 = vadd.f32 %v7477, %v8155
    %v8157 = vpop.f32.mrb[0].mxu0
    %v8158 = vadd.f32 %v7481, %v8157
    %v8159 = vpop.f32.mrb[0].mxu0
    %v8160 = vadd.f32 %v7477, %v8159
    %v8161 = vpop.f32.mrb[0].mxu0
    %v8162 = vadd.f32 %v7481, %v8161
    %8163 = vmatprep.mubr.bf16.mxu0 0
    %8164 = vmatmul.mubr.bf16.gmra.mrb[0].mxu0 %v7741
    %v8165 = vpop.f32.mrb[0].mxu0
    %v8166 = vadd.f32 %v7477, %v8165
    %v8167 = vpop.f32.mrb[0].mxu0
    %v8168 = vadd.f32 %v7481, %v8167
    %v8169 = vpop.f32.mrb[0].mxu0
    %v8170 = vadd.f32 %v7477, %v8169
    %v8171 = vpop.f32.mrb[0].mxu0
    %v8172 = vadd.f32 %v7481, %v8171
    %8173 = vmatprep.mubr.bf16.mxu0 0
    %8174 = vmatmul.mubr.bf16.gmra.mrb[0].mxu0 %v7744
    %v8175 = vpop.f32.mrb[0].mxu0
    %v8176 = vadd.f32 %v7477, %v8175
    %v8177 = vpop.f32.mrb[0].mxu0
    %v8178 = vadd.f32 %v7481, %v8177
    %v8179 = vpop.f32.mrb[0].mxu0
    %v8180 = vadd.f32 %v7477, %v8179
    %v8181 = vpop.f32.mrb[0].mxu0
    %v8182 = vadd.f32 %v7481, %v8181
    %8183 = vdwg.mxu0
    %v8184 = vpack.c.bf16 %v7785, %v7781
    %v8185 = vpack.c.bf16 %v7787, %v7783
    %v8186 = vpack.c.bf16 %v7858, %v7854
    %v8187 = vpack.c.bf16 %v7860, %v7856
    %v8188 = vpack.c.bf16 %v7931, %v7927
    %v8189 = vpack.c.bf16 %v7933, %v7929
    %v8190 = vpack.c.bf16 %v8004, %v8000
    %v8191 = vpack.c.bf16 %v8006, %v8002
    %v8192 = vpack.c.bf16 %v8077, %v8073
    %v8193 = vpack.c.bf16 %v8079, %v8075
    %v8194 = vpack.c.bf16 %v8150, %v8146
    %v8195 = vpack.c.bf16 %v8152, %v8148
    %v8196 = vpack.c.bf16 %v7795, %v7791
    %v8197 = vpack.c.bf16 %v7797, %v7793
    %v8198 = vpack.c.bf16 %v7868, %v7864
    %v8199 = vpack.c.bf16 %v7870, %v7866
    %v8200 = vpack.c.bf16 %v7941, %v7937
    %v8201 = vpack.c.bf16 %v7943, %v7939
    %v8202 = vpack.c.bf16 %v8014, %v8010
    %v8203 = vpack.c.bf16 %v8016, %v8012
    %v8204 = vpack.c.bf16 %v8087, %v8083
    %v8205 = vpack.c.bf16 %v8089, %v8085
    %v8206 = vpack.c.bf16 %v8160, %v8156
    %v8207 = vpack.c.bf16 %v8162, %v8158
    %v8208 = vpack.c.bf16 %v7805, %v7801
    %v8209 = vpack.c.bf16 %v7807, %v7803
    %v8210 = vpack.c.bf16 %v7878, %v7874
    %v8211 = vpack.c.bf16 %v7880, %v7876
    %v8212 = vpack.c.bf16 %v7951, %v7947
    %v8213 = vpack.c.bf16 %v7953, %v7949
    %v8214 = vpack.c.bf16 %v8024, %v8020
    %v8215 = vpack.c.bf16 %v8026, %v8022
    %v8216 = vpack.c.bf16 %v8097, %v8093
    %v8217 = vpack.c.bf16 %v8099, %v8095
    %v8218 = vpack.c.bf16 %v8170, %v8166
    %v8219 = vpack.c.bf16 %v8172, %v8168
    %v8220 = vpack.c.bf16 %v7815, %v7811
    %v8221 = vpack.c.bf16 %v7817, %v7813
    %v8222 = vpack.c.bf16 %v7888, %v7884
    %v8223 = vpack.c.bf16 %v7890, %v7886
    %v8224 = vpack.c.bf16 %v7961, %v7957
    %v8225 = vpack.c.bf16 %v7963, %v7959
    %v8226 = vpack.c.bf16 %v8034, %v8030
    %v8227 = vpack.c.bf16 %v8036, %v8032
    %v8228 = vpack.c.bf16 %v8107, %v8103
    %v8229 = vpack.c.bf16 %v8109, %v8105
    %v8230 = vpack.c.bf16 %v8180, %v8176
    %v8231 = vpack.c.bf16 %v8182, %v8178
    %8232 = vmatprep.subr.bf16.mxu0 0
    %8233 = vmatpush1.bf16.xpose.msra.mxu0 %v8188
    %8234 = vmatprep.subr.bf16.mxu0 0
    %8235 = vmatpush1.bf16.xpose.msra.mxu0 0
    %8236 = vmatprep.subr.bf16.mxu0 0
    %8237 = vmatpush1.bf16.xpose.msra.mxu0 0
    %8238 = vmatprep.subr.bf16.mxu0 0
    %8239 = vmatpush1.bf16.xpose.msra.mxu0 0
    %8240 = vmatprep.subr.bf16.mxu0 0
    %8241 = vmatpush1.bf16.xpose.msra.mxu0 0
    %8242 = vmatprep.subr.bf16.mxu0 0
    %8243 = vmatpush1.bf16.xpose.msra.mxu0 0
    %8244 = vmatprep.subr.bf16.mxu0 0
    %8245 = vmatpush1.bf16.xpose.msra.mxu0 0
    %8246 = vmatprep.subr.bf16.mxu0 0
    %8247 = vmatpush1.bf16.xpose.msra.mxu0 0
    %8248 = vmatprep.subr.bf16.mxu0 0
    %8249 = vmatpush1.bf16.xpose.msra.mxu0 0
    %8250 = vmatprep.subr.bf16.mxu0 0
    %8251 = vmatpush1.bf16.xpose.msra.mxu0 0
    %8252 = vmatprep.subr.bf16.mxu0 0
    %8253 = vmatpush1.bf16.xpose.msra.mxu0 0
    %8254 = vmatprep.subr.bf16.mxu0 0
    %8255 = vmatpush1.bf16.xpose.msra.mxu0 0
    %8256 = vmatprep.subr.bf16.mxu0 0
    %8257 = vmatpush1.bf16.xpose.msra.mxu0 0
    %8258 = vmatprep.subr.bf16.mxu0 0
    %8259 = vmatpush1.bf16.xpose.msra.mxu0 0
    %8260 = vmatprep.subr.bf16.mxu0 0
    %8261 = vmatpush1.bf16.xpose.msra.mxu0 0
    %8262 = vmatprep.subr.bf16.mxu0 0
    %8263 = vmatpush1.bf16.xpose.msra.mxu0 0
    %8264 = vmatprep.mubr.bf16.mxu0 0
    %8265 = vmatmul.mubr.bf16.gmra.mrb[0].mxu0 %v8184
    %v8266 = vpop.f32.mrb[0].mxu0
    %v8267 = vadd.f32 %v299, %v8266
    %v8268 = vpop.f32.mrb[0].mxu0
    %v8269 = vpop.f32.mrb[0].mxu0
    %v8270 = vadd.f32 %v300, %v8269
    %v8271 = vpop.f32.mrb[0].mxu0
    %8272 = vdwg.mxu0
    %8273 = vmatprep.subr.bf16.mxu0 0
    %8274 = vmatpush1.bf16.xpose.msra.mxu0 %v8200
    %8275 = vmatprep.subr.bf16.mxu0 0
    %8276 = vmatpush1.bf16.xpose.msra.mxu0 0
    %8277 = vmatprep.subr.bf16.mxu0 0
    %8278 = vmatpush1.bf16.xpose.msra.mxu0 0
    %8279 = vmatprep.subr.bf16.mxu0 0
    %8280 = vmatpush1.bf16.xpose.msra.mxu0 0
    %8281 = vmatprep.subr.bf16.mxu0 0
    %8282 = vmatpush1.bf16.xpose.msra.mxu0 0
    %8283 = vmatprep.subr.bf16.mxu0 0
    %8284 = vmatpush1.bf16.xpose.msra.mxu0 0
    %8285 = vmatprep.subr.bf16.mxu0 0
    %8286 = vmatpush1.bf16.xpose.msra.mxu0 0
    %8287 = vmatprep.subr.bf16.mxu0 0
    %8288 = vmatpush1.bf16.xpose.msra.mxu0 0
    %8289 = vmatprep.subr.bf16.mxu0 0
    %8290 = vmatpush1.bf16.xpose.msra.mxu0 0
    %8291 = vmatprep.subr.bf16.mxu0 0
    %8292 = vmatpush1.bf16.xpose.msra.mxu0 0
    %8293 = vmatprep.subr.bf16.mxu0 0
    %8294 = vmatpush1.bf16.xpose.msra.mxu0 0
    %8295 = vmatprep.subr.bf16.mxu0 0
    %8296 = vmatpush1.bf16.xpose.msra.mxu0 0
    %8297 = vmatprep.subr.bf16.mxu0 0
    %8298 = vmatpush1.bf16.xpose.msra.mxu0 0
    %8299 = vmatprep.subr.bf16.mxu0 0
    %8300 = vmatpush1.bf16.xpose.msra.mxu0 0
    %8301 = vmatprep.subr.bf16.mxu0 0
    %8302 = vmatpush1.bf16.xpose.msra.mxu0 0
    %8303 = vmatprep.subr.bf16.mxu0 0
    %8304 = vmatpush1.bf16.xpose.msra.mxu0 0
    %8305 = vmatprep.mubr.bf16.mxu0 0
    %8306 = vmatmul.mubr.bf16.gmra.mrb[0].mxu0 %v8196
    %v8307 = vpop.f32.mrb[0].mxu0
    %v8308 = vadd.f32 %v301, %v8307
    %v8309 = vpop.f32.mrb[0].mxu0
    %v8310 = vpop.f32.mrb[0].mxu0
    %v8311 = vadd.f32 %v302, %v8310
    %v8312 = vpop.f32.mrb[0].mxu0
    %8313 = vdwg.mxu0
    %8314 = vmatprep.subr.bf16.mxu0 0
    %8315 = vmatpush1.bf16.xpose.msra.mxu0 %v8212
    %8316 = vmatprep.subr.bf16.mxu0 0
    %8317 = vmatpush1.bf16.xpose.msra.mxu0 0
    %8318 = vmatprep.subr.bf16.mxu0 0
    %8319 = vmatpush1.bf16.xpose.msra.mxu0 0
    %8320 = vmatprep.subr.bf16.mxu0 0
    %8321 = vmatpush1.bf16.xpose.msra.mxu0 0
    %8322 = vmatprep.subr.bf16.mxu0 0
    %8323 = vmatpush1.bf16.xpose.msra.mxu0 0
    %8324 = vmatprep.subr.bf16.mxu0 0
    %8325 = vmatpush1.bf16.xpose.msra.mxu0 0
    %8326 = vmatprep.subr.bf16.mxu0 0
    %8327 = vmatpush1.bf16.xpose.msra.mxu0 0
    %8328 = vmatprep.subr.bf16.mxu0 0
    %8329 = vmatpush1.bf16.xpose.msra.mxu0 0
    %8330 = vmatprep.subr.bf16.mxu0 0
    %8331 = vmatpush1.bf16.xpose.msra.mxu0 0
    %8332 = vmatprep.subr.bf16.mxu0 0
    %8333 = vmatpush1.bf16.xpose.msra.mxu0 0
    %8334 = vmatprep.subr.bf16.mxu0 0
    %8335 = vmatpush1.bf16.xpose.msra.mxu0 0
    %8336 = vmatprep.subr.bf16.mxu0 0
    %8337 = vmatpush1.bf16.xpose.msra.mxu0 0
    %8338 = vmatprep.subr.bf16.mxu0 0
    %8339 = vmatpush1.bf16.xpose.msra.mxu0 0
    %8340 = vmatprep.subr.bf16.mxu0 0
    %8341 = vmatpush1.bf16.xpose.msra.mxu0 0
    %8342 = vmatprep.subr.bf16.mxu0 0
    %8343 = vmatpush1.bf16.xpose.msra.mxu0 0
    %8344 = vmatprep.subr.bf16.mxu0 0
    %8345 = vmatpush1.bf16.xpose.msra.mxu0 0
    %8346 = vmatprep.mubr.bf16.mxu0 0
    %8347 = vmatmul.mubr.bf16.gmra.mrb[0].mxu0 %v8208
    %v8348 = vpop.f32.mrb[0].mxu0
    %v8349 = vadd.f32 %v303, %v8348
    %v8350 = vpop.f32.mrb[0].mxu0
    %v8351 = vpop.f32.mrb[0].mxu0
    %v8352 = vadd.f32 %v304, %v8351
    %v8353 = vpop.f32.mrb[0].mxu0
    %8354 = vdwg.mxu0
    %8355 = vmatprep.subr.bf16.mxu0 0
    %8356 = vmatpush1.bf16.xpose.msra.mxu0 %v8224
    %8357 = vmatprep.subr.bf16.mxu0 0
    %8358 = vmatpush1.bf16.xpose.msra.mxu0 0
    %8359 = vmatprep.subr.bf16.mxu0 0
    %8360 = vmatpush1.bf16.xpose.msra.mxu0 0
    %8361 = vmatprep.subr.bf16.mxu0 0
    %8362 = vmatpush1.bf16.xpose.msra.mxu0 0
    %8363 = vmatprep.subr.bf16.mxu0 0
    %8364 = vmatpush1.bf16.xpose.msra.mxu0 0
    %8365 = vmatprep.subr.bf16.mxu0 0
    %8366 = vmatpush1.bf16.xpose.msra.mxu0 0
    %8367 = vmatprep.subr.bf16.mxu0 0
    %8368 = vmatpush1.bf16.xpose.msra.mxu0 0
    %8369 = vmatprep.subr.bf16.mxu0 0
    %8370 = vmatpush1.bf16.xpose.msra.mxu0 0
    %8371 = vmatprep.subr.bf16.mxu0 0
    %8372 = vmatpush1.bf16.xpose.msra.mxu0 0
    %8373 = vmatprep.subr.bf16.mxu0 0
    %8374 = vmatpush1.bf16.xpose.msra.mxu0 0
    %8375 = vmatprep.subr.bf16.mxu0 0
    %8376 = vmatpush1.bf16.xpose.msra.mxu0 0
    %8377 = vmatprep.subr.bf16.mxu0 0
    %8378 = vmatpush1.bf16.xpose.msra.mxu0 0
    %8379 = vmatprep.subr.bf16.mxu0 0
    %8380 = vmatpush1.bf16.xpose.msra.mxu0 0
    %8381 = vmatprep.subr.bf16.mxu0 0
    %8382 = vmatpush1.bf16.xpose.msra.mxu0 0
    %8383 = vmatprep.subr.bf16.mxu0 0
    %8384 = vmatpush1.bf16.xpose.msra.mxu0 0
    %8385 = vmatprep.subr.bf16.mxu0 0
    %8386 = vmatpush1.bf16.xpose.msra.mxu0 0
    %8387 = vmatprep.mubr.bf16.mxu0 0
    %8388 = vmatmul.mubr.bf16.gmra.mrb[0].mxu0 %v8220
    %v8389 = vpop.f32.mrb[0].mxu0
    %v8390 = vadd.f32 %v305, %v8389
    %v8391 = vpop.f32.mrb[0].mxu0
    %v8392 = vpop.f32.mrb[0].mxu0
    %v8393 = vadd.f32 %v306, %v8392
    %v8394 = vpop.f32.mrb[0].mxu0
    %8395 = vdwg.mxu0
    %8396 = vmatprep.subr.bf16.mxu0 0
    %8397 = vmatpush1.bf16.xpose.msra.mxu0 %v8189
    %8398 = vmatprep.subr.bf16.mxu0 0
    %8399 = vmatpush1.bf16.xpose.msra.mxu0 0
    %8400 = vmatprep.subr.bf16.mxu0 0
    %8401 = vmatpush1.bf16.xpose.msra.mxu0 0
    %8402 = vmatprep.subr.bf16.mxu0 0
    %8403 = vmatpush1.bf16.xpose.msra.mxu0 0
    %8404 = vmatprep.subr.bf16.mxu0 0
    %8405 = vmatpush1.bf16.xpose.msra.mxu0 0
    %8406 = vmatprep.subr.bf16.mxu0 0
    %8407 = vmatpush1.bf16.xpose.msra.mxu0 0
    %8408 = vmatprep.subr.bf16.mxu0 0
    %8409 = vmatpush1.bf16.xpose.msra.mxu0 0
    %8410 = vmatprep.subr.bf16.mxu0 0
    %8411 = vmatpush1.bf16.xpose.msra.mxu0 0
    %8412 = vmatprep.subr.bf16.mxu0 0
    %8413 = vmatpush1.bf16.xpose.msra.mxu0 0
    %8414 = vmatprep.subr.bf16.mxu0 0
    %8415 = vmatpush1.bf16.xpose.msra.mxu0 0
    %8416 = vmatprep.subr.bf16.mxu0 0
    %8417 = vmatpush1.bf16.xpose.msra.mxu0 0
    %8418 = vmatprep.subr.bf16.mxu0 0
    %8419 = vmatpush1.bf16.xpose.msra.mxu0 0
    %8420 = vmatprep.subr.bf16.mxu0 0
    %8421 = vmatpush1.bf16.xpose.msra.mxu0 0
    %8422 = vmatprep.subr.bf16.mxu0 0
    %8423 = vmatpush1.bf16.xpose.msra.mxu0 0
    %8424 = vmatprep.subr.bf16.mxu0 0
    %8425 = vmatpush1.bf16.xpose.msra.mxu0 0
    %8426 = vmatprep.subr.bf16.mxu0 0
    %8427 = vmatpush1.bf16.xpose.msra.mxu0 0
    %8428 = vmatprep.mubr.bf16.mxu0 0
    %8429 = vmatmul.mubr.bf16.gmra.mrb[0].mxu0 %v8185
    %v8430 = vpop.f32.mrb[0].mxu0
    %v8431 = vadd.f32 %v299, %v8430
    %v8432 = vpop.f32.mrb[0].mxu0
    %v8433 = vpop.f32.mrb[0].mxu0
    %v8434 = vadd.f32 %v300, %v8433
    %v8435 = vpop.f32.mrb[0].mxu0
    %8436 = vdwg.mxu0
    %8437 = vmatprep.subr.bf16.mxu0 0
    %8438 = vmatpush1.bf16.xpose.msra.mxu0 %v8201
    %8439 = vmatprep.subr.bf16.mxu0 0
    %8440 = vmatpush1.bf16.xpose.msra.mxu0 0
    %8441 = vmatprep.subr.bf16.mxu0 0
    %8442 = vmatpush1.bf16.xpose.msra.mxu0 0
    %8443 = vmatprep.subr.bf16.mxu0 0
    %8444 = vmatpush1.bf16.xpose.msra.mxu0 0
    %8445 = vmatprep.subr.bf16.mxu0 0
    %8446 = vmatpush1.bf16.xpose.msra.mxu0 0
    %8447 = vmatprep.subr.bf16.mxu0 0
    %8448 = vmatpush1.bf16.xpose.msra.mxu0 0
    %8449 = vmatprep.subr.bf16.mxu0 0
    %8450 = vmatpush1.bf16.xpose.msra.mxu0 0
    %8451 = vmatprep.subr.bf16.mxu0 0
    %8452 = vmatpush1.bf16.xpose.msra.mxu0 0
    %8453 = vmatprep.subr.bf16.mxu0 0
    %8454 = vmatpush1.bf16.xpose.msra.mxu0 0
    %8455 = vmatprep.subr.bf16.mxu0 0
    %8456 = vmatpush1.bf16.xpose.msra.mxu0 0
    %8457 = vmatprep.subr.bf16.mxu0 0
    %8458 = vmatpush1.bf16.xpose.msra.mxu0 0
    %8459 = vmatprep.subr.bf16.mxu0 0
    %8460 = vmatpush1.bf16.xpose.msra.mxu0 0
    %8461 = vmatprep.subr.bf16.mxu0 0
    %8462 = vmatpush1.bf16.xpose.msra.mxu0 0
    %8463 = vmatprep.subr.bf16.mxu0 0
    %8464 = vmatpush1.bf16.xpose.msra.mxu0 0
    %8465 = vmatprep.subr.bf16.mxu0 0
    %8466 = vmatpush1.bf16.xpose.msra.mxu0 0
    %8467 = vmatprep.subr.bf16.mxu0 0
    %8468 = vmatpush1.bf16.xpose.msra.mxu0 0
    %8469 = vmatprep.mubr.bf16.mxu0 0
    %8470 = vmatmul.mubr.bf16.gmra.mrb[0].mxu0 %v8197
    %v8471 = vpop.f32.mrb[0].mxu0
    %v8472 = vadd.f32 %v301, %v8471
    %v8473 = vpop.f32.mrb[0].mxu0
    %v8474 = vpop.f32.mrb[0].mxu0
    %v8475 = vadd.f32 %v302, %v8474
    %v8476 = vpop.f32.mrb[0].mxu0
    %8477 = vdwg.mxu0
    %8478 = vmatprep.subr.bf16.mxu0 0
    %8479 = vmatpush1.bf16.xpose.msra.mxu0 %v8213
    %8480 = vmatprep.subr.bf16.mxu0 0
    %8481 = vmatpush1.bf16.xpose.msra.mxu0 0
    %8482 = vmatprep.subr.bf16.mxu0 0
    %8483 = vmatpush1.bf16.xpose.msra.mxu0 0
    %8484 = vmatprep.subr.bf16.mxu0 0
    %8485 = vmatpush1.bf16.xpose.msra.mxu0 0
    %8486 = vmatprep.subr.bf16.mxu0 0
    %8487 = vmatpush1.bf16.xpose.msra.mxu0 0
    %8488 = vmatprep.subr.bf16.mxu0 0
    %8489 = vmatpush1.bf16.xpose.msra.mxu0 0
    %8490 = vmatprep.subr.bf16.mxu0 0
    %8491 = vmatpush1.bf16.xpose.msra.mxu0 0
    %8492 = vmatprep.subr.bf16.mxu0 0
    %8493 = vmatpush1.bf16.xpose.msra.mxu0 0
    %8494 = vmatprep.subr.bf16.mxu0 0
    %8495 = vmatpush1.bf16.xpose.msra.mxu0 0
    %8496 = vmatprep.subr.bf16.mxu0 0
    %8497 = vmatpush1.bf16.xpose.msra.mxu0 0
    %8498 = vmatprep.subr.bf16.mxu0 0
    %8499 = vmatpush1.bf16.xpose.msra.mxu0 0
    %8500 = vmatprep.subr.bf16.mxu0 0
    %8501 = vmatpush1.bf16.xpose.msra.mxu0 0
    %8502 = vmatprep.subr.bf16.mxu0 0
    %8503 = vmatpush1.bf16.xpose.msra.mxu0 0
    %8504 = vmatprep.subr.bf16.mxu0 0
    %8505 = vmatpush1.bf16.xpose.msra.mxu0 0
    %8506 = vmatprep.subr.bf16.mxu0 0
    %8507 = vmatpush1.bf16.xpose.msra.mxu0 0
    %8508 = vmatprep.subr.bf16.mxu0 0
    %8509 = vmatpush1.bf16.xpose.msra.mxu0 0
    %8510 = vmatprep.mubr.bf16.mxu0 0
    %8511 = vmatmul.mubr.bf16.gmra.mrb[0].mxu0 %v8209
    %v8512 = vpop.f32.mrb[0].mxu0
    %v8513 = vadd.f32 %v303, %v8512
    %v8514 = vpop.f32.mrb[0].mxu0
    %v8515 = vpop.f32.mrb[0].mxu0
    %v8516 = vadd.f32 %v304, %v8515
    %v8517 = vpop.f32.mrb[0].mxu0
    %8518 = vdwg.mxu0
    %8519 = vmatprep.subr.bf16.mxu0 0
    %8520 = vmatpush1.bf16.xpose.msra.mxu0 %v8225
    %8521 = vmatprep.subr.bf16.mxu0 0
    %8522 = vmatpush1.bf16.xpose.msra.mxu0 0
    %8523 = vmatprep.subr.bf16.mxu0 0
    %8524 = vmatpush1.bf16.xpose.msra.mxu0 0
    %8525 = vmatprep.subr.bf16.mxu0 0
    %8526 = vmatpush1.bf16.xpose.msra.mxu0 0
    %8527 = vmatprep.subr.bf16.mxu0 0
    %8528 = vmatpush1.bf16.xpose.msra.mxu0 0
    %8529 = vmatprep.subr.bf16.mxu0 0
    %8530 = vmatpush1.bf16.xpose.msra.mxu0 0
    %8531 = vmatprep.subr.bf16.mxu0 0
    %8532 = vmatpush1.bf16.xpose.msra.mxu0 0
    %8533 = vmatprep.subr.bf16.mxu0 0
    %8534 = vmatpush1.bf16.xpose.msra.mxu0 0
    %8535 = vmatprep.subr.bf16.mxu0 0
    %8536 = vmatpush1.bf16.xpose.msra.mxu0 0
    %8537 = vmatprep.subr.bf16.mxu0 0
    %8538 = vmatpush1.bf16.xpose.msra.mxu0 0
    %8539 = vmatprep.subr.bf16.mxu0 0
    %8540 = vmatpush1.bf16.xpose.msra.mxu0 0
    %8541 = vmatprep.subr.bf16.mxu0 0
    %8542 = vmatpush1.bf16.xpose.msra.mxu0 0
    %8543 = vmatprep.subr.bf16.mxu0 0
    %8544 = vmatpush1.bf16.xpose.msra.mxu0 0
    %8545 = vmatprep.subr.bf16.mxu0 0
    %8546 = vmatpush1.bf16.xpose.msra.mxu0 0
    %8547 = vmatprep.subr.bf16.mxu0 0
    %8548 = vmatpush1.bf16.xpose.msra.mxu0 0
    %8549 = vmatprep.subr.bf16.mxu0 0
    %8550 = vmatpush1.bf16.xpose.msra.mxu0 0
    %8551 = vmatprep.mubr.bf16.mxu0 0
    %8552 = vmatmul.mubr.bf16.gmra.mrb[0].mxu0 %v8221
    %v8553 = vpop.f32.mrb[0].mxu0
    %v8554 = vadd.f32 %v305, %v8553
    %v8555 = vpop.f32.mrb[0].mxu0
    %v8556 = vpop.f32.mrb[0].mxu0
    %v8557 = vadd.f32 %v306, %v8556
    %v8558 = vpop.f32.mrb[0].mxu0
    %8559 = vdwg.mxu0
    %8560 = vmatprep.subr.bf16.mxu0 0
    %8561 = vmatpush1.bf16.xpose.msra.mxu0 %v8190
    %8562 = vmatprep.subr.bf16.mxu0 0
    %8563 = vmatpush1.bf16.xpose.msra.mxu0 0
    %8564 = vmatprep.subr.bf16.mxu0 0
    %8565 = vmatpush1.bf16.xpose.msra.mxu0 0
    %8566 = vmatprep.subr.bf16.mxu0 0
    %8567 = vmatpush1.bf16.xpose.msra.mxu0 0
    %8568 = vmatprep.subr.bf16.mxu0 0
    %8569 = vmatpush1.bf16.xpose.msra.mxu0 0
    %8570 = vmatprep.subr.bf16.mxu0 0
    %8571 = vmatpush1.bf16.xpose.msra.mxu0 0
    %8572 = vmatprep.subr.bf16.mxu0 0
    %8573 = vmatpush1.bf16.xpose.msra.mxu0 0
    %8574 = vmatprep.subr.bf16.mxu0 0
    %8575 = vmatpush1.bf16.xpose.msra.mxu0 0
    %8576 = vmatprep.subr.bf16.mxu0 0
    %8577 = vmatpush1.bf16.xpose.msra.mxu0 0
    %8578 = vmatprep.subr.bf16.mxu0 0
    %8579 = vmatpush1.bf16.xpose.msra.mxu0 0
    %8580 = vmatprep.subr.bf16.mxu0 0
    %8581 = vmatpush1.bf16.xpose.msra.mxu0 0
    %8582 = vmatprep.subr.bf16.mxu0 0
    %8583 = vmatpush1.bf16.xpose.msra.mxu0 0
    %8584 = vmatprep.subr.bf16.mxu0 0
    %8585 = vmatpush1.bf16.xpose.msra.mxu0 0
    %8586 = vmatprep.subr.bf16.mxu0 0
    %8587 = vmatpush1.bf16.xpose.msra.mxu0 0
    %8588 = vmatprep.subr.bf16.mxu0 0
    %8589 = vmatpush1.bf16.xpose.msra.mxu0 0
    %8590 = vmatprep.subr.bf16.mxu0 0
    %8591 = vmatpush1.bf16.xpose.msra.mxu0 0
    %8592 = vmatprep.mubr.bf16.mxu0 0
    %8593 = vmatmul.mubr.bf16.gmra.mrb[0].mxu0 %v8186
    %v8594 = vpop.f32.mrb[0].mxu0
    %v8595 = vadd.f32 %v299, %v8594
    %v8596 = vpop.f32.mrb[0].mxu0
    %v8597 = vpop.f32.mrb[0].mxu0
    %v8598 = vadd.f32 %v300, %v8597
    %v8599 = vpop.f32.mrb[0].mxu0
    %8600 = vdwg.mxu0
    %8601 = vmatprep.subr.bf16.mxu0 0
    %8602 = vmatpush1.bf16.xpose.msra.mxu0 %v8202
    %8603 = vmatprep.subr.bf16.mxu0 0
    %8604 = vmatpush1.bf16.xpose.msra.mxu0 0
    %8605 = vmatprep.subr.bf16.mxu0 0
    %8606 = vmatpush1.bf16.xpose.msra.mxu0 0
    %8607 = vmatprep.subr.bf16.mxu0 0
    %8608 = vmatpush1.bf16.xpose.msra.mxu0 0
    %8609 = vmatprep.subr.bf16.mxu0 0
    %8610 = vmatpush1.bf16.xpose.msra.mxu0 0
    %8611 = vmatprep.subr.bf16.mxu0 0
    %8612 = vmatpush1.bf16.xpose.msra.mxu0 0
    %8613 = vmatprep.subr.bf16.mxu0 0
    %8614 = vmatpush1.bf16.xpose.msra.mxu0 0
    %8615 = vmatprep.subr.bf16.mxu0 0
    %8616 = vmatpush1.bf16.xpose.msra.mxu0 0
    %8617 = vmatprep.subr.bf16.mxu0 0
    %8618 = vmatpush1.bf16.xpose.msra.mxu0 0
    %8619 = vmatprep.subr.bf16.mxu0 0
    %8620 = vmatpush1.bf16.xpose.msra.mxu0 0
    %8621 = vmatprep.subr.bf16.mxu0 0
    %8622 = vmatpush1.bf16.xpose.msra.mxu0 0
    %8623 = vmatprep.subr.bf16.mxu0 0
    %8624 = vmatpush1.bf16.xpose.msra.mxu0 0
    %8625 = vmatprep.subr.bf16.mxu0 0
    %8626 = vmatpush1.bf16.xpose.msra.mxu0 0
    %8627 = vmatprep.subr.bf16.mxu0 0
    %8628 = vmatpush1.bf16.xpose.msra.mxu0 0
    %8629 = vmatprep.subr.bf16.mxu0 0
    %8630 = vmatpush1.bf16.xpose.msra.mxu0 0
    %8631 = vmatprep.subr.bf16.mxu0 0
    %8632 = vmatpush1.bf16.xpose.msra.mxu0 0
    %8633 = vmatprep.mubr.bf16.mxu0 0
    %8634 = vmatmul.mubr.bf16.gmra.mrb[0].mxu0 %v8198
    %v8635 = vpop.f32.mrb[0].mxu0
    %v8636 = vadd.f32 %v301, %v8635
    %v8637 = vpop.f32.mrb[0].mxu0
    %v8638 = vpop.f32.mrb[0].mxu0
    %v8639 = vadd.f32 %v302, %v8638
    %v8640 = vpop.f32.mrb[0].mxu0
    %8641 = vdwg.mxu0
    %8642 = vmatprep.subr.bf16.mxu0 0
    %8643 = vmatpush1.bf16.xpose.msra.mxu0 %v8214
    %8644 = vmatprep.subr.bf16.mxu0 0
    %8645 = vmatpush1.bf16.xpose.msra.mxu0 0
    %8646 = vmatprep.subr.bf16.mxu0 0
    %8647 = vmatpush1.bf16.xpose.msra.mxu0 0
    %8648 = vmatprep.subr.bf16.mxu0 0
    %8649 = vmatpush1.bf16.xpose.msra.mxu0 0
    %8650 = vmatprep.subr.bf16.mxu0 0
    %8651 = vmatpush1.bf16.xpose.msra.mxu0 0
    %8652 = vmatprep.subr.bf16.mxu0 0
    %8653 = vmatpush1.bf16.xpose.msra.mxu0 0
    %8654 = vmatprep.subr.bf16.mxu0 0
    %8655 = vmatpush1.bf16.xpose.msra.mxu0 0
    %8656 = vmatprep.subr.bf16.mxu0 0
    %8657 = vmatpush1.bf16.xpose.msra.mxu0 0
    %8658 = vmatprep.subr.bf16.mxu0 0
    %8659 = vmatpush1.bf16.xpose.msra.mxu0 0
    %8660 = vmatprep.subr.bf16.mxu0 0
    %8661 = vmatpush1.bf16.xpose.msra.mxu0 0
    %8662 = vmatprep.subr.bf16.mxu0 0
    %8663 = vmatpush1.bf16.xpose.msra.mxu0 0
    %8664 = vmatprep.subr.bf16.mxu0 0
    %8665 = vmatpush1.bf16.xpose.msra.mxu0 0
    %8666 = vmatprep.subr.bf16.mxu0 0
    %8667 = vmatpush1.bf16.xpose.msra.mxu0 0
    %8668 = vmatprep.subr.bf16.mxu0 0
    %8669 = vmatpush1.bf16.xpose.msra.mxu0 0
    %8670 = vmatprep.subr.bf16.mxu0 0
    %8671 = vmatpush1.bf16.xpose.msra.mxu0 0
    %8672 = vmatprep.subr.bf16.mxu0 0
    %8673 = vmatpush1.bf16.xpose.msra.mxu0 0
    %8674 = vmatprep.mubr.bf16.mxu0 0
    %8675 = vmatmul.mubr.bf16.gmra.mrb[0].mxu0 %v8210
    %v8676 = vpop.f32.mrb[0].mxu0
    %v8677 = vadd.f32 %v303, %v8676
    %v8678 = vpop.f32.mrb[0].mxu0
    %v8679 = vpop.f32.mrb[0].mxu0
    %v8680 = vadd.f32 %v304, %v8679
    %v8681 = vpop.f32.mrb[0].mxu0
    %8682 = vdwg.mxu0
    %8683 = vmatprep.subr.bf16.mxu0 0
    %8684 = vmatpush1.bf16.xpose.msra.mxu0 %v8226
    %8685 = vmatprep.subr.bf16.mxu0 0
    %8686 = vmatpush1.bf16.xpose.msra.mxu0 0
    %8687 = vmatprep.subr.bf16.mxu0 0
    %8688 = vmatpush1.bf16.xpose.msra.mxu0 0
    %8689 = vmatprep.subr.bf16.mxu0 0
    %8690 = vmatpush1.bf16.xpose.msra.mxu0 0
    %8691 = vmatprep.subr.bf16.mxu0 0
    %8692 = vmatpush1.bf16.xpose.msra.mxu0 0
    %8693 = vmatprep.subr.bf16.mxu0 0
    %8694 = vmatpush1.bf16.xpose.msra.mxu0 0
    %8695 = vmatprep.subr.bf16.mxu0 0
    %8696 = vmatpush1.bf16.xpose.msra.mxu0 0
    %8697 = vmatprep.subr.bf16.mxu0 0
    %8698 = vmatpush1.bf16.xpose.msra.mxu0 0
    %8699 = vmatprep.subr.bf16.mxu0 0
    %8700 = vmatpush1.bf16.xpose.msra.mxu0 0
    %8701 = vmatprep.subr.bf16.mxu0 0
    %8702 = vmatpush1.bf16.xpose.msra.mxu0 0
    %8703 = vmatprep.subr.bf16.mxu0 0
    %8704 = vmatpush1.bf16.xpose.msra.mxu0 0
    %8705 = vmatprep.subr.bf16.mxu0 0
    %8706 = vmatpush1.bf16.xpose.msra.mxu0 0
    %8707 = vmatprep.subr.bf16.mxu0 0
    %8708 = vmatpush1.bf16.xpose.msra.mxu0 0
    %8709 = vmatprep.subr.bf16.mxu0 0
    %8710 = vmatpush1.bf16.xpose.msra.mxu0 0
    %8711 = vmatprep.subr.bf16.mxu0 0
    %8712 = vmatpush1.bf16.xpose.msra.mxu0 0
    %8713 = vmatprep.subr.bf16.mxu0 0
    %8714 = vmatpush1.bf16.xpose.msra.mxu0 0
    %8715 = vmatprep.mubr.bf16.mxu0 0
    %8716 = vmatmul.mubr.bf16.gmra.mrb[0].mxu0 %v8222
    %v8717 = vpop.f32.mrb[0].mxu0
    %v8718 = vadd.f32 %v305, %v8717
    %v8719 = vpop.f32.mrb[0].mxu0
    %v8720 = vpop.f32.mrb[0].mxu0
    %v8721 = vadd.f32 %v306, %v8720
    %v8722 = vpop.f32.mrb[0].mxu0
    %8723 = vdwg.mxu0
    %8724 = vmatprep.subr.bf16.mxu0 0
    %8725 = vmatpush1.bf16.xpose.msra.mxu0 %v8191
    %8726 = vmatprep.subr.bf16.mxu0 0
    %8727 = vmatpush1.bf16.xpose.msra.mxu0 0
    %8728 = vmatprep.subr.bf16.mxu0 0
    %8729 = vmatpush1.bf16.xpose.msra.mxu0 0
    %8730 = vmatprep.subr.bf16.mxu0 0
    %8731 = vmatpush1.bf16.xpose.msra.mxu0 0
    %8732 = vmatprep.subr.bf16.mxu0 0
    %8733 = vmatpush1.bf16.xpose.msra.mxu0 0
    %8734 = vmatprep.subr.bf16.mxu0 0
    %8735 = vmatpush1.bf16.xpose.msra.mxu0 0
    %8736 = vmatprep.subr.bf16.mxu0 0
    %8737 = vmatpush1.bf16.xpose.msra.mxu0 0
    %8738 = vmatprep.subr.bf16.mxu0 0
    %8739 = vmatpush1.bf16.xpose.msra.mxu0 0
    %8740 = vmatprep.subr.bf16.mxu0 0
    %8741 = vmatpush1.bf16.xpose.msra.mxu0 0
    %8742 = vmatprep.subr.bf16.mxu0 0
    %8743 = vmatpush1.bf16.xpose.msra.mxu0 0
    %8744 = vmatprep.subr.bf16.mxu0 0
    %8745 = vmatpush1.bf16.xpose.msra.mxu0 0
    %8746 = vmatprep.subr.bf16.mxu0 0
    %8747 = vmatpush1.bf16.xpose.msra.mxu0 0
    %8748 = vmatprep.subr.bf16.mxu0 0
    %8749 = vmatpush1.bf16.xpose.msra.mxu0 0
    %8750 = vmatprep.subr.bf16.mxu0 0
    %8751 = vmatpush1.bf16.xpose.msra.mxu0 0
    %8752 = vmatprep.subr.bf16.mxu0 0
    %8753 = vmatpush1.bf16.xpose.msra.mxu0 0
    %8754 = vmatprep.subr.bf16.mxu0 0
    %8755 = vmatpush1.bf16.xpose.msra.mxu0 0
    %8756 = vmatprep.mubr.bf16.mxu0 0
    %8757 = vmatmul.mubr.bf16.gmra.mrb[0].mxu0 %v8187
    %v8758 = vpop.f32.mrb[0].mxu0
    %v8759 = vadd.f32 %v299, %v8758
    %v8760 = vpop.f32.mrb[0].mxu0
    %v8761 = vpop.f32.mrb[0].mxu0
    %v8762 = vadd.f32 %v300, %v8761
    %v8763 = vpop.f32.mrb[0].mxu0
    %8764 = vdwg.mxu0
    %8765 = vmatprep.subr.bf16.mxu0 0
    %8766 = vmatpush1.bf16.xpose.msra.mxu0 %v8203
    %8767 = vmatprep.subr.bf16.mxu0 0
    %8768 = vmatpush1.bf16.xpose.msra.mxu0 0
    %8769 = vmatprep.subr.bf16.mxu0 0
    %8770 = vmatpush1.bf16.xpose.msra.mxu0 0
    %8771 = vmatprep.subr.bf16.mxu0 0
    %8772 = vmatpush1.bf16.xpose.msra.mxu0 0
    %8773 = vmatprep.subr.bf16.mxu0 0
    %8774 = vmatpush1.bf16.xpose.msra.mxu0 0
    %8775 = vmatprep.subr.bf16.mxu0 0
    %8776 = vmatpush1.bf16.xpose.msra.mxu0 0
    %8777 = vmatprep.subr.bf16.mxu0 0
    %8778 = vmatpush1.bf16.xpose.msra.mxu0 0
    %8779 = vmatprep.subr.bf16.mxu0 0
    %8780 = vmatpush1.bf16.xpose.msra.mxu0 0
    %8781 = vmatprep.subr.bf16.mxu0 0
    %8782 = vmatpush1.bf16.xpose.msra.mxu0 0
    %8783 = vmatprep.subr.bf16.mxu0 0
    %8784 = vmatpush1.bf16.xpose.msra.mxu0 0
    %8785 = vmatprep.subr.bf16.mxu0 0
    %8786 = vmatpush1.bf16.xpose.msra.mxu0 0
    %8787 = vmatprep.subr.bf16.mxu0 0
    %8788 = vmatpush1.bf16.xpose.msra.mxu0 0
    %8789 = vmatprep.subr.bf16.mxu0 0
    %8790 = vmatpush1.bf16.xpose.msra.mxu0 0
    %8791 = vmatprep.subr.bf16.mxu0 0
    %8792 = vmatpush1.bf16.xpose.msra.mxu0 0
    %8793 = vmatprep.subr.bf16.mxu0 0
    %8794 = vmatpush1.bf16.xpose.msra.mxu0 0
    %8795 = vmatprep.subr.bf16.mxu0 0
    %8796 = vmatpush1.bf16.xpose.msra.mxu0 0
    %8797 = vmatprep.mubr.bf16.mxu0 0
    %8798 = vmatmul.mubr.bf16.gmra.mrb[0].mxu0 %v8199
    %v8799 = vpop.f32.mrb[0].mxu0
    %v8800 = vadd.f32 %v301, %v8799
    %v8801 = vpop.f32.mrb[0].mxu0
    %v8802 = vpop.f32.mrb[0].mxu0
    %v8803 = vadd.f32 %v302, %v8802
    %v8804 = vpop.f32.mrb[0].mxu0
    %8805 = vdwg.mxu0
    %8806 = vmatprep.subr.bf16.mxu0 0
    %8807 = vmatpush1.bf16.xpose.msra.mxu0 %v8215
    %8808 = vmatprep.subr.bf16.mxu0 0
    %8809 = vmatpush1.bf16.xpose.msra.mxu0 0
    %8810 = vmatprep.subr.bf16.mxu0 0
    %8811 = vmatpush1.bf16.xpose.msra.mxu0 0
    %8812 = vmatprep.subr.bf16.mxu0 0
    %8813 = vmatpush1.bf16.xpose.msra.mxu0 0
    %8814 = vmatprep.subr.bf16.mxu0 0
    %8815 = vmatpush1.bf16.xpose.msra.mxu0 0
    %8816 = vmatprep.subr.bf16.mxu0 0
    %8817 = vmatpush1.bf16.xpose.msra.mxu0 0
    %8818 = vmatprep.subr.bf16.mxu0 0
    %8819 = vmatpush1.bf16.xpose.msra.mxu0 0
    %8820 = vmatprep.subr.bf16.mxu0 0
    %8821 = vmatpush1.bf16.xpose.msra.mxu0 0
    %8822 = vmatprep.subr.bf16.mxu0 0
    %8823 = vmatpush1.bf16.xpose.msra.mxu0 0
    %8824 = vmatprep.subr.bf16.mxu0 0
    %8825 = vmatpush1.bf16.xpose.msra.mxu0 0
    %8826 = vmatprep.subr.bf16.mxu0 0
    %8827 = vmatpush1.bf16.xpose.msra.mxu0 0
    %8828 = vmatprep.subr.bf16.mxu0 0
    %8829 = vmatpush1.bf16.xpose.msra.mxu0 0
    %8830 = vmatprep.subr.bf16.mxu0 0
    %8831 = vmatpush1.bf16.xpose.msra.mxu0 0
    %8832 = vmatprep.subr.bf16.mxu0 0
    %8833 = vmatpush1.bf16.xpose.msra.mxu0 0
    %8834 = vmatprep.subr.bf16.mxu0 0
    %8835 = vmatpush1.bf16.xpose.msra.mxu0 0
    %8836 = vmatprep.subr.bf16.mxu0 0
    %8837 = vmatpush1.bf16.xpose.msra.mxu0 0
    %8838 = vmatprep.mubr.bf16.mxu0 0
    %8839 = vmatmul.mubr.bf16.gmra.mrb[0].mxu0 %v8211
    %v8840 = vpop.f32.mrb[0].mxu0
    %v8841 = vadd.f32 %v303, %v8840
    %v8842 = vpop.f32.mrb[0].mxu0
    %v8843 = vpop.f32.mrb[0].mxu0
    %v8844 = vadd.f32 %v304, %v8843
    %v8845 = vpop.f32.mrb[0].mxu0
    %8846 = vdwg.mxu0
    %8847 = vmatprep.subr.bf16.mxu0 0
    %8848 = vmatpush1.bf16.xpose.msra.mxu0 %v8227
    %8849 = vmatprep.subr.bf16.mxu0 0
    %8850 = vmatpush1.bf16.xpose.msra.mxu0 0
    %8851 = vmatprep.subr.bf16.mxu0 0
    %8852 = vmatpush1.bf16.xpose.msra.mxu0 0
    %8853 = vmatprep.subr.bf16.mxu0 0
    %8854 = vmatpush1.bf16.xpose.msra.mxu0 0
    %8855 = vmatprep.subr.bf16.mxu0 0
    %8856 = vmatpush1.bf16.xpose.msra.mxu0 0
    %8857 = vmatprep.subr.bf16.mxu0 0
    %8858 = vmatpush1.bf16.xpose.msra.mxu0 0
    %8859 = vmatprep.subr.bf16.mxu0 0
    %8860 = vmatpush1.bf16.xpose.msra.mxu0 0
    %8861 = vmatprep.subr.bf16.mxu0 0
    %8862 = vmatpush1.bf16.xpose.msra.mxu0 0
    %8863 = vmatprep.subr.bf16.mxu0 0
    %8864 = vmatpush1.bf16.xpose.msra.mxu0 0
    %8865 = vmatprep.subr.bf16.mxu0 0
    %8866 = vmatpush1.bf16.xpose.msra.mxu0 0
    %8867 = vmatprep.subr.bf16.mxu0 0
    %8868 = vmatpush1.bf16.xpose.msra.mxu0 0
    %8869 = vmatprep.subr.bf16.mxu0 0
    %8870 = vmatpush1.bf16.xpose.msra.mxu0 0
    %8871 = vmatprep.subr.bf16.mxu0 0
    %8872 = vmatpush1.bf16.xpose.msra.mxu0 0
    %8873 = vmatprep.subr.bf16.mxu0 0
    %8874 = vmatpush1.bf16.xpose.msra.mxu0 0
    %8875 = vmatprep.subr.bf16.mxu0 0
    %8876 = vmatpush1.bf16.xpose.msra.mxu0 0
    %8877 = vmatprep.subr.bf16.mxu0 0
    %8878 = vmatpush1.bf16.xpose.msra.mxu0 0
    %8879 = vmatprep.mubr.bf16.mxu0 0
    %8880 = vmatmul.mubr.bf16.gmra.mrb[0].mxu0 %v8223
    %v8881 = vpop.f32.mrb[0].mxu0
    %v8882 = vadd.f32 %v305, %v8881
    %v8883 = vpop.f32.mrb[0].mxu0
    %v8884 = vpop.f32.mrb[0].mxu0
    %v8885 = vadd.f32 %v306, %v8884
    %v8886 = vpop.f32.mrb[0].mxu0
    %8887 = vdwg.mxu0
    %v8888 = vsel %vm1826, %v8267, -inf
    %8889 = vmax.xlane.f32.xlu0 %v8888
    %v8890 = vpop.xlane.xlu0 %8889
    %v8891 = vsel %vm1826, %v8270, -inf
    %8892 = vmax.xlane.f32.xlu0 %v8891
    %v8893 = vpop.xlane.xlu0 %8892
    %v8894 = vsel %vm1826, %v8308, -inf
    %8895 = vmax.xlane.f32.xlu0 %v8894
    %v8896 = vpop.xlane.xlu0 %8895
    %v8897 = vsel %vm1826, %v8311, -inf
    %8898 = vmax.xlane.f32.xlu0 %v8897
    %v8899 = vpop.xlane.xlu0 %8898
    %v8900 = vsel %vm1826, %v8349, -inf
    %8901 = vmax.xlane.f32.xlu0 %v8900
    %v8902 = vpop.xlane.xlu0 %8901
    %v8903 = vsel %vm1826, %v8352, -inf
    %8904 = vmax.xlane.f32.xlu0 %v8903
    %v8905 = vpop.xlane.xlu0 %8904
    %v8906 = vsel %vm1826, %v8390, -inf
    %8907 = vmax.xlane.f32.xlu0 %v8906
    %v8908 = vpop.xlane.xlu0 %8907
    %v8909 = vsel %vm1826, %v8393, -inf
    %8910 = vmax.xlane.f32.xlu0 %v8909
    %v8911 = vpop.xlane.xlu0 %8910
    %v8912 = vsel %vm1826, %v8431, -inf
    %8913 = vmax.xlane.f32.xlu0 %v8912
    %v8914 = vpop.xlane.xlu0 %8913
    %v8915 = vsel %vm1826, %v8434, -inf
    %8916 = vmax.xlane.f32.xlu0 %v8915
    %v8917 = vpop.xlane.xlu0 %8916
    %v8918 = vsel %vm1826, %v8472, -inf
    %8919 = vmax.xlane.f32.xlu0 %v8918
    %v8920 = vpop.xlane.xlu0 %8919
    %v8921 = vsel %vm1826, %v8475, -inf
    %8922 = vmax.xlane.f32.xlu0 %v8921
    %v8923 = vpop.xlane.xlu0 %8922
    %v8924 = vsel %vm1826, %v8513, -inf
    %8925 = vmax.xlane.f32.xlu0 %v8924
    %v8926 = vpop.xlane.xlu0 %8925
    %v8927 = vsel %vm1826, %v8516, -inf
    %8928 = vmax.xlane.f32.xlu0 %v8927
    %v8929 = vpop.xlane.xlu0 %8928
    %v8930 = vsel %vm1826, %v8554, -inf
    %8931 = vmax.xlane.f32.xlu0 %v8930
    %v8932 = vpop.xlane.xlu0 %8931
    %v8933 = vsel %vm1826, %v8557, -inf
    %8934 = vmax.xlane.f32.xlu0 %v8933
    %v8935 = vpop.xlane.xlu0 %8934
    %v8936 = vsel %vm1826, %v8595, -inf
    %8937 = vmax.xlane.f32.xlu0 %v8936
    %v8938 = vpop.xlane.xlu0 %8937
    %v8939 = vsel %vm1826, %v8598, -inf
    %8940 = vmax.xlane.f32.xlu0 %v8939
    %v8941 = vpop.xlane.xlu0 %8940
    %v8942 = vsel %vm1826, %v8636, -inf
    %8943 = vmax.xlane.f32.xlu0 %v8942
    %v8944 = vpop.xlane.xlu0 %8943
    %v8945 = vsel %vm1826, %v8639, -inf
    %8946 = vmax.xlane.f32.xlu0 %v8945
    %v8947 = vpop.xlane.xlu0 %8946
    %v8948 = vsel %vm1826, %v8677, -inf
    %8949 = vmax.xlane.f32.xlu0 %v8948
    %v8950 = vpop.xlane.xlu0 %8949
    %v8951 = vsel %vm1826, %v8680, -inf
    %8952 = vmax.xlane.f32.xlu0 %v8951
    %v8953 = vpop.xlane.xlu0 %8952
    %v8954 = vsel %vm1826, %v8718, -inf
    %8955 = vmax.xlane.f32.xlu0 %v8954
    %v8956 = vpop.xlane.xlu0 %8955
    %v8957 = vsel %vm1826, %v8721, -inf
    %8958 = vmax.xlane.f32.xlu0 %v8957
    %v8959 = vpop.xlane.xlu0 %8958
    %v8960 = vsel %vm1826, %v8759, -inf
    %8961 = vmax.xlane.f32.xlu0 %v8960
    %v8962 = vpop.xlane.xlu0 %8961
    %v8963 = vsel %vm1826, %v8762, -inf
    %8964 = vmax.xlane.f32.xlu0 %v8963
    %v8965 = vpop.xlane.xlu0 %8964
    %v8966 = vsel %vm1826, %v8800, -inf
    %8967 = vmax.xlane.f32.xlu0 %v8966
    %v8968 = vpop.xlane.xlu0 %8967
    %v8969 = vsel %vm1826, %v8803, -inf
    %8970 = vmax.xlane.f32.xlu0 %v8969
    %v8971 = vpop.xlane.xlu0 %8970
    %v8972 = vsel %vm1826, %v8841, -inf
    %8973 = vmax.xlane.f32.xlu0 %v8972
    %v8974 = vpop.xlane.xlu0 %8973
    %v8975 = vsel %vm1826, %v8844, -inf
    %8976 = vmax.xlane.f32.xlu0 %v8975
    %v8977 = vpop.xlane.xlu0 %8976
    %v8978 = vsel %vm1826, %v8882, -inf
    %8979 = vmax.xlane.f32.xlu0 %v8978
    %v8980 = vpop.xlane.xlu0 %8979
    %v8981 = vsel %vm1826, %v8885, -inf
    %8982 = vmax.xlane.f32.xlu0 %v8981
    %v8983 = vpop.xlane.xlu0 %8982
    %v8984 = vsub.f32 %v8267, %v8890
    %v8985 = vsub.f32 %v8270, %v8893
    %v8986 = vsub.f32 %v8308, %v8896
    %v8987 = vsub.f32 %v8311, %v8899
    %v8988 = vsub.f32 %v8349, %v8902
    %v8989 = vsub.f32 %v8352, %v8905
    %v8990 = vsub.f32 %v8390, %v8908
    %v8991 = vsub.f32 %v8393, %v8911
    %v8992 = vsub.f32 %v8431, %v8914
    %v8993 = vsub.f32 %v8434, %v8917
    %v8994 = vsub.f32 %v8472, %v8920
    %v8995 = vsub.f32 %v8475, %v8923
    %v8996 = vsub.f32 %v8513, %v8926
    %v8997 = vsub.f32 %v8516, %v8929
    %v8998 = vsub.f32 %v8554, %v8932
    %v8999 = vsub.f32 %v8557, %v8935
    %v9000 = vsub.f32 %v8595, %v8938
    %v9001 = vsub.f32 %v8598, %v8941
    %v9002 = vsub.f32 %v8636, %v8944
    %v9003 = vsub.f32 %v8639, %v8947
    %v9004 = vsub.f32 %v8677, %v8950
    %v9005 = vsub.f32 %v8680, %v8953
    %v9006 = vsub.f32 %v8718, %v8956
    %v9007 = vsub.f32 %v8721, %v8959
    %v9008 = vsub.f32 %v8759, %v8962
    %v9009 = vsub.f32 %v8762, %v8965
    %v9010 = vsub.f32 %v8800, %v8968
    %v9011 = vsub.f32 %v8803, %v8971
    %v9012 = vsub.f32 %v8841, %v8974
    %v9013 = vsub.f32 %v8844, %v8977
    %v9014 = vsub.f32 %v8882, %v8980
    %v9015 = vsub.f32 %v8885, %v8983
    %v9016 = vmul.f32 %v8984, 1.442695
    %v9017 = vpow.pop %v9016
    %v9018 = vmul.f32 %v8985, 1.442695
    %v9019 = vpow.pop %v9018
    %v9020 = vmul.f32 %v8986, 1.442695
    %v9021 = vpow.pop %v9020
    %v9022 = vmul.f32 %v8987, 1.442695
    %v9023 = vpow.pop %v9022
    %v9024 = vmul.f32 %v8988, 1.442695
    %v9025 = vpow.pop %v9024
    %v9026 = vmul.f32 %v8989, 1.442695
    %v9027 = vpow.pop %v9026
    %v9028 = vmul.f32 %v8990, 1.442695
    %v9029 = vpow.pop %v9028
    %v9030 = vmul.f32 %v8991, 1.442695
    %v9031 = vpow.pop %v9030
    %v9032 = vmul.f32 %v8992, 1.442695
    %v9033 = vpow.pop %v9032
    %v9034 = vmul.f32 %v8993, 1.442695
    %v9035 = vpow.pop %v9034
    %v9036 = vmul.f32 %v8994, 1.442695
    %v9037 = vpow.pop %v9036
    %v9038 = vmul.f32 %v8995, 1.442695
    %v9039 = vpow.pop %v9038
    %v9040 = vmul.f32 %v8996, 1.442695
    %v9041 = vpow.pop %v9040
    %v9042 = vmul.f32 %v8997, 1.442695
    %v9043 = vpow.pop %v9042
    %v9044 = vmul.f32 %v8998, 1.442695
    %v9045 = vpow.pop %v9044
    %v9046 = vmul.f32 %v8999, 1.442695
    %v9047 = vpow.pop %v9046
    %v9048 = vmul.f32 %v9000, 1.442695
    %v9049 = vpow.pop %v9048
    %v9050 = vmul.f32 %v9001, 1.442695
    %v9051 = vpow.pop %v9050
    %v9052 = vmul.f32 %v9002, 1.442695
    %v9053 = vpow.pop %v9052
    %v9054 = vmul.f32 %v9003, 1.442695
    %v9055 = vpow.pop %v9054
    %v9056 = vmul.f32 %v9004, 1.442695
    %v9057 = vpow.pop %v9056
    %v9058 = vmul.f32 %v9005, 1.442695
    %v9059 = vpow.pop %v9058
    %v9060 = vmul.f32 %v9006, 1.442695
    %v9061 = vpow.pop %v9060
    %v9062 = vmul.f32 %v9007, 1.442695
    %v9063 = vpow.pop %v9062
    %v9064 = vmul.f32 %v9008, 1.442695
    %v9065 = vpow.pop %v9064
    %v9066 = vmul.f32 %v9009, 1.442695
    %v9067 = vpow.pop %v9066
    %v9068 = vmul.f32 %v9010, 1.442695
    %v9069 = vpow.pop %v9068
    %v9070 = vmul.f32 %v9011, 1.442695
    %v9071 = vpow.pop %v9070
    %v9072 = vmul.f32 %v9012, 1.442695
    %v9073 = vpow.pop %v9072
    %v9074 = vmul.f32 %v9013, 1.442695
    %v9075 = vpow.pop %v9074
    %v9076 = vmul.f32 %v9014, 1.442695
    %v9077 = vpow.pop %v9076
    %v9078 = vmul.f32 %v9015, 1.442695
    %v9079 = vpow.pop %v9078
    %v9080 = vsel %vm1826, %v9017, 0.0
    %9081 = vadd.xlane.f32.xlu0 %v9080
    %v9082 = vpop.xlane.xlu0 %9081
    %v9083 = vsel %vm1826, %v9019, 0.0
    %9084 = vadd.xlane.f32.xlu0 %v9083
    %v9085 = vpop.xlane.xlu0 %9084
    %v9086 = vsel %vm1826, %v9021, 0.0
    %9087 = vadd.xlane.f32.xlu0 %v9086
    %v9088 = vpop.xlane.xlu0 %9087
    %v9089 = vsel %vm1826, %v9023, 0.0
    %9090 = vadd.xlane.f32.xlu0 %v9089
    %v9091 = vpop.xlane.xlu0 %9090
    %v9092 = vsel %vm1826, %v9025, 0.0
    %9093 = vadd.xlane.f32.xlu0 %v9092
    %v9094 = vpop.xlane.xlu0 %9093
    %v9095 = vsel %vm1826, %v9027, 0.0
    %9096 = vadd.xlane.f32.xlu0 %v9095
    %v9097 = vpop.xlane.xlu0 %9096
    %v9098 = vsel %vm1826, %v9029, 0.0
    %9099 = vadd.xlane.f32.xlu0 %v9098
    %v9100 = vpop.xlane.xlu0 %9099
    %v9101 = vsel %vm1826, %v9031, 0.0
    %9102 = vadd.xlane.f32.xlu0 %v9101
    %v9103 = vpop.xlane.xlu0 %9102
    %v9104 = vsel %vm1826, %v9033, 0.0
    %9105 = vadd.xlane.f32.xlu0 %v9104
    %v9106 = vpop.xlane.xlu0 %9105
    %v9107 = vsel %vm1826, %v9035, 0.0
    %9108 = vadd.xlane.f32.xlu0 %v9107
    %v9109 = vpop.xlane.xlu0 %9108
    %v9110 = vsel %vm1826, %v9037, 0.0
    %9111 = vadd.xlane.f32.xlu0 %v9110
    %v9112 = vpop.xlane.xlu0 %9111
    %v9113 = vsel %vm1826, %v9039, 0.0
    %9114 = vadd.xlane.f32.xlu0 %v9113
    %v9115 = vpop.xlane.xlu0 %9114
    %v9116 = vsel %vm1826, %v9041, 0.0
    %9117 = vadd.xlane.f32.xlu0 %v9116
    %v9118 = vpop.xlane.xlu0 %9117
    %v9119 = vsel %vm1826, %v9043, 0.0
    %9120 = vadd.xlane.f32.xlu0 %v9119
    %v9121 = vpop.xlane.xlu0 %9120
    %v9122 = vsel %vm1826, %v9045, 0.0
    %9123 = vadd.xlane.f32.xlu0 %v9122
    %v9124 = vpop.xlane.xlu0 %9123
    %v9125 = vsel %vm1826, %v9047, 0.0
    %9126 = vadd.xlane.f32.xlu0 %v9125
    %v9127 = vpop.xlane.xlu0 %9126
    %v9128 = vsel %vm1826, %v9049, 0.0
    %9129 = vadd.xlane.f32.xlu0 %v9128
    %v9130 = vpop.xlane.xlu0 %9129
    %v9131 = vsel %vm1826, %v9051, 0.0
    %9132 = vadd.xlane.f32.xlu0 %v9131
    %v9133 = vpop.xlane.xlu0 %9132
    %v9134 = vsel %vm1826, %v9053, 0.0
    %9135 = vadd.xlane.f32.xlu0 %v9134
    %v9136 = vpop.xlane.xlu0 %9135
    %v9137 = vsel %vm1826, %v9055, 0.0
    %9138 = vadd.xlane.f32.xlu0 %v9137
    %v9139 = vpop.xlane.xlu0 %9138
    %v9140 = vsel %vm1826, %v9057, 0.0
    %9141 = vadd.xlane.f32.xlu0 %v9140
    %v9142 = vpop.xlane.xlu0 %9141
    %v9143 = vsel %vm1826, %v9059, 0.0
    %9144 = vadd.xlane.f32.xlu0 %v9143
    %v9145 = vpop.xlane.xlu0 %9144
    %v9146 = vsel %vm1826, %v9061, 0.0
    %9147 = vadd.xlane.f32.xlu0 %v9146
    %v9148 = vpop.xlane.xlu0 %9147
    %v9149 = vsel %vm1826, %v9063, 0.0
    %9150 = vadd.xlane.f32.xlu0 %v9149
    %v9151 = vpop.xlane.xlu0 %9150
    %v9152 = vsel %vm1826, %v9065, 0.0
    %9153 = vadd.xlane.f32.xlu0 %v9152
    %v9154 = vpop.xlane.xlu0 %9153
    %v9155 = vsel %vm1826, %v9067, 0.0
    %9156 = vadd.xlane.f32.xlu0 %v9155
    %v9157 = vpop.xlane.xlu0 %9156
    %v9158 = vsel %vm1826, %v9069, 0.0
    %9159 = vadd.xlane.f32.xlu0 %v9158
    %v9160 = vpop.xlane.xlu0 %9159
    %v9161 = vsel %vm1826, %v9071, 0.0
    %9162 = vadd.xlane.f32.xlu0 %v9161
    %v9163 = vpop.xlane.xlu0 %9162
    %v9164 = vsel %vm1826, %v9073, 0.0
    %9165 = vadd.xlane.f32.xlu0 %v9164
    %v9166 = vpop.xlane.xlu0 %9165
    %v9167 = vsel %vm1826, %v9075, 0.0
    %9168 = vadd.xlane.f32.xlu0 %v9167
    %v9169 = vpop.xlane.xlu0 %9168
    %v9170 = vsel %vm1826, %v9077, 0.0
    %9171 = vadd.xlane.f32.xlu0 %v9170
    %v9172 = vpop.xlane.xlu0 %9171
    %v9173 = vsel %vm1826, %v9079, 0.0
    %9174 = vadd.xlane.f32.xlu0 %v9173
    %v9175 = vpop.xlane.xlu0 %9174
    %v9176 = vpack.c.bf16 %v9019, %v9017
    %v9177 = vpack.c.bf16 %v9023, %v9021
    %v9178 = vpack.c.bf16 %v9027, %v9025
    %v9179 = vpack.c.bf16 %v9031, %v9029
    %v9180 = vpack.c.bf16 %v9035, %v9033
    %v9181 = vpack.c.bf16 %v9039, %v9037
    %v9182 = vpack.c.bf16 %v9043, %v9041
    %v9183 = vpack.c.bf16 %v9047, %v9045
    %v9184 = vpack.c.bf16 %v9051, %v9049
    %v9185 = vpack.c.bf16 %v9055, %v9053
    %v9186 = vpack.c.bf16 %v9059, %v9057
    %v9187 = vpack.c.bf16 %v9063, %v9061
    %v9188 = vpack.c.bf16 %v9067, %v9065
    %v9189 = vpack.c.bf16 %v9071, %v9069
    %v9190 = vpack.c.bf16 %v9075, %v9073
    %v9191 = vpack.c.bf16 %v9079, %v9077
    %v9193 = vsel %vm1826, %v9176, 0
    %9195 = vmatprep.subr.bf16.mxu0 0
    %9196 = vmatpush1.bf16.msra.mxu0 %v8192
    %9197 = vmatprep.subr.bf16.mxu0 0
    %9198 = vmatpush1.bf16.msra.mxu0 0
    %9199 = vmatprep.subr.bf16.mxu0 0
    %9200 = vmatpush1.bf16.msra.mxu0 0
    %9201 = vmatprep.subr.bf16.mxu0 0
    %9202 = vmatpush1.bf16.msra.mxu0 0
    %9203 = vmatprep.subr.bf16.mxu0 0
    %9204 = vmatpush1.bf16.msra.mxu0 0
    %9205 = vmatprep.subr.bf16.mxu0 0
    %9206 = vmatpush1.bf16.msra.mxu0 0
    %9207 = vmatprep.subr.bf16.mxu0 0
    %9208 = vmatpush1.bf16.msra.mxu0 0
    %9209 = vmatprep.subr.bf16.mxu0 0
    %9210 = vmatpush1.bf16.msra.mxu0 0
    %9211 = vmatprep.subr.bf16.mxu0 0
    %9212 = vmatpush1.bf16.msra.mxu0 0
    %9213 = vmatprep.subr.bf16.mxu0 0
    %9214 = vmatpush1.bf16.msra.mxu0 0
    %9215 = vmatprep.subr.bf16.mxu0 0
    %9216 = vmatpush1.bf16.msra.mxu0 0
    %9217 = vmatprep.subr.bf16.mxu0 0
    %9218 = vmatpush1.bf16.msra.mxu0 0
    %9219 = vmatprep.subr.bf16.mxu0 0
    %9220 = vmatpush1.bf16.msra.mxu0 0
    %9221 = vmatprep.subr.bf16.mxu0 0
    %9222 = vmatpush1.bf16.msra.mxu0 0
    %9223 = vmatprep.subr.bf16.mxu0 0
    %9224 = vmatpush1.bf16.msra.mxu0 0
    %9225 = vmatprep.subr.bf16.mxu0 0
    %9226 = vmatpush1.bf16.msra.mxu0 0
    %9227 = vmatprep.mubr.bf16.mxu0 0
    %9228 = vmatmul.mubr.bf16.gmra.mrb[0].mxu0 %v9193
    %v9229 = vpop.f32.mrb[0].mxu0
    %v9230 = vadd.f32 0.0, %v9229
    %v9231 = vpop.f32.mrb[0].mxu0
    %v9232 = vpop.f32.mrb[0].mxu0
    %v9233 = vadd.f32 0.0, %v9232
    %v9234 = vpop.f32.mrb[0].mxu0
    %9235 = vdwg.mxu0
    %v9237 = vsel %vm1826, %v9177, 0
    %9239 = vmatprep.subr.bf16.mxu0 0
    %9240 = vmatpush1.bf16.msra.mxu0 %v8204
    %9241 = vmatprep.subr.bf16.mxu0 0
    %9242 = vmatpush1.bf16.msra.mxu0 0
    %9243 = vmatprep.subr.bf16.mxu0 0
    %9244 = vmatpush1.bf16.msra.mxu0 0
    %9245 = vmatprep.subr.bf16.mxu0 0
    %9246 = vmatpush1.bf16.msra.mxu0 0
    %9247 = vmatprep.subr.bf16.mxu0 0
    %9248 = vmatpush1.bf16.msra.mxu0 0
    %9249 = vmatprep.subr.bf16.mxu0 0
    %9250 = vmatpush1.bf16.msra.mxu0 0
    %9251 = vmatprep.subr.bf16.mxu0 0
    %9252 = vmatpush1.bf16.msra.mxu0 0
    %9253 = vmatprep.subr.bf16.mxu0 0
    %9254 = vmatpush1.bf16.msra.mxu0 0
    %9255 = vmatprep.subr.bf16.mxu0 0
    %9256 = vmatpush1.bf16.msra.mxu0 0
    %9257 = vmatprep.subr.bf16.mxu0 0
    %9258 = vmatpush1.bf16.msra.mxu0 0
    %9259 = vmatprep.subr.bf16.mxu0 0
    %9260 = vmatpush1.bf16.msra.mxu0 0
    %9261 = vmatprep.subr.bf16.mxu0 0
    %9262 = vmatpush1.bf16.msra.mxu0 0
    %9263 = vmatprep.subr.bf16.mxu0 0
    %9264 = vmatpush1.bf16.msra.mxu0 0
    %9265 = vmatprep.subr.bf16.mxu0 0
    %9266 = vmatpush1.bf16.msra.mxu0 0
    %9267 = vmatprep.subr.bf16.mxu0 0
    %9268 = vmatpush1.bf16.msra.mxu0 0
    %9269 = vmatprep.subr.bf16.mxu0 0
    %9270 = vmatpush1.bf16.msra.mxu0 0
    %9271 = vmatprep.mubr.bf16.mxu0 0
    %9272 = vmatmul.mubr.bf16.gmra.mrb[0].mxu0 %v9237
    %v9273 = vpop.f32.mrb[0].mxu0
    %v9274 = vadd.f32 0.0, %v9273
    %v9275 = vpop.f32.mrb[0].mxu0
    %v9276 = vpop.f32.mrb[0].mxu0
    %v9277 = vadd.f32 0.0, %v9276
    %v9278 = vpop.f32.mrb[0].mxu0
    %9279 = vdwg.mxu0
    %v9281 = vsel %vm1826, %v9178, 0
    %9283 = vmatprep.subr.bf16.mxu0 0
    %9284 = vmatpush1.bf16.msra.mxu0 %v8216
    %9285 = vmatprep.subr.bf16.mxu0 0
    %9286 = vmatpush1.bf16.msra.mxu0 0
    %9287 = vmatprep.subr.bf16.mxu0 0
    %9288 = vmatpush1.bf16.msra.mxu0 0
    %9289 = vmatprep.subr.bf16.mxu0 0
    %9290 = vmatpush1.bf16.msra.mxu0 0
    %9291 = vmatprep.subr.bf16.mxu0 0
    %9292 = vmatpush1.bf16.msra.mxu0 0
    %9293 = vmatprep.subr.bf16.mxu0 0
    %9294 = vmatpush1.bf16.msra.mxu0 0
    %9295 = vmatprep.subr.bf16.mxu0 0
    %9296 = vmatpush1.bf16.msra.mxu0 0
    %9297 = vmatprep.subr.bf16.mxu0 0
    %9298 = vmatpush1.bf16.msra.mxu0 0
    %9299 = vmatprep.subr.bf16.mxu0 0
    %9300 = vmatpush1.bf16.msra.mxu0 0
    %9301 = vmatprep.subr.bf16.mxu0 0
    %9302 = vmatpush1.bf16.msra.mxu0 0
    %9303 = vmatprep.subr.bf16.mxu0 0
    %9304 = vmatpush1.bf16.msra.mxu0 0
    %9305 = vmatprep.subr.bf16.mxu0 0
    %9306 = vmatpush1.bf16.msra.mxu0 0
    %9307 = vmatprep.subr.bf16.mxu0 0
    %9308 = vmatpush1.bf16.msra.mxu0 0
    %9309 = vmatprep.subr.bf16.mxu0 0
    %9310 = vmatpush1.bf16.msra.mxu0 0
    %9311 = vmatprep.subr.bf16.mxu0 0
    %9312 = vmatpush1.bf16.msra.mxu0 0
    %9313 = vmatprep.subr.bf16.mxu0 0
    %9314 = vmatpush1.bf16.msra.mxu0 0
    %9315 = vmatprep.mubr.bf16.mxu0 0
    %9316 = vmatmul.mubr.bf16.gmra.mrb[0].mxu0 %v9281
    %v9317 = vpop.f32.mrb[0].mxu0
    %v9318 = vadd.f32 0.0, %v9317
    %v9319 = vpop.f32.mrb[0].mxu0
    %v9320 = vpop.f32.mrb[0].mxu0
    %v9321 = vadd.f32 0.0, %v9320
    %v9322 = vpop.f32.mrb[0].mxu0
    %9323 = vdwg.mxu0
    %v9325 = vsel %vm1826, %v9179, 0
    %9327 = vmatprep.subr.bf16.mxu0 0
    %9328 = vmatpush1.bf16.msra.mxu0 %v8228
    %9329 = vmatprep.subr.bf16.mxu0 0
    %9330 = vmatpush1.bf16.msra.mxu0 0
    %9331 = vmatprep.subr.bf16.mxu0 0
    %9332 = vmatpush1.bf16.msra.mxu0 0
    %9333 = vmatprep.subr.bf16.mxu0 0
    %9334 = vmatpush1.bf16.msra.mxu0 0
    %9335 = vmatprep.subr.bf16.mxu0 0
    %9336 = vmatpush1.bf16.msra.mxu0 0
    %9337 = vmatprep.subr.bf16.mxu0 0
    %9338 = vmatpush1.bf16.msra.mxu0 0
    %9339 = vmatprep.subr.bf16.mxu0 0
    %9340 = vmatpush1.bf16.msra.mxu0 0
    %9341 = vmatprep.subr.bf16.mxu0 0
    %9342 = vmatpush1.bf16.msra.mxu0 0
    %9343 = vmatprep.subr.bf16.mxu0 0
    %9344 = vmatpush1.bf16.msra.mxu0 0
    %9345 = vmatprep.subr.bf16.mxu0 0
    %9346 = vmatpush1.bf16.msra.mxu0 0
    %9347 = vmatprep.subr.bf16.mxu0 0
    %9348 = vmatpush1.bf16.msra.mxu0 0
    %9349 = vmatprep.subr.bf16.mxu0 0
    %9350 = vmatpush1.bf16.msra.mxu0 0
    %9351 = vmatprep.subr.bf16.mxu0 0
    %9352 = vmatpush1.bf16.msra.mxu0 0
    %9353 = vmatprep.subr.bf16.mxu0 0
    %9354 = vmatpush1.bf16.msra.mxu0 0
    %9355 = vmatprep.subr.bf16.mxu0 0
    %9356 = vmatpush1.bf16.msra.mxu0 0
    %9357 = vmatprep.subr.bf16.mxu0 0
    %9358 = vmatpush1.bf16.msra.mxu0 0
    %9359 = vmatprep.mubr.bf16.mxu0 0
    %9360 = vmatmul.mubr.bf16.gmra.mrb[0].mxu0 %v9325
    %v9361 = vpop.f32.mrb[0].mxu0
    %v9362 = vadd.f32 0.0, %v9361
    %v9363 = vpop.f32.mrb[0].mxu0
    %v9364 = vpop.f32.mrb[0].mxu0
    %v9365 = vadd.f32 0.0, %v9364
    %v9366 = vpop.f32.mrb[0].mxu0
    %9367 = vdwg.mxu0
    %v9369 = vsel %vm1826, %v9180, 0
    %9371 = vmatprep.subr.bf16.mxu0 0
    %9372 = vmatpush1.bf16.msra.mxu0 %v8193
    %9373 = vmatprep.subr.bf16.mxu0 0
    %9374 = vmatpush1.bf16.msra.mxu0 0
    %9375 = vmatprep.subr.bf16.mxu0 0
    %9376 = vmatpush1.bf16.msra.mxu0 0
    %9377 = vmatprep.subr.bf16.mxu0 0
    %9378 = vmatpush1.bf16.msra.mxu0 0
    %9379 = vmatprep.subr.bf16.mxu0 0
    %9380 = vmatpush1.bf16.msra.mxu0 0
    %9381 = vmatprep.subr.bf16.mxu0 0
    %9382 = vmatpush1.bf16.msra.mxu0 0
    %9383 = vmatprep.subr.bf16.mxu0 0
    %9384 = vmatpush1.bf16.msra.mxu0 0
    %9385 = vmatprep.subr.bf16.mxu0 0
    %9386 = vmatpush1.bf16.msra.mxu0 0
    %9387 = vmatprep.subr.bf16.mxu0 0
    %9388 = vmatpush1.bf16.msra.mxu0 0
    %9389 = vmatprep.subr.bf16.mxu0 0
    %9390 = vmatpush1.bf16.msra.mxu0 0
    %9391 = vmatprep.subr.bf16.mxu0 0
    %9392 = vmatpush1.bf16.msra.mxu0 0
    %9393 = vmatprep.subr.bf16.mxu0 0
    %9394 = vmatpush1.bf16.msra.mxu0 0
    %9395 = vmatprep.subr.bf16.mxu0 0
    %9396 = vmatpush1.bf16.msra.mxu0 0
    %9397 = vmatprep.subr.bf16.mxu0 0
    %9398 = vmatpush1.bf16.msra.mxu0 0
    %9399 = vmatprep.subr.bf16.mxu0 0
    %9400 = vmatpush1.bf16.msra.mxu0 0
    %9401 = vmatprep.subr.bf16.mxu0 0
    %9402 = vmatpush1.bf16.msra.mxu0 0
    %9403 = vmatprep.mubr.bf16.mxu0 0
    %9404 = vmatmul.mubr.bf16.gmra.mrb[0].mxu0 %v9369
    %v9405 = vpop.f32.mrb[0].mxu0
    %v9406 = vadd.f32 0.0, %v9405
    %v9407 = vpop.f32.mrb[0].mxu0
    %v9408 = vpop.f32.mrb[0].mxu0
    %v9409 = vadd.f32 0.0, %v9408
    %v9410 = vpop.f32.mrb[0].mxu0
    %9411 = vdwg.mxu0
    %v9413 = vsel %vm1826, %v9181, 0
    %9415 = vmatprep.subr.bf16.mxu0 0
    %9416 = vmatpush1.bf16.msra.mxu0 %v8205
    %9417 = vmatprep.subr.bf16.mxu0 0
    %9418 = vmatpush1.bf16.msra.mxu0 0
    %9419 = vmatprep.subr.bf16.mxu0 0
    %9420 = vmatpush1.bf16.msra.mxu0 0
    %9421 = vmatprep.subr.bf16.mxu0 0
    %9422 = vmatpush1.bf16.msra.mxu0 0
    %9423 = vmatprep.subr.bf16.mxu0 0
    %9424 = vmatpush1.bf16.msra.mxu0 0
    %9425 = vmatprep.subr.bf16.mxu0 0
    %9426 = vmatpush1.bf16.msra.mxu0 0
    %9427 = vmatprep.subr.bf16.mxu0 0
    %9428 = vmatpush1.bf16.msra.mxu0 0
    %9429 = vmatprep.subr.bf16.mxu0 0
    %9430 = vmatpush1.bf16.msra.mxu0 0
    %9431 = vmatprep.subr.bf16.mxu0 0
    %9432 = vmatpush1.bf16.msra.mxu0 0
    %9433 = vmatprep.subr.bf16.mxu0 0
    %9434 = vmatpush1.bf16.msra.mxu0 0
    %9435 = vmatprep.subr.bf16.mxu0 0
    %9436 = vmatpush1.bf16.msra.mxu0 0
    %9437 = vmatprep.subr.bf16.mxu0 0
    %9438 = vmatpush1.bf16.msra.mxu0 0
    %9439 = vmatprep.subr.bf16.mxu0 0
    %9440 = vmatpush1.bf16.msra.mxu0 0
    %9441 = vmatprep.subr.bf16.mxu0 0
    %9442 = vmatpush1.bf16.msra.mxu0 0
    %9443 = vmatprep.subr.bf16.mxu0 0
    %9444 = vmatpush1.bf16.msra.mxu0 0
    %9445 = vmatprep.subr.bf16.mxu0 0
    %9446 = vmatpush1.bf16.msra.mxu0 0
    %9447 = vmatprep.mubr.bf16.mxu0 0
    %9448 = vmatmul.mubr.bf16.gmra.mrb[0].mxu0 %v9413
    %v9449 = vpop.f32.mrb[0].mxu0
    %v9450 = vadd.f32 0.0, %v9449
    %v9451 = vpop.f32.mrb[0].mxu0
    %v9452 = vpop.f32.mrb[0].mxu0
    %v9453 = vadd.f32 0.0, %v9452
    %v9454 = vpop.f32.mrb[0].mxu0
    %9455 = vdwg.mxu0
    %v9457 = vsel %vm1826, %v9182, 0
    %9459 = vmatprep.subr.bf16.mxu0 0
    %9460 = vmatpush1.bf16.msra.mxu0 %v8217
    %9461 = vmatprep.subr.bf16.mxu0 0
    %9462 = vmatpush1.bf16.msra.mxu0 0
    %9463 = vmatprep.subr.bf16.mxu0 0
    %9464 = vmatpush1.bf16.msra.mxu0 0
    %9465 = vmatprep.subr.bf16.mxu0 0
    %9466 = vmatpush1.bf16.msra.mxu0 0
    %9467 = vmatprep.subr.bf16.mxu0 0
    %9468 = vmatpush1.bf16.msra.mxu0 0
    %9469 = vmatprep.subr.bf16.mxu0 0
    %9470 = vmatpush1.bf16.msra.mxu0 0
    %9471 = vmatprep.subr.bf16.mxu0 0
    %9472 = vmatpush1.bf16.msra.mxu0 0
    %9473 = vmatprep.subr.bf16.mxu0 0
    %9474 = vmatpush1.bf16.msra.mxu0 0
    %9475 = vmatprep.subr.bf16.mxu0 0
    %9476 = vmatpush1.bf16.msra.mxu0 0
    %9477 = vmatprep.subr.bf16.mxu0 0
    %9478 = vmatpush1.bf16.msra.mxu0 0
    %9479 = vmatprep.subr.bf16.mxu0 0
    %9480 = vmatpush1.bf16.msra.mxu0 0
    %9481 = vmatprep.subr.bf16.mxu0 0
    %9482 = vmatpush1.bf16.msra.mxu0 0
    %9483 = vmatprep.subr.bf16.mxu0 0
    %9484 = vmatpush1.bf16.msra.mxu0 0
    %9485 = vmatprep.subr.bf16.mxu0 0
    %9486 = vmatpush1.bf16.msra.mxu0 0
    %9487 = vmatprep.subr.bf16.mxu0 0
    %9488 = vmatpush1.bf16.msra.mxu0 0
    %9489 = vmatprep.subr.bf16.mxu0 0
    %9490 = vmatpush1.bf16.msra.mxu0 0
    %9491 = vmatprep.mubr.bf16.mxu0 0
    %9492 = vmatmul.mubr.bf16.gmra.mrb[0].mxu0 %v9457
    %v9493 = vpop.f32.mrb[0].mxu0
    %v9494 = vadd.f32 0.0, %v9493
    %v9495 = vpop.f32.mrb[0].mxu0
    %v9496 = vpop.f32.mrb[0].mxu0
    %v9497 = vadd.f32 0.0, %v9496
    %v9498 = vpop.f32.mrb[0].mxu0
    %9499 = vdwg.mxu0
    %v9501 = vsel %vm1826, %v9183, 0
    %9503 = vmatprep.subr.bf16.mxu0 0
    %9504 = vmatpush1.bf16.msra.mxu0 %v8229
    %9505 = vmatprep.subr.bf16.mxu0 0
    %9506 = vmatpush1.bf16.msra.mxu0 0
    %9507 = vmatprep.subr.bf16.mxu0 0
    %9508 = vmatpush1.bf16.msra.mxu0 0
    %9509 = vmatprep.subr.bf16.mxu0 0
    %9510 = vmatpush1.bf16.msra.mxu0 0
    %9511 = vmatprep.subr.bf16.mxu0 0
    %9512 = vmatpush1.bf16.msra.mxu0 0
    %9513 = vmatprep.subr.bf16.mxu0 0
    %9514 = vmatpush1.bf16.msra.mxu0 0
    %9515 = vmatprep.subr.bf16.mxu0 0
    %9516 = vmatpush1.bf16.msra.mxu0 0
    %9517 = vmatprep.subr.bf16.mxu0 0
    %9518 = vmatpush1.bf16.msra.mxu0 0
    %9519 = vmatprep.subr.bf16.mxu0 0
    %9520 = vmatpush1.bf16.msra.mxu0 0
    %9521 = vmatprep.subr.bf16.mxu0 0
    %9522 = vmatpush1.bf16.msra.mxu0 0
    %9523 = vmatprep.subr.bf16.mxu0 0
    %9524 = vmatpush1.bf16.msra.mxu0 0
    %9525 = vmatprep.subr.bf16.mxu0 0
    %9526 = vmatpush1.bf16.msra.mxu0 0
    %9527 = vmatprep.subr.bf16.mxu0 0
    %9528 = vmatpush1.bf16.msra.mxu0 0
    %9529 = vmatprep.subr.bf16.mxu0 0
    %9530 = vmatpush1.bf16.msra.mxu0 0
    %9531 = vmatprep.subr.bf16.mxu0 0
    %9532 = vmatpush1.bf16.msra.mxu0 0
    %9533 = vmatprep.subr.bf16.mxu0 0
    %9534 = vmatpush1.bf16.msra.mxu0 0
    %9535 = vmatprep.mubr.bf16.mxu0 0
    %9536 = vmatmul.mubr.bf16.gmra.mrb[0].mxu0 %v9501
    %v9537 = vpop.f32.mrb[0].mxu0
    %v9538 = vadd.f32 0.0, %v9537
    %v9539 = vpop.f32.mrb[0].mxu0
    %v9540 = vpop.f32.mrb[0].mxu0
    %v9541 = vadd.f32 0.0, %v9540
    %v9542 = vpop.f32.mrb[0].mxu0
    %9543 = vdwg.mxu0
    %v9545 = vsel %vm1826, %v9184, 0
    %9547 = vmatprep.subr.bf16.mxu0 0
    %9548 = vmatpush1.bf16.msra.mxu0 %v8194
    %9549 = vmatprep.subr.bf16.mxu0 0
    %9550 = vmatpush1.bf16.msra.mxu0 0
    %9551 = vmatprep.subr.bf16.mxu0 0
    %9552 = vmatpush1.bf16.msra.mxu0 0
    %9553 = vmatprep.subr.bf16.mxu0 0
    %9554 = vmatpush1.bf16.msra.mxu0 0
    %9555 = vmatprep.subr.bf16.mxu0 0
    %9556 = vmatpush1.bf16.msra.mxu0 0
    %9557 = vmatprep.subr.bf16.mxu0 0
    %9558 = vmatpush1.bf16.msra.mxu0 0
    %9559 = vmatprep.subr.bf16.mxu0 0
    %9560 = vmatpush1.bf16.msra.mxu0 0
    %9561 = vmatprep.subr.bf16.mxu0 0
    %9562 = vmatpush1.bf16.msra.mxu0 0
    %9563 = vmatprep.subr.bf16.mxu0 0
    %9564 = vmatpush1.bf16.msra.mxu0 0
    %9565 = vmatprep.subr.bf16.mxu0 0
    %9566 = vmatpush1.bf16.msra.mxu0 0
    %9567 = vmatprep.subr.bf16.mxu0 0
    %9568 = vmatpush1.bf16.msra.mxu0 0
    %9569 = vmatprep.subr.bf16.mxu0 0
    %9570 = vmatpush1.bf16.msra.mxu0 0
    %9571 = vmatprep.subr.bf16.mxu0 0
    %9572 = vmatpush1.bf16.msra.mxu0 0
    %9573 = vmatprep.subr.bf16.mxu0 0
    %9574 = vmatpush1.bf16.msra.mxu0 0
    %9575 = vmatprep.subr.bf16.mxu0 0
    %9576 = vmatpush1.bf16.msra.mxu0 0
    %9577 = vmatprep.subr.bf16.mxu0 0
    %9578 = vmatpush1.bf16.msra.mxu0 0
    %9579 = vmatprep.mubr.bf16.mxu0 0
    %9580 = vmatmul.mubr.bf16.gmra.mrb[0].mxu0 %v9545
    %v9581 = vpop.f32.mrb[0].mxu0
    %v9582 = vadd.f32 0.0, %v9581
    %v9583 = vpop.f32.mrb[0].mxu0
    %v9584 = vpop.f32.mrb[0].mxu0
    %v9585 = vadd.f32 0.0, %v9584
    %v9586 = vpop.f32.mrb[0].mxu0
    %9587 = vdwg.mxu0
    %v9589 = vsel %vm1826, %v9185, 0
    %9591 = vmatprep.subr.bf16.mxu0 0
    %9592 = vmatpush1.bf16.msra.mxu0 %v8206
    %9593 = vmatprep.subr.bf16.mxu0 0
    %9594 = vmatpush1.bf16.msra.mxu0 0
    %9595 = vmatprep.subr.bf16.mxu0 0
    %9596 = vmatpush1.bf16.msra.mxu0 0
    %9597 = vmatprep.subr.bf16.mxu0 0
    %9598 = vmatpush1.bf16.msra.mxu0 0
    %9599 = vmatprep.subr.bf16.mxu0 0
    %9600 = vmatpush1.bf16.msra.mxu0 0
    %9601 = vmatprep.subr.bf16.mxu0 0
    %9602 = vmatpush1.bf16.msra.mxu0 0
    %9603 = vmatprep.subr.bf16.mxu0 0
    %9604 = vmatpush1.bf16.msra.mxu0 0
    %9605 = vmatprep.subr.bf16.mxu0 0
    %9606 = vmatpush1.bf16.msra.mxu0 0
    %9607 = vmatprep.subr.bf16.mxu0 0
    %9608 = vmatpush1.bf16.msra.mxu0 0
    %9609 = vmatprep.subr.bf16.mxu0 0
    %9610 = vmatpush1.bf16.msra.mxu0 0
    %9611 = vmatprep.subr.bf16.mxu0 0
    %9612 = vmatpush1.bf16.msra.mxu0 0
    %9613 = vmatprep.subr.bf16.mxu0 0
    %9614 = vmatpush1.bf16.msra.mxu0 0
    %9615 = vmatprep.subr.bf16.mxu0 0
    %9616 = vmatpush1.bf16.msra.mxu0 0
    %9617 = vmatprep.subr.bf16.mxu0 0
    %9618 = vmatpush1.bf16.msra.mxu0 0
    %9619 = vmatprep.subr.bf16.mxu0 0
    %9620 = vmatpush1.bf16.msra.mxu0 0
    %9621 = vmatprep.subr.bf16.mxu0 0
    %9622 = vmatpush1.bf16.msra.mxu0 0
    %9623 = vmatprep.mubr.bf16.mxu0 0
    %9624 = vmatmul.mubr.bf16.gmra.mrb[0].mxu0 %v9589
    %v9625 = vpop.f32.mrb[0].mxu0
    %v9626 = vadd.f32 0.0, %v9625
    %v9627 = vpop.f32.mrb[0].mxu0
    %v9628 = vpop.f32.mrb[0].mxu0
    %v9629 = vadd.f32 0.0, %v9628
    %v9630 = vpop.f32.mrb[0].mxu0
    %9631 = vdwg.mxu0
    %v9633 = vsel %vm1826, %v9186, 0
    %9635 = vmatprep.subr.bf16.mxu0 0
    %9636 = vmatpush1.bf16.msra.mxu0 %v8218
    %9637 = vmatprep.subr.bf16.mxu0 0
    %9638 = vmatpush1.bf16.msra.mxu0 0
    %9639 = vmatprep.subr.bf16.mxu0 0
    %9640 = vmatpush1.bf16.msra.mxu0 0
    %9641 = vmatprep.subr.bf16.mxu0 0
    %9642 = vmatpush1.bf16.msra.mxu0 0
    %9643 = vmatprep.subr.bf16.mxu0 0
    %9644 = vmatpush1.bf16.msra.mxu0 0
    %9645 = vmatprep.subr.bf16.mxu0 0
    %9646 = vmatpush1.bf16.msra.mxu0 0
    %9647 = vmatprep.subr.bf16.mxu0 0
    %9648 = vmatpush1.bf16.msra.mxu0 0
    %9649 = vmatprep.subr.bf16.mxu0 0
    %9650 = vmatpush1.bf16.msra.mxu0 0
    %9651 = vmatprep.subr.bf16.mxu0 0
    %9652 = vmatpush1.bf16.msra.mxu0 0
    %9653 = vmatprep.subr.bf16.mxu0 0
    %9654 = vmatpush1.bf16.msra.mxu0 0
    %9655 = vmatprep.subr.bf16.mxu0 0
    %9656 = vmatpush1.bf16.msra.mxu0 0
    %9657 = vmatprep.subr.bf16.mxu0 0
    %9658 = vmatpush1.bf16.msra.mxu0 0
    %9659 = vmatprep.subr.bf16.mxu0 0
    %9660 = vmatpush1.bf16.msra.mxu0 0
    %9661 = vmatprep.subr.bf16.mxu0 0
    %9662 = vmatpush1.bf16.msra.mxu0 0
    %9663 = vmatprep.subr.bf16.mxu0 0
    %9664 = vmatpush1.bf16.msra.mxu0 0
    %9665 = vmatprep.subr.bf16.mxu0 0
    %9666 = vmatpush1.bf16.msra.mxu0 0
    %9667 = vmatprep.mubr.bf16.mxu0 0
    %9668 = vmatmul.mubr.bf16.gmra.mrb[0].mxu0 %v9633
    %v9669 = vpop.f32.mrb[0].mxu0
    %v9670 = vadd.f32 0.0, %v9669
    %v9671 = vpop.f32.mrb[0].mxu0
    %v9672 = vpop.f32.mrb[0].mxu0
    %v9673 = vadd.f32 0.0, %v9672
    %v9674 = vpop.f32.mrb[0].mxu0
    %9675 = vdwg.mxu0
    %v9677 = vsel %vm1826, %v9187, 0
    %9679 = vmatprep.subr.bf16.mxu0 0
    %9680 = vmatpush1.bf16.msra.mxu0 %v8230
    %9681 = vmatprep.subr.bf16.mxu0 0
    %9682 = vmatpush1.bf16.msra.mxu0 0
    %9683 = vmatprep.subr.bf16.mxu0 0
    %9684 = vmatpush1.bf16.msra.mxu0 0
    %9685 = vmatprep.subr.bf16.mxu0 0
    %9686 = vmatpush1.bf16.msra.mxu0 0
    %9687 = vmatprep.subr.bf16.mxu0 0
    %9688 = vmatpush1.bf16.msra.mxu0 0
    %9689 = vmatprep.subr.bf16.mxu0 0
    %9690 = vmatpush1.bf16.msra.mxu0 0
    %9691 = vmatprep.subr.bf16.mxu0 0
    %9692 = vmatpush1.bf16.msra.mxu0 0
    %9693 = vmatprep.subr.bf16.mxu0 0
    %9694 = vmatpush1.bf16.msra.mxu0 0
    %9695 = vmatprep.subr.bf16.mxu0 0
    %9696 = vmatpush1.bf16.msra.mxu0 0
    %9697 = vmatprep.subr.bf16.mxu0 0
    %9698 = vmatpush1.bf16.msra.mxu0 0
    %9699 = vmatprep.subr.bf16.mxu0 0
    %9700 = vmatpush1.bf16.msra.mxu0 0
    %9701 = vmatprep.subr.bf16.mxu0 0
    %9702 = vmatpush1.bf16.msra.mxu0 0
    %9703 = vmatprep.subr.bf16.mxu0 0
    %9704 = vmatpush1.bf16.msra.mxu0 0
    %9705 = vmatprep.subr.bf16.mxu0 0
    %9706 = vmatpush1.bf16.msra.mxu0 0
    %9707 = vmatprep.subr.bf16.mxu0 0
    %9708 = vmatpush1.bf16.msra.mxu0 0
    %9709 = vmatprep.subr.bf16.mxu0 0
    %9710 = vmatpush1.bf16.msra.mxu0 0
    %9711 = vmatprep.mubr.bf16.mxu0 0
    %9712 = vmatmul.mubr.bf16.gmra.mrb[0].mxu0 %v9677
    %v9713 = vpop.f32.mrb[0].mxu0
    %v9714 = vadd.f32 0.0, %v9713
    %v9715 = vpop.f32.mrb[0].mxu0
    %v9716 = vpop.f32.mrb[0].mxu0
    %v9717 = vadd.f32 0.0, %v9716
    %v9718 = vpop.f32.mrb[0].mxu0
    %9719 = vdwg.mxu0
    %v9721 = vsel %vm1826, %v9188, 0
    %9723 = vmatprep.subr.bf16.mxu0 0
    %9724 = vmatpush1.bf16.msra.mxu0 %v8195
    %9725 = vmatprep.subr.bf16.mxu0 0
    %9726 = vmatpush1.bf16.msra.mxu0 0
    %9727 = vmatprep.subr.bf16.mxu0 0
    %9728 = vmatpush1.bf16.msra.mxu0 0
    %9729 = vmatprep.subr.bf16.mxu0 0
    %9730 = vmatpush1.bf16.msra.mxu0 0
    %9731 = vmatprep.subr.bf16.mxu0 0
    %9732 = vmatpush1.bf16.msra.mxu0 0
    %9733 = vmatprep.subr.bf16.mxu0 0
    %9734 = vmatpush1.bf16.msra.mxu0 0
    %9735 = vmatprep.subr.bf16.mxu0 0
    %9736 = vmatpush1.bf16.msra.mxu0 0
    %9737 = vmatprep.subr.bf16.mxu0 0
    %9738 = vmatpush1.bf16.msra.mxu0 0
    %9739 = vmatprep.subr.bf16.mxu0 0
    %9740 = vmatpush1.bf16.msra.mxu0 0
    %9741 = vmatprep.subr.bf16.mxu0 0
    %9742 = vmatpush1.bf16.msra.mxu0 0
    %9743 = vmatprep.subr.bf16.mxu0 0
    %9744 = vmatpush1.bf16.msra.mxu0 0
    %9745 = vmatprep.subr.bf16.mxu0 0
    %9746 = vmatpush1.bf16.msra.mxu0 0
    %9747 = vmatprep.subr.bf16.mxu0 0
    %9748 = vmatpush1.bf16.msra.mxu0 0
    %9749 = vmatprep.subr.bf16.mxu0 0
    %9750 = vmatpush1.bf16.msra.mxu0 0
    %9751 = vmatprep.subr.bf16.mxu0 0
    %9752 = vmatpush1.bf16.msra.mxu0 0
    %9753 = vmatprep.subr.bf16.mxu0 0
    %9754 = vmatpush1.bf16.msra.mxu0 0
    %9755 = vmatprep.mubr.bf16.mxu0 0
    %9756 = vmatmul.mubr.bf16.gmra.mrb[0].mxu0 %v9721
    %v9757 = vpop.f32.mrb[0].mxu0
    %v9758 = vadd.f32 0.0, %v9757
    %v9759 = vpop.f32.mrb[0].mxu0
    %v9760 = vpop.f32.mrb[0].mxu0
    %v9761 = vadd.f32 0.0, %v9760
    %v9762 = vpop.f32.mrb[0].mxu0
    %9763 = vdwg.mxu0
    %v9765 = vsel %vm1826, %v9189, 0
    %9767 = vmatprep.subr.bf16.mxu0 0
    %9768 = vmatpush1.bf16.msra.mxu0 %v8207
    %9769 = vmatprep.subr.bf16.mxu0 0
    %9770 = vmatpush1.bf16.msra.mxu0 0
    %9771 = vmatprep.subr.bf16.mxu0 0
    %9772 = vmatpush1.bf16.msra.mxu0 0
    %9773 = vmatprep.subr.bf16.mxu0 0
    %9774 = vmatpush1.bf16.msra.mxu0 0
    %9775 = vmatprep.subr.bf16.mxu0 0
    %9776 = vmatpush1.bf16.msra.mxu0 0
    %9777 = vmatprep.subr.bf16.mxu0 0
    %9778 = vmatpush1.bf16.msra.mxu0 0
    %9779 = vmatprep.subr.bf16.mxu0 0
    %9780 = vmatpush1.bf16.msra.mxu0 0
    %9781 = vmatprep.subr.bf16.mxu0 0
    %9782 = vmatpush1.bf16.msra.mxu0 0
    %9783 = vmatprep.subr.bf16.mxu0 0
    %9784 = vmatpush1.bf16.msra.mxu0 0
    %9785 = vmatprep.subr.bf16.mxu0 0
    %9786 = vmatpush1.bf16.msra.mxu0 0
    %9787 = vmatprep.subr.bf16.mxu0 0
    %9788 = vmatpush1.bf16.msra.mxu0 0
    %9789 = vmatprep.subr.bf16.mxu0 0
    %9790 = vmatpush1.bf16.msra.mxu0 0
    %9791 = vmatprep.subr.bf16.mxu0 0
    %9792 = vmatpush1.bf16.msra.mxu0 0
    %9793 = vmatprep.subr.bf16.mxu0 0
    %9794 = vmatpush1.bf16.msra.mxu0 0
    %9795 = vmatprep.subr.bf16.mxu0 0
    %9796 = vmatpush1.bf16.msra.mxu0 0
    %9797 = vmatprep.subr.bf16.mxu0 0
    %9798 = vmatpush1.bf16.msra.mxu0 0
    %9799 = vmatprep.mubr.bf16.mxu0 0
    %9800 = vmatmul.mubr.bf16.gmra.mrb[0].mxu0 %v9765
    %v9801 = vpop.f32.mrb[0].mxu0
    %v9802 = vadd.f32 0.0, %v9801
    %v9803 = vpop.f32.mrb[0].mxu0
    %v9804 = vpop.f32.mrb[0].mxu0
    %v9805 = vadd.f32 0.0, %v9804
    %v9806 = vpop.f32.mrb[0].mxu0
    %9807 = vdwg.mxu0
    %v9809 = vsel %vm1826, %v9190, 0
    %9811 = vmatprep.subr.bf16.mxu0 0
    %9812 = vmatpush1.bf16.msra.mxu0 %v8219
    %9813 = vmatprep.subr.bf16.mxu0 0
    %9814 = vmatpush1.bf16.msra.mxu0 0
    %9815 = vmatprep.subr.bf16.mxu0 0
    %9816 = vmatpush1.bf16.msra.mxu0 0
    %9817 = vmatprep.subr.bf16.mxu0 0
    %9818 = vmatpush1.bf16.msra.mxu0 0
    %9819 = vmatprep.subr.bf16.mxu0 0
    %9820 = vmatpush1.bf16.msra.mxu0 0
    %9821 = vmatprep.subr.bf16.mxu0 0
    %9822 = vmatpush1.bf16.msra.mxu0 0
    %9823 = vmatprep.subr.bf16.mxu0 0
    %9824 = vmatpush1.bf16.msra.mxu0 0
    %9825 = vmatprep.subr.bf16.mxu0 0
    %9826 = vmatpush1.bf16.msra.mxu0 0
    %9827 = vmatprep.subr.bf16.mxu0 0
    %9828 = vmatpush1.bf16.msra.mxu0 0
    %9829 = vmatprep.subr.bf16.mxu0 0
    %9830 = vmatpush1.bf16.msra.mxu0 0
    %9831 = vmatprep.subr.bf16.mxu0 0
    %9832 = vmatpush1.bf16.msra.mxu0 0
    %9833 = vmatprep.subr.bf16.mxu0 0
    %9834 = vmatpush1.bf16.msra.mxu0 0
    %9835 = vmatprep.subr.bf16.mxu0 0
    %9836 = vmatpush1.bf16.msra.mxu0 0
    %9837 = vmatprep.subr.bf16.mxu0 0
    %9838 = vmatpush1.bf16.msra.mxu0 0
    %9839 = vmatprep.subr.bf16.mxu0 0
    %9840 = vmatpush1.bf16.msra.mxu0 0
    %9841 = vmatprep.subr.bf16.mxu0 0
    %9842 = vmatpush1.bf16.msra.mxu0 0
    %9843 = vmatprep.mubr.bf16.mxu0 0
    %9844 = vmatmul.mubr.bf16.gmra.mrb[0].mxu0 %v9809
    %v9845 = vpop.f32.mrb[0].mxu0
    %v9846 = vadd.f32 0.0, %v9845
    %v9847 = vpop.f32.mrb[0].mxu0
    %v9848 = vpop.f32.mrb[0].mxu0
    %v9849 = vadd.f32 0.0, %v9848
    %v9850 = vpop.f32.mrb[0].mxu0
    %9851 = vdwg.mxu0
    %v9853 = vsel %vm1826, %v9191, 0
    %9855 = vmatprep.subr.bf16.mxu0 0
    %9856 = vmatpush1.bf16.msra.mxu0 %v8231
    %9857 = vmatprep.subr.bf16.mxu0 0
    %9858 = vmatpush1.bf16.msra.mxu0 0
    %9859 = vmatprep.subr.bf16.mxu0 0
    %9860 = vmatpush1.bf16.msra.mxu0 0
    %9861 = vmatprep.subr.bf16.mxu0 0
    %9862 = vmatpush1.bf16.msra.mxu0 0
    %9863 = vmatprep.subr.bf16.mxu0 0
    %9864 = vmatpush1.bf16.msra.mxu0 0
    %9865 = vmatprep.subr.bf16.mxu0 0
    %9866 = vmatpush1.bf16.msra.mxu0 0
    %9867 = vmatprep.subr.bf16.mxu0 0
    %9868 = vmatpush1.bf16.msra.mxu0 0
    %9869 = vmatprep.subr.bf16.mxu0 0
    %9870 = vmatpush1.bf16.msra.mxu0 0
    %9871 = vmatprep.subr.bf16.mxu0 0
    %9872 = vmatpush1.bf16.msra.mxu0 0
    %9873 = vmatprep.subr.bf16.mxu0 0
    %9874 = vmatpush1.bf16.msra.mxu0 0
    %9875 = vmatprep.subr.bf16.mxu0 0
    %9876 = vmatpush1.bf16.msra.mxu0 0
    %9877 = vmatprep.subr.bf16.mxu0 0
    %9878 = vmatpush1.bf16.msra.mxu0 0
    %9879 = vmatprep.subr.bf16.mxu0 0
    %9880 = vmatpush1.bf16.msra.mxu0 0
    %9881 = vmatprep.subr.bf16.mxu0 0
    %9882 = vmatpush1.bf16.msra.mxu0 0
    %9883 = vmatprep.subr.bf16.mxu0 0
    %9884 = vmatpush1.bf16.msra.mxu0 0
    %9885 = vmatprep.subr.bf16.mxu0 0
    %9886 = vmatpush1.bf16.msra.mxu0 0
    %9887 = vmatprep.mubr.bf16.mxu0 0
    %9888 = vmatmul.mubr.bf16.gmra.mrb[0].mxu0 %v9853
    %v9889 = vpop.f32.mrb[0].mxu0
    %v9890 = vadd.f32 0.0, %v9889
    %v9891 = vpop.f32.mrb[0].mxu0
    %v9892 = vpop.f32.mrb[0].mxu0
    %v9893 = vadd.f32 0.0, %v9892
    %v9894 = vpop.f32.mrb[0].mxu0
    %9895 = vdwg.mxu0
    %v9896 = vrcp.pop %v9082
    %v9897 = vrcp.pop %v9085
    %v9898 = vrcp.pop %v9088
    %v9899 = vrcp.pop %v9091
    %v9900 = vrcp.pop %v9094
    %v9901 = vrcp.pop %v9097
    %v9902 = vrcp.pop %v9100
    %v9903 = vrcp.pop %v9103
    %v9904 = vrcp.pop %v9106
    %v9905 = vrcp.pop %v9109
    %v9906 = vrcp.pop %v9112
    %v9907 = vrcp.pop %v9115
    %v9908 = vrcp.pop %v9118
    %v9909 = vrcp.pop %v9121
    %v9910 = vrcp.pop %v9124
    %v9911 = vrcp.pop %v9127
    %v9912 = vrcp.pop %v9130
    %v9913 = vrcp.pop %v9133
    %v9914 = vrcp.pop %v9136
    %v9915 = vrcp.pop %v9139
    %v9916 = vrcp.pop %v9142
    %v9917 = vrcp.pop %v9145
    %v9918 = vrcp.pop %v9148
    %v9919 = vrcp.pop %v9151
    %v9920 = vrcp.pop %v9154
    %v9921 = vrcp.pop %v9157
    %v9922 = vrcp.pop %v9160
    %v9923 = vrcp.pop %v9163
    %v9924 = vrcp.pop %v9166
    %v9925 = vrcp.pop %v9169
    %v9926 = vrcp.pop %v9172
    %v9927 = vrcp.pop %v9175
    %v9928 = vmul.f32 %v9230, %v9896
    %v9929 = vmul.f32 %v9233, %v9897
    %v9930 = vmul.f32 %v9274, %v9898
    %v9931 = vmul.f32 %v9277, %v9899
    %v9932 = vmul.f32 %v9318, %v9900
    %v9933 = vmul.f32 %v9321, %v9901
    %v9934 = vmul.f32 %v9362, %v9902
    %v9935 = vmul.f32 %v9365, %v9903
    %v9936 = vmul.f32 %v9406, %v9904
    %v9937 = vmul.f32 %v9409, %v9905
    %v9938 = vmul.f32 %v9450, %v9906
    %v9939 = vmul.f32 %v9453, %v9907
    %v9940 = vmul.f32 %v9494, %v9908
    %v9941 = vmul.f32 %v9497, %v9909
    %v9942 = vmul.f32 %v9538, %v9910
    %v9943 = vmul.f32 %v9541, %v9911
    %v9944 = vmul.f32 %v9582, %v9912
    %v9945 = vmul.f32 %v9585, %v9913
    %v9946 = vmul.f32 %v9626, %v9914
    %v9947 = vmul.f32 %v9629, %v9915
    %v9948 = vmul.f32 %v9670, %v9916
    %v9949 = vmul.f32 %v9673, %v9917
    %v9950 = vmul.f32 %v9714, %v9918
    %v9951 = vmul.f32 %v9717, %v9919
    %v9952 = vmul.f32 %v9758, %v9920
    %v9953 = vmul.f32 %v9761, %v9921
    %v9954 = vmul.f32 %v9802, %v9922
    %v9955 = vmul.f32 %v9805, %v9923
    %v9956 = vmul.f32 %v9846, %v9924
    %v9957 = vmul.f32 %v9849, %v9925
    %v9958 = vmul.f32 %v9890, %v9926
    %v9959 = vmul.f32 %v9893, %v9927
    %s9960 = scalar_lea.vmem [#allocation10], 512
    %v9961 = vld [vmem:[%s9960] sm:$0xf]
    %v9962 = vld [vmem:[%s9960 + $0x4] sm:$0xf]
    %v9963 = vld [vmem:[%s9960 + $0x8] sm:$0xf]
    %v9964 = vld [vmem:[%s9960 + $0xc] sm:$0xf]
    %v9965 = vld [vmem:[%s9960 + $0x10] sm:$0xf]
    %v9966 = vld [vmem:[%s9960 + $0x14] sm:$0xf]
    %v9967 = vld [vmem:[%s9960 + $0x18] sm:$0xf]
    %v9968 = vld [vmem:[%s9960 + $0x1c] sm:$0xf]
    %v9969 = vld [vmem:[%s9960 + $0x20] sm:$0xf]
    %v9970 = vld [vmem:[%s9960 + $0x24] sm:$0xf]
    %v9971 = vld [vmem:[%s9960 + $0x28] sm:$0xf]
    %v9972 = vld [vmem:[%s9960 + $0x2c] sm:$0xf]
    %v9973 = vld [vmem:[%s9960 + $0x30] sm:$0xf]
    %v9974 = vld [vmem:[%s9960 + $0x34] sm:$0xf]
    %v9975 = vld [vmem:[%s9960 + $0x38] sm:$0xf]
    %v9976 = vld [vmem:[%s9960 + $0x3c] sm:$0xf]
    %v9977 = vld [vmem:[%s9960 + $0x40] sm:$0xf]
    %v9978 = vld [vmem:[%s9960 + $0x44] sm:$0xf]
    %v9979 = vld [vmem:[%s9960 + $0x48] sm:$0xf]
    %v9980 = vld [vmem:[%s9960 + $0x4c] sm:$0xf]
    %v9981 = vld [vmem:[%s9960 + $0x50] sm:$0xf]
    %v9982 = vld [vmem:[%s9960 + $0x54] sm:$0xf]
    %v9983 = vld [vmem:[%s9960 + $0x58] sm:$0xf]
    %v9984 = vld [vmem:[%s9960 + $0x5c] sm:$0xf]
    %v9985 = vld [vmem:[%s9960 + $0x60] sm:$0xf]
    %v9986 = vld [vmem:[%s9960 + $0x64] sm:$0xf]
    %v9987 = vld [vmem:[%s9960 + $0x68] sm:$0xf]
    %v9988 = vld [vmem:[%s9960 + $0x6c] sm:$0xf]
    %v9989 = vld [vmem:[%s9960 + $0x70] sm:$0xf]
    %v9990 = vld [vmem:[%s9960 + $0x74] sm:$0xf]
    %v9991 = vld [vmem:[%s9960 + $0x78] sm:$0xf]
    %v9992 = vld [vmem:[%s9960 + $0x7c] sm:$0xf]
    %v9993 = vld [vmem:[%s9960 + $0x80] sm:$0xf]
    %v9994 = vld [vmem:[%s9960 + $0x84] sm:$0xf]
    %v9995 = vld [vmem:[%s9960 + $0x88] sm:$0xf]
    %v9996 = vld [vmem:[%s9960 + $0x8c] sm:$0xf]
    %v9997 = vld [vmem:[%s9960 + $0x90] sm:$0xf]
    %v9998 = vld [vmem:[%s9960 + $0x94] sm:$0xf]
    %v9999 = vld [vmem:[%s9960 + $0x98] sm:$0xf]
    %v10000 = vld [vmem:[%s9960 + $0x9c] sm:$0xf]
    %v10001 = vld [vmem:[%s9960 + $0xa0] sm:$0xf]
    %v10002 = vld [vmem:[%s9960 + $0xa4] sm:$0xf]
    %v10003 = vld [vmem:[%s9960 + $0xa8] sm:$0xf]
    %v10004 = vld [vmem:[%s9960 + $0xac] sm:$0xf]
    %v10005 = vld [vmem:[%s9960 + $0xb0] sm:$0xf]
    %v10006 = vld [vmem:[%s9960 + $0xb4] sm:$0xf]
    %v10007 = vld [vmem:[%s9960 + $0xb8] sm:$0xf]
    %v10008 = vld [vmem:[%s9960 + $0xbc] sm:$0xf]
    %v10009 = vld [vmem:[%s9960 + $0xc0] sm:$0xf]
    %v10010 = vld [vmem:[%s9960 + $0xc4] sm:$0xf]
    %v10011 = vld [vmem:[%s9960 + $0xc8] sm:$0xf]
    %v10012 = vld [vmem:[%s9960 + $0xcc] sm:$0xf]
    %v10013 = vld [vmem:[%s9960 + $0xd0] sm:$0xf]
    %v10014 = vld [vmem:[%s9960 + $0xd4] sm:$0xf]
    %v10015 = vld [vmem:[%s9960 + $0xd8] sm:$0xf]
    %v10016 = vld [vmem:[%s9960 + $0xdc] sm:$0xf]
    %v10017 = vld [vmem:[%s9960 + $0xe0] sm:$0xf]
    %v10018 = vld [vmem:[%s9960 + $0xe4] sm:$0xf]
    %v10019 = vld [vmem:[%s9960 + $0xe8] sm:$0xf]
    %v10020 = vld [vmem:[%s9960 + $0xec] sm:$0xf]
    %v10021 = vld [vmem:[%s9960 + $0xf0] sm:$0xf]
    %v10022 = vld [vmem:[%s9960 + $0xf4] sm:$0xf]
    %v10023 = vld [vmem:[%s9960 + $0xf8] sm:$0xf]
    %v10024 = vld [vmem:[%s9960 + $0xfc] sm:$0xf]
    %v10025 = vpack.c.bf16 %v9929, %v9928
    %v10026 = vpack.c.bf16 %v9937, %v9936
    %v10027 = vpack.c.bf16 %v9945, %v9944
    %v10028 = vpack.c.bf16 %v9953, %v9952
    %v10029 = vpack.c.bf16 %v9931, %v9930
    %v10030 = vpack.c.bf16 %v9939, %v9938
    %v10031 = vpack.c.bf16 %v9947, %v9946
    %v10032 = vpack.c.bf16 %v9955, %v9954
    %v10033 = vpack.c.bf16 %v9933, %v9932
    %v10034 = vpack.c.bf16 %v9941, %v9940
    %v10035 = vpack.c.bf16 %v9949, %v9948
    %v10036 = vpack.c.bf16 %v9957, %v9956
    %v10037 = vpack.c.bf16 %v9935, %v9934
    %v10038 = vpack.c.bf16 %v9943, %v9942
    %v10039 = vpack.c.bf16 %v9951, %v9950
    %v10040 = vpack.c.bf16 %v9959, %v9958
    %s10041 = scalar_lea.vmem [#allocation11], 2
    %v10042 = vld [vmem:[%s10041] sm:$0x1]
    %v10044 = vlaneseq
    %v10045 = vshrl.u32 %v10044, 7
    %v10046 = vsub.s32 0, %v10045
    %v10047 = vrot.slane %v10042, %v10046
    %v10113 = vunpack.c.l.b16 %v9961
    %v10114 = vunpack.c.l.b16 %v9962
    %v10115 = vunpack.c.l.b16 %v9963
    %v10116 = vunpack.c.l.b16 %v9964
    %v10117 = vunpack.c.l.b16 %v9965
    %v10118 = vunpack.c.l.b16 %v9966
    %v10119 = vunpack.c.l.b16 %v9967
    %v10120 = vunpack.c.l.b16 %v9968
    %v10121 = vunpack.c.l.b16 %v9969
    %v10122 = vunpack.c.l.b16 %v9970
    %v10123 = vunpack.c.l.b16 %v9971
    %v10124 = vunpack.c.l.b16 %v9972
    %v10125 = vunpack.c.l.b16 %v9973
    %v10126 = vunpack.c.l.b16 %v9974
    %v10127 = vunpack.c.l.b16 %v9975
    %v10128 = vunpack.c.l.b16 %v9976
    %v10129 = vunpack.c.l.b16 %v9977
    %v10130 = vunpack.c.l.b16 %v9978
    %v10131 = vunpack.c.l.b16 %v9979
    %v10132 = vunpack.c.l.b16 %v9980
    %v10133 = vunpack.c.l.b16 %v9981
    %v10134 = vunpack.c.l.b16 %v9982
    %v10135 = vunpack.c.l.b16 %v9983
    %v10136 = vunpack.c.l.b16 %v9984
    %v10137 = vunpack.c.l.b16 %v9985
    %v10138 = vunpack.c.l.b16 %v9986
    %v10139 = vunpack.c.l.b16 %v9987
    %v10140 = vunpack.c.l.b16 %v9988
    %v10141 = vunpack.c.l.b16 %v9989
    %v10142 = vunpack.c.l.b16 %v9990
    %v10143 = vunpack.c.l.b16 %v9991
    %v10144 = vunpack.c.l.b16 %v9992
    %v10145 = vunpack.c.l.b16 %v9993
    %v10146 = vunpack.c.l.b16 %v9994
    %v10147 = vunpack.c.l.b16 %v9995
    %v10148 = vunpack.c.l.b16 %v9996
    %v10149 = vunpack.c.l.b16 %v9997
    %v10150 = vunpack.c.l.b16 %v9998
    %v10151 = vunpack.c.l.b16 %v9999
    %v10152 = vunpack.c.l.b16 %v10000
    %v10153 = vunpack.c.l.b16 %v10001
    %v10154 = vunpack.c.l.b16 %v10002
    %v10155 = vunpack.c.l.b16 %v10003
    %v10156 = vunpack.c.l.b16 %v10004
    %v10157 = vunpack.c.l.b16 %v10005
    %v10158 = vunpack.c.l.b16 %v10006
    %v10159 = vunpack.c.l.b16 %v10007
    %v10160 = vunpack.c.l.b16 %v10008
    %v10161 = vunpack.c.l.b16 %v10009
    %v10162 = vunpack.c.l.b16 %v10010
    %v10163 = vunpack.c.l.b16 %v10011
    %v10164 = vunpack.c.l.b16 %v10012
    %v10165 = vunpack.c.l.b16 %v10013
    %v10166 = vunpack.c.l.b16 %v10014
    %v10167 = vunpack.c.l.b16 %v10015
    %v10168 = vunpack.c.l.b16 %v10016
    %v10169 = vunpack.c.l.b16 %v10017
    %v10170 = vunpack.c.l.b16 %v10018
    %v10171 = vunpack.c.l.b16 %v10019
    %v10172 = vunpack.c.l.b16 %v10020
    %v10173 = vunpack.c.l.b16 %v10021
    %v10174 = vunpack.c.l.b16 %v10022
    %v10175 = vunpack.c.l.b16 %v10023
    %v10176 = vunpack.c.l.b16 %v10024
    %v10177 = vpack.c.b16 %v10114, %v10113
    %v10178 = vpack.c.b16 %v10116, %v10115
    %v10179 = vpack.c.b16 %v10118, %v10117
    %v10180 = vpack.c.b16 %v10120, %v10119
    %v10181 = vpack.c.b16 %v10122, %v10121
    %v10182 = vpack.c.b16 %v10124, %v10123
    %v10183 = vpack.c.b16 %v10126, %v10125
    %v10184 = vpack.c.b16 %v10128, %v10127
    %v10185 = vpack.c.b16 %v10130, %v10129
    %v10186 = vpack.c.b16 %v10132, %v10131
    %v10187 = vpack.c.b16 %v10134, %v10133
    %v10188 = vpack.c.b16 %v10136, %v10135
    %v10189 = vpack.c.b16 %v10138, %v10137
    %v10190 = vpack.c.b16 %v10140, %v10139
    %v10191 = vpack.c.b16 %v10142, %v10141
    %v10192 = vpack.c.b16 %v10144, %v10143
    %v10193 = vpack.c.b16 %v10146, %v10145
    %v10194 = vpack.c.b16 %v10148, %v10147
    %v10195 = vpack.c.b16 %v10150, %v10149
    %v10196 = vpack.c.b16 %v10152, %v10151
    %v10197 = vpack.c.b16 %v10154, %v10153
    %v10198 = vpack.c.b16 %v10156, %v10155
    %v10199 = vpack.c.b16 %v10158, %v10157
    %v10200 = vpack.c.b16 %v10160, %v10159
    %v10201 = vpack.c.b16 %v10162, %v10161
    %v10202 = vpack.c.b16 %v10164, %v10163
    %v10203 = vpack.c.b16 %v10166, %v10165
    %v10204 = vpack.c.b16 %v10168, %v10167
    %v10205 = vpack.c.b16 %v10170, %v10169
    %v10206 = vpack.c.b16 %v10172, %v10171
    %v10207 = vpack.c.b16 %v10174, %v10173
    %v10208 = vpack.c.b16 %v10176, %v10175
    %10241 = vmatprep.subr.bf16.mxu0 0
    %10242 = vmatpush1.bf16.msra.mxu0 %v10177
    %10243 = vmatprep.subr.bf16.mxu0 0
    %10244 = vmatpush1.bf16.msra.mxu0 %v10178
    %10245 = vmatprep.subr.bf16.mxu0 0
    %10246 = vmatpush1.bf16.msra.mxu0 %v10179
    %10247 = vmatprep.subr.bf16.mxu0 0
    %10248 = vmatpush1.bf16.msra.mxu0 %v10180
    %10249 = vmatprep.subr.bf16.mxu0 0
    %10250 = vmatpush1.bf16.msra.mxu0 %v10181
    %10251 = vmatprep.subr.bf16.mxu0 0
    %10252 = vmatpush1.bf16.msra.mxu0 %v10182
    %10253 = vmatprep.subr.bf16.mxu0 0
    %10254 = vmatpush1.bf16.msra.mxu0 %v10183
    %10255 = vmatprep.subr.bf16.mxu0 0
    %10256 = vmatpush1.bf16.msra.mxu0 %v10184
    %10257 = vmatprep.subr.bf16.mxu0 0
    %10258 = vmatpush1.bf16.msra.mxu0 %v10185
    %10259 = vmatprep.subr.bf16.mxu0 0
    %10260 = vmatpush1.bf16.msra.mxu0 %v10186
    %10261 = vmatprep.subr.bf16.mxu0 0
    %10262 = vmatpush1.bf16.msra.mxu0 %v10187
    %10263 = vmatprep.subr.bf16.mxu0 0
    %10264 = vmatpush1.bf16.msra.mxu0 %v10188
    %10265 = vmatprep.subr.bf16.mxu0 0
    %10266 = vmatpush1.bf16.msra.mxu0 %v10189
    %10267 = vmatprep.subr.bf16.mxu0 0
    %10268 = vmatpush1.bf16.msra.mxu0 %v10190
    %10269 = vmatprep.subr.bf16.mxu0 0
    %10270 = vmatpush1.bf16.msra.mxu0 %v10191
    %10271 = vmatprep.subr.bf16.mxu0 0
    %10272 = vmatpush1.bf16.msra.mxu0 %v10192
    %10273 = vmatprep.mubr.bf16.mxu0 %v10026
    %10274 = vmatmul.mubr.bf16.gmra.mrb[0].mxu0 %v10025
    %v10275 = vpop.f32.mrb[0].mxu0
    %v10276 = vadd.f32 %v10047, %v10275
    %v10277 = vpop.f32.mrb[0].mxu0
    %v10278 = vpop.f32.mrb[0].mxu0
    %v10279 = vadd.f32 %v10047, %v10278
    %v10280 = vpop.f32.mrb[0].mxu0
    %10281 = vmatprep.mubr.bf16.mxu0 %v10030
    %10282 = vmatmul.mubr.bf16.gmra.mrb[0].mxu0 %v10029
    %v10283 = vpop.f32.mrb[0].mxu0
    %v10284 = vadd.f32 %v10047, %v10283
    %v10285 = vpop.f32.mrb[0].mxu0
    %v10286 = vpop.f32.mrb[0].mxu0
    %v10287 = vadd.f32 %v10047, %v10286
    %v10288 = vpop.f32.mrb[0].mxu0
    %10289 = vmatprep.mubr.bf16.mxu0 %v10034
    %10290 = vmatmul.mubr.bf16.gmra.mrb[0].mxu0 %v10033
    %v10291 = vpop.f32.mrb[0].mxu0
    %v10292 = vadd.f32 %v10047, %v10291
    %v10293 = vpop.f32.mrb[0].mxu0
    %v10294 = vpop.f32.mrb[0].mxu0
    %v10295 = vadd.f32 %v10047, %v10294
    %v10296 = vpop.f32.mrb[0].mxu0
    %10297 = vmatprep.mubr.bf16.mxu0 %v10038
    %10298 = vmatmul.mubr.bf16.gmra.mrb[0].mxu0 %v10037
    %v10299 = vpop.f32.mrb[0].mxu0
    %v10300 = vadd.f32 %v10047, %v10299
    %v10301 = vpop.f32.mrb[0].mxu0
    %v10302 = vpop.f32.mrb[0].mxu0
    %v10303 = vadd.f32 %v10047, %v10302
    %v10304 = vpop.f32.mrb[0].mxu0
    %10305 = vdwg.mxu0
    %10306 = vmatprep.subr.bf16.mxu0 0
    %10307 = vmatpush1.bf16.msra.mxu0 %v10193
    %10308 = vmatprep.subr.bf16.mxu0 0
    %10309 = vmatpush1.bf16.msra.mxu0 %v10194
    %10310 = vmatprep.subr.bf16.mxu0 0
    %10311 = vmatpush1.bf16.msra.mxu0 %v10195
    %10312 = vmatprep.subr.bf16.mxu0 0
    %10313 = vmatpush1.bf16.msra.mxu0 %v10196
    %10314 = vmatprep.subr.bf16.mxu0 0
    %10315 = vmatpush1.bf16.msra.mxu0 %v10197
    %10316 = vmatprep.subr.bf16.mxu0 0
    %10317 = vmatpush1.bf16.msra.mxu0 %v10198
    %10318 = vmatprep.subr.bf16.mxu0 0
    %10319 = vmatpush1.bf16.msra.mxu0 %v10199
    %10320 = vmatprep.subr.bf16.mxu0 0
    %10321 = vmatpush1.bf16.msra.mxu0 %v10200
    %10322 = vmatprep.subr.bf16.mxu0 0
    %10323 = vmatpush1.bf16.msra.mxu0 %v10201
    %10324 = vmatprep.subr.bf16.mxu0 0
    %10325 = vmatpush1.bf16.msra.mxu0 %v10202
    %10326 = vmatprep.subr.bf16.mxu0 0
    %10327 = vmatpush1.bf16.msra.mxu0 %v10203
    %10328 = vmatprep.subr.bf16.mxu0 0
    %10329 = vmatpush1.bf16.msra.mxu0 %v10204
    %10330 = vmatprep.subr.bf16.mxu0 0
    %10331 = vmatpush1.bf16.msra.mxu0 %v10205
    %10332 = vmatprep.subr.bf16.mxu0 0
    %10333 = vmatpush1.bf16.msra.mxu0 %v10206
    %10334 = vmatprep.subr.bf16.mxu0 0
    %10335 = vmatpush1.bf16.msra.mxu0 %v10207
    %10336 = vmatprep.subr.bf16.mxu0 0
    %10337 = vmatpush1.bf16.msra.mxu0 %v10208
    %10338 = vmatprep.mubr.bf16.mxu0 %v10028
    %10339 = vmatmul.mubr.bf16.gmra.mrb[0].mxu0 %v10027
    %v10340 = vpop.f32.mrb[0].mxu0
    %v10341 = vadd.f32 %v10276, %v10340
    %v10342 = vpop.f32.mrb[0].mxu0
    %v10343 = vpop.f32.mrb[0].mxu0
    %v10344 = vadd.f32 %v10279, %v10343
    %v10345 = vpop.f32.mrb[0].mxu0
    %10346 = vmatprep.mubr.bf16.mxu0 %v10032
    %10347 = vmatmul.mubr.bf16.gmra.mrb[0].mxu0 %v10031
    %v10348 = vpop.f32.mrb[0].mxu0
    %v10349 = vadd.f32 %v10284, %v10348
    %v10350 = vpop.f32.mrb[0].mxu0
    %v10351 = vpop.f32.mrb[0].mxu0
    %v10352 = vadd.f32 %v10287, %v10351
    %v10353 = vpop.f32.mrb[0].mxu0
    %10354 = vmatprep.mubr.bf16.mxu0 %v10036
    %10355 = vmatmul.mubr.bf16.gmra.mrb[0].mxu0 %v10035
    %v10356 = vpop.f32.mrb[0].mxu0
    %v10357 = vadd.f32 %v10292, %v10356
    %v10358 = vpop.f32.mrb[0].mxu0
    %v10359 = vpop.f32.mrb[0].mxu0
    %v10360 = vadd.f32 %v10295, %v10359
    %v10361 = vpop.f32.mrb[0].mxu0
    %10362 = vmatprep.mubr.bf16.mxu0 %v10040
    %10363 = vmatmul.mubr.bf16.gmra.mrb[0].mxu0 %v10039
    %v10364 = vpop.f32.mrb[0].mxu0
    %v10365 = vadd.f32 %v10300, %v10364
    %v10366 = vpop.f32.mrb[0].mxu0
    %v10367 = vpop.f32.mrb[0].mxu0
    %v10368 = vadd.f32 %v10303, %v10367
    %v10369 = vpop.f32.mrb[0].mxu0
    %10370 = vdwg.mxu0
    %v10371 = vadd.f32 %v7368, %v10341
    %v10372 = vadd.f32 %v7369, %v10344
    %v10373 = vadd.f32 %v7370, %v10349
    %v10374 = vadd.f32 %v7371, %v10352
    %v10375 = vadd.f32 %v7372, %v10357
    %v10376 = vadd.f32 %v7373, %v10360
    %v10377 = vadd.f32 %v7374, %v10365
    %v10378 = vadd.f32 %v7375, %v10368
    %s10379 = scalar_lea.vmem [#allocation13], 2
    %v10380 = vld [vmem:[%s10379] sm:$0x1]
    %s10381 = scalar_lea.vmem [#allocation14], 2
    %v10382 = vld [vmem:[%s10381] sm:$0x1]
    %v10383 = vsel %vm671, %v10371, 0.0
    %10384 = vadd.xlane.f32.xlu0 %v10383
    %v10385 = vpop.xlane.xlu0 %10384
    %v10386 = vsel %vm671, %v10372, 0.0
    %10387 = vadd.xlane.f32.xlu0 %v10386
    %v10388 = vpop.xlane.xlu0 %10387
    %v10389 = vsel %vm671, %v10373, 0.0
    %10390 = vadd.xlane.f32.xlu0 %v10389
    %v10391 = vpop.xlane.xlu0 %10390
    %v10392 = vsel %vm671, %v10374, 0.0
    %10393 = vadd.xlane.f32.xlu0 %v10392
    %v10394 = vpop.xlane.xlu0 %10393
    %v10395 = vsel %vm671, %v10375, 0.0
    %10396 = vadd.xlane.f32.xlu0 %v10395
    %v10397 = vpop.xlane.xlu0 %10396
    %v10398 = vsel %vm671, %v10376, 0.0
    %10399 = vadd.xlane.f32.xlu0 %v10398
    %v10400 = vpop.xlane.xlu0 %10399
    %v10401 = vsel %vm671, %v10377, 0.0
    %10402 = vadd.xlane.f32.xlu0 %v10401
    %v10403 = vpop.xlane.xlu0 %10402
    %v10404 = vsel %vm671, %v10378, 0.0
    %10405 = vadd.xlane.f32.xlu0 %v10404
    %v10406 = vpop.xlane.xlu0 %10405
    %v10407 = vmul.f32 %v10385, %v3342
    %v10408 = vmul.f32 %v10388, %v3342
    %v10409 = vmul.f32 %v10391, %v3342
    %v10410 = vmul.f32 %v10394, %v3342
    %v10411 = vmul.f32 %v10397, %v3342
    %v10412 = vmul.f32 %v10400, %v3342
    %v10413 = vmul.f32 %v10403, %v3342
    %v10414 = vmul.f32 %v10406, %v3342
    %v10415 = vsub.f32 %v10371, %v10407
    %v10416 = vsub.f32 %v10372, %v10408
    %v10417 = vsub.f32 %v10373, %v10409
    %v10418 = vsub.f32 %v10374, %v10410
    %v10419 = vsub.f32 %v10375, %v10411
    %v10420 = vsub.f32 %v10376, %v10412
    %v10421 = vsub.f32 %v10377, %v10413
    %v10422 = vsub.f32 %v10378, %v10414
    %v10423 = vmul.f32 %v10415, %v10415
    %v10424 = vmul.f32 %v10416, %v10416
    %v10425 = vmul.f32 %v10417, %v10417
    %v10426 = vmul.f32 %v10418, %v10418
    %v10427 = vmul.f32 %v10419, %v10419
    %v10428 = vmul.f32 %v10420, %v10420
    %v10429 = vmul.f32 %v10421, %v10421
    %v10430 = vmul.f32 %v10422, %v10422
    %v10431 = vsel %vm671, %v10423, 0.0
    %10432 = vadd.xlane.f32.xlu0 %v10431
    %v10433 = vpop.xlane.xlu0 %10432
    %v10434 = vsel %vm671, %v10424, 0.0
    %10435 = vadd.xlane.f32.xlu0 %v10434
    %v10436 = vpop.xlane.xlu0 %10435
    %v10437 = vsel %vm671, %v10425, 0.0
    %10438 = vadd.xlane.f32.xlu0 %v10437
    %v10439 = vpop.xlane.xlu0 %10438
    %v10440 = vsel %vm671, %v10426, 0.0
    %10441 = vadd.xlane.f32.xlu0 %v10440
    %v10442 = vpop.xlane.xlu0 %10441
    %v10443 = vsel %vm671, %v10427, 0.0
    %10444 = vadd.xlane.f32.xlu0 %v10443
    %v10445 = vpop.xlane.xlu0 %10444
    %v10446 = vsel %vm671, %v10428, 0.0
    %10447 = vadd.xlane.f32.xlu0 %v10446
    %v10448 = vpop.xlane.xlu0 %10447
    %v10449 = vsel %vm671, %v10429, 0.0
    %10450 = vadd.xlane.f32.xlu0 %v10449
    %v10451 = vpop.xlane.xlu0 %10450
    %v10452 = vsel %vm671, %v10430, 0.0
    %10453 = vadd.xlane.f32.xlu0 %v10452
    %v10454 = vpop.xlane.xlu0 %10453
    %v10455 = vmul.f32 %v10433, %v3342
    %v10456 = vmul.f32 %v10436, %v3342
    %v10457 = vmul.f32 %v10439, %v3342
    %v10458 = vmul.f32 %v10442, %v3342
    %v10459 = vmul.f32 %v10445, %v3342
    %v10460 = vmul.f32 %v10448, %v3342
    %v10461 = vmul.f32 %v10451, %v3342
    %v10462 = vmul.f32 %v10454, %v3342
    %v10463 = vadd.f32 %v10455, 1e-05
    %v10464 = vadd.f32 %v10456, 1e-05
    %v10465 = vadd.f32 %v10457, 1e-05
    %v10466 = vadd.f32 %v10458, 1e-05
    %v10467 = vadd.f32 %v10459, 1e-05
    %v10468 = vadd.f32 %v10460, 1e-05
    %v10469 = vadd.f32 %v10461, 1e-05
    %v10470 = vadd.f32 %v10462, 1e-05
    %v10471 = vrsqrt.pop %v10463
    %v10472 = vrsqrt.pop %v10464
    %v10473 = vrsqrt.pop %v10465
    %v10474 = vrsqrt.pop %v10466
    %v10475 = vrsqrt.pop %v10467
    %v10476 = vrsqrt.pop %v10468
    %v10477 = vrsqrt.pop %v10469
    %v10478 = vrsqrt.pop %v10470
    %v10479 = vmul.f32 %v10415, %v10471
    %v10480 = vmul.f32 %v10416, %v10472
    %v10481 = vmul.f32 %v10417, %v10473
    %v10482 = vmul.f32 %v10418, %v10474
    %v10483 = vmul.f32 %v10419, %v10475
    %v10484 = vmul.f32 %v10420, %v10476
    %v10485 = vmul.f32 %v10421, %v10477
    %v10486 = vmul.f32 %v10422, %v10478
    %v10488 = vlaneseq
    %v10489 = vshrl.u32 %v10488, 7
    %v10490 = vsub.s32 0, %v10489
    %v10491 = vrot.slane %v10380, %v10490
    %v10493 = vmul.f32 %v10479, %v10491
    %v10494 = vmul.f32 %v10480, %v10491
    %v10495 = vmul.f32 %v10481, %v10491
    %v10496 = vmul.f32 %v10482, %v10491
    %v10497 = vmul.f32 %v10483, %v10491
    %v10498 = vmul.f32 %v10484, %v10491
    %v10499 = vmul.f32 %v10485, %v10491
    %v10500 = vmul.f32 %v10486, %v10491
    %v10502 = vlaneseq
    %v10503 = vshrl.u32 %v10502, 7
    %v10504 = vsub.s32 0, %v10503
    %v10505 = vrot.slane %v10382, %v10504
    %v10507 = vadd.f32 %v10493, %v10505
    %v10508 = vadd.f32 %v10494, %v10505
    %v10509 = vadd.f32 %v10495, %v10505
    %v10510 = vadd.f32 %v10496, %v10505
    %v10511 = vadd.f32 %v10497, %v10505
    %v10512 = vadd.f32 %v10498, %v10505
    %v10513 = vadd.f32 %v10499, %v10505
    %v10514 = vadd.f32 %v10500, %v10505
    %s10515 = scalar_lea.vmem [#allocation16], 64
    %v10516 = vld [vmem:[%s10515] sm:$0xf]
    %v10517 = vld [vmem:[%s10515 + $0x4] sm:$0xf]
    %v10518 = vld [vmem:[%s10515 + $0x8] sm:$0xf]
    %v10519 = vld [vmem:[%s10515 + $0xc] sm:$0xf]
    %v10520 = vld [vmem:[%s10515 + $0x10] sm:$0xf]
    %v10521 = vld [vmem:[%s10515 + $0x14] sm:$0xf]
    %v10522 = vld [vmem:[%s10515 + $0x18] sm:$0xf]
    %v10523 = vld [vmem:[%s10515 + $0x1c] sm:$0xf]
    %v10524 = vpack.c.bf16 %v10508, %v10507
    %v10525 = vpack.c.bf16 %v10510, %v10509
    %v10526 = vpack.c.bf16 %v10512, %v10511
    %v10527 = vpack.c.bf16 %v10514, %v10513
    %s10528 = scalar_lea.vmem [#allocation17], 2
    %v10529 = vld [vmem:[%s10528] sm:$0x1]
    %v10531 = vlaneseq
    %v10532 = vshrl.u32 %v10531, 7
    %v10533 = vsub.s32 0, %v10532
    %v10534 = vrot.slane %v10529, %v10533
    %v10544 = vunpack.c.l.b16 %v10516
    %v10545 = vunpack.c.l.b16 %v10517
    %v10546 = vunpack.c.l.b16 %v10518
    %v10547 = vunpack.c.l.b16 %v10519
    %v10548 = vunpack.c.l.b16 %v10520
    %v10549 = vunpack.c.l.b16 %v10521
    %v10550 = vunpack.c.l.b16 %v10522
    %v10551 = vunpack.c.l.b16 %v10523
    %v10552 = vpack.c.b16 %v10545, %v10544
    %v10553 = vpack.c.b16 %v10547, %v10546
    %v10554 = vpack.c.b16 %v10549, %v10548
    %v10555 = vpack.c.b16 %v10551, %v10550
    %v10561 = vsel %vm671, %v10524, 0
    %v10564 = vsel %vm671, %v10525, 0
    %v10567 = vsel %vm671, %v10526, 0
    %v10570 = vsel %vm671, %v10527, 0
    %10572 = vmatprep.subr.bf16.mxu0 0
    %10573 = vmatpush1.bf16.msra.mxu0 %v10552
    %10574 = vmatprep.subr.bf16.mxu0 0
    %10575 = vmatpush1.bf16.msra.mxu0 %v10553
    %10576 = vmatprep.subr.bf16.mxu0 0
    %10577 = vmatpush1.bf16.msra.mxu0 %v10554
    %10578 = vmatprep.subr.bf16.mxu0 0
    %10579 = vmatpush1.bf16.msra.mxu0 %v10555
    %10580 = vmatprep.subr.bf16.mxu0 0
    %10581 = vmatpush1.bf16.msra.mxu0 0
    %10582 = vmatprep.subr.bf16.mxu0 0
    %10583 = vmatpush1.bf16.msra.mxu0 0
    %10584 = vmatprep.subr.bf16.mxu0 0
    %10585 = vmatpush1.bf16.msra.mxu0 0
    %10586 = vmatprep.subr.bf16.mxu0 0
    %10587 = vmatpush1.bf16.msra.mxu0 0
    %10588 = vmatprep.subr.bf16.mxu0 0
    %10589 = vmatpush1.bf16.msra.mxu0 0
    %10590 = vmatprep.subr.bf16.mxu0 0
    %10591 = vmatpush1.bf16.msra.mxu0 0
    %10592 = vmatprep.subr.bf16.mxu0 0
    %10593 = vmatpush1.bf16.msra.mxu0 0
    %10594 = vmatprep.subr.bf16.mxu0 0
    %10595 = vmatpush1.bf16.msra.mxu0 0
    %10596 = vmatprep.subr.bf16.mxu0 0
    %10597 = vmatpush1.bf16.msra.mxu0 0
    %10598 = vmatprep.subr.bf16.mxu0 0
    %10599 = vmatpush1.bf16.msra.mxu0 0
    %10600 = vmatprep.subr.bf16.mxu0 0
    %10601 = vmatpush1.bf16.msra.mxu0 0
    %10602 = vmatprep.subr.bf16.mxu0 0
    %10603 = vmatpush1.bf16.msra.mxu0 0
    %10604 = vmatprep.mubr.bf16.mxu0 0
    %10605 = vmatmul.mubr.bf16.gmra.mrb[0].mxu0 %v10561
    %v10606 = vpop.f32.mrb[0].mxu0
    %v10607 = vadd.f32 %v10534, %v10606
    %v10608 = vpop.f32.mrb[0].mxu0
    %v10609 = vpop.f32.mrb[0].mxu0
    %v10610 = vadd.f32 %v10534, %v10609
    %v10611 = vpop.f32.mrb[0].mxu0
    %10612 = vmatprep.mubr.bf16.mxu0 0
    %10613 = vmatmul.mubr.bf16.gmra.mrb[0].mxu0 %v10564
    %v10614 = vpop.f32.mrb[0].mxu0
    %v10615 = vadd.f32 %v10534, %v10614
    %v10616 = vpop.f32.mrb[0].mxu0
    %v10617 = vpop.f32.mrb[0].mxu0
    %v10618 = vadd.f32 %v10534, %v10617
    %v10619 = vpop.f32.mrb[0].mxu0
    %10620 = vmatprep.mubr.bf16.mxu0 0
    %10621 = vmatmul.mubr.bf16.gmra.mrb[0].mxu0 %v10567
    %v10622 = vpop.f32.mrb[0].mxu0
    %v10623 = vadd.f32 %v10534, %v10622
    %v10624 = vpop.f32.mrb[0].mxu0
    %v10625 = vpop.f32.mrb[0].mxu0
    %v10626 = vadd.f32 %v10534, %v10625
    %v10627 = vpop.f32.mrb[0].mxu0
    %10628 = vmatprep.mubr.bf16.mxu0 0
    %10629 = vmatmul.mubr.bf16.gmra.mrb[0].mxu0 %v10570
    %v10630 = vpop.f32.mrb[0].mxu0
    %v10631 = vadd.f32 %v10534, %v10630
    %v10632 = vpop.f32.mrb[0].mxu0
    %v10633 = vpop.f32.mrb[0].mxu0
    %v10634 = vadd.f32 %v10534, %v10633
    %v10635 = vpop.f32.mrb[0].mxu0
    %10636 = vdwg.mxu0
    %v10637 = vmax.f32 %v10607, 0.0
    %v10638 = vmax.f32 %v10610, 0.0
    %v10639 = vmax.f32 %v10615, 0.0
    %v10640 = vmax.f32 %v10618, 0.0
    %v10641 = vmax.f32 %v10623, 0.0
    %v10642 = vmax.f32 %v10626, 0.0
    %v10643 = vmax.f32 %v10631, 0.0
    %v10644 = vmax.f32 %v10634, 0.0
    %s10645 = scalar_lea.vmem [#allocation19], 64
    %v10646 = vld [vmem:[%s10645] sm:$0xf]
    %v10647 = vld [vmem:[%s10645 + $0x4] sm:$0xf]
    %v10648 = vld [vmem:[%s10645 + $0x8] sm:$0xf]
    %v10649 = vld [vmem:[%s10645 + $0xc] sm:$0xf]
    %v10650 = vld [vmem:[%s10645 + $0x10] sm:$0xf]
    %v10651 = vld [vmem:[%s10645 + $0x14] sm:$0xf]
    %v10652 = vld [vmem:[%s10645 + $0x18] sm:$0xf]
    %v10653 = vld [vmem:[%s10645 + $0x1c] sm:$0xf]
    %v10654 = vpack.c.bf16 %v10638, %v10637
    %v10655 = vpack.c.bf16 %v10640, %v10639
    %v10656 = vpack.c.bf16 %v10642, %v10641
    %v10657 = vpack.c.bf16 %v10644, %v10643
    %s10658 = scalar_lea.vmem [#allocation20], 2
    %v10659 = vld [vmem:[%s10658] sm:$0x1]
    %v10661 = vlaneseq
    %v10662 = vshrl.u32 %v10661, 7
    %v10663 = vsub.s32 0, %v10662
    %v10664 = vrot.slane %v10659, %v10663
    %v10674 = vunpack.c.l.b16 %v10646
    %v10675 = vunpack.c.l.b16 %v10647
    %v10676 = vunpack.c.l.b16 %v10648
    %v10677 = vunpack.c.l.b16 %v10649
    %v10678 = vunpack.c.l.b16 %v10650
    %v10679 = vunpack.c.l.b16 %v10651
    %v10680 = vunpack.c.l.b16 %v10652
    %v10681 = vunpack.c.l.b16 %v10653
    %v10682 = vpack.c.b16 %v10675, %v10674
    %v10683 = vpack.c.b16 %v10677, %v10676
    %v10684 = vpack.c.b16 %v10679, %v10678
    %v10685 = vpack.c.b16 %v10681, %v10680
    %v10691 = vsel %vm671, %v10654, 0
    %v10694 = vsel %vm671, %v10655, 0
    %v10697 = vsel %vm671, %v10656, 0
    %v10700 = vsel %vm671, %v10657, 0
    %10702 = vmatprep.subr.bf16.mxu0 0
    %10703 = vmatpush1.bf16.msra.mxu0 %v10682
    %10704 = vmatprep.subr.bf16.mxu0 0
    %10705 = vmatpush1.bf16.msra.mxu0 %v10683
    %10706 = vmatprep.subr.bf16.mxu0 0
    %10707 = vmatpush1.bf16.msra.mxu0 %v10684
    %10708 = vmatprep.subr.bf16.mxu0 0
    %10709 = vmatpush1.bf16.msra.mxu0 %v10685
    %10710 = vmatprep.subr.bf16.mxu0 0
    %10711 = vmatpush1.bf16.msra.mxu0 0
    %10712 = vmatprep.subr.bf16.mxu0 0
    %10713 = vmatpush1.bf16.msra.mxu0 0
    %10714 = vmatprep.subr.bf16.mxu0 0
    %10715 = vmatpush1.bf16.msra.mxu0 0
    %10716 = vmatprep.subr.bf16.mxu0 0
    %10717 = vmatpush1.bf16.msra.mxu0 0
    %10718 = vmatprep.subr.bf16.mxu0 0
    %10719 = vmatpush1.bf16.msra.mxu0 0
    %10720 = vmatprep.subr.bf16.mxu0 0
    %10721 = vmatpush1.bf16.msra.mxu0 0
    %10722 = vmatprep.subr.bf16.mxu0 0
    %10723 = vmatpush1.bf16.msra.mxu0 0
    %10724 = vmatprep.subr.bf16.mxu0 0
    %10725 = vmatpush1.bf16.msra.mxu0 0
    %10726 = vmatprep.subr.bf16.mxu0 0
    %10727 = vmatpush1.bf16.msra.mxu0 0
    %10728 = vmatprep.subr.bf16.mxu0 0
    %10729 = vmatpush1.bf16.msra.mxu0 0
    %10730 = vmatprep.subr.bf16.mxu0 0
    %10731 = vmatpush1.bf16.msra.mxu0 0
    %10732 = vmatprep.subr.bf16.mxu0 0
    %10733 = vmatpush1.bf16.msra.mxu0 0
    %10734 = vmatprep.mubr.bf16.mxu0 0
    %10735 = vmatmul.mubr.bf16.gmra.mrb[0].mxu0 %v10691
    %v10736 = vpop.f32.mrb[0].mxu0
    %v10737 = vadd.f32 %v10664, %v10736
    %v10738 = vpop.f32.mrb[0].mxu0
    %v10739 = vpop.f32.mrb[0].mxu0
    %v10740 = vadd.f32 %v10664, %v10739
    %v10741 = vpop.f32.mrb[0].mxu0
    %10742 = vmatprep.mubr.bf16.mxu0 0
    %10743 = vmatmul.mubr.bf16.gmra.mrb[0].mxu0 %v10694
    %v10744 = vpop.f32.mrb[0].mxu0
    %v10745 = vadd.f32 %v10664, %v10744
    %v10746 = vpop.f32.mrb[0].mxu0
    %v10747 = vpop.f32.mrb[0].mxu0
    %v10748 = vadd.f32 %v10664, %v10747
    %v10749 = vpop.f32.mrb[0].mxu0
    %10750 = vmatprep.mubr.bf16.mxu0 0
    %10751 = vmatmul.mubr.bf16.gmra.mrb[0].mxu0 %v10697
    %v10752 = vpop.f32.mrb[0].mxu0
    %v10753 = vadd.f32 %v10664, %v10752
    %v10754 = vpop.f32.mrb[0].mxu0
    %v10755 = vpop.f32.mrb[0].mxu0
    %v10756 = vadd.f32 %v10664, %v10755
    %v10757 = vpop.f32.mrb[0].mxu0
    %10758 = vmatprep.mubr.bf16.mxu0 0
    %10759 = vmatmul.mubr.bf16.gmra.mrb[0].mxu0 %v10700
    %v10760 = vpop.f32.mrb[0].mxu0
    %v10761 = vadd.f32 %v10664, %v10760
    %v10762 = vpop.f32.mrb[0].mxu0
    %v10763 = vpop.f32.mrb[0].mxu0
    %v10764 = vadd.f32 %v10664, %v10763
    %v10765 = vpop.f32.mrb[0].mxu0
    %10766 = vdwg.mxu0
    %v10767 = vadd.f32 %v10507, %v10737
    %v10768 = vadd.f32 %v10508, %v10740
    %v10769 = vadd.f32 %v10509, %v10745
    %v10770 = vadd.f32 %v10510, %v10748
    %v10771 = vadd.f32 %v10511, %v10753
    %v10772 = vadd.f32 %v10512, %v10756
    %v10773 = vadd.f32 %v10513, %v10761
    %v10774 = vadd.f32 %v10514, %v10764
    %s10775 = scalar_lea.vmem [#allocation22], 2
    %v10776 = vld [vmem:[%s10775] sm:$0x1]
    %s10777 = scalar_lea.vmem [#allocation23], 2
    %v10778 = vld [vmem:[%s10777] sm:$0x1]
    %v10779 = vsel %vm671, %v10767, 0.0
    %10780 = vadd.xlane.f32.xlu0 %v10779
    %v10781 = vpop.xlane.xlu0 %10780
    %v10782 = vsel %vm671, %v10768, 0.0
    %10783 = vadd.xlane.f32.xlu0 %v10782
    %v10784 = vpop.xlane.xlu0 %10783
    %v10785 = vsel %vm671, %v10769, 0.0
    %10786 = vadd.xlane.f32.xlu0 %v10785
    %v10787 = vpop.xlane.xlu0 %10786
    %v10788 = vsel %vm671, %v10770, 0.0
    %10789 = vadd.xlane.f32.xlu0 %v10788
    %v10790 = vpop.xlane.xlu0 %10789
    %v10791 = vsel %vm671, %v10771, 0.0
    %10792 = vadd.xlane.f32.xlu0 %v10791
    %v10793 = vpop.xlane.xlu0 %10792
    %v10794 = vsel %vm671, %v10772, 0.0
    %10795 = vadd.xlane.f32.xlu0 %v10794
    %v10796 = vpop.xlane.xlu0 %10795
    %v10797 = vsel %vm671, %v10773, 0.0
    %10798 = vadd.xlane.f32.xlu0 %v10797
    %v10799 = vpop.xlane.xlu0 %10798
    %v10800 = vsel %vm671, %v10774, 0.0
    %10801 = vadd.xlane.f32.xlu0 %v10800
    %v10802 = vpop.xlane.xlu0 %10801
    %v10803 = vmul.f32 %v10781, %v3342
    %v10804 = vmul.f32 %v10784, %v3342
    %v10805 = vmul.f32 %v10787, %v3342
    %v10806 = vmul.f32 %v10790, %v3342
    %v10807 = vmul.f32 %v10793, %v3342
    %v10808 = vmul.f32 %v10796, %v3342
    %v10809 = vmul.f32 %v10799, %v3342
    %v10810 = vmul.f32 %v10802, %v3342
    %v10811 = vsub.f32 %v10767, %v10803
    %v10812 = vsub.f32 %v10768, %v10804
    %v10813 = vsub.f32 %v10769, %v10805
    %v10814 = vsub.f32 %v10770, %v10806
    %v10815 = vsub.f32 %v10771, %v10807
    %v10816 = vsub.f32 %v10772, %v10808
    %v10817 = vsub.f32 %v10773, %v10809
    %v10818 = vsub.f32 %v10774, %v10810
    %v10819 = vmul.f32 %v10811, %v10811
    %v10820 = vmul.f32 %v10812, %v10812
    %v10821 = vmul.f32 %v10813, %v10813
    %v10822 = vmul.f32 %v10814, %v10814
    %v10823 = vmul.f32 %v10815, %v10815
    %v10824 = vmul.f32 %v10816, %v10816
    %v10825 = vmul.f32 %v10817, %v10817
    %v10826 = vmul.f32 %v10818, %v10818
    %v10827 = vsel %vm671, %v10819, 0.0
    %10828 = vadd.xlane.f32.xlu0 %v10827
    %v10829 = vpop.xlane.xlu0 %10828
    %v10830 = vsel %vm671, %v10820, 0.0
    %10831 = vadd.xlane.f32.xlu0 %v10830
    %v10832 = vpop.xlane.xlu0 %10831
    %v10833 = vsel %vm671, %v10821, 0.0
    %10834 = vadd.xlane.f32.xlu0 %v10833
    %v10835 = vpop.xlane.xlu0 %10834
    %v10836 = vsel %vm671, %v10822, 0.0
    %10837 = vadd.xlane.f32.xlu0 %v10836
    %v10838 = vpop.xlane.xlu0 %10837
    %v10839 = vsel %vm671, %v10823, 0.0
    %10840 = vadd.xlane.f32.xlu0 %v10839
    %v10841 = vpop.xlane.xlu0 %10840
    %v10842 = vsel %vm671, %v10824, 0.0
    %10843 = vadd.xlane.f32.xlu0 %v10842
    %v10844 = vpop.xlane.xlu0 %10843
    %v10845 = vsel %vm671, %v10825, 0.0
    %10846 = vadd.xlane.f32.xlu0 %v10845
    %v10847 = vpop.xlane.xlu0 %10846
    %v10848 = vsel %vm671, %v10826, 0.0
    %10849 = vadd.xlane.f32.xlu0 %v10848
    %v10850 = vpop.xlane.xlu0 %10849
    %v10851 = vmul.f32 %v10829, %v3342
    %v10852 = vmul.f32 %v10832, %v3342
    %v10853 = vmul.f32 %v10835, %v3342
    %v10854 = vmul.f32 %v10838, %v3342
    %v10855 = vmul.f32 %v10841, %v3342
    %v10856 = vmul.f32 %v10844, %v3342
    %v10857 = vmul.f32 %v10847, %v3342
    %v10858 = vmul.f32 %v10850, %v3342
    %v10859 = vadd.f32 %v10851, 1e-05
    %v10860 = vadd.f32 %v10852, 1e-05
    %v10861 = vadd.f32 %v10853, 1e-05
    %v10862 = vadd.f32 %v10854, 1e-05
    %v10863 = vadd.f32 %v10855, 1e-05
    %v10864 = vadd.f32 %v10856, 1e-05
    %v10865 = vadd.f32 %v10857, 1e-05
    %v10866 = vadd.f32 %v10858, 1e-05
    %v10867 = vrsqrt.pop %v10859
    %v10868 = vrsqrt.pop %v10860
    %v10869 = vrsqrt.pop %v10861
    %v10870 = vrsqrt.pop %v10862
    %v10871 = vrsqrt.pop %v10863
    %v10872 = vrsqrt.pop %v10864
    %v10873 = vrsqrt.pop %v10865
    %v10874 = vrsqrt.pop %v10866
    %v10875 = vmul.f32 %v10811, %v10867
    %v10876 = vmul.f32 %v10812, %v10868
    %v10877 = vmul.f32 %v10813, %v10869
    %v10878 = vmul.f32 %v10814, %v10870
    %v10879 = vmul.f32 %v10815, %v10871
    %v10880 = vmul.f32 %v10816, %v10872
    %v10881 = vmul.f32 %v10817, %v10873
    %v10882 = vmul.f32 %v10818, %v10874
    %v10884 = vlaneseq
    %v10885 = vshrl.u32 %v10884, 7
    %v10886 = vsub.s32 0, %v10885
    %v10887 = vrot.slane %v10776, %v10886
    %v10889 = vmul.f32 %v10875, %v10887
    %v10890 = vmul.f32 %v10876, %v10887
    %v10891 = vmul.f32 %v10877, %v10887
    %v10892 = vmul.f32 %v10878, %v10887
    %v10893 = vmul.f32 %v10879, %v10887
    %v10894 = vmul.f32 %v10880, %v10887
    %v10895 = vmul.f32 %v10881, %v10887
    %v10896 = vmul.f32 %v10882, %v10887
    %v10898 = vlaneseq
    %v10899 = vshrl.u32 %v10898, 7
    %v10900 = vsub.s32 0, %v10899
    %v10901 = vrot.slane %v10778, %v10900
    %v10903 = vadd.f32 %v10889, %v10901
    %v10904 = vadd.f32 %v10890, %v10901
    %v10905 = vadd.f32 %v10891, %v10901
    %v10906 = vadd.f32 %v10892, %v10901
    %v10907 = vadd.f32 %v10893, %v10901
    %v10908 = vadd.f32 %v10894, %v10901
    %v10909 = vadd.f32 %v10895, %v10901
    %v10910 = vadd.f32 %v10896, %v10901
    %v10911 = vld [vmem:[#allocation25] sm:$0x1]
    %v10912 = vld [vmem:[#allocation26] sm:$0x1]
    %v10913 = vsel %vm671, %v10903, 0.0
    %10914 = vadd.xlane.f32.xlu0 %v10913
    %v10915 = vpop.xlane.xlu0 %10914
    %v10916 = vsel %vm671, %v10904, 0.0
    %10917 = vadd.xlane.f32.xlu0 %v10916
    %v10918 = vpop.xlane.xlu0 %10917
    %v10919 = vsel %vm671, %v10905, 0.0
    %10920 = vadd.xlane.f32.xlu0 %v10919
    %v10921 = vpop.xlane.xlu0 %10920
    %v10922 = vsel %vm671, %v10906, 0.0
    %10923 = vadd.xlane.f32.xlu0 %v10922
    %v10924 = vpop.xlane.xlu0 %10923
    %v10925 = vsel %vm671, %v10907, 0.0
    %10926 = vadd.xlane.f32.xlu0 %v10925
    %v10927 = vpop.xlane.xlu0 %10926
    %v10928 = vsel %vm671, %v10908, 0.0
    %10929 = vadd.xlane.f32.xlu0 %v10928
    %v10930 = vpop.xlane.xlu0 %10929
    %v10931 = vsel %vm671, %v10909, 0.0
    %10932 = vadd.xlane.f32.xlu0 %v10931
    %v10933 = vpop.xlane.xlu0 %10932
    %v10934 = vsel %vm671, %v10910, 0.0
    %10935 = vadd.xlane.f32.xlu0 %v10934
    %v10936 = vpop.xlane.xlu0 %10935
    %v10937 = vmul.f32 %v10915, %v3342
    %v10938 = vmul.f32 %v10918, %v3342
    %v10939 = vmul.f32 %v10921, %v3342
    %v10940 = vmul.f32 %v10924, %v3342
    %v10941 = vmul.f32 %v10927, %v3342
    %v10942 = vmul.f32 %v10930, %v3342
    %v10943 = vmul.f32 %v10933, %v3342
    %v10944 = vmul.f32 %v10936, %v3342
    %v10945 = vsub.f32 %v10903, %v10937
    %v10946 = vsub.f32 %v10904, %v10938
    %v10947 = vsub.f32 %v10905, %v10939
    %v10948 = vsub.f32 %v10906, %v10940
    %v10949 = vsub.f32 %v10907, %v10941
    %v10950 = vsub.f32 %v10908, %v10942
    %v10951 = vsub.f32 %v10909, %v10943
    %v10952 = vsub.f32 %v10910, %v10944
    %v10953 = vmul.f32 %v10945, %v10945
    %v10954 = vmul.f32 %v10946, %v10946
    %v10955 = vmul.f32 %v10947, %v10947
    %v10956 = vmul.f32 %v10948, %v10948
    %v10957 = vmul.f32 %v10949, %v10949
    %v10958 = vmul.f32 %v10950, %v10950
    %v10959 = vmul.f32 %v10951, %v10951
    %v10960 = vmul.f32 %v10952, %v10952
    %v10961 = vsel %vm671, %v10953, 0.0
    %10962 = vadd.xlane.f32.xlu0 %v10961
    %v10963 = vpop.xlane.xlu0 %10962
    %v10964 = vsel %vm671, %v10954, 0.0
    %10965 = vadd.xlane.f32.xlu0 %v10964
    %v10966 = vpop.xlane.xlu0 %10965
    %v10967 = vsel %vm671, %v10955, 0.0
    %10968 = vadd.xlane.f32.xlu0 %v10967
    %v10969 = vpop.xlane.xlu0 %10968
    %v10970 = vsel %vm671, %v10956, 0.0
    %10971 = vadd.xlane.f32.xlu0 %v10970
    %v10972 = vpop.xlane.xlu0 %10971
    %v10973 = vsel %vm671, %v10957, 0.0
    %10974 = vadd.xlane.f32.xlu0 %v10973
    %v10975 = vpop.xlane.xlu0 %10974
    %v10976 = vsel %vm671, %v10958, 0.0
    %10977 = vadd.xlane.f32.xlu0 %v10976
    %v10978 = vpop.xlane.xlu0 %10977
    %v10979 = vsel %vm671, %v10959, 0.0
    %10980 = vadd.xlane.f32.xlu0 %v10979
    %v10981 = vpop.xlane.xlu0 %10980
    %v10982 = vsel %vm671, %v10960, 0.0
    %10983 = vadd.xlane.f32.xlu0 %v10982
    %v10984 = vpop.xlane.xlu0 %10983
    %v10985 = vmul.f32 %v10963, %v3342
    %v10986 = vmul.f32 %v10966, %v3342
    %v10987 = vmul.f32 %v10969, %v3342
    %v10988 = vmul.f32 %v10972, %v3342
    %v10989 = vmul.f32 %v10975, %v3342
    %v10990 = vmul.f32 %v10978, %v3342
    %v10991 = vmul.f32 %v10981, %v3342
    %v10992 = vmul.f32 %v10984, %v3342
    %v10993 = vadd.f32 %v10985, 1e-05
    %v10994 = vadd.f32 %v10986, 1e-05
    %v10995 = vadd.f32 %v10987, 1e-05
    %v10996 = vadd.f32 %v10988, 1e-05
    %v10997 = vadd.f32 %v10989, 1e-05
    %v10998 = vadd.f32 %v10990, 1e-05
    %v10999 = vadd.f32 %v10991, 1e-05
    %v11000 = vadd.f32 %v10992, 1e-05
    %v11001 = vrsqrt.pop %v10993
    %v11002 = vrsqrt.pop %v10994
    %v11003 = vrsqrt.pop %v10995
    %v11004 = vrsqrt.pop %v10996
    %v11005 = vrsqrt.pop %v10997
    %v11006 = vrsqrt.pop %v10998
    %v11007 = vrsqrt.pop %v10999
    %v11008 = vrsqrt.pop %v11000
    %v11009 = vmul.f32 %v10945, %v11001
    %v11010 = vmul.f32 %v10946, %v11002
    %v11011 = vmul.f32 %v10947, %v11003
    %v11012 = vmul.f32 %v10948, %v11004
    %v11013 = vmul.f32 %v10949, %v11005
    %v11014 = vmul.f32 %v10950, %v11006
    %v11015 = vmul.f32 %v10951, %v11007
    %v11016 = vmul.f32 %v10952, %v11008
    %v11018 = vlaneseq
    %v11019 = vshrl.u32 %v11018, 7
    %v11020 = vsub.s32 0, %v11019
    %v11021 = vrot.slane %v10911, %v11020
    %v11023 = vmul.f32 %v11009, %v11021
    %v11024 = vmul.f32 %v11010, %v11021
    %v11025 = vmul.f32 %v11011, %v11021
    %v11026 = vmul.f32 %v11012, %v11021
    %v11027 = vmul.f32 %v11013, %v11021
    %v11028 = vmul.f32 %v11014, %v11021
    %v11029 = vmul.f32 %v11015, %v11021
    %v11030 = vmul.f32 %v11016, %v11021
    %v11032 = vlaneseq
    %v11033 = vshrl.u32 %v11032, 7
    %v11034 = vsub.s32 0, %v11033
    %v11035 = vrot.slane %v10912, %v11034
    %v11037 = vadd.f32 %v11023, %v11035
    %v11038 = vadd.f32 %v11024, %v11035
    %v11039 = vadd.f32 %v11025, %v11035
    %v11040 = vadd.f32 %v11026, %v11035
    %v11041 = vadd.f32 %v11027, %v11035
    %v11042 = vadd.f32 %v11028, %v11035
    %v11043 = vadd.f32 %v11029, %v11035
    %v11044 = vadd.f32 %v11030, %v11035
    %v11045 = vld [vmem:[#allocation28] sm:$0xf]
    %v11046 = vld [vmem:[#allocation28 + $0x4] sm:$0xf]
    %v11047 = vld [vmem:[#allocation28 + $0x8] sm:$0xf]
    %v11048 = vld [vmem:[#allocation28 + $0xc] sm:$0xf]
    %v11049 = vld [vmem:[#allocation28 + $0x10] sm:$0xf]
    %v11050 = vld [vmem:[#allocation28 + $0x14] sm:$0xf]
    %v11051 = vld [vmem:[#allocation28 + $0x18] sm:$0xf]
    %v11052 = vld [vmem:[#allocation28 + $0x1c] sm:$0xf]
    %v11053 = vpack.c.bf16 %v11038, %v11037
    %v11054 = vpack.c.bf16 %v11040, %v11039
    %v11055 = vpack.c.bf16 %v11042, %v11041
    %v11056 = vpack.c.bf16 %v11044, %v11043
    %v11057 = vld [vmem:[#allocation29] sm:$0x1]
    %v11059 = vlaneseq
    %v11060 = vshrl.u32 %v11059, 7
    %v11061 = vsub.s32 0, %v11060
    %v11062 = vrot.slane %v11057, %v11061
    %v11072 = vunpack.c.l.b16 %v11045
    %v11073 = vunpack.c.l.b16 %v11046
    %v11074 = vunpack.c.l.b16 %v11047
    %v11075 = vunpack.c.l.b16 %v11048
    %v11076 = vunpack.c.l.b16 %v11049
    %v11077 = vunpack.c.l.b16 %v11050
    %v11078 = vunpack.c.l.b16 %v11051
    %v11079 = vunpack.c.l.b16 %v11052
    %v11080 = vpack.c.b16 %v11073, %v11072
    %v11081 = vpack.c.b16 %v11075, %v11074
    %v11082 = vpack.c.b16 %v11077, %v11076
    %v11083 = vpack.c.b16 %v11079, %v11078
    %v11089 = vsel %vm671, %v11053, 0
    %v11092 = vsel %vm671, %v11054, 0
    %v11095 = vsel %vm671, %v11055, 0
    %v11098 = vsel %vm671, %v11056, 0
    %11100 = vmatprep.subr.bf16.mxu0 0
    %11101 = vmatpush1.bf16.msra.mxu0 %v11080
    %11102 = vmatprep.subr.bf16.mxu0 0
    %11103 = vmatpush1.bf16.msra.mxu0 %v11081
    %11104 = vmatprep.subr.bf16.mxu0 0
    %11105 = vmatpush1.bf16.msra.mxu0 %v11082
    %11106 = vmatprep.subr.bf16.mxu0 0
    %11107 = vmatpush1.bf16.msra.mxu0 %v11083
    %11108 = vmatprep.subr.bf16.mxu0 0
    %11109 = vmatpush1.bf16.msra.mxu0 0
    %11110 = vmatprep.subr.bf16.mxu0 0
    %11111 = vmatpush1.bf16.msra.mxu0 0
    %11112 = vmatprep.subr.bf16.mxu0 0
    %11113 = vmatpush1.bf16.msra.mxu0 0
    %11114 = vmatprep.subr.bf16.mxu0 0
    %11115 = vmatpush1.bf16.msra.mxu0 0
    %11116 = vmatprep.subr.bf16.mxu0 0
    %11117 = vmatpush1.bf16.msra.mxu0 0
    %11118 = vmatprep.subr.bf16.mxu0 0
    %11119 = vmatpush1.bf16.msra.mxu0 0
    %11120 = vmatprep.subr.bf16.mxu0 0
    %11121 = vmatpush1.bf16.msra.mxu0 0
    %11122 = vmatprep.subr.bf16.mxu0 0
    %11123 = vmatpush1.bf16.msra.mxu0 0
    %11124 = vmatprep.subr.bf16.mxu0 0
    %11125 = vmatpush1.bf16.msra.mxu0 0
    %11126 = vmatprep.subr.bf16.mxu0 0
    %11127 = vmatpush1.bf16.msra.mxu0 0
    %11128 = vmatprep.subr.bf16.mxu0 0
    %11129 = vmatpush1.bf16.msra.mxu0 0
    %11130 = vmatprep.subr.bf16.mxu0 0
    %11131 = vmatpush1.bf16.msra.mxu0 0
    %11132 = vmatprep.mubr.bf16.mxu0 0
    %11133 = vmatmul.mubr.bf16.gmra.mrb[0].mxu0 %v11089
    %v11134 = vpop.f32.mrb[0].mxu0
    %v11135 = vadd.f32 %v11062, %v11134
    %v11136 = vpop.f32.mrb[0].mxu0
    %v11137 = vpop.f32.mrb[0].mxu0
    %v11138 = vadd.f32 %v11062, %v11137
    %v11139 = vpop.f32.mrb[0].mxu0
    %11140 = vmatprep.mubr.bf16.mxu0 0
    %11141 = vmatmul.mubr.bf16.gmra.mrb[0].mxu0 %v11092
    %v11142 = vpop.f32.mrb[0].mxu0
    %v11143 = vadd.f32 %v11062, %v11142
    %v11144 = vpop.f32.mrb[0].mxu0
    %v11145 = vpop.f32.mrb[0].mxu0
    %v11146 = vadd.f32 %v11062, %v11145
    %v11147 = vpop.f32.mrb[0].mxu0
    %11148 = vmatprep.mubr.bf16.mxu0 0
    %11149 = vmatmul.mubr.bf16.gmra.mrb[0].mxu0 %v11095
    %v11150 = vpop.f32.mrb[0].mxu0
    %v11151 = vadd.f32 %v11062, %v11150
    %v11152 = vpop.f32.mrb[0].mxu0
    %v11153 = vpop.f32.mrb[0].mxu0
    %v11154 = vadd.f32 %v11062, %v11153
    %v11155 = vpop.f32.mrb[0].mxu0
    %11156 = vmatprep.mubr.bf16.mxu0 0
    %11157 = vmatmul.mubr.bf16.gmra.mrb[0].mxu0 %v11098
    %v11158 = vpop.f32.mrb[0].mxu0
    %v11159 = vadd.f32 %v11062, %v11158
    %v11160 = vpop.f32.mrb[0].mxu0
    %v11161 = vpop.f32.mrb[0].mxu0
    %v11162 = vadd.f32 %v11062, %v11161
    %v11163 = vpop.f32.mrb[0].mxu0
    %11164 = vdwg.mxu0
    %v11165 = vpack.c.bf16 %v11138, %v11135
    %v11166 = vpack.c.bf16 %v11146, %v11143
    %v11167 = vpack.c.bf16 %v11154, %v11151
    %v11168 = vpack.c.bf16 %v11162, %v11159
    %v11173 = vunpack.c.l.b16 %v11165
    %v11174 = vunpack.c.h.b16 %v11165
    %v11175 = vunpack.c.l.b16 %v11166
    %v11176 = vunpack.c.h.b16 %v11166
    %v11177 = vunpack.c.l.b16 %v11167
    %v11178 = vunpack.c.h.b16 %v11167
    %v11179 = vunpack.c.l.b16 %v11168
    %v11180 = vunpack.c.h.b16 %v11168
    %v11181 = vpack.c.b16 %v11173, %v11173
    %v11182 = vpack.c.b16 %v11174, %v11174
    %v11183 = vpack.c.b16 %v11175, %v11175
    %v11184 = vpack.c.b16 %v11176, %v11176
    %v11185 = vpack.c.b16 %v11177, %v11177
    %v11186 = vpack.c.b16 %v11178, %v11178
    %v11187 = vpack.c.b16 %v11179, %v11179
    %v11188 = vpack.c.b16 %v11180, %v11180
    %11197 = vst [vmem:[#allocation31] sm:$0xf] %v11181
    %11198 = vst [vmem:[#allocation31 + $0x4] sm:$0xf] %v11182
    %11199 = vst [vmem:[#allocation31 + $0x8] sm:$0xf] %v11183
    %11200 = vst [vmem:[#allocation31 + $0xc] sm:$0xf] %v11184
    %11201 = vst [vmem:[#allocation31 + $0x10] sm:$0xf] %v11185
    %11202 = vst [vmem:[#allocation31 + $0x14] sm:$0xf] %v11186
    %11203 = vst [vmem:[#allocation31 + $0x18] sm:$0xf] %v11187
    %11204 = vst [vmem:[#allocation31 + $0x1c] sm:$0xf] %v11188
    // Predicated region
    $region146: #{tpu_custom_call.1} parent=1 // pred_check
      _
    $region147: #{tpu_custom_call.1} parent=1 // pred_check_branch
      %11206 = sbr.rel (0) target = $region149
    $region148: #{tpu_custom_call.1} parent=1 // pred_region
      %s11208 = ssub.s32 512, 512
      %11209 = vsyncadd [#allocation4], %s11208
      %s11210 = sshll.u32 [#allocation31], 4
      %s11211 = int_to_ptr.vmem [resolvable:$true] %s11210
      %11216 = dma.vmem_to_hbm [thread:$0]  %s11211, 512, %s18, [#allocation4], 64, 64, 4
    $region149: #{tpu_custom_call.1} parent=1 // pred_fallthru
      _
    // Predicated region
    $region150: #{tpu_custom_call.1} parent=1 // pred_check
      _
    $region151: #{tpu_custom_call.1} parent=1 // pred_check_branch
      %11218 = sbr.rel (0) target = $region153
    $region152: #{tpu_custom_call.1} parent=1 // pred_region
      %11219 = dma.done [#allocation4], 512
    $region153: #{tpu_custom_call.1} parent=1 // pred_fallthru
      _
    %11220 = vsyncpa [#allocation3], 1
    %11221 = vsyncpa [#allocation6], 1
    %11222 = vsyncpa [#allocation9], 1
    %11223 = vsyncpa [#allocation12], 1
    %11224 = vsyncpa [#allocation15], 1
    %11225 = vsyncpa [#allocation18], 1
    %11226 = vsyncpa [#allocation21], 1
    %11227 = vsyncpa [#allocation24], 1
    %11228 = vsyncpa [#allocation27], 1
    %11229 = vsyncpa [#allocation30], 1
    %11230 = vsyncpa [#allocation4], 1

</llo_original>
